<compile_context>
chip_gen: v5e
topology: v5e:2x2
jax: 0.10.0
libtpu: 0.0.40
codegen_flags: <defaults>
</compile_context>

<pallas_src>
import functools

import jax
import jax.numpy as jnp
from jax.experimental import pallas as pl
from jax.experimental.pallas import tpu as pltpu


def _round_up(v, m):
    return (v + m - 1) // m * m


# ----------------------------------------------------------------------------
# Pallas kernels
# ----------------------------------------------------------------------------
def _mm_affine_kernel(x_ref, w_ref, scale_ref, shift_ref, o_ref, acc_ref, *, relu):
    """One (tm, tn) output tile: accumulate bf16 matmuls over the K grid axis
    into an f32 VMEM scratch, then apply the folded-BN affine (+ReLU)."""
    @pl.when(pl.program_id(2) == 0)
    def _():
        acc_ref[...] = jnp.zeros_like(acc_ref)

    acc_ref[...] += jnp.dot(x_ref[...], w_ref[...],
                            preferred_element_type=jnp.float32)

    @pl.when(pl.program_id(2) == pl.num_programs(2) - 1)
    def _():
        y = acc_ref[...] * scale_ref[...] + shift_ref[...]
        if relu:
            y = jnp.maximum(y, 0.0)
        o_ref[...] = y.astype(o_ref.dtype)


def _mm_affine_res_kernel(x_ref, w_ref, scale_ref, shift_ref, res_ref, o_ref,
                          acc_ref):
    """Same as above, plus a per-tile-streamed residual add before the ReLU
    (bottleneck conv3 + bn3 + skip + relu3, fused)."""
    @pl.when(pl.program_id(2) == 0)
    def _():
        acc_ref[...] = jnp.zeros_like(acc_ref)

    acc_ref[...] += jnp.dot(x_ref[...], w_ref[...],
                            preferred_element_type=jnp.float32)

    @pl.when(pl.program_id(2) == pl.num_programs(2) - 1)
    def _():
        y = (acc_ref[...] * scale_ref[...] + shift_ref[...]
             + res_ref[...].astype(jnp.float32))
        o_ref[...] = jnp.maximum(y, 0.0).astype(o_ref.dtype)


def _attn_pool_kernel(q_ref, k_ref, v_ref, o_ref, *, heads, dh, scale):
    """One batch element per grid step; all heads computed inside (static
    unrolled loop), output written as a single lane-dense (1, E) block."""
    q = q_ref[0].astype(jnp.float32)      # (1, E)
    k = k_ref[0].astype(jnp.float32)      # (L, E)
    v = v_ref[0].astype(jnp.float32)      # (L, E)
    for h in range(heads):
        lo, hi = h * dh, (h + 1) * dh
        s = jax.lax.dot_general(q[:, lo:hi], k[:, lo:hi],
                                (((1,), (1,)), ((), ())),
                                preferred_element_type=jnp.float32) * scale  # (1, L)
        s = s - jnp.max(s, axis=-1, keepdims=True)
        p = jnp.exp(s)
        p = p * pl.reciprocal(jnp.sum(p, axis=-1, keepdims=True), approx=True)
        oh = jnp.dot(p, v[:, lo:hi], preferred_element_type=jnp.float32)     # (1, dh)
        o_ref[0, :, lo:hi] = oh.astype(o_ref.dtype)


# ----------------------------------------------------------------------------
# Pallas wrappers
# ----------------------------------------------------------------------------
def mm_affine(x, w, scale, shift, *, relu=False, residual=None,
              out_dtype=jnp.bfloat16, tm=256, tn=256, tk=512):
    """y = (x @ w) * scale + shift (+ residual) (+ relu), tiled Pallas matmul.

    bf16 operands, f32 accumulation, epilogue (BN affine / residual / ReLU) in
    f32 on the last K step.  Inputs are zero-padded to tile multiples (tiles
    collapse to the full padded dim for small shapes, keeping (8,128)-legal
    blocks) and the result is sliced back.
    """
    M, K = x.shape
    N = w.shape[1]

    tm = min(tm, _round_up(M, 8))
    tk = min(tk, _round_up(K, 128))
    tn = min(tn, _round_up(N, 128))
    Mp, Kp, Np = _round_up(M, tm), _round_up(K, tk), _round_up(N, tn)

    xb = x.astype(jnp.bfloat16)
    wb = w.astype(jnp.bfloat16)
    if (Mp, Kp) != (M, K):
        xb = jnp.pad(xb, ((0, Mp - M), (0, Kp - K)))
    if (Kp, Np) != (K, N):
        wb = jnp.pad(wb, ((0, Kp - K), (0, Np - N)))
    scale_p = jnp.pad(scale.reshape(1, N).astype(jnp.float32),
                      ((0, 0), (0, Np - N)))
    shift_p = jnp.pad(shift.reshape(1, N).astype(jnp.float32),
                      ((0, 0), (0, Np - N)))

    grid = (Mp // tm, Np // tn, Kp // tk)

    x_spec = pl.BlockSpec((tm, tk), lambda i, j, k: (i, k))
    w_spec = pl.BlockSpec((tk, tn), lambda i, j, k: (k, j))
    sc_spec = pl.BlockSpec((1, tn), lambda i, j, k: (0, j))
    o_spec = pl.BlockSpec((tm, tn), lambda i, j, k: (i, j))

    if residual is None:
        kern = functools.partial(_mm_affine_kernel, relu=relu)
        in_specs = [x_spec, w_spec, sc_spec, sc_spec]
        args = (xb, wb, scale_p, shift_p)
    else:
        rb = residual.astype(jnp.bfloat16)
        if (Mp, Np) != (M, N):
            rb = jnp.pad(rb, ((0, Mp - M), (0, Np - N)))
        kern = _mm_affine_res_kernel
        in_specs = [x_spec, w_spec, sc_spec, sc_spec, o_spec]
        args = (xb, wb, scale_p, shift_p, rb)

    y = pl.pallas_call(
        kern,
        out_shape=jax.ShapeDtypeStruct((Mp, Np), out_dtype),
        grid=grid,
        in_specs=in_specs,
        out_specs=o_spec,
        scratch_shapes=[pltpu.VMEM((tm, tn), jnp.float32)],
        compiler_params=pltpu.CompilerParams(
            dimension_semantics=("parallel", "parallel", "arbitrary"),
            vmem_limit_bytes=32 * 1024 * 1024),
    )(*args)
    if (Mp, Np) != (M, N):
        y = y[:M, :N]
    return y


def avg_pool(x, k):
    """AvgPool2d(k) on NHWC (spatial dims divisible by k here)."""
    if k == 1:
        return x
    n, h, w, c = x.shape
    return (x.reshape(n, h // k, k, w // k, k, c)
            .astype(jnp.float32).mean(axis=(2, 4)).astype(x.dtype))


def conv2d_bn(x, w, scale, shift, *, stride=1, padding=0, relu=False,
              residual=None, out_dtype=jnp.bfloat16):
    """Conv2d(bias=False) + BN affine (+residual, +relu) via bf16 im2col +
    tiled Pallas matmul.

    x: NHWC activations.  w: PyTorch conv weight (Cout, Cin, kh, kw).
    """
    x = x.astype(jnp.bfloat16)
    n, h, wd, c = x.shape
    cout, cin, kh, kw = w.shape
    if kh == 1 and kw == 1 and stride == 1 and padding == 0:
        ho, wo = h, wd
        xc = x.reshape(n * h * wd, c)
        wm = w.reshape(cout, cin).T                       # (Cin, Cout)
    else:
        xp = jnp.pad(x, ((0, 0), (padding, padding), (padding, padding), (0, 0)))
        ho = (h + 2 * padding - kh) // stride + 1
        wo = (wd + 2 * padding - kw) // stride + 1
        cols = []
        for dy in range(kh):
            for dx in range(kw):
                cols.append(xp[:, dy:dy + stride * ho:stride,
                               dx:dx + stride * wo:stride, :])
        patches = jnp.stack(cols, axis=3)                 # (N, Ho, Wo, kh*kw, C) bf16
        xc = patches.reshape(n * ho * wo, kh * kw * c)
        wm = jnp.transpose(w, (2, 3, 1, 0)).reshape(kh * kw * cin, cout)

    res = None
    if residual is not None:
        res = residual.reshape(n * ho * wo, cout)
    y = mm_affine(xc, wm, scale, shift, relu=relu, residual=res,
                  out_dtype=out_dtype)
    return y.reshape(n, ho, wo, cout)


# ----------------------------------------------------------------------------
# Model pieces
# ----------------------------------------------------------------------------
def stem(x, p):
    x = conv2d_bn(x, p['conv1_w'], p['bn1_s'], p['bn1_b'],
                  stride=2, padding=1, relu=True)
    x = conv2d_bn(x, p['conv2_w'], p['bn2_s'], p['bn2_b'],
                  stride=1, padding=1, relu=True)
    x = conv2d_bn(x, p['conv3_w'], p['bn3_s'], p['bn3_b'],
                  stride=1, padding=1, relu=True)
    return avg_pool(x, 2)


def bottleneck(x, p):
    stride = p['stride']
    out = conv2d_bn(x, p['conv1_w'], p['bn1_s'], p['bn1_b'], relu=True)
    out = conv2d_bn(out, p['conv2_w'], p['bn2_s'], p['bn2_b'],
                    stride=1, padding=1, relu=True)
    if stride > 1:
        out = avg_pool(out, stride)
    if 'ds_conv_w' in p:
        idt = avg_pool(x, stride)
        idt = conv2d_bn(idt, p['ds_conv_w'], p['ds_bn_s'], p['ds_bn_b'])
    else:
        idt = x
    # conv3 + bn3 + residual add + relu3, fused in one Pallas kernel
    return conv2d_bn(out, p['conv3_w'], p['bn3_s'], p['bn3_b'], residual=idt)


def attn_pool(x, p, num_heads):
    n, h, w, e = x.shape
    tokens = x.astype(jnp.float32).reshape(n, h * w, e).transpose(1, 0, 2)  # (HW, N, E)
    tokens = jnp.concatenate([tokens.mean(axis=0, keepdims=True), tokens], axis=0)
    tokens = tokens + p['pos_emb'][:, None, :]
    L = tokens.shape[0]

    # Fused q/k/v projection: one (L*N, E) @ (E, 3E) tiled Pallas matmul.
    w_qkv = jnp.concatenate([p['q_w'].T, p['k_w'].T, p['v_w'].T], axis=1)   # (E, 3E)
    b_qkv = jnp.concatenate([p['q_b'], p['k_b'], p['v_b']])
    ones3 = jnp.ones((3 * e,), jnp.float32)
    qkv = mm_affine(tokens.reshape(L * n, e), w_qkv, ones3, b_qkv,
                    out_dtype=jnp.bfloat16)
    qkv = qkv.reshape(L, n, 3 * e)

    q = qkv[0, :, :e].reshape(n, 1, e)                 # query = mean token only
    k = qkv[:, :, e:2 * e].transpose(1, 0, 2)          # (N, L, E)
    v = qkv[:, :, 2 * e:].transpose(1, 0, 2)           # (N, L, E)

    dh = e // num_heads
    o = pl.pallas_call(
        functools.partial(_attn_pool_kernel, heads=num_heads, dh=dh,
                          scale=float(dh) ** -0.5),
        out_shape=jax.ShapeDtypeStruct((n, 1, e), jnp.float32),
        grid=(n,),
        in_specs=[pl.BlockSpec((1, 1, e), lambda b: (b, 0, 0)),
                  pl.BlockSpec((1, L, e), lambda b: (b, 0, 0)),
                  pl.BlockSpec((1, L, e), lambda b: (b, 0, 0))],
        out_specs=pl.BlockSpec((1, 1, e), lambda b: (b, 0, 0)),
        compiler_params=pltpu.CompilerParams(dimension_semantics=("parallel",)),
    )(q, k, v)

    o = o.reshape(n, e)                                 # concat heads
    out_dim = p['c_w'].shape[0]
    return mm_affine(o, p['c_w'].T, jnp.ones((out_dim,), jnp.float32), p['c_b'],
                     out_dtype=jnp.float32)


def modified_resnet_forward(x_nchw, params):
    """x_nchw: (N, 3, H, W) like PyTorch; returns (N, output_dim)."""
    x = jnp.transpose(x_nchw, (0, 2, 3, 1)).astype(jnp.float32)  # NCHW -> NHWC
    x = stem(x, params)
    for blocks in params['layers']:
        for bp in blocks:
            x = bottleneck(x, bp)
    return attn_pool(x, params['attnpool'], params['heads'])


# ----------------------------------------------------------------------------
# Deterministic parameter init (shapes follow ModifiedResNet.__init__)
# ----------------------------------------------------------------------------
def _normal(key, shape, std):
    return std * jax.random.normal(key, shape, jnp.float32)


def _bn_params(key, c, eps=1e-5):
    k1, k2 = jax.random.split(key)
    gamma = 1.0 + _normal(k1, (c,), 0.1)
    beta = _normal(k2, (c,), 0.1)
    running_mean = jnp.zeros((c,), jnp.float32)
    running_var = jnp.ones((c,), jnp.float32)
    scale = gamma / jnp.sqrt(running_var + eps)
    shift = beta - running_mean * scale
    return scale, shift


def _bottleneck_params(key, inplanes, planes, stride):
    keys = jax.random.split(key, 8)
    exp = 4
    p = {'stride': stride}
    p['conv1_w'] = _normal(keys[0], (planes, inplanes, 1, 1), (2.0 / inplanes) ** 0.5)
    p['bn1_s'], p['bn1_b'] = _bn_params(keys[1], planes)
    p['conv2_w'] = _normal(keys[2], (planes, planes, 3, 3), (2.0 / (9 * planes)) ** 0.5)
    p['bn2_s'], p['bn2_b'] = _bn_params(keys[3], planes)
    p['conv3_w'] = _normal(keys[4], (planes * exp, planes, 1, 1), (2.0 / planes) ** 0.5)
    p['bn3_s'], p['bn3_b'] = _bn_params(keys[5], planes * exp)
    if stride > 1 or inplanes != planes * exp:
        p['ds_conv_w'] = _normal(keys[6], (planes * exp, inplanes, 1, 1),
                                 (2.0 / inplanes) ** 0.5)
        p['ds_bn_s'], p['ds_bn_b'] = _bn_params(keys[7], planes * exp)
    return p


def init_params(key, layers, output_dim, heads, input_resolution, width):
    keys = jax.random.split(key, 8)
    p = {'heads': heads}
    w2 = width // 2
    p['conv1_w'] = _normal(keys[0], (w2, 3, 3, 3), (2.0 / (9 * 3)) ** 0.5)
    p['bn1_s'], p['bn1_b'] = _bn_params(keys[1], w2)
    p['conv2_w'] = _normal(keys[2], (w2, w2, 3, 3), (2.0 / (9 * w2)) ** 0.5)
    p['bn2_s'], p['bn2_b'] = _bn_params(keys[3], w2)
    p['conv3_w'] = _normal(keys[4], (width, w2, 3, 3), (2.0 / (9 * w2)) ** 0.5)
    p['bn3_s'], p['bn3_b'] = _bn_params(keys[5], width)

    inplanes = width
    widths = (width, width * 2, width * 4, width * 8)
    strides = (1, 2, 2, 2)
    lkeys = jax.random.split(keys[6], 4)
    all_blocks = []
    for li in range(4):
        planes, stride = widths[li], strides[li]
        bkeys = jax.random.split(lkeys[li], layers[li])
        blocks = [_bottleneck_params(bkeys[0], inplanes, planes, stride)]
        inplanes = planes * 4
        for bi in range(1, layers[li]):
            blocks.append(_bottleneck_params(bkeys[bi], inplanes, planes, 1))
        all_blocks.append(blocks)
    p['layers'] = all_blocks

    embed_dim = width * 32
    spacial = input_resolution // 32
    ak = jax.random.split(keys[7], 9)
    p['attnpool'] = {
        'pos_emb': _normal(ak[0], (spacial * spacial + 1, embed_dim), embed_dim ** -0.5),
        'q_w': _normal(ak[1], (embed_dim, embed_dim), embed_dim ** -0.5),
        'q_b': _normal(ak[2], (embed_dim,), 0.02),
        'k_w': _normal(ak[3], (embed_dim, embed_dim), embed_dim ** -0.5),
        'k_b': _normal(ak[4], (embed_dim,), 0.02),
        'v_w': _normal(ak[5], (embed_dim, embed_dim), embed_dim ** -0.5),
        'v_b': _normal(ak[6], (embed_dim,), 0.02),
        'c_w': _normal(ak[7], (output_dim, embed_dim), embed_dim ** -0.5),
        'c_b': _normal(ak[8], (embed_dim if output_dim is None else output_dim,), 0.02),
    }
    return p


# ----------------------------------------------------------------------------
if __name__ == "__main__":
    key = jax.random.PRNGKey(0)
    kparams, kx = jax.random.split(key)

    # Small but structurally faithful config: width=8 -> embed_dim=256,
    # input_resolution=32 -> final feature map 1x1 (resolution / 32).
    layers = (1, 1, 1, 1)
    output_dim = 32
    heads = 4
    input_resolution = 32
    width = 8

    params = init_params(kparams, layers, output_dim, heads, input_resolution, width)
    x = jax.random.normal(kx, (2, 3, input_resolution, input_resolution), jnp.float32)

    # Close over params so Python ints (stride/heads) stay static under jit.
    fwd = jax.jit(lambda inp: modified_resnet_forward(inp, params))
    out = fwd(x)
    out = jax.block_until_ready(out)

    assert out.shape == (2, output_dim), out.shape
    assert bool(jnp.all(jnp.isfinite(out)))
    print("KERNEL_OK")
</pallas_src>

<mosaic_0001>
module attributes {stable_mosaic.version = 11 : i64} {
  func.func @_mm_affine_kernel(%arg0: i32, %arg1: i32, %arg2: i32, %arg3: memref<256x128xbf16, #tpu.memory_space<vmem>>, %arg4: memref<128x128xbf16, #tpu.memory_space<vmem>>, %arg5: memref<1x128xf32, #tpu.memory_space<vmem>>, %arg6: memref<1x128xf32, #tpu.memory_space<vmem>>, %arg7: memref<256x128xbf16, #tpu.memory_space<vmem>>, %arg8: memref<256x128xf32, #tpu.memory_space<vmem>>) attributes {dimension_semantics = [#tpu.dimension_semantics<parallel>, #tpu.dimension_semantics<parallel>, #tpu.dimension_semantics<arbitrary>], iteration_bounds = array<i64: 2, 1, 1>, scalar_prefetch = 0 : i64, scratch_operands = 1 : i64, tpu.core_type = #tpu.core_type<tc>, window_params = [{transform_indices = @transform_0, window_bounds = array<i64: 256, 128>}, {transform_indices = @transform_1, window_bounds = array<i64: 128, 128>}, {transform_indices = @transform_2, window_bounds = array<i64: 1, 128>}, {transform_indices = @transform_3, window_bounds = array<i64: 1, 128>}, {transform_indices = @transform_4, window_bounds = array<i64: 256, 128>}]} {
    %c0_i32 = arith.constant 0 : i32
    %0 = arith.cmpi eq, %arg2, %c0_i32 : i32
    %1 = arith.extui %0 : i1 to i32
    %c0_i32_0 = arith.constant 0 : i32
    %2 = arith.cmpi ne, %1, %c0_i32_0 : i32
    scf.if %2 {
      %cst_10 = arith.constant 0.000000e+00 : f32
      %12 = vector.broadcast %cst_10 : f32 to vector<256x128xf32>
      %c0_11 = arith.constant 0 : index
      %c0_12 = arith.constant 0 : index
      %13 = vector.load %arg8[%c0_11, %c0_12] : memref<256x128xf32, #tpu.memory_space<vmem>>, vector<256x128xf32>
      tpu.vector_store %arg8[%c0_11, %c0_12], %12 {strides = array<i32>} : memref<256x128xf32, #tpu.memory_space<vmem>>, vector<256x128xf32>,
    } else {
    }
    %c0 = arith.constant 0 : index
    %c0_1 = arith.constant 0 : index
    %3 = vector.load %arg8[%c0, %c0_1] : memref<256x128xf32, #tpu.memory_space<vmem>>, vector<256x128xf32>
    %c0_2 = arith.constant 0 : index
    %c0_3 = arith.constant 0 : index
    %4 = vector.load %arg3[%c0_2, %c0_3] : memref<256x128xbf16, #tpu.memory_space<vmem>>, vector<256x128xbf16>
    %c0_4 = arith.constant 0 : index
    %c0_5 = arith.constant 0 : index
    %5 = vector.load %arg4[%c0_4, %c0_5] : memref<128x128xbf16, #tpu.memory_space<vmem>>, vector<128x128xbf16>
    %cst = arith.constant dense<0.000000e+00> : vector<256x128xf32>
    %6 = tpu.matmul %4, %5, %cst {dimension_numbers = #tpu.dot_dimension_numbers<[1], [0], [0], [1], [0, 0, 1, 1], [], []>} : vector<256x128xbf16>, vector<128x128xbf16>, vector<256x128xf32> -> vector<256x128xf32>
    %7 = arith.addf %3, %6 : vector<256x128xf32>
    %c0_6 = arith.constant 0 : index
    %c0_7 = arith.constant 0 : index
    %8 = vector.load %arg8[%c0_6, %c0_7] : memref<256x128xf32, #tpu.memory_space<vmem>>, vector<256x128xf32>
    tpu.vector_store %arg8[%c0_6, %c0_7], %7 {strides = array<i32>} : memref<256x128xf32, #tpu.memory_space<vmem>>, vector<256x128xf32>,
    %c0_i32_8 = arith.constant 0 : i32
    %9 = arith.cmpi eq, %arg2, %c0_i32_8 : i32
    %10 = arith.extui %9 : i1 to i32
    %c0_i32_9 = arith.constant 0 : i32
    %11 = arith.cmpi ne, %10, %c0_i32_9 : i32
    scf.if %11 {
      %c0_10 = arith.constant 0 : index
      %c0_11 = arith.constant 0 : index
      %12 = vector.load %arg8[%c0_10, %c0_11] : memref<256x128xf32, #tpu.memory_space<vmem>>, vector<256x128xf32>
      %c0_12 = arith.constant 0 : index
      %c0_13 = arith.constant 0 : index
      %13 = vector.load %arg5[%c0_12, %c0_13] : memref<1x128xf32, #tpu.memory_space<vmem>>, vector<1x128xf32>
      %14 = vector.broadcast %13 : vector<1x128xf32> to vector<256x128xf32>
      %15 = arith.mulf %12, %14 : vector<256x128xf32>
      %c0_14 = arith.constant 0 : index
      %c0_15 = arith.constant 0 : index
      %16 = vector.load %arg6[%c0_14, %c0_15] : memref<1x128xf32, #tpu.memory_space<vmem>>, vector<1x128xf32>
      %17 = vector.broadcast %16 : vector<1x128xf32> to vector<256x128xf32>
      %18 = arith.addf %15, %17 : vector<256x128xf32>
      %cst_16 = arith.constant 0.000000e+00 : f32
      %19 = vector.broadcast %cst_16 : f32 to vector<256x128xf32>
      %20 = arith.maximumf %18, %19 : vector<256x128xf32>
      %21 = arith.truncf %20 : vector<256x128xf32> to vector<256x128xbf16>
      %c0_17 = arith.constant 0 : index
      %c0_18 = arith.constant 0 : index
      %22 = vector.load %arg7[%c0_17, %c0_18] : memref<256x128xbf16, #tpu.memory_space<vmem>>, vector<256x128xbf16>
      tpu.vector_store %arg7[%c0_17, %c0_18], %21 {strides = array<i32>} : memref<256x128xbf16, #tpu.memory_space<vmem>>, vector<256x128xbf16>,
    } else {
    }
    return
  }
  func.func @transform_0(%arg0: i32, %arg1: i32, %arg2: i32) -> (i32, i32) {
    %c0_i32 = arith.constant 0 : i32
    return %arg0, %arg2 : i32, i32
  }
  func.func @transform_1(%arg0: i32, %arg1: i32, %arg2: i32) -> (i32, i32) {
    %c0_i32 = arith.constant 0 : i32
    return %arg2, %arg1 : i32, i32
  }
  func.func @transform_2(%arg0: i32, %arg1: i32, %arg2: i32) -> (i32, i32) {
    %c0_i32 = arith.constant 0 : i32
    %c0_i32_0 = arith.constant 0 : i32
    return %c0_i32, %arg1 : i32, i32
  }
  func.func @transform_3(%arg0: i32, %arg1: i32, %arg2: i32) -> (i32, i32) {
    %c0_i32 = arith.constant 0 : i32
    %c0_i32_0 = arith.constant 0 : i32
    return %c0_i32, %arg1 : i32, i32
  }
  func.func @transform_4(%arg0: i32, %arg1: i32, %arg2: i32) -> (i32, i32) {
    %c0_i32 = arith.constant 0 : i32
    return %arg0, %arg1 : i32, i32
  }
}

module attributes {stable_mosaic.version = 11 : i64} {
  func.func @_mm_affine_kernel(%arg0: i32, %arg1: i32, %arg2: i32, %arg3: memref<128x128xbf16, #tpu.memory_space<vmem>>, %arg4: memref<128x128xbf16, #tpu.memory_space<vmem>>, %arg5: memref<1x128xf32, #tpu.memory_space<vmem>>, %arg6: memref<1x128xf32, #tpu.memory_space<vmem>>, %arg7: memref<128x128xbf16, #tpu.memory_space<vmem>>, %arg8: memref<128x128xf32, #tpu.memory_space<vmem>>) attributes {dimension_semantics = [#tpu.dimension_semantics<parallel>, #tpu.dimension_semantics<parallel>, #tpu.dimension_semantics<arbitrary>], iteration_bounds = array<i64: 1, 1, 1>, scalar_prefetch = 0 : i64, scratch_operands = 1 : i64, tpu.core_type = #tpu.core_type<tc>, window_params = [{transform_indices = @transform_0, window_bounds = array<i64: 128, 128>}, {transform_indices = @transform_1, window_bounds = array<i64: 128, 128>}, {transform_indices = @transform_2, window_bounds = array<i64: 1, 128>}, {transform_indices = @transform_3, window_bounds = array<i64: 1, 128>}, {transform_indices = @transform_4, window_bounds = array<i64: 128, 128>}]} {
    %c0_i32 = arith.constant 0 : i32
    %0 = arith.cmpi eq, %arg2, %c0_i32 : i32
    %1 = arith.extui %0 : i1 to i32
    %c0_i32_0 = arith.constant 0 : i32
    %2 = arith.cmpi ne, %1, %c0_i32_0 : i32
    scf.if %2 {
      %cst_10 = arith.constant 0.000000e+00 : f32
      %12 = vector.broadcast %cst_10 : f32 to vector<128x128xf32>
      %c0_11 = arith.constant 0 : index
      %c0_12 = arith.constant 0 : index
      %13 = vector.load %arg8[%c0_11, %c0_12] : memref<128x128xf32, #tpu.memory_space<vmem>>, vector<128x128xf32>
      tpu.vector_store %arg8[%c0_11, %c0_12], %12 {strides = array<i32>} : memref<128x128xf32, #tpu.memory_space<vmem>>, vector<128x128xf32>,
    } else {
    }
    %c0 = arith.constant 0 : index
    %c0_1 = arith.constant 0 : index
    %3 = vector.load %arg8[%c0, %c0_1] : memref<128x128xf32, #tpu.memory_space<vmem>>, vector<128x128xf32>
    %c0_2 = arith.constant 0 : index
    %c0_3 = arith.constant 0 : index
    %4 = vector.load %arg3[%c0_2, %c0_3] : memref<128x128xbf16, #tpu.memory_space<vmem>>, vector<128x128xbf16>
    %c0_4 = arith.constant 0 : index
    %c0_5 = arith.constant 0 : index
    %5 = vector.load %arg4[%c0_4, %c0_5] : memref<128x128xbf16, #tpu.memory_space<vmem>>, vector<128x128xbf16>
    %cst = arith.constant dense<0.000000e+00> : vector<128x128xf32>
    %6 = tpu.matmul %4, %5, %cst {dimension_numbers = #tpu.dot_dimension_numbers<[1], [0], [0], [1], [0, 0, 1, 1], [], []>} : vector<128x128xbf16>, vector<128x128xbf16>, vector<128x128xf32> -> vector<128x128xf32>
    %7 = arith.addf %3, %6 : vector<128x128xf32>
    %c0_6 = arith.constant 0 : index
    %c0_7 = arith.constant 0 : index
    %8 = vector.load %arg8[%c0_6, %c0_7] : memref<128x128xf32, #tpu.memory_space<vmem>>, vector<128x128xf32>
    tpu.vector_store %arg8[%c0_6, %c0_7], %7 {strides = array<i32>} : memref<128x128xf32, #tpu.memory_space<vmem>>, vector<128x128xf32>,
    %c0_i32_8 = arith.constant 0 : i32
    %9 = arith.cmpi eq, %arg2, %c0_i32_8 : i32
    %10 = arith.extui %9 : i1 to i32
    %c0_i32_9 = arith.constant 0 : i32
    %11 = arith.cmpi ne, %10, %c0_i32_9 : i32
    scf.if %11 {
      %c0_10 = arith.constant 0 : index
      %c0_11 = arith.constant 0 : index
      %12 = vector.load %arg8[%c0_10, %c0_11] : memref<128x128xf32, #tpu.memory_space<vmem>>, vector<128x128xf32>
      %c0_12 = arith.constant 0 : index
      %c0_13 = arith.constant 0 : index
      %13 = vector.load %arg5[%c0_12, %c0_13] : memref<1x128xf32, #tpu.memory_space<vmem>>, vector<1x128xf32>
      %14 = vector.broadcast %13 : vector<1x128xf32> to vector<128x128xf32>
      %15 = arith.mulf %12, %14 : vector<128x128xf32>
      %c0_14 = arith.constant 0 : index
      %c0_15 = arith.constant 0 : index
      %16 = vector.load %arg6[%c0_14, %c0_15] : memref<1x128xf32, #tpu.memory_space<vmem>>, vector<1x128xf32>
      %17 = vector.broadcast %16 : vector<1x128xf32> to vector<128x128xf32>
      %18 = arith.addf %15, %17 : vector<128x128xf32>
      %19 = arith.truncf %18 : vector<128x128xf32> to vector<128x128xbf16>
      %c0_16 = arith.constant 0 : index
      %c0_17 = arith.constant 0 : index
      %20 = vector.load %arg7[%c0_16, %c0_17] : memref<128x128xbf16, #tpu.memory_space<vmem>>, vector<128x128xbf16>
      tpu.vector_store %arg7[%c0_16, %c0_17], %19 {strides = array<i32>} : memref<128x128xbf16, #tpu.memory_space<vmem>>, vector<128x128xbf16>,
    } else {
    }
    return
  }
  func.func @transform_0(%arg0: i32, %arg1: i32, %arg2: i32) -> (i32, i32) {
    %c0_i32 = arith.constant 0 : i32
    return %arg0, %arg2 : i32, i32
  }
  func.func @transform_1(%arg0: i32, %arg1: i32, %arg2: i32) -> (i32, i32) {
    %c0_i32 = arith.constant 0 : i32
    return %arg2, %arg1 : i32, i32
  }
  func.func @transform_2(%arg0: i32, %arg1: i32, %arg2: i32) -> (i32, i32) {
    %c0_i32 = arith.constant 0 : i32
    %c0_i32_0 = arith.constant 0 : i32
    return %c0_i32, %arg1 : i32, i32
  }
  func.func @transform_3(%arg0: i32, %arg1: i32, %arg2: i32) -> (i32, i32) {
    %c0_i32 = arith.constant 0 : i32
    %c0_i32_0 = arith.constant 0 : i32
    return %c0_i32, %arg1 : i32, i32
  }
  func.func @transform_4(%arg0: i32, %arg1: i32, %arg2: i32) -> (i32, i32) {
    %c0_i32 = arith.constant 0 : i32
    return %arg0, %arg1 : i32, i32
  }
}

module attributes {stable_mosaic.version = 11 : i64} {
  func.func @_mm_affine_kernel(%arg0: i32, %arg1: i32, %arg2: i32, %arg3: memref<128x128xbf16, #tpu.memory_space<vmem>>, %arg4: memref<128x128xbf16, #tpu.memory_space<vmem>>, %arg5: memref<1x128xf32, #tpu.memory_space<vmem>>, %arg6: memref<1x128xf32, #tpu.memory_space<vmem>>, %arg7: memref<128x128xbf16, #tpu.memory_space<vmem>>, %arg8: memref<128x128xf32, #tpu.memory_space<vmem>>) attributes {dimension_semantics = [#tpu.dimension_semantics<parallel>, #tpu.dimension_semantics<parallel>, #tpu.dimension_semantics<arbitrary>], iteration_bounds = array<i64: 1, 1, 1>, scalar_prefetch = 0 : i64, scratch_operands = 1 : i64, tpu.core_type = #tpu.core_type<tc>, window_params = [{transform_indices = @transform_0, window_bounds = array<i64: 128, 128>}, {transform_indices = @transform_1, window_bounds = array<i64: 128, 128>}, {transform_indices = @transform_2, window_bounds = array<i64: 1, 128>}, {transform_indices = @transform_3, window_bounds = array<i64: 1, 128>}, {transform_indices = @transform_4, window_bounds = array<i64: 128, 128>}]} {
    %c0_i32 = arith.constant 0 : i32
    %0 = arith.cmpi eq, %arg2, %c0_i32 : i32
    %1 = arith.extui %0 : i1 to i32
    %c0_i32_0 = arith.constant 0 : i32
    %2 = arith.cmpi ne, %1, %c0_i32_0 : i32
    scf.if %2 {
      %cst_10 = arith.constant 0.000000e+00 : f32
      %12 = vector.broadcast %cst_10 : f32 to vector<128x128xf32>
      %c0_11 = arith.constant 0 : index
      %c0_12 = arith.constant 0 : index
      %13 = vector.load %arg8[%c0_11, %c0_12] : memref<128x128xf32, #tpu.memory_space<vmem>>, vector<128x128xf32>
      tpu.vector_store %arg8[%c0_11, %c0_12], %12 {strides = array<i32>} : memref<128x128xf32, #tpu.memory_space<vmem>>, vector<128x128xf32>,
    } else {
    }
    %c0 = arith.constant 0 : index
    %c0_1 = arith.constant 0 : index
    %3 = vector.load %arg8[%c0, %c0_1] : memref<128x128xf32, #tpu.memory_space<vmem>>, vector<128x128xf32>
    %c0_2 = arith.constant 0 : index
    %c0_3 = arith.constant 0 : index
    %4 = vector.load %arg3[%c0_2, %c0_3] : memref<128x128xbf16, #tpu.memory_space<vmem>>, vector<128x128xbf16>
    %c0_4 = arith.constant 0 : index
    %c0_5 = arith.constant 0 : index
    %5 = vector.load %arg4[%c0_4, %c0_5] : memref<128x128xbf16, #tpu.memory_space<vmem>>, vector<128x128xbf16>
    %cst = arith.constant dense<0.000000e+00> : vector<128x128xf32>
    %6 = tpu.matmul %4, %5, %cst {dimension_numbers = #tpu.dot_dimension_numbers<[1], [0], [0], [1], [0, 0, 1, 1], [], []>} : vector<128x128xbf16>, vector<128x128xbf16>, vector<128x128xf32> -> vector<128x128xf32>
    %7 = arith.addf %3, %6 : vector<128x128xf32>
    %c0_6 = arith.constant 0 : index
    %c0_7 = arith.constant 0 : index
    %8 = vector.load %arg8[%c0_6, %c0_7] : memref<128x128xf32, #tpu.memory_space<vmem>>, vector<128x128xf32>
    tpu.vector_store %arg8[%c0_6, %c0_7], %7 {strides = array<i32>} : memref<128x128xf32, #tpu.memory_space<vmem>>, vector<128x128xf32>,
    %c0_i32_8 = arith.constant 0 : i32
    %9 = arith.cmpi eq, %arg2, %c0_i32_8 : i32
    %10 = arith.extui %9 : i1 to i32
    %c0_i32_9 = arith.constant 0 : i32
    %11 = arith.cmpi ne, %10, %c0_i32_9 : i32
    scf.if %11 {
      %c0_10 = arith.constant 0 : index
      %c0_11 = arith.constant 0 : index
      %12 = vector.load %arg8[%c0_10, %c0_11] : memref<128x128xf32, #tpu.memory_space<vmem>>, vector<128x128xf32>
      %c0_12 = arith.constant 0 : index
      %c0_13 = arith.constant 0 : index
      %13 = vector.load %arg5[%c0_12, %c0_13] : memref<1x128xf32, #tpu.memory_space<vmem>>, vector<1x128xf32>
      %14 = vector.broadcast %13 : vector<1x128xf32> to vector<128x128xf32>
      %15 = arith.mulf %12, %14 : vector<128x128xf32>
      %c0_14 = arith.constant 0 : index
      %c0_15 = arith.constant 0 : index
      %16 = vector.load %arg6[%c0_14, %c0_15] : memref<1x128xf32, #tpu.memory_space<vmem>>, vector<1x128xf32>
      %17 = vector.broadcast %16 : vector<1x128xf32> to vector<128x128xf32>
      %18 = arith.addf %15, %17 : vector<128x128xf32>
      %cst_16 = arith.constant 0.000000e+00 : f32
      %19 = vector.broadcast %cst_16 : f32 to vector<128x128xf32>
      %20 = arith.maximumf %18, %19 : vector<128x128xf32>
      %21 = arith.truncf %20 : vector<128x128xf32> to vector<128x128xbf16>
      %c0_17 = arith.constant 0 : index
      %c0_18 = arith.constant 0 : index
      %22 = vector.load %arg7[%c0_17, %c0_18] : memref<128x128xbf16, #tpu.memory_space<vmem>>, vector<128x128xbf16>
      tpu.vector_store %arg7[%c0_17, %c0_18], %21 {strides = array<i32>} : memref<128x128xbf16, #tpu.memory_space<vmem>>, vector<128x128xbf16>,
    } else {
    }
    return
  }
  func.func @transform_0(%arg0: i32, %arg1: i32, %arg2: i32) -> (i32, i32) {
    %c0_i32 = arith.constant 0 : i32
    return %arg0, %arg2 : i32, i32
  }
  func.func @transform_1(%arg0: i32, %arg1: i32, %arg2: i32) -> (i32, i32) {
    %c0_i32 = arith.constant 0 : i32
    return %arg2, %arg1 : i32, i32
  }
  func.func @transform_2(%arg0: i32, %arg1: i32, %arg2: i32) -> (i32, i32) {
    %c0_i32 = arith.constant 0 : i32
    %c0_i32_0 = arith.constant 0 : i32
    return %c0_i32, %arg1 : i32, i32
  }
  func.func @transform_3(%arg0: i32, %arg1: i32, %arg2: i32) -> (i32, i32) {
    %c0_i32 = arith.constant 0 : i32
    %c0_i32_0 = arith.constant 0 : i32
    return %c0_i32, %arg1 : i32, i32
  }
  func.func @transform_4(%arg0: i32, %arg1: i32, %arg2: i32) -> (i32, i32) {
    %c0_i32 = arith.constant 0 : i32
    return %arg0, %arg1 : i32, i32
  }
}

module attributes {stable_mosaic.version = 11 : i64} {
  func.func @_mm_affine_res_kernel(%arg0: i32, %arg1: i32, %arg2: i32, %arg3: memref<128x128xbf16, #tpu.memory_space<vmem>>, %arg4: memref<128x128xbf16, #tpu.memory_space<vmem>>, %arg5: memref<1x128xf32, #tpu.memory_space<vmem>>, %arg6: memref<1x128xf32, #tpu.memory_space<vmem>>, %arg7: memref<128x128xbf16, #tpu.memory_space<vmem>>, %arg8: memref<128x128xbf16, #tpu.memory_space<vmem>>, %arg9: memref<128x128xf32, #tpu.memory_space<vmem>>) attributes {dimension_semantics = [#tpu.dimension_semantics<parallel>, #tpu.dimension_semantics<parallel>, #tpu.dimension_semantics<arbitrary>], iteration_bounds = array<i64: 1, 1, 1>, scalar_prefetch = 0 : i64, scratch_operands = 1 : i64, tpu.core_type = #tpu.core_type<tc>, window_params = [{transform_indices = @transform_0, window_bounds = array<i64: 128, 128>}, {transform_indices = @transform_1, window_bounds = array<i64: 128, 128>}, {transform_indices = @transform_2, window_bounds = array<i64: 1, 128>}, {transform_indices = @transform_3, window_bounds = array<i64: 1, 128>}, {transform_indices = @transform_4, window_bounds = array<i64: 128, 128>}, {transform_indices = @transform_5, window_bounds = array<i64: 128, 128>}]} {
    %c0_i32 = arith.constant 0 : i32
    %0 = arith.cmpi eq, %arg2, %c0_i32 : i32
    %1 = arith.extui %0 : i1 to i32
    %c0_i32_0 = arith.constant 0 : i32
    %2 = arith.cmpi ne, %1, %c0_i32_0 : i32
    scf.if %2 {
      %cst_10 = arith.constant 0.000000e+00 : f32
      %12 = vector.broadcast %cst_10 : f32 to vector<128x128xf32>
      %c0_11 = arith.constant 0 : index
      %c0_12 = arith.constant 0 : index
      %13 = vector.load %arg9[%c0_11, %c0_12] : memref<128x128xf32, #tpu.memory_space<vmem>>, vector<128x128xf32>
      tpu.vector_store %arg9[%c0_11, %c0_12], %12 {strides = array<i32>} : memref<128x128xf32, #tpu.memory_space<vmem>>, vector<128x128xf32>,
    } else {
    }
    %c0 = arith.constant 0 : index
    %c0_1 = arith.constant 0 : index
    %3 = vector.load %arg9[%c0, %c0_1] : memref<128x128xf32, #tpu.memory_space<vmem>>, vector<128x128xf32>
    %c0_2 = arith.constant 0 : index
    %c0_3 = arith.constant 0 : index
    %4 = vector.load %arg3[%c0_2, %c0_3] : memref<128x128xbf16, #tpu.memory_space<vmem>>, vector<128x128xbf16>
    %c0_4 = arith.constant 0 : index
    %c0_5 = arith.constant 0 : index
    %5 = vector.load %arg4[%c0_4, %c0_5] : memref<128x128xbf16, #tpu.memory_space<vmem>>, vector<128x128xbf16>
    %cst = arith.constant dense<0.000000e+00> : vector<128x128xf32>
    %6 = tpu.matmul %4, %5, %cst {dimension_numbers = #tpu.dot_dimension_numbers<[1], [0], [0], [1], [0, 0, 1, 1], [], []>} : vector<128x128xbf16>, vector<128x128xbf16>, vector<128x128xf32> -> vector<128x128xf32>
    %7 = arith.addf %3, %6 : vector<128x128xf32>
    %c0_6 = arith.constant 0 : index
    %c0_7 = arith.constant 0 : index
    %8 = vector.load %arg9[%c0_6, %c0_7] : memref<128x128xf32, #tpu.memory_space<vmem>>, vector<128x128xf32>
    tpu.vector_store %arg9[%c0_6, %c0_7], %7 {strides = array<i32>} : memref<128x128xf32, #tpu.memory_space<vmem>>, vector<128x128xf32>,
    %c0_i32_8 = arith.constant 0 : i32
    %9 = arith.cmpi eq, %arg2, %c0_i32_8 : i32
    %10 = arith.extui %9 : i1 to i32
    %c0_i32_9 = arith.constant 0 : i32
    %11 = arith.cmpi ne, %10, %c0_i32_9 : i32
    scf.if %11 {
      %c0_10 = arith.constant 0 : index
      %c0_11 = arith.constant 0 : index
      %12 = vector.load %arg9[%c0_10, %c0_11] : memref<128x128xf32, #tpu.memory_space<vmem>>, vector<128x128xf32>
      %c0_12 = arith.constant 0 : index
      %c0_13 = arith.constant 0 : index
      %13 = vector.load %arg5[%c0_12, %c0_13] : memref<1x128xf32, #tpu.memory_space<vmem>>, vector<1x128xf32>
      %14 = vector.broadcast %13 : vector<1x128xf32> to vector<128x128xf32>
      %15 = arith.mulf %12, %14 : vector<128x128xf32>
      %c0_14 = arith.constant 0 : index
      %c0_15 = arith.constant 0 : index
      %16 = vector.load %arg6[%c0_14, %c0_15] : memref<1x128xf32, #tpu.memory_space<vmem>>, vector<1x128xf32>
      %17 = vector.broadcast %16 : vector<1x128xf32> to vector<128x128xf32>
      %18 = arith.addf %15, %17 : vector<128x128xf32>
      %c0_16 = arith.constant 0 : index
      %c0_17 = arith.constant 0 : index
      %19 = vector.load %arg7[%c0_16, %c0_17] : memref<128x128xbf16, #tpu.memory_space<vmem>>, vector<128x128xbf16>
      %20 = arith.extf %19 : vector<128x128xbf16> to vector<128x128xf32>
      %21 = arith.addf %18, %20 : vector<128x128xf32>
      %cst_18 = arith.constant 0.000000e+00 : f32
      %22 = vector.broadcast %cst_18 : f32 to vector<128x128xf32>
      %23 = arith.maximumf %21, %22 : vector<128x128xf32>
      %24 = arith.truncf %23 : vector<128x128xf32> to vector<128x128xbf16>
      %c0_19 = arith.constant 0 : index
      %c0_20 = arith.constant 0 : index
      %25 = vector.load %arg8[%c0_19, %c0_20] : memref<128x128xbf16, #tpu.memory_space<vmem>>, vector<128x128xbf16>
      tpu.vector_store %arg8[%c0_19, %c0_20], %24 {strides = array<i32>} : memref<128x128xbf16, #tpu.memory_space<vmem>>, vector<128x128xbf16>,
    } else {
    }
    return
  }
  func.func @transform_0(%arg0: i32, %arg1: i32, %arg2: i32) -> (i32, i32) {
    %c0_i32 = arith.constant 0 : i32
    return %arg0, %arg2 : i32, i32
  }
  func.func @transform_1(%arg0: i32, %arg1: i32, %arg2: i32) -> (i32, i32) {
    %c0_i32 = arith.constant 0 : i32
    return %arg2, %arg1 : i32, i32
  }
  func.func @transform_2(%arg0: i32, %arg1: i32, %arg2: i32) -> (i32, i32) {
    %c0_i32 = arith.constant 0 : i32
    %c0_i32_0 = arith.constant 0 : i32
    return %c0_i32, %arg1 : i32, i32
  }
  func.func @transform_3(%arg0: i32, %arg1: i32, %arg2: i32) -> (i32, i32) {
    %c0_i32 = arith.constant 0 : i32
    %c0_i32_0 = arith.constant 0 : i32
    return %c0_i32, %arg1 : i32, i32
  }
  func.func @transform_4(%arg0: i32, %arg1: i32, %arg2: i32) -> (i32, i32) {
    %c0_i32 = arith.constant 0 : i32
    return %arg0, %arg1 : i32, i32
  }
  func.func @transform_5(%arg0: i32, %arg1: i32, %arg2: i32) -> (i32, i32) {
    %c0_i32 = arith.constant 0 : i32
    return %arg0, %arg1 : i32, i32
  }
}

module attributes {stable_mosaic.version = 11 : i64} {
  func.func @_mm_affine_kernel(%arg0: i32, %arg1: i32, %arg2: i32, %arg3: memref<32x128xbf16, #tpu.memory_space<vmem>>, %arg4: memref<128x128xbf16, #tpu.memory_space<vmem>>, %arg5: memref<1x128xf32, #tpu.memory_space<vmem>>, %arg6: memref<1x128xf32, #tpu.memory_space<vmem>>, %arg7: memref<32x128xbf16, #tpu.memory_space<vmem>>, %arg8: memref<32x128xf32, #tpu.memory_space<vmem>>) attributes {dimension_semantics = [#tpu.dimension_semantics<parallel>, #tpu.dimension_semantics<parallel>, #tpu.dimension_semantics<arbitrary>], iteration_bounds = array<i64: 1, 1, 1>, scalar_prefetch = 0 : i64, scratch_operands = 1 : i64, tpu.core_type = #tpu.core_type<tc>, window_params = [{transform_indices = @transform_0, window_bounds = array<i64: 32, 128>}, {transform_indices = @transform_1, window_bounds = array<i64: 128, 128>}, {transform_indices = @transform_2, window_bounds = array<i64: 1, 128>}, {transform_indices = @transform_3, window_bounds = array<i64: 1, 128>}, {transform_indices = @transform_4, window_bounds = array<i64: 32, 128>}]} {
    %c0_i32 = arith.constant 0 : i32
    %0 = arith.cmpi eq, %arg2, %c0_i32 : i32
    %1 = arith.extui %0 : i1 to i32
    %c0_i32_0 = arith.constant 0 : i32
    %2 = arith.cmpi ne, %1, %c0_i32_0 : i32
    scf.if %2 {
      %cst_10 = arith.constant 0.000000e+00 : f32
      %12 = vector.broadcast %cst_10 : f32 to vector<32x128xf32>
      %c0_11 = arith.constant 0 : index
      %c0_12 = arith.constant 0 : index
      %13 = vector.load %arg8[%c0_11, %c0_12] : memref<32x128xf32, #tpu.memory_space<vmem>>, vector<32x128xf32>
      tpu.vector_store %arg8[%c0_11, %c0_12], %12 {strides = array<i32>} : memref<32x128xf32, #tpu.memory_space<vmem>>, vector<32x128xf32>,
    } else {
    }
    %c0 = arith.constant 0 : index
    %c0_1 = arith.constant 0 : index
    %3 = vector.load %arg8[%c0, %c0_1] : memref<32x128xf32, #tpu.memory_space<vmem>>, vector<32x128xf32>
    %c0_2 = arith.constant 0 : index
    %c0_3 = arith.constant 0 : index
    %4 = vector.load %arg3[%c0_2, %c0_3] : memref<32x128xbf16, #tpu.memory_space<vmem>>, vector<32x128xbf16>
    %c0_4 = arith.constant 0 : index
    %c0_5 = arith.constant 0 : index
    %5 = vector.load %arg4[%c0_4, %c0_5] : memref<128x128xbf16, #tpu.memory_space<vmem>>, vector<128x128xbf16>
    %cst = arith.constant dense<0.000000e+00> : vector<32x128xf32>
    %6 = tpu.matmul %4, %5, %cst {dimension_numbers = #tpu.dot_dimension_numbers<[1], [0], [0], [1], [0, 0, 1, 1], [], []>} : vector<32x128xbf16>, vector<128x128xbf16>, vector<32x128xf32> -> vector<32x128xf32>
    %7 = arith.addf %3, %6 : vector<32x128xf32>
    %c0_6 = arith.constant 0 : index
    %c0_7 = arith.constant 0 : index
    %8 = vector.load %arg8[%c0_6, %c0_7] : memref<32x128xf32, #tpu.memory_space<vmem>>, vector<32x128xf32>
    tpu.vector_store %arg8[%c0_6, %c0_7], %7 {strides = array<i32>} : memref<32x128xf32, #tpu.memory_space<vmem>>, vector<32x128xf32>,
    %c0_i32_8 = arith.constant 0 : i32
    %9 = arith.cmpi eq, %arg2, %c0_i32_8 : i32
    %10 = arith.extui %9 : i1 to i32
    %c0_i32_9 = arith.constant 0 : i32
    %11 = arith.cmpi ne, %10, %c0_i32_9 : i32
    scf.if %11 {
      %c0_10 = arith.constant 0 : index
      %c0_11 = arith.constant 0 : index
      %12 = vector.load %arg8[%c0_10, %c0_11] : memref<32x128xf32, #tpu.memory_space<vmem>>, vector<32x128xf32>
      %c0_12 = arith.constant 0 : index
      %c0_13 = arith.constant 0 : index
      %13 = vector.load %arg5[%c0_12, %c0_13] : memref<1x128xf32, #tpu.memory_space<vmem>>, vector<1x128xf32>
      %14 = vector.broadcast %13 : vector<1x128xf32> to vector<32x128xf32>
      %15 = arith.mulf %12, %14 : vector<32x128xf32>
      %c0_14 = arith.constant 0 : index
      %c0_15 = arith.constant 0 : index
      %16 = vector.load %arg6[%c0_14, %c0_15] : memref<1x128xf32, #tpu.memory_space<vmem>>, vector<1x128xf32>
      %17 = vector.broadcast %16 : vector<1x128xf32> to vector<32x128xf32>
      %18 = arith.addf %15, %17 : vector<32x128xf32>
      %19 = arith.truncf %18 : vector<32x128xf32> to vector<32x128xbf16>
      %c0_16 = arith.constant 0 : index
      %c0_17 = arith.constant 0 : index
      %20 = vector.load %arg7[%c0_16, %c0_17] : memref<32x128xbf16, #tpu.memory_space<vmem>>, vector<32x128xbf16>
      tpu.vector_store %arg7[%c0_16, %c0_17], %19 {strides = array<i32>} : memref<32x128xbf16, #tpu.memory_space<vmem>>, vector<32x128xbf16>,
    } else {
    }
    return
  }
  func.func @transform_0(%arg0: i32, %arg1: i32, %arg2: i32) -> (i32, i32) {
    %c0_i32 = arith.constant 0 : i32
    return %arg0, %arg2 : i32, i32
  }
  func.func @transform_1(%arg0: i32, %arg1: i32, %arg2: i32) -> (i32, i32) {
    %c0_i32 = arith.constant 0 : i32
    return %arg2, %arg1 : i32, i32
  }
  func.func @transform_2(%arg0: i32, %arg1: i32, %arg2: i32) -> (i32, i32) {
    %c0_i32 = arith.constant 0 : i32
    %c0_i32_0 = arith.constant 0 : i32
    return %c0_i32, %arg1 : i32, i32
  }
  func.func @transform_3(%arg0: i32, %arg1: i32, %arg2: i32) -> (i32, i32) {
    %c0_i32 = arith.constant 0 : i32
    %c0_i32_0 = arith.constant 0 : i32
    return %c0_i32, %arg1 : i32, i32
  }
  func.func @transform_4(%arg0: i32, %arg1: i32, %arg2: i32) -> (i32, i32) {
    %c0_i32 = arith.constant 0 : i32
    return %arg0, %arg1 : i32, i32
  }
}

module attributes {stable_mosaic.version = 11 : i64} {
  func.func @_mm_affine_kernel(%arg0: i32, %arg1: i32, %arg2: i32, %arg3: memref<128x256xbf16, #tpu.memory_space<vmem>>, %arg4: memref<256x128xbf16, #tpu.memory_space<vmem>>, %arg5: memref<1x128xf32, #tpu.memory_space<vmem>>, %arg6: memref<1x128xf32, #tpu.memory_space<vmem>>, %arg7: memref<128x128xbf16, #tpu.memory_space<vmem>>, %arg8: memref<128x128xf32, #tpu.memory_space<vmem>>) attributes {dimension_semantics = [#tpu.dimension_semantics<parallel>, #tpu.dimension_semantics<parallel>, #tpu.dimension_semantics<arbitrary>], iteration_bounds = array<i64: 1, 1, 1>, scalar_prefetch = 0 : i64, scratch_operands = 1 : i64, tpu.core_type = #tpu.core_type<tc>, window_params = [{transform_indices = @transform_0, window_bounds = array<i64: 128, 256>}, {transform_indices = @transform_1, window_bounds = array<i64: 256, 128>}, {transform_indices = @transform_2, window_bounds = array<i64: 1, 128>}, {transform_indices = @transform_3, window_bounds = array<i64: 1, 128>}, {transform_indices = @transform_4, window_bounds = array<i64: 128, 128>}]} {
    %c0_i32 = arith.constant 0 : i32
    %0 = arith.cmpi eq, %arg2, %c0_i32 : i32
    %1 = arith.extui %0 : i1 to i32
    %c0_i32_0 = arith.constant 0 : i32
    %2 = arith.cmpi ne, %1, %c0_i32_0 : i32
    scf.if %2 {
      %cst_10 = arith.constant 0.000000e+00 : f32
      %12 = vector.broadcast %cst_10 : f32 to vector<128x128xf32>
      %c0_11 = arith.constant 0 : index
      %c0_12 = arith.constant 0 : index
      %13 = vector.load %arg8[%c0_11, %c0_12] : memref<128x128xf32, #tpu.memory_space<vmem>>, vector<128x128xf32>
      tpu.vector_store %arg8[%c0_11, %c0_12], %12 {strides = array<i32>} : memref<128x128xf32, #tpu.memory_space<vmem>>, vector<128x128xf32>,
    } else {
    }
    %c0 = arith.constant 0 : index
    %c0_1 = arith.constant 0 : index
    %3 = vector.load %arg8[%c0, %c0_1] : memref<128x128xf32, #tpu.memory_space<vmem>>, vector<128x128xf32>
    %c0_2 = arith.constant 0 : index
    %c0_3 = arith.constant 0 : index
    %4 = vector.load %arg3[%c0_2, %c0_3] : memref<128x256xbf16, #tpu.memory_space<vmem>>, vector<128x256xbf16>
    %c0_4 = arith.constant 0 : index
    %c0_5 = arith.constant 0 : index
    %5 = vector.load %arg4[%c0_4, %c0_5] : memref<256x128xbf16, #tpu.memory_space<vmem>>, vector<256x128xbf16>
    %cst = arith.constant dense<0.000000e+00> : vector<128x128xf32>
    %6 = tpu.matmul %4, %5, %cst {dimension_numbers = #tpu.dot_dimension_numbers<[1], [0], [0], [1], [0, 0, 1, 1], [], []>} : vector<128x256xbf16>, vector<256x128xbf16>, vector<128x128xf32> -> vector<128x128xf32>
    %7 = arith.addf %3, %6 : vector<128x128xf32>
    %c0_6 = arith.constant 0 : index
    %c0_7 = arith.constant 0 : index
    %8 = vector.load %arg8[%c0_6, %c0_7] : memref<128x128xf32, #tpu.memory_space<vmem>>, vector<128x128xf32>
    tpu.vector_store %arg8[%c0_6, %c0_7], %7 {strides = array<i32>} : memref<128x128xf32, #tpu.memory_space<vmem>>, vector<128x128xf32>,
    %c0_i32_8 = arith.constant 0 : i32
    %9 = arith.cmpi eq, %arg2, %c0_i32_8 : i32
    %10 = arith.extui %9 : i1 to i32
    %c0_i32_9 = arith.constant 0 : i32
    %11 = arith.cmpi ne, %10, %c0_i32_9 : i32
    scf.if %11 {
      %c0_10 = arith.constant 0 : index
      %c0_11 = arith.constant 0 : index
      %12 = vector.load %arg8[%c0_10, %c0_11] : memref<128x128xf32, #tpu.memory_space<vmem>>, vector<128x128xf32>
      %c0_12 = arith.constant 0 : index
      %c0_13 = arith.constant 0 : index
      %13 = vector.load %arg5[%c0_12, %c0_13] : memref<1x128xf32, #tpu.memory_space<vmem>>, vector<1x128xf32>
      %14 = vector.broadcast %13 : vector<1x128xf32> to vector<128x128xf32>
      %15 = arith.mulf %12, %14 : vector<128x128xf32>
      %c0_14 = arith.constant 0 : index
      %c0_15 = arith.constant 0 : index
      %16 = vector.load %arg6[%c0_14, %c0_15] : memref<1x128xf32, #tpu.memory_space<vmem>>, vector<1x128xf32>
      %17 = vector.broadcast %16 : vector<1x128xf32> to vector<128x128xf32>
      %18 = arith.addf %15, %17 : vector<128x128xf32>
      %cst_16 = arith.constant 0.000000e+00 : f32
      %19 = vector.broadcast %cst_16 : f32 to vector<128x128xf32>
      %20 = arith.maximumf %18, %19 : vector<128x128xf32>
      %21 = arith.truncf %20 : vector<128x128xf32> to vector<128x128xbf16>
      %c0_17 = arith.constant 0 : index
      %c0_18 = arith.constant 0 : index
      %22 = vector.load %arg7[%c0_17, %c0_18] : memref<128x128xbf16, #tpu.memory_space<vmem>>, vector<128x128xbf16>
      tpu.vector_store %arg7[%c0_17, %c0_18], %21 {strides = array<i32>} : memref<128x128xbf16, #tpu.memory_space<vmem>>, vector<128x128xbf16>,
    } else {
    }
    return
  }
  func.func @transform_0(%arg0: i32, %arg1: i32, %arg2: i32) -> (i32, i32) {
    %c0_i32 = arith.constant 0 : i32
    return %arg0, %arg2 : i32, i32
  }
  func.func @transform_1(%arg0: i32, %arg1: i32, %arg2: i32) -> (i32, i32) {
    %c0_i32 = arith.constant 0 : i32
    return %arg2, %arg1 : i32, i32
  }
  func.func @transform_2(%arg0: i32, %arg1: i32, %arg2: i32) -> (i32, i32) {
    %c0_i32 = arith.constant 0 : i32
    %c0_i32_0 = arith.constant 0 : i32
    return %c0_i32, %arg1 : i32, i32
  }
  func.func @transform_3(%arg0: i32, %arg1: i32, %arg2: i32) -> (i32, i32) {
    %c0_i32 = arith.constant 0 : i32
    %c0_i32_0 = arith.constant 0 : i32
    return %c0_i32, %arg1 : i32, i32
  }
  func.func @transform_4(%arg0: i32, %arg1: i32, %arg2: i32) -> (i32, i32) {
    %c0_i32 = arith.constant 0 : i32
    return %arg0, %arg1 : i32, i32
  }
}

module attributes {stable_mosaic.version = 11 : i64} {
  func.func @_mm_affine_res_kernel(%arg0: i32, %arg1: i32, %arg2: i32, %arg3: memref<32x128xbf16, #tpu.memory_space<vmem>>, %arg4: memref<128x128xbf16, #tpu.memory_space<vmem>>, %arg5: memref<1x128xf32, #tpu.memory_space<vmem>>, %arg6: memref<1x128xf32, #tpu.memory_space<vmem>>, %arg7: memref<32x128xbf16, #tpu.memory_space<vmem>>, %arg8: memref<32x128xbf16, #tpu.memory_space<vmem>>, %arg9: memref<32x128xf32, #tpu.memory_space<vmem>>) attributes {dimension_semantics = [#tpu.dimension_semantics<parallel>, #tpu.dimension_semantics<parallel>, #tpu.dimension_semantics<arbitrary>], iteration_bounds = array<i64: 1, 1, 1>, scalar_prefetch = 0 : i64, scratch_operands = 1 : i64, tpu.core_type = #tpu.core_type<tc>, window_params = [{transform_indices = @transform_0, window_bounds = array<i64: 32, 128>}, {transform_indices = @transform_1, window_bounds = array<i64: 128, 128>}, {transform_indices = @transform_2, window_bounds = array<i64: 1, 128>}, {transform_indices = @transform_3, window_bounds = array<i64: 1, 128>}, {transform_indices = @transform_4, window_bounds = array<i64: 32, 128>}, {transform_indices = @transform_5, window_bounds = array<i64: 32, 128>}]} {
    %c0_i32 = arith.constant 0 : i32
    %0 = arith.cmpi eq, %arg2, %c0_i32 : i32
    %1 = arith.extui %0 : i1 to i32
    %c0_i32_0 = arith.constant 0 : i32
    %2 = arith.cmpi ne, %1, %c0_i32_0 : i32
    scf.if %2 {
      %cst_10 = arith.constant 0.000000e+00 : f32
      %12 = vector.broadcast %cst_10 : f32 to vector<32x128xf32>
      %c0_11 = arith.constant 0 : index
      %c0_12 = arith.constant 0 : index
      %13 = vector.load %arg9[%c0_11, %c0_12] : memref<32x128xf32, #tpu.memory_space<vmem>>, vector<32x128xf32>
      tpu.vector_store %arg9[%c0_11, %c0_12], %12 {strides = array<i32>} : memref<32x128xf32, #tpu.memory_space<vmem>>, vector<32x128xf32>,
    } else {
    }
    %c0 = arith.constant 0 : index
    %c0_1 = arith.constant 0 : index
    %3 = vector.load %arg9[%c0, %c0_1] : memref<32x128xf32, #tpu.memory_space<vmem>>, vector<32x128xf32>
    %c0_2 = arith.constant 0 : index
    %c0_3 = arith.constant 0 : index
    %4 = vector.load %arg3[%c0_2, %c0_3] : memref<32x128xbf16, #tpu.memory_space<vmem>>, vector<32x128xbf16>
    %c0_4 = arith.constant 0 : index
    %c0_5 = arith.constant 0 : index
    %5 = vector.load %arg4[%c0_4, %c0_5] : memref<128x128xbf16, #tpu.memory_space<vmem>>, vector<128x128xbf16>
    %cst = arith.constant dense<0.000000e+00> : vector<32x128xf32>
    %6 = tpu.matmul %4, %5, %cst {dimension_numbers = #tpu.dot_dimension_numbers<[1], [0], [0], [1], [0, 0, 1, 1], [], []>} : vector<32x128xbf16>, vector<128x128xbf16>, vector<32x128xf32> -> vector<32x128xf32>
    %7 = arith.addf %3, %6 : vector<32x128xf32>
    %c0_6 = arith.constant 0 : index
    %c0_7 = arith.constant 0 : index
    %8 = vector.load %arg9[%c0_6, %c0_7] : memref<32x128xf32, #tpu.memory_space<vmem>>, vector<32x128xf32>
    tpu.vector_store %arg9[%c0_6, %c0_7], %7 {strides = array<i32>} : memref<32x128xf32, #tpu.memory_space<vmem>>, vector<32x128xf32>,
    %c0_i32_8 = arith.constant 0 : i32
    %9 = arith.cmpi eq, %arg2, %c0_i32_8 : i32
    %10 = arith.extui %9 : i1 to i32
    %c0_i32_9 = arith.constant 0 : i32
    %11 = arith.cmpi ne, %10, %c0_i32_9 : i32
    scf.if %11 {
      %c0_10 = arith.constant 0 : index
      %c0_11 = arith.constant 0 : index
      %12 = vector.load %arg9[%c0_10, %c0_11] : memref<32x128xf32, #tpu.memory_space<vmem>>, vector<32x128xf32>
      %c0_12 = arith.constant 0 : index
      %c0_13 = arith.constant 0 : index
      %13 = vector.load %arg5[%c0_12, %c0_13] : memref<1x128xf32, #tpu.memory_space<vmem>>, vector<1x128xf32>
      %14 = vector.broadcast %13 : vector<1x128xf32> to vector<32x128xf32>
      %15 = arith.mulf %12, %14 : vector<32x128xf32>
      %c0_14 = arith.constant 0 : index
      %c0_15 = arith.constant 0 : index
      %16 = vector.load %arg6[%c0_14, %c0_15] : memref<1x128xf32, #tpu.memory_space<vmem>>, vector<1x128xf32>
      %17 = vector.broadcast %16 : vector<1x128xf32> to vector<32x128xf32>
      %18 = arith.addf %15, %17 : vector<32x128xf32>
      %c0_16 = arith.constant 0 : index
      %c0_17 = arith.constant 0 : index
      %19 = vector.load %arg7[%c0_16, %c0_17] : memref<32x128xbf16, #tpu.memory_space<vmem>>, vector<32x128xbf16>
      %20 = arith.extf %19 : vector<32x128xbf16> to vector<32x128xf32>
      %21 = arith.addf %18, %20 : vector<32x128xf32>
      %cst_18 = arith.constant 0.000000e+00 : f32
      %22 = vector.broadcast %cst_18 : f32 to vector<32x128xf32>
      %23 = arith.maximumf %21, %22 : vector<32x128xf32>
      %24 = arith.truncf %23 : vector<32x128xf32> to vector<32x128xbf16>
      %c0_19 = arith.constant 0 : index
      %c0_20 = arith.constant 0 : index
      %25 = vector.load %arg8[%c0_19, %c0_20] : memref<32x128xbf16, #tpu.memory_space<vmem>>, vector<32x128xbf16>
      tpu.vector_store %arg8[%c0_19, %c0_20], %24 {strides = array<i32>} : memref<32x128xbf16, #tpu.memory_space<vmem>>, vector<32x128xbf16>,
    } else {
    }
    return
  }
  func.func @transform_0(%arg0: i32, %arg1: i32, %arg2: i32) -> (i32, i32) {
    %c0_i32 = arith.constant 0 : i32
    return %arg0, %arg2 : i32, i32
  }
  func.func @transform_1(%arg0: i32, %arg1: i32, %arg2: i32) -> (i32, i32) {
    %c0_i32 = arith.constant 0 : i32
    return %arg2, %arg1 : i32, i32
  }
  func.func @transform_2(%arg0: i32, %arg1: i32, %arg2: i32) -> (i32, i32) {
    %c0_i32 = arith.constant 0 : i32
    %c0_i32_0 = arith.constant 0 : i32
    return %c0_i32, %arg1 : i32, i32
  }
  func.func @transform_3(%arg0: i32, %arg1: i32, %arg2: i32) -> (i32, i32) {
    %c0_i32 = arith.constant 0 : i32
    %c0_i32_0 = arith.constant 0 : i32
    return %c0_i32, %arg1 : i32, i32
  }
  func.func @transform_4(%arg0: i32, %arg1: i32, %arg2: i32) -> (i32, i32) {
    %c0_i32 = arith.constant 0 : i32
    return %arg0, %arg1 : i32, i32
  }
  func.func @transform_5(%arg0: i32, %arg1: i32, %arg2: i32) -> (i32, i32) {
    %c0_i32 = arith.constant 0 : i32
    return %arg0, %arg1 : i32, i32
  }
}

module attributes {stable_mosaic.version = 11 : i64} {
  func.func @_mm_affine_kernel(%arg0: i32, %arg1: i32, %arg2: i32, %arg3: memref<32x128xbf16, #tpu.memory_space<vmem>>, %arg4: memref<128x128xbf16, #tpu.memory_space<vmem>>, %arg5: memref<1x128xf32, #tpu.memory_space<vmem>>, %arg6: memref<1x128xf32, #tpu.memory_space<vmem>>, %arg7: memref<32x128xbf16, #tpu.memory_space<vmem>>, %arg8: memref<32x128xf32, #tpu.memory_space<vmem>>) attributes {dimension_semantics = [#tpu.dimension_semantics<parallel>, #tpu.dimension_semantics<parallel>, #tpu.dimension_semantics<arbitrary>], iteration_bounds = array<i64: 1, 1, 1>, scalar_prefetch = 0 : i64, scratch_operands = 1 : i64, tpu.core_type = #tpu.core_type<tc>, window_params = [{transform_indices = @transform_0, window_bounds = array<i64: 32, 128>}, {transform_indices = @transform_1, window_bounds = array<i64: 128, 128>}, {transform_indices = @transform_2, window_bounds = array<i64: 1, 128>}, {transform_indices = @transform_3, window_bounds = array<i64: 1, 128>}, {transform_indices = @transform_4, window_bounds = array<i64: 32, 128>}]} {
    %c0_i32 = arith.constant 0 : i32
    %0 = arith.cmpi eq, %arg2, %c0_i32 : i32
    %1 = arith.extui %0 : i1 to i32
    %c0_i32_0 = arith.constant 0 : i32
    %2 = arith.cmpi ne, %1, %c0_i32_0 : i32
    scf.if %2 {
      %cst_10 = arith.constant 0.000000e+00 : f32
      %12 = vector.broadcast %cst_10 : f32 to vector<32x128xf32>
      %c0_11 = arith.constant 0 : index
      %c0_12 = arith.constant 0 : index
      %13 = vector.load %arg8[%c0_11, %c0_12] : memref<32x128xf32, #tpu.memory_space<vmem>>, vector<32x128xf32>
      tpu.vector_store %arg8[%c0_11, %c0_12], %12 {strides = array<i32>} : memref<32x128xf32, #tpu.memory_space<vmem>>, vector<32x128xf32>,
    } else {
    }
    %c0 = arith.constant 0 : index
    %c0_1 = arith.constant 0 : index
    %3 = vector.load %arg8[%c0, %c0_1] : memref<32x128xf32, #tpu.memory_space<vmem>>, vector<32x128xf32>
    %c0_2 = arith.constant 0 : index
    %c0_3 = arith.constant 0 : index
    %4 = vector.load %arg3[%c0_2, %c0_3] : memref<32x128xbf16, #tpu.memory_space<vmem>>, vector<32x128xbf16>
    %c0_4 = arith.constant 0 : index
    %c0_5 = arith.constant 0 : index
    %5 = vector.load %arg4[%c0_4, %c0_5] : memref<128x128xbf16, #tpu.memory_space<vmem>>, vector<128x128xbf16>
    %cst = arith.constant dense<0.000000e+00> : vector<32x128xf32>
    %6 = tpu.matmul %4, %5, %cst {dimension_numbers = #tpu.dot_dimension_numbers<[1], [0], [0], [1], [0, 0, 1, 1], [], []>} : vector<32x128xbf16>, vector<128x128xbf16>, vector<32x128xf32> -> vector<32x128xf32>
    %7 = arith.addf %3, %6 : vector<32x128xf32>
    %c0_6 = arith.constant 0 : index
    %c0_7 = arith.constant 0 : index
    %8 = vector.load %arg8[%c0_6, %c0_7] : memref<32x128xf32, #tpu.memory_space<vmem>>, vector<32x128xf32>
    tpu.vector_store %arg8[%c0_6, %c0_7], %7 {strides = array<i32>} : memref<32x128xf32, #tpu.memory_space<vmem>>, vector<32x128xf32>,
    %c0_i32_8 = arith.constant 0 : i32
    %9 = arith.cmpi eq, %arg2, %c0_i32_8 : i32
    %10 = arith.extui %9 : i1 to i32
    %c0_i32_9 = arith.constant 0 : i32
    %11 = arith.cmpi ne, %10, %c0_i32_9 : i32
    scf.if %11 {
      %c0_10 = arith.constant 0 : index
      %c0_11 = arith.constant 0 : index
      %12 = vector.load %arg8[%c0_10, %c0_11] : memref<32x128xf32, #tpu.memory_space<vmem>>, vector<32x128xf32>
      %c0_12 = arith.constant 0 : index
      %c0_13 = arith.constant 0 : index
      %13 = vector.load %arg5[%c0_12, %c0_13] : memref<1x128xf32, #tpu.memory_space<vmem>>, vector<1x128xf32>
      %14 = vector.broadcast %13 : vector<1x128xf32> to vector<32x128xf32>
      %15 = arith.mulf %12, %14 : vector<32x128xf32>
      %c0_14 = arith.constant 0 : index
      %c0_15 = arith.constant 0 : index
      %16 = vector.load %arg6[%c0_14, %c0_15] : memref<1x128xf32, #tpu.memory_space<vmem>>, vector<1x128xf32>
      %17 = vector.broadcast %16 : vector<1x128xf32> to vector<32x128xf32>
      %18 = arith.addf %15, %17 : vector<32x128xf32>
      %cst_16 = arith.constant 0.000000e+00 : f32
      %19 = vector.broadcast %cst_16 : f32 to vector<32x128xf32>
      %20 = arith.maximumf %18, %19 : vector<32x128xf32>
      %21 = arith.truncf %20 : vector<32x128xf32> to vector<32x128xbf16>
      %c0_17 = arith.constant 0 : index
      %c0_18 = arith.constant 0 : index
      %22 = vector.load %arg7[%c0_17, %c0_18] : memref<32x128xbf16, #tpu.memory_space<vmem>>, vector<32x128xbf16>
      tpu.vector_store %arg7[%c0_17, %c0_18], %21 {strides = array<i32>} : memref<32x128xbf16, #tpu.memory_space<vmem>>, vector<32x128xbf16>,
    } else {
    }
    return
  }
  func.func @transform_0(%arg0: i32, %arg1: i32, %arg2: i32) -> (i32, i32) {
    %c0_i32 = arith.constant 0 : i32
    return %arg0, %arg2 : i32, i32
  }
  func.func @transform_1(%arg0: i32, %arg1: i32, %arg2: i32) -> (i32, i32) {
    %c0_i32 = arith.constant 0 : i32
    return %arg2, %arg1 : i32, i32
  }
  func.func @transform_2(%arg0: i32, %arg1: i32, %arg2: i32) -> (i32, i32) {
    %c0_i32 = arith.constant 0 : i32
    %c0_i32_0 = arith.constant 0 : i32
    return %c0_i32, %arg1 : i32, i32
  }
  func.func @transform_3(%arg0: i32, %arg1: i32, %arg2: i32) -> (i32, i32) {
    %c0_i32 = arith.constant 0 : i32
    %c0_i32_0 = arith.constant 0 : i32
    return %c0_i32, %arg1 : i32, i32
  }
  func.func @transform_4(%arg0: i32, %arg1: i32, %arg2: i32) -> (i32, i32) {
    %c0_i32 = arith.constant 0 : i32
    return %arg0, %arg1 : i32, i32
  }
}

module attributes {stable_mosaic.version = 11 : i64} {
  func.func @_mm_affine_kernel(%arg0: i32, %arg1: i32, %arg2: i32, %arg3: memref<8x128xbf16, #tpu.memory_space<vmem>>, %arg4: memref<128x128xbf16, #tpu.memory_space<vmem>>, %arg5: memref<1x128xf32, #tpu.memory_space<vmem>>, %arg6: memref<1x128xf32, #tpu.memory_space<vmem>>, %arg7: memref<8x128xbf16, #tpu.memory_space<vmem>>, %arg8: memref<8x128xf32, #tpu.memory_space<vmem>>) attributes {dimension_semantics = [#tpu.dimension_semantics<parallel>, #tpu.dimension_semantics<parallel>, #tpu.dimension_semantics<arbitrary>], iteration_bounds = array<i64: 1, 1, 1>, scalar_prefetch = 0 : i64, scratch_operands = 1 : i64, tpu.core_type = #tpu.core_type<tc>, window_params = [{transform_indices = @transform_0, window_bounds = array<i64: 8, 128>}, {transform_indices = @transform_1, window_bounds = array<i64: 128, 128>}, {transform_indices = @transform_2, window_bounds = array<i64: 1, 128>}, {transform_indices = @transform_3, window_bounds = array<i64: 1, 128>}, {transform_indices = @transform_4, window_bounds = array<i64: 8, 128>}]} {
    %c0_i32 = arith.constant 0 : i32
    %0 = arith.cmpi eq, %arg2, %c0_i32 : i32
    %1 = arith.extui %0 : i1 to i32
    %c0_i32_0 = arith.constant 0 : i32
    %2 = arith.cmpi ne, %1, %c0_i32_0 : i32
    scf.if %2 {
      %cst_10 = arith.constant 0.000000e+00 : f32
      %12 = vector.broadcast %cst_10 : f32 to vector<8x128xf32>
      %c0_11 = arith.constant 0 : index
      %c0_12 = arith.constant 0 : index
      %13 = vector.load %arg8[%c0_11, %c0_12] : memref<8x128xf32, #tpu.memory_space<vmem>>, vector<8x128xf32>
      tpu.vector_store %arg8[%c0_11, %c0_12], %12 {strides = array<i32>} : memref<8x128xf32, #tpu.memory_space<vmem>>, vector<8x128xf32>,
    } else {
    }
    %c0 = arith.constant 0 : index
    %c0_1 = arith.constant 0 : index
    %3 = vector.load %arg8[%c0, %c0_1] : memref<8x128xf32, #tpu.memory_space<vmem>>, vector<8x128xf32>
    %c0_2 = arith.constant 0 : index
    %c0_3 = arith.constant 0 : index
    %4 = vector.load %arg3[%c0_2, %c0_3] : memref<8x128xbf16, #tpu.memory_space<vmem>>, vector<8x128xbf16>
    %c0_4 = arith.constant 0 : index
    %c0_5 = arith.constant 0 : index
    %5 = vector.load %arg4[%c0_4, %c0_5] : memref<128x128xbf16, #tpu.memory_space<vmem>>, vector<128x128xbf16>
    %cst = arith.constant dense<0.000000e+00> : vector<8x128xf32>
    %6 = tpu.matmul %4, %5, %cst {dimension_numbers = #tpu.dot_dimension_numbers<[1], [0], [0], [1], [0, 0, 1, 1], [], []>} : vector<8x128xbf16>, vector<128x128xbf16>, vector<8x128xf32> -> vector<8x128xf32>
    %7 = arith.addf %3, %6 : vector<8x128xf32>
    %c0_6 = arith.constant 0 : index
    %c0_7 = arith.constant 0 : index
    %8 = vector.load %arg8[%c0_6, %c0_7] : memref<8x128xf32, #tpu.memory_space<vmem>>, vector<8x128xf32>
    tpu.vector_store %arg8[%c0_6, %c0_7], %7 {strides = array<i32>} : memref<8x128xf32, #tpu.memory_space<vmem>>, vector<8x128xf32>,
    %c0_i32_8 = arith.constant 0 : i32
    %9 = arith.cmpi eq, %arg2, %c0_i32_8 : i32
    %10 = arith.extui %9 : i1 to i32
    %c0_i32_9 = arith.constant 0 : i32
    %11 = arith.cmpi ne, %10, %c0_i32_9 : i32
    scf.if %11 {
      %c0_10 = arith.constant 0 : index
      %c0_11 = arith.constant 0 : index
      %12 = vector.load %arg8[%c0_10, %c0_11] : memref<8x128xf32, #tpu.memory_space<vmem>>, vector<8x128xf32>
      %c0_12 = arith.constant 0 : index
      %c0_13 = arith.constant 0 : index
      %13 = vector.load %arg5[%c0_12, %c0_13] : memref<1x128xf32, #tpu.memory_space<vmem>>, vector<1x128xf32>
      %14 = vector.broadcast %13 : vector<1x128xf32> to vector<8x128xf32>
      %15 = arith.mulf %12, %14 : vector<8x128xf32>
      %c0_14 = arith.constant 0 : index
      %c0_15 = arith.constant 0 : index
      %16 = vector.load %arg6[%c0_14, %c0_15] : memref<1x128xf32, #tpu.memory_space<vmem>>, vector<1x128xf32>
      %17 = vector.broadcast %16 : vector<1x128xf32> to vector<8x128xf32>
      %18 = arith.addf %15, %17 : vector<8x128xf32>
      %19 = arith.truncf %18 : vector<8x128xf32> to vector<8x128xbf16>
      %c0_16 = arith.constant 0 : index
      %c0_17 = arith.constant 0 : index
      %20 = vector.load %arg7[%c0_16, %c0_17] : memref<8x128xbf16, #tpu.memory_space<vmem>>, vector<8x128xbf16>
      tpu.vector_store %arg7[%c0_16, %c0_17], %19 {strides = array<i32>} : memref<8x128xbf16, #tpu.memory_space<vmem>>, vector<8x128xbf16>,
    } else {
    }
    return
  }
  func.func @transform_0(%arg0: i32, %arg1: i32, %arg2: i32) -> (i32, i32) {
    %c0_i32 = arith.constant 0 : i32
    return %arg0, %arg2 : i32, i32
  }
  func.func @transform_1(%arg0: i32, %arg1: i32, %arg2: i32) -> (i32, i32) {
    %c0_i32 = arith.constant 0 : i32
    return %arg2, %arg1 : i32, i32
  }
  func.func @transform_2(%arg0: i32, %arg1: i32, %arg2: i32) -> (i32, i32) {
    %c0_i32 = arith.constant 0 : i32
    %c0_i32_0 = arith.constant 0 : i32
    return %c0_i32, %arg1 : i32, i32
  }
  func.func @transform_3(%arg0: i32, %arg1: i32, %arg2: i32) -> (i32, i32) {
    %c0_i32 = arith.constant 0 : i32
    %c0_i32_0 = arith.constant 0 : i32
    return %c0_i32, %arg1 : i32, i32
  }
  func.func @transform_4(%arg0: i32, %arg1: i32, %arg2: i32) -> (i32, i32) {
    %c0_i32 = arith.constant 0 : i32
    return %arg0, %arg1 : i32, i32
  }
}

module attributes {stable_mosaic.version = 11 : i64} {
  func.func @_mm_affine_kernel(%arg0: i32, %arg1: i32, %arg2: i32, %arg3: memref<32x384xbf16, #tpu.memory_space<vmem>>, %arg4: memref<384x128xbf16, #tpu.memory_space<vmem>>, %arg5: memref<1x128xf32, #tpu.memory_space<vmem>>, %arg6: memref<1x128xf32, #tpu.memory_space<vmem>>, %arg7: memref<32x128xbf16, #tpu.memory_space<vmem>>, %arg8: memref<32x128xf32, #tpu.memory_space<vmem>>) attributes {dimension_semantics = [#tpu.dimension_semantics<parallel>, #tpu.dimension_semantics<parallel>, #tpu.dimension_semantics<arbitrary>], iteration_bounds = array<i64: 1, 1, 1>, scalar_prefetch = 0 : i64, scratch_operands = 1 : i64, tpu.core_type = #tpu.core_type<tc>, window_params = [{transform_indices = @transform_0, window_bounds = array<i64: 32, 384>}, {transform_indices = @transform_1, window_bounds = array<i64: 384, 128>}, {transform_indices = @transform_2, window_bounds = array<i64: 1, 128>}, {transform_indices = @transform_3, window_bounds = array<i64: 1, 128>}, {transform_indices = @transform_4, window_bounds = array<i64: 32, 128>}]} {
    %c0_i32 = arith.constant 0 : i32
    %0 = arith.cmpi eq, %arg2, %c0_i32 : i32
    %1 = arith.extui %0 : i1 to i32
    %c0_i32_0 = arith.constant 0 : i32
    %2 = arith.cmpi ne, %1, %c0_i32_0 : i32
    scf.if %2 {
      %cst_10 = arith.constant 0.000000e+00 : f32
      %12 = vector.broadcast %cst_10 : f32 to vector<32x128xf32>
      %c0_11 = arith.constant 0 : index
      %c0_12 = arith.constant 0 : index
      %13 = vector.load %arg8[%c0_11, %c0_12] : memref<32x128xf32, #tpu.memory_space<vmem>>, vector<32x128xf32>
      tpu.vector_store %arg8[%c0_11, %c0_12], %12 {strides = array<i32>} : memref<32x128xf32, #tpu.memory_space<vmem>>, vector<32x128xf32>,
    } else {
    }
    %c0 = arith.constant 0 : index
    %c0_1 = arith.constant 0 : index
    %3 = vector.load %arg8[%c0, %c0_1] : memref<32x128xf32, #tpu.memory_space<vmem>>, vector<32x128xf32>
    %c0_2 = arith.constant 0 : index
    %c0_3 = arith.constant 0 : index
    %4 = vector.load %arg3[%c0_2, %c0_3] : memref<32x384xbf16, #tpu.memory_space<vmem>>, vector<32x384xbf16>
    %c0_4 = arith.constant 0 : index
    %c0_5 = arith.constant 0 : index
    %5 = vector.load %arg4[%c0_4, %c0_5] : memref<384x128xbf16, #tpu.memory_space<vmem>>, vector<384x128xbf16>
    %cst = arith.constant dense<0.000000e+00> : vector<32x128xf32>
    %6 = tpu.matmul %4, %5, %cst {dimension_numbers = #tpu.dot_dimension_numbers<[1], [0], [0], [1], [0, 0, 1, 1], [], []>} : vector<32x384xbf16>, vector<384x128xbf16>, vector<32x128xf32> -> vector<32x128xf32>
    %7 = arith.addf %3, %6 : vector<32x128xf32>
    %c0_6 = arith.constant 0 : index
    %c0_7 = arith.constant 0 : index
    %8 = vector.load %arg8[%c0_6, %c0_7] : memref<32x128xf32, #tpu.memory_space<vmem>>, vector<32x128xf32>
    tpu.vector_store %arg8[%c0_6, %c0_7], %7 {strides = array<i32>} : memref<32x128xf32, #tpu.memory_space<vmem>>, vector<32x128xf32>,
    %c0_i32_8 = arith.constant 0 : i32
    %9 = arith.cmpi eq, %arg2, %c0_i32_8 : i32
    %10 = arith.extui %9 : i1 to i32
    %c0_i32_9 = arith.constant 0 : i32
    %11 = arith.cmpi ne, %10, %c0_i32_9 : i32
    scf.if %11 {
      %c0_10 = arith.constant 0 : index
      %c0_11 = arith.constant 0 : index
      %12 = vector.load %arg8[%c0_10, %c0_11] : memref<32x128xf32, #tpu.memory_space<vmem>>, vector<32x128xf32>
      %c0_12 = arith.constant 0 : index
      %c0_13 = arith.constant 0 : index
      %13 = vector.load %arg5[%c0_12, %c0_13] : memref<1x128xf32, #tpu.memory_space<vmem>>, vector<1x128xf32>
      %14 = vector.broadcast %13 : vector<1x128xf32> to vector<32x128xf32>
      %15 = arith.mulf %12, %14 : vector<32x128xf32>
      %c0_14 = arith.constant 0 : index
      %c0_15 = arith.constant 0 : index
      %16 = vector.load %arg6[%c0_14, %c0_15] : memref<1x128xf32, #tpu.memory_space<vmem>>, vector<1x128xf32>
      %17 = vector.broadcast %16 : vector<1x128xf32> to vector<32x128xf32>
      %18 = arith.addf %15, %17 : vector<32x128xf32>
      %cst_16 = arith.constant 0.000000e+00 : f32
      %19 = vector.broadcast %cst_16 : f32 to vector<32x128xf32>
      %20 = arith.maximumf %18, %19 : vector<32x128xf32>
      %21 = arith.truncf %20 : vector<32x128xf32> to vector<32x128xbf16>
      %c0_17 = arith.constant 0 : index
      %c0_18 = arith.constant 0 : index
      %22 = vector.load %arg7[%c0_17, %c0_18] : memref<32x128xbf16, #tpu.memory_space<vmem>>, vector<32x128xbf16>
      tpu.vector_store %arg7[%c0_17, %c0_18], %21 {strides = array<i32>} : memref<32x128xbf16, #tpu.memory_space<vmem>>, vector<32x128xbf16>,
    } else {
    }
    return
  }
  func.func @transform_0(%arg0: i32, %arg1: i32, %arg2: i32) -> (i32, i32) {
    %c0_i32 = arith.constant 0 : i32
    return %arg0, %arg2 : i32, i32
  }
  func.func @transform_1(%arg0: i32, %arg1: i32, %arg2: i32) -> (i32, i32) {
    %c0_i32 = arith.constant 0 : i32
    return %arg2, %arg1 : i32, i32
  }
  func.func @transform_2(%arg0: i32, %arg1: i32, %arg2: i32) -> (i32, i32) {
    %c0_i32 = arith.constant 0 : i32
    %c0_i32_0 = arith.constant 0 : i32
    return %c0_i32, %arg1 : i32, i32
  }
  func.func @transform_3(%arg0: i32, %arg1: i32, %arg2: i32) -> (i32, i32) {
    %c0_i32 = arith.constant 0 : i32
    %c0_i32_0 = arith.constant 0 : i32
    return %c0_i32, %arg1 : i32, i32
  }
  func.func @transform_4(%arg0: i32, %arg1: i32, %arg2: i32) -> (i32, i32) {
    %c0_i32 = arith.constant 0 : i32
    return %arg0, %arg1 : i32, i32
  }
}

module attributes {stable_mosaic.version = 11 : i64} {
  func.func @_mm_affine_res_kernel(%arg0: i32, %arg1: i32, %arg2: i32, %arg3: memref<8x128xbf16, #tpu.memory_space<vmem>>, %arg4: memref<128x128xbf16, #tpu.memory_space<vmem>>, %arg5: memref<1x128xf32, #tpu.memory_space<vmem>>, %arg6: memref<1x128xf32, #tpu.memory_space<vmem>>, %arg7: memref<8x128xbf16, #tpu.memory_space<vmem>>, %arg8: memref<8x128xbf16, #tpu.memory_space<vmem>>, %arg9: memref<8x128xf32, #tpu.memory_space<vmem>>) attributes {dimension_semantics = [#tpu.dimension_semantics<parallel>, #tpu.dimension_semantics<parallel>, #tpu.dimension_semantics<arbitrary>], iteration_bounds = array<i64: 1, 1, 1>, scalar_prefetch = 0 : i64, scratch_operands = 1 : i64, tpu.core_type = #tpu.core_type<tc>, window_params = [{transform_indices = @transform_0, window_bounds = array<i64: 8, 128>}, {transform_indices = @transform_1, window_bounds = array<i64: 128, 128>}, {transform_indices = @transform_2, window_bounds = array<i64: 1, 128>}, {transform_indices = @transform_3, window_bounds = array<i64: 1, 128>}, {transform_indices = @transform_4, window_bounds = array<i64: 8, 128>}, {transform_indices = @transform_5, window_bounds = array<i64: 8, 128>}]} {
    %c0_i32 = arith.constant 0 : i32
    %0 = arith.cmpi eq, %arg2, %c0_i32 : i32
    %1 = arith.extui %0 : i1 to i32
    %c0_i32_0 = arith.constant 0 : i32
    %2 = arith.cmpi ne, %1, %c0_i32_0 : i32
    scf.if %2 {
      %cst_10 = arith.constant 0.000000e+00 : f32
      %12 = vector.broadcast %cst_10 : f32 to vector<8x128xf32>
      %c0_11 = arith.constant 0 : index
      %c0_12 = arith.constant 0 : index
      %13 = vector.load %arg9[%c0_11, %c0_12] : memref<8x128xf32, #tpu.memory_space<vmem>>, vector<8x128xf32>
      tpu.vector_store %arg9[%c0_11, %c0_12], %12 {strides = array<i32>} : memref<8x128xf32, #tpu.memory_space<vmem>>, vector<8x128xf32>,
    } else {
    }
    %c0 = arith.constant 0 : index
    %c0_1 = arith.constant 0 : index
    %3 = vector.load %arg9[%c0, %c0_1] : memref<8x128xf32, #tpu.memory_space<vmem>>, vector<8x128xf32>
    %c0_2 = arith.constant 0 : index
    %c0_3 = arith.constant 0 : index
    %4 = vector.load %arg3[%c0_2, %c0_3] : memref<8x128xbf16, #tpu.memory_space<vmem>>, vector<8x128xbf16>
    %c0_4 = arith.constant 0 : index
    %c0_5 = arith.constant 0 : index
    %5 = vector.load %arg4[%c0_4, %c0_5] : memref<128x128xbf16, #tpu.memory_space<vmem>>, vector<128x128xbf16>
    %cst = arith.constant dense<0.000000e+00> : vector<8x128xf32>
    %6 = tpu.matmul %4, %5, %cst {dimension_numbers = #tpu.dot_dimension_numbers<[1], [0], [0], [1], [0, 0, 1, 1], [], []>} : vector<8x128xbf16>, vector<128x128xbf16>, vector<8x128xf32> -> vector<8x128xf32>
    %7 = arith.addf %3, %6 : vector<8x128xf32>
    %c0_6 = arith.constant 0 : index
    %c0_7 = arith.constant 0 : index
    %8 = vector.load %arg9[%c0_6, %c0_7] : memref<8x128xf32, #tpu.memory_space<vmem>>, vector<8x128xf32>
    tpu.vector_store %arg9[%c0_6, %c0_7], %7 {strides = array<i32>} : memref<8x128xf32, #tpu.memory_space<vmem>>, vector<8x128xf32>,
    %c0_i32_8 = arith.constant 0 : i32
    %9 = arith.cmpi eq, %arg2, %c0_i32_8 : i32
    %10 = arith.extui %9 : i1 to i32
    %c0_i32_9 = arith.constant 0 : i32
    %11 = arith.cmpi ne, %10, %c0_i32_9 : i32
    scf.if %11 {
      %c0_10 = arith.constant 0 : index
      %c0_11 = arith.constant 0 : index
      %12 = vector.load %arg9[%c0_10, %c0_11] : memref<8x128xf32, #tpu.memory_space<vmem>>, vector<8x128xf32>
      %c0_12 = arith.constant 0 : index
      %c0_13 = arith.constant 0 : index
      %13 = vector.load %arg5[%c0_12, %c0_13] : memref<1x128xf32, #tpu.memory_space<vmem>>, vector<1x128xf32>
      %14 = vector.broadcast %13 : vector<1x128xf32> to vector<8x128xf32>
      %15 = arith.mulf %12, %14 : vector<8x128xf32>
      %c0_14 = arith.constant 0 : index
      %c0_15 = arith.constant 0 : index
      %16 = vector.load %arg6[%c0_14, %c0_15] : memref<1x128xf32, #tpu.memory_space<vmem>>, vector<1x128xf32>
      %17 = vector.broadcast %16 : vector<1x128xf32> to vector<8x128xf32>
      %18 = arith.addf %15, %17 : vector<8x128xf32>
      %c0_16 = arith.constant 0 : index
      %c0_17 = arith.constant 0 : index
      %19 = vector.load %arg7[%c0_16, %c0_17] : memref<8x128xbf16, #tpu.memory_space<vmem>>, vector<8x128xbf16>
      %20 = arith.extf %19 : vector<8x128xbf16> to vector<8x128xf32>
      %21 = arith.addf %18, %20 : vector<8x128xf32>
      %cst_18 = arith.constant 0.000000e+00 : f32
      %22 = vector.broadcast %cst_18 : f32 to vector<8x128xf32>
      %23 = arith.maximumf %21, %22 : vector<8x128xf32>
      %24 = arith.truncf %23 : vector<8x128xf32> to vector<8x128xbf16>
      %c0_19 = arith.constant 0 : index
      %c0_20 = arith.constant 0 : index
      %25 = vector.load %arg8[%c0_19, %c0_20] : memref<8x128xbf16, #tpu.memory_space<vmem>>, vector<8x128xbf16>
      tpu.vector_store %arg8[%c0_19, %c0_20], %24 {strides = array<i32>} : memref<8x128xbf16, #tpu.memory_space<vmem>>, vector<8x128xbf16>,
    } else {
    }
    return
  }
  func.func @transform_0(%arg0: i32, %arg1: i32, %arg2: i32) -> (i32, i32) {
    %c0_i32 = arith.constant 0 : i32
    return %arg0, %arg2 : i32, i32
  }
  func.func @transform_1(%arg0: i32, %arg1: i32, %arg2: i32) -> (i32, i32) {
    %c0_i32 = arith.constant 0 : i32
    return %arg2, %arg1 : i32, i32
  }
  func.func @transform_2(%arg0: i32, %arg1: i32, %arg2: i32) -> (i32, i32) {
    %c0_i32 = arith.constant 0 : i32
    %c0_i32_0 = arith.constant 0 : i32
    return %c0_i32, %arg1 : i32, i32
  }
  func.func @transform_3(%arg0: i32, %arg1: i32, %arg2: i32) -> (i32, i32) {
    %c0_i32 = arith.constant 0 : i32
    %c0_i32_0 = arith.constant 0 : i32
    return %c0_i32, %arg1 : i32, i32
  }
  func.func @transform_4(%arg0: i32, %arg1: i32, %arg2: i32) -> (i32, i32) {
    %c0_i32 = arith.constant 0 : i32
    return %arg0, %arg1 : i32, i32
  }
  func.func @transform_5(%arg0: i32, %arg1: i32, %arg2: i32) -> (i32, i32) {
    %c0_i32 = arith.constant 0 : i32
    return %arg0, %arg1 : i32, i32
  }
}

module attributes {stable_mosaic.version = 11 : i64} {
  func.func @_mm_affine_kernel(%arg0: i32, %arg1: i32, %arg2: i32, %arg3: memref<8x128xbf16, #tpu.memory_space<vmem>>, %arg4: memref<128x256xbf16, #tpu.memory_space<vmem>>, %arg5: memref<1x256xf32, #tpu.memory_space<vmem>>, %arg6: memref<1x256xf32, #tpu.memory_space<vmem>>, %arg7: memref<8x256xbf16, #tpu.memory_space<vmem>>, %arg8: memref<8x256xf32, #tpu.memory_space<vmem>>) attributes {dimension_semantics = [#tpu.dimension_semantics<parallel>, #tpu.dimension_semantics<parallel>, #tpu.dimension_semantics<arbitrary>], iteration_bounds = array<i64: 1, 1, 1>, scalar_prefetch = 0 : i64, scratch_operands = 1 : i64, tpu.core_type = #tpu.core_type<tc>, window_params = [{transform_indices = @transform_0, window_bounds = array<i64: 8, 128>}, {transform_indices = @transform_1, window_bounds = array<i64: 128, 256>}, {transform_indices = @transform_2, window_bounds = array<i64: 1, 256>}, {transform_indices = @transform_3, window_bounds = array<i64: 1, 256>}, {transform_indices = @transform_4, window_bounds = array<i64: 8, 256>}]} {
    %c0_i32 = arith.constant 0 : i32
    %0 = arith.cmpi eq, %arg2, %c0_i32 : i32
    %1 = arith.extui %0 : i1 to i32
    %c0_i32_0 = arith.constant 0 : i32
    %2 = arith.cmpi ne, %1, %c0_i32_0 : i32
    scf.if %2 {
      %cst_10 = arith.constant 0.000000e+00 : f32
      %12 = vector.broadcast %cst_10 : f32 to vector<8x256xf32>
      %c0_11 = arith.constant 0 : index
      %c0_12 = arith.constant 0 : index
      %13 = vector.load %arg8[%c0_11, %c0_12] : memref<8x256xf32, #tpu.memory_space<vmem>>, vector<8x256xf32>
      tpu.vector_store %arg8[%c0_11, %c0_12], %12 {strides = array<i32>} : memref<8x256xf32, #tpu.memory_space<vmem>>, vector<8x256xf32>,
    } else {
    }
    %c0 = arith.constant 0 : index
    %c0_1 = arith.constant 0 : index
    %3 = vector.load %arg8[%c0, %c0_1] : memref<8x256xf32, #tpu.memory_space<vmem>>, vector<8x256xf32>
    %c0_2 = arith.constant 0 : index
    %c0_3 = arith.constant 0 : index
    %4 = vector.load %arg3[%c0_2, %c0_3] : memref<8x128xbf16, #tpu.memory_space<vmem>>, vector<8x128xbf16>
    %c0_4 = arith.constant 0 : index
    %c0_5 = arith.constant 0 : index
    %5 = vector.load %arg4[%c0_4, %c0_5] : memref<128x256xbf16, #tpu.memory_space<vmem>>, vector<128x256xbf16>
    %cst = arith.constant dense<0.000000e+00> : vector<8x256xf32>
    %6 = tpu.matmul %4, %5, %cst {dimension_numbers = #tpu.dot_dimension_numbers<[1], [0], [0], [1], [0, 0, 1, 1], [], []>} : vector<8x128xbf16>, vector<128x256xbf16>, vector<8x256xf32> -> vector<8x256xf32>
    %7 = arith.addf %3, %6 : vector<8x256xf32>
    %c0_6 = arith.constant 0 : index
    %c0_7 = arith.constant 0 : index
    %8 = vector.load %arg8[%c0_6, %c0_7] : memref<8x256xf32, #tpu.memory_space<vmem>>, vector<8x256xf32>
    tpu.vector_store %arg8[%c0_6, %c0_7], %7 {strides = array<i32>} : memref<8x256xf32, #tpu.memory_space<vmem>>, vector<8x256xf32>,
    %c0_i32_8 = arith.constant 0 : i32
    %9 = arith.cmpi eq, %arg2, %c0_i32_8 : i32
    %10 = arith.extui %9 : i1 to i32
    %c0_i32_9 = arith.constant 0 : i32
    %11 = arith.cmpi ne, %10, %c0_i32_9 : i32
    scf.if %11 {
      %c0_10 = arith.constant 0 : index
      %c0_11 = arith.constant 0 : index
      %12 = vector.load %arg8[%c0_10, %c0_11] : memref<8x256xf32, #tpu.memory_space<vmem>>, vector<8x256xf32>
      %c0_12 = arith.constant 0 : index
      %c0_13 = arith.constant 0 : index
      %13 = vector.load %arg5[%c0_12, %c0_13] : memref<1x256xf32, #tpu.memory_space<vmem>>, vector<1x256xf32>
      %14 = vector.broadcast %13 : vector<1x256xf32> to vector<8x256xf32>
      %15 = arith.mulf %12, %14 : vector<8x256xf32>
      %c0_14 = arith.constant 0 : index
      %c0_15 = arith.constant 0 : index
      %16 = vector.load %arg6[%c0_14, %c0_15] : memref<1x256xf32, #tpu.memory_space<vmem>>, vector<1x256xf32>
      %17 = vector.broadcast %16 : vector<1x256xf32> to vector<8x256xf32>
      %18 = arith.addf %15, %17 : vector<8x256xf32>
      %19 = arith.truncf %18 : vector<8x256xf32> to vector<8x256xbf16>
      %c0_16 = arith.constant 0 : index
      %c0_17 = arith.constant 0 : index
      %20 = vector.load %arg7[%c0_16, %c0_17] : memref<8x256xbf16, #tpu.memory_space<vmem>>, vector<8x256xbf16>
      tpu.vector_store %arg7[%c0_16, %c0_17], %19 {strides = array<i32>} : memref<8x256xbf16, #tpu.memory_space<vmem>>, vector<8x256xbf16>,
    } else {
    }
    return
  }
  func.func @transform_0(%arg0: i32, %arg1: i32, %arg2: i32) -> (i32, i32) {
    %c0_i32 = arith.constant 0 : i32
    return %arg0, %arg2 : i32, i32
  }
  func.func @transform_1(%arg0: i32, %arg1: i32, %arg2: i32) -> (i32, i32) {
    %c0_i32 = arith.constant 0 : i32
    return %arg2, %arg1 : i32, i32
  }
  func.func @transform_2(%arg0: i32, %arg1: i32, %arg2: i32) -> (i32, i32) {
    %c0_i32 = arith.constant 0 : i32
    %c0_i32_0 = arith.constant 0 : i32
    return %c0_i32, %arg1 : i32, i32
  }
  func.func @transform_3(%arg0: i32, %arg1: i32, %arg2: i32) -> (i32, i32) {
    %c0_i32 = arith.constant 0 : i32
    %c0_i32_0 = arith.constant 0 : i32
    return %c0_i32, %arg1 : i32, i32
  }
  func.func @transform_4(%arg0: i32, %arg1: i32, %arg2: i32) -> (i32, i32) {
    %c0_i32 = arith.constant 0 : i32
    return %arg0, %arg1 : i32, i32
  }
}

module attributes {stable_mosaic.version = 11 : i64} {
  func.func @_mm_affine_kernel(%arg0: i32, %arg1: i32, %arg2: i32, %arg3: memref<8x128xbf16, #tpu.memory_space<vmem>>, %arg4: memref<128x128xbf16, #tpu.memory_space<vmem>>, %arg5: memref<1x128xf32, #tpu.memory_space<vmem>>, %arg6: memref<1x128xf32, #tpu.memory_space<vmem>>, %arg7: memref<8x128xbf16, #tpu.memory_space<vmem>>, %arg8: memref<8x128xf32, #tpu.memory_space<vmem>>) attributes {dimension_semantics = [#tpu.dimension_semantics<parallel>, #tpu.dimension_semantics<parallel>, #tpu.dimension_semantics<arbitrary>], iteration_bounds = array<i64: 1, 1, 1>, scalar_prefetch = 0 : i64, scratch_operands = 1 : i64, tpu.core_type = #tpu.core_type<tc>, window_params = [{transform_indices = @transform_0, window_bounds = array<i64: 8, 128>}, {transform_indices = @transform_1, window_bounds = array<i64: 128, 128>}, {transform_indices = @transform_2, window_bounds = array<i64: 1, 128>}, {transform_indices = @transform_3, window_bounds = array<i64: 1, 128>}, {transform_indices = @transform_4, window_bounds = array<i64: 8, 128>}]} {
    %c0_i32 = arith.constant 0 : i32
    %0 = arith.cmpi eq, %arg2, %c0_i32 : i32
    %1 = arith.extui %0 : i1 to i32
    %c0_i32_0 = arith.constant 0 : i32
    %2 = arith.cmpi ne, %1, %c0_i32_0 : i32
    scf.if %2 {
      %cst_10 = arith.constant 0.000000e+00 : f32
      %12 = vector.broadcast %cst_10 : f32 to vector<8x128xf32>
      %c0_11 = arith.constant 0 : index
      %c0_12 = arith.constant 0 : index
      %13 = vector.load %arg8[%c0_11, %c0_12] : memref<8x128xf32, #tpu.memory_space<vmem>>, vector<8x128xf32>
      tpu.vector_store %arg8[%c0_11, %c0_12], %12 {strides = array<i32>} : memref<8x128xf32, #tpu.memory_space<vmem>>, vector<8x128xf32>,
    } else {
    }
    %c0 = arith.constant 0 : index
    %c0_1 = arith.constant 0 : index
    %3 = vector.load %arg8[%c0, %c0_1] : memref<8x128xf32, #tpu.memory_space<vmem>>, vector<8x128xf32>
    %c0_2 = arith.constant 0 : index
    %c0_3 = arith.constant 0 : index
    %4 = vector.load %arg3[%c0_2, %c0_3] : memref<8x128xbf16, #tpu.memory_space<vmem>>, vector<8x128xbf16>
    %c0_4 = arith.constant 0 : index
    %c0_5 = arith.constant 0 : index
    %5 = vector.load %arg4[%c0_4, %c0_5] : memref<128x128xbf16, #tpu.memory_space<vmem>>, vector<128x128xbf16>
    %cst = arith.constant dense<0.000000e+00> : vector<8x128xf32>
    %6 = tpu.matmul %4, %5, %cst {dimension_numbers = #tpu.dot_dimension_numbers<[1], [0], [0], [1], [0, 0, 1, 1], [], []>} : vector<8x128xbf16>, vector<128x128xbf16>, vector<8x128xf32> -> vector<8x128xf32>
    %7 = arith.addf %3, %6 : vector<8x128xf32>
    %c0_6 = arith.constant 0 : index
    %c0_7 = arith.constant 0 : index
    %8 = vector.load %arg8[%c0_6, %c0_7] : memref<8x128xf32, #tpu.memory_space<vmem>>, vector<8x128xf32>
    tpu.vector_store %arg8[%c0_6, %c0_7], %7 {strides = array<i32>} : memref<8x128xf32, #tpu.memory_space<vmem>>, vector<8x128xf32>,
    %c0_i32_8 = arith.constant 0 : i32
    %9 = arith.cmpi eq, %arg2, %c0_i32_8 : i32
    %10 = arith.extui %9 : i1 to i32
    %c0_i32_9 = arith.constant 0 : i32
    %11 = arith.cmpi ne, %10, %c0_i32_9 : i32
    scf.if %11 {
      %c0_10 = arith.constant 0 : index
      %c0_11 = arith.constant 0 : index
      %12 = vector.load %arg8[%c0_10, %c0_11] : memref<8x128xf32, #tpu.memory_space<vmem>>, vector<8x128xf32>
      %c0_12 = arith.constant 0 : index
      %c0_13 = arith.constant 0 : index
      %13 = vector.load %arg5[%c0_12, %c0_13] : memref<1x128xf32, #tpu.memory_space<vmem>>, vector<1x128xf32>
      %14 = vector.broadcast %13 : vector<1x128xf32> to vector<8x128xf32>
      %15 = arith.mulf %12, %14 : vector<8x128xf32>
      %c0_14 = arith.constant 0 : index
      %c0_15 = arith.constant 0 : index
      %16 = vector.load %arg6[%c0_14, %c0_15] : memref<1x128xf32, #tpu.memory_space<vmem>>, vector<1x128xf32>
      %17 = vector.broadcast %16 : vector<1x128xf32> to vector<8x128xf32>
      %18 = arith.addf %15, %17 : vector<8x128xf32>
      %cst_16 = arith.constant 0.000000e+00 : f32
      %19 = vector.broadcast %cst_16 : f32 to vector<8x128xf32>
      %20 = arith.maximumf %18, %19 : vector<8x128xf32>
      %21 = arith.truncf %20 : vector<8x128xf32> to vector<8x128xbf16>
      %c0_17 = arith.constant 0 : index
      %c0_18 = arith.constant 0 : index
      %22 = vector.load %arg7[%c0_17, %c0_18] : memref<8x128xbf16, #tpu.memory_space<vmem>>, vector<8x128xbf16>
      tpu.vector_store %arg7[%c0_17, %c0_18], %21 {strides = array<i32>} : memref<8x128xbf16, #tpu.memory_space<vmem>>, vector<8x128xbf16>,
    } else {
    }
    return
  }
  func.func @transform_0(%arg0: i32, %arg1: i32, %arg2: i32) -> (i32, i32) {
    %c0_i32 = arith.constant 0 : i32
    return %arg0, %arg2 : i32, i32
  }
  func.func @transform_1(%arg0: i32, %arg1: i32, %arg2: i32) -> (i32, i32) {
    %c0_i32 = arith.constant 0 : i32
    return %arg2, %arg1 : i32, i32
  }
  func.func @transform_2(%arg0: i32, %arg1: i32, %arg2: i32) -> (i32, i32) {
    %c0_i32 = arith.constant 0 : i32
    %c0_i32_0 = arith.constant 0 : i32
    return %c0_i32, %arg1 : i32, i32
  }
  func.func @transform_3(%arg0: i32, %arg1: i32, %arg2: i32) -> (i32, i32) {
    %c0_i32 = arith.constant 0 : i32
    %c0_i32_0 = arith.constant 0 : i32
    return %c0_i32, %arg1 : i32, i32
  }
  func.func @transform_4(%arg0: i32, %arg1: i32, %arg2: i32) -> (i32, i32) {
    %c0_i32 = arith.constant 0 : i32
    return %arg0, %arg1 : i32, i32
  }
}

module attributes {stable_mosaic.version = 11 : i64} {
  func.func @_mm_affine_kernel(%arg0: i32, %arg1: i32, %arg2: i32, %arg3: memref<8x512xbf16, #tpu.memory_space<vmem>>, %arg4: memref<512x128xbf16, #tpu.memory_space<vmem>>, %arg5: memref<1x128xf32, #tpu.memory_space<vmem>>, %arg6: memref<1x128xf32, #tpu.memory_space<vmem>>, %arg7: memref<8x128xbf16, #tpu.memory_space<vmem>>, %arg8: memref<8x128xf32, #tpu.memory_space<vmem>>) attributes {dimension_semantics = [#tpu.dimension_semantics<parallel>, #tpu.dimension_semantics<parallel>, #tpu.dimension_semantics<arbitrary>], iteration_bounds = array<i64: 1, 1, 2>, scalar_prefetch = 0 : i64, scratch_operands = 1 : i64, tpu.core_type = #tpu.core_type<tc>, window_params = [{transform_indices = @transform_0, window_bounds = array<i64: 8, 512>}, {transform_indices = @transform_1, window_bounds = array<i64: 512, 128>}, {transform_indices = @transform_2, window_bounds = array<i64: 1, 128>}, {transform_indices = @transform_3, window_bounds = array<i64: 1, 128>}, {transform_indices = @transform_4, window_bounds = array<i64: 8, 128>}]} {
    %c0_i32 = arith.constant 0 : i32
    %0 = arith.cmpi eq, %arg2, %c0_i32 : i32
    %1 = arith.extui %0 : i1 to i32
    %c0_i32_0 = arith.constant 0 : i32
    %2 = arith.cmpi ne, %1, %c0_i32_0 : i32
    scf.if %2 {
      %cst_9 = arith.constant 0.000000e+00 : f32
      %12 = vector.broadcast %cst_9 : f32 to vector<8x128xf32>
      %c0_10 = arith.constant 0 : index
      %c0_11 = arith.constant 0 : index
      %13 = vector.load %arg8[%c0_10, %c0_11] : memref<8x128xf32, #tpu.memory_space<vmem>>, vector<8x128xf32>
      tpu.vector_store %arg8[%c0_10, %c0_11], %12 {strides = array<i32>} : memref<8x128xf32, #tpu.memory_space<vmem>>, vector<8x128xf32>,
    } else {
    }
    %c0 = arith.constant 0 : index
    %c0_1 = arith.constant 0 : index
    %3 = vector.load %arg8[%c0, %c0_1] : memref<8x128xf32, #tpu.memory_space<vmem>>, vector<8x128xf32>
    %c0_2 = arith.constant 0 : index
    %c0_3 = arith.constant 0 : index
    %4 = vector.load %arg3[%c0_2, %c0_3] : memref<8x512xbf16, #tpu.memory_space<vmem>>, vector<8x512xbf16>
    %c0_4 = arith.constant 0 : index
    %c0_5 = arith.constant 0 : index
    %5 = vector.load %arg4[%c0_4, %c0_5] : memref<512x128xbf16, #tpu.memory_space<vmem>>, vector<512x128xbf16>
    %cst = arith.constant dense<0.000000e+00> : vector<8x128xf32>
    %6 = tpu.matmul %4, %5, %cst {dimension_numbers = #tpu.dot_dimension_numbers<[1], [0], [0], [1], [0, 0, 1, 1], [], []>} : vector<8x512xbf16>, vector<512x128xbf16>, vector<8x128xf32> -> vector<8x128xf32>
    %7 = arith.addf %3, %6 : vector<8x128xf32>
    %c0_6 = arith.constant 0 : index
    %c0_7 = arith.constant 0 : index
    %8 = vector.load %arg8[%c0_6, %c0_7] : memref<8x128xf32, #tpu.memory_space<vmem>>, vector<8x128xf32>
    tpu.vector_store %arg8[%c0_6, %c0_7], %7 {strides = array<i32>} : memref<8x128xf32, #tpu.memory_space<vmem>>, vector<8x128xf32>,
    %c1_i32 = arith.constant 1 : i32
    %9 = arith.cmpi eq, %arg2, %c1_i32 : i32
    %10 = arith.extui %9 : i1 to i32
    %c0_i32_8 = arith.constant 0 : i32
    %11 = arith.cmpi ne, %10, %c0_i32_8 : i32
    scf.if %11 {
      %c0_9 = arith.constant 0 : index
      %c0_10 = arith.constant 0 : index
      %12 = vector.load %arg8[%c0_9, %c0_10] : memref<8x128xf32, #tpu.memory_space<vmem>>, vector<8x128xf32>
      %c0_11 = arith.constant 0 : index
      %c0_12 = arith.constant 0 : index
      %13 = vector.load %arg5[%c0_11, %c0_12] : memref<1x128xf32, #tpu.memory_space<vmem>>, vector<1x128xf32>
      %14 = vector.broadcast %13 : vector<1x128xf32> to vector<8x128xf32>
      %15 = arith.mulf %12, %14 : vector<8x128xf32>
      %c0_13 = arith.constant 0 : index
      %c0_14 = arith.constant 0 : index
      %16 = vector.load %arg6[%c0_13, %c0_14] : memref<1x128xf32, #tpu.memory_space<vmem>>, vector<1x128xf32>
      %17 = vector.broadcast %16 : vector<1x128xf32> to vector<8x128xf32>
      %18 = arith.addf %15, %17 : vector<8x128xf32>
      %cst_15 = arith.constant 0.000000e+00 : f32
      %19 = vector.broadcast %cst_15 : f32 to vector<8x128xf32>
      %20 = arith.maximumf %18, %19 : vector<8x128xf32>
      %21 = arith.truncf %20 : vector<8x128xf32> to vector<8x128xbf16>
      %c0_16 = arith.constant 0 : index
      %c0_17 = arith.constant 0 : index
      %22 = vector.load %arg7[%c0_16, %c0_17] : memref<8x128xbf16, #tpu.memory_space<vmem>>, vector<8x128xbf16>
      tpu.vector_store %arg7[%c0_16, %c0_17], %21 {strides = array<i32>} : memref<8x128xbf16, #tpu.memory_space<vmem>>, vector<8x128xbf16>,
    } else {
    }
    return
  }
  func.func @transform_0(%arg0: i32, %arg1: i32, %arg2: i32) -> (i32, i32) {
    %c0_i32 = arith.constant 0 : i32
    return %arg0, %arg2 : i32, i32
  }
  func.func @transform_1(%arg0: i32, %arg1: i32, %arg2: i32) -> (i32, i32) {
    %c0_i32 = arith.constant 0 : i32
    return %arg2, %arg1 : i32, i32
  }
  func.func @transform_2(%arg0: i32, %arg1: i32, %arg2: i32) -> (i32, i32) {
    %c0_i32 = arith.constant 0 : i32
    %c0_i32_0 = arith.constant 0 : i32
    return %c0_i32, %arg1 : i32, i32
  }
  func.func @transform_3(%arg0: i32, %arg1: i32, %arg2: i32) -> (i32, i32) {
    %c0_i32 = arith.constant 0 : i32
    %c0_i32_0 = arith.constant 0 : i32
    return %c0_i32, %arg1 : i32, i32
  }
  func.func @transform_4(%arg0: i32, %arg1: i32, %arg2: i32) -> (i32, i32) {
    %c0_i32 = arith.constant 0 : i32
    return %arg0, %arg1 : i32, i32
  }
}

module attributes {stable_mosaic.version = 11 : i64} {
  func.func @_mm_affine_res_kernel(%arg0: i32, %arg1: i32, %arg2: i32, %arg3: memref<8x128xbf16, #tpu.memory_space<vmem>>, %arg4: memref<128x256xbf16, #tpu.memory_space<vmem>>, %arg5: memref<1x256xf32, #tpu.memory_space<vmem>>, %arg6: memref<1x256xf32, #tpu.memory_space<vmem>>, %arg7: memref<8x256xbf16, #tpu.memory_space<vmem>>, %arg8: memref<8x256xbf16, #tpu.memory_space<vmem>>, %arg9: memref<8x256xf32, #tpu.memory_space<vmem>>) attributes {dimension_semantics = [#tpu.dimension_semantics<parallel>, #tpu.dimension_semantics<parallel>, #tpu.dimension_semantics<arbitrary>], iteration_bounds = array<i64: 1, 1, 1>, scalar_prefetch = 0 : i64, scratch_operands = 1 : i64, tpu.core_type = #tpu.core_type<tc>, window_params = [{transform_indices = @transform_0, window_bounds = array<i64: 8, 128>}, {transform_indices = @transform_1, window_bounds = array<i64: 128, 256>}, {transform_indices = @transform_2, window_bounds = array<i64: 1, 256>}, {transform_indices = @transform_3, window_bounds = array<i64: 1, 256>}, {transform_indices = @transform_4, window_bounds = array<i64: 8, 256>}, {transform_indices = @transform_5, window_bounds = array<i64: 8, 256>}]} {
    %c0_i32 = arith.constant 0 : i32
    %0 = arith.cmpi eq, %arg2, %c0_i32 : i32
    %1 = arith.extui %0 : i1 to i32
    %c0_i32_0 = arith.constant 0 : i32
    %2 = arith.cmpi ne, %1, %c0_i32_0 : i32
    scf.if %2 {
      %cst_10 = arith.constant 0.000000e+00 : f32
      %12 = vector.broadcast %cst_10 : f32 to vector<8x256xf32>
      %c0_11 = arith.constant 0 : index
      %c0_12 = arith.constant 0 : index
      %13 = vector.load %arg9[%c0_11, %c0_12] : memref<8x256xf32, #tpu.memory_space<vmem>>, vector<8x256xf32>
      tpu.vector_store %arg9[%c0_11, %c0_12], %12 {strides = array<i32>} : memref<8x256xf32, #tpu.memory_space<vmem>>, vector<8x256xf32>,
    } else {
    }
    %c0 = arith.constant 0 : index
    %c0_1 = arith.constant 0 : index
    %3 = vector.load %arg9[%c0, %c0_1] : memref<8x256xf32, #tpu.memory_space<vmem>>, vector<8x256xf32>
    %c0_2 = arith.constant 0 : index
    %c0_3 = arith.constant 0 : index
    %4 = vector.load %arg3[%c0_2, %c0_3] : memref<8x128xbf16, #tpu.memory_space<vmem>>, vector<8x128xbf16>
    %c0_4 = arith.constant 0 : index
    %c0_5 = arith.constant 0 : index
    %5 = vector.load %arg4[%c0_4, %c0_5] : memref<128x256xbf16, #tpu.memory_space<vmem>>, vector<128x256xbf16>
    %cst = arith.constant dense<0.000000e+00> : vector<8x256xf32>
    %6 = tpu.matmul %4, %5, %cst {dimension_numbers = #tpu.dot_dimension_numbers<[1], [0], [0], [1], [0, 0, 1, 1], [], []>} : vector<8x128xbf16>, vector<128x256xbf16>, vector<8x256xf32> -> vector<8x256xf32>
    %7 = arith.addf %3, %6 : vector<8x256xf32>
    %c0_6 = arith.constant 0 : index
    %c0_7 = arith.constant 0 : index
    %8 = vector.load %arg9[%c0_6, %c0_7] : memref<8x256xf32, #tpu.memory_space<vmem>>, vector<8x256xf32>
    tpu.vector_store %arg9[%c0_6, %c0_7], %7 {strides = array<i32>} : memref<8x256xf32, #tpu.memory_space<vmem>>, vector<8x256xf32>,
    %c0_i32_8 = arith.constant 0 : i32
    %9 = arith.cmpi eq, %arg2, %c0_i32_8 : i32
    %10 = arith.extui %9 : i1 to i32
    %c0_i32_9 = arith.constant 0 : i32
    %11 = arith.cmpi ne, %10, %c0_i32_9 : i32
    scf.if %11 {
      %c0_10 = arith.constant 0 : index
      %c0_11 = arith.constant 0 : index
      %12 = vector.load %arg9[%c0_10, %c0_11] : memref<8x256xf32, #tpu.memory_space<vmem>>, vector<8x256xf32>
      %c0_12 = arith.constant 0 : index
      %c0_13 = arith.constant 0 : index
      %13 = vector.load %arg5[%c0_12, %c0_13] : memref<1x256xf32, #tpu.memory_space<vmem>>, vector<1x256xf32>
      %14 = vector.broadcast %13 : vector<1x256xf32> to vector<8x256xf32>
      %15 = arith.mulf %12, %14 : vector<8x256xf32>
      %c0_14 = arith.constant 0 : index
      %c0_15 = arith.constant 0 : index
      %16 = vector.load %arg6[%c0_14, %c0_15] : memref<1x256xf32, #tpu.memory_space<vmem>>, vector<1x256xf32>
      %17 = vector.broadcast %16 : vector<1x256xf32> to vector<8x256xf32>
      %18 = arith.addf %15, %17 : vector<8x256xf32>
      %c0_16 = arith.constant 0 : index
      %c0_17 = arith.constant 0 : index
      %19 = vector.load %arg7[%c0_16, %c0_17] : memref<8x256xbf16, #tpu.memory_space<vmem>>, vector<8x256xbf16>
      %20 = arith.extf %19 : vector<8x256xbf16> to vector<8x256xf32>
      %21 = arith.addf %18, %20 : vector<8x256xf32>
      %cst_18 = arith.constant 0.000000e+00 : f32
      %22 = vector.broadcast %cst_18 : f32 to vector<8x256xf32>
      %23 = arith.maximumf %21, %22 : vector<8x256xf32>
      %24 = arith.truncf %23 : vector<8x256xf32> to vector<8x256xbf16>
      %c0_19 = arith.constant 0 : index
      %c0_20 = arith.constant 0 : index
      %25 = vector.load %arg8[%c0_19, %c0_20] : memref<8x256xbf16, #tpu.memory_space<vmem>>, vector<8x256xbf16>
      tpu.vector_store %arg8[%c0_19, %c0_20], %24 {strides = array<i32>} : memref<8x256xbf16, #tpu.memory_space<vmem>>, vector<8x256xbf16>,
    } else {
    }
    return
  }
  func.func @transform_0(%arg0: i32, %arg1: i32, %arg2: i32) -> (i32, i32) {
    %c0_i32 = arith.constant 0 : i32
    return %arg0, %arg2 : i32, i32
  }
  func.func @transform_1(%arg0: i32, %arg1: i32, %arg2: i32) -> (i32, i32) {
    %c0_i32 = arith.constant 0 : i32
    return %arg2, %arg1 : i32, i32
  }
  func.func @transform_2(%arg0: i32, %arg1: i32, %arg2: i32) -> (i32, i32) {
    %c0_i32 = arith.constant 0 : i32
    %c0_i32_0 = arith.constant 0 : i32
    return %c0_i32, %arg1 : i32, i32
  }
  func.func @transform_3(%arg0: i32, %arg1: i32, %arg2: i32) -> (i32, i32) {
    %c0_i32 = arith.constant 0 : i32
    %c0_i32_0 = arith.constant 0 : i32
    return %c0_i32, %arg1 : i32, i32
  }
  func.func @transform_4(%arg0: i32, %arg1: i32, %arg2: i32) -> (i32, i32) {
    %c0_i32 = arith.constant 0 : i32
    return %arg0, %arg1 : i32, i32
  }
  func.func @transform_5(%arg0: i32, %arg1: i32, %arg2: i32) -> (i32, i32) {
    %c0_i32 = arith.constant 0 : i32
    return %arg0, %arg1 : i32, i32
  }
}

module attributes {stable_mosaic.version = 11 : i64} {
  func.func @_mm_affine_kernel(%arg0: i32, %arg1: i32, %arg2: i32, %arg3: memref<8x256xbf16, #tpu.memory_space<vmem>>, %arg4: memref<256x256xbf16, #tpu.memory_space<vmem>>, %arg5: memref<1x256xf32, #tpu.memory_space<vmem>>, %arg6: memref<1x256xf32, #tpu.memory_space<vmem>>, %arg7: memref<8x256xbf16, #tpu.memory_space<vmem>>, %arg8: memref<8x256xf32, #tpu.memory_space<vmem>>) attributes {dimension_semantics = [#tpu.dimension_semantics<parallel>, #tpu.dimension_semantics<parallel>, #tpu.dimension_semantics<arbitrary>], iteration_bounds = array<i64: 1, 3, 1>, scalar_prefetch = 0 : i64, scratch_operands = 1 : i64, tpu.core_type = #tpu.core_type<tc>, window_params = [{transform_indices = @transform_0, window_bounds = array<i64: 8, 256>}, {transform_indices = @transform_1, window_bounds = array<i64: 256, 256>}, {transform_indices = @transform_2, window_bounds = array<i64: 1, 256>}, {transform_indices = @transform_3, window_bounds = array<i64: 1, 256>}, {transform_indices = @transform_4, window_bounds = array<i64: 8, 256>}]} {
    %c0_i32 = arith.constant 0 : i32
    %0 = arith.cmpi eq, %arg2, %c0_i32 : i32
    %1 = arith.extui %0 : i1 to i32
    %c0_i32_0 = arith.constant 0 : i32
    %2 = arith.cmpi ne, %1, %c0_i32_0 : i32
    scf.if %2 {
      %cst_10 = arith.constant 0.000000e+00 : f32
      %12 = vector.broadcast %cst_10 : f32 to vector<8x256xf32>
      %c0_11 = arith.constant 0 : index
      %c0_12 = arith.constant 0 : index
      %13 = vector.load %arg8[%c0_11, %c0_12] : memref<8x256xf32, #tpu.memory_space<vmem>>, vector<8x256xf32>
      tpu.vector_store %arg8[%c0_11, %c0_12], %12 {strides = array<i32>} : memref<8x256xf32, #tpu.memory_space<vmem>>, vector<8x256xf32>,
    } else {
    }
    %c0 = arith.constant 0 : index
    %c0_1 = arith.constant 0 : index
    %3 = vector.load %arg8[%c0, %c0_1] : memref<8x256xf32, #tpu.memory_space<vmem>>, vector<8x256xf32>
    %c0_2 = arith.constant 0 : index
    %c0_3 = arith.constant 0 : index
    %4 = vector.load %arg3[%c0_2, %c0_3] : memref<8x256xbf16, #tpu.memory_space<vmem>>, vector<8x256xbf16>
    %c0_4 = arith.constant 0 : index
    %c0_5 = arith.constant 0 : index
    %5 = vector.load %arg4[%c0_4, %c0_5] : memref<256x256xbf16, #tpu.memory_space<vmem>>, vector<256x256xbf16>
    %cst = arith.constant dense<0.000000e+00> : vector<8x256xf32>
    %6 = tpu.matmul %4, %5, %cst {dimension_numbers = #tpu.dot_dimension_numbers<[1], [0], [0], [1], [0, 0, 1, 1], [], []>} : vector<8x256xbf16>, vector<256x256xbf16>, vector<8x256xf32> -> vector<8x256xf32>
    %7 = arith.addf %3, %6 : vector<8x256xf32>
    %c0_6 = arith.constant 0 : index
    %c0_7 = arith.constant 0 : index
    %8 = vector.load %arg8[%c0_6, %c0_7] : memref<8x256xf32, #tpu.memory_space<vmem>>, vector<8x256xf32>
    tpu.vector_store %arg8[%c0_6, %c0_7], %7 {strides = array<i32>} : memref<8x256xf32, #tpu.memory_space<vmem>>, vector<8x256xf32>,
    %c0_i32_8 = arith.constant 0 : i32
    %9 = arith.cmpi eq, %arg2, %c0_i32_8 : i32
    %10 = arith.extui %9 : i1 to i32
    %c0_i32_9 = arith.constant 0 : i32
    %11 = arith.cmpi ne, %10, %c0_i32_9 : i32
    scf.if %11 {
      %c0_10 = arith.constant 0 : index
      %c0_11 = arith.constant 0 : index
      %12 = vector.load %arg8[%c0_10, %c0_11] : memref<8x256xf32, #tpu.memory_space<vmem>>, vector<8x256xf32>
      %c0_12 = arith.constant 0 : index
      %c0_13 = arith.constant 0 : index
      %13 = vector.load %arg5[%c0_12, %c0_13] : memref<1x256xf32, #tpu.memory_space<vmem>>, vector<1x256xf32>
      %14 = vector.broadcast %13 : vector<1x256xf32> to vector<8x256xf32>
      %15 = arith.mulf %12, %14 : vector<8x256xf32>
      %c0_14 = arith.constant 0 : index
      %c0_15 = arith.constant 0 : index
      %16 = vector.load %arg6[%c0_14, %c0_15] : memref<1x256xf32, #tpu.memory_space<vmem>>, vector<1x256xf32>
      %17 = vector.broadcast %16 : vector<1x256xf32> to vector<8x256xf32>
      %18 = arith.addf %15, %17 : vector<8x256xf32>
      %19 = arith.truncf %18 : vector<8x256xf32> to vector<8x256xbf16>
      %c0_16 = arith.constant 0 : index
      %c0_17 = arith.constant 0 : index
      %20 = vector.load %arg7[%c0_16, %c0_17] : memref<8x256xbf16, #tpu.memory_space<vmem>>, vector<8x256xbf16>
      tpu.vector_store %arg7[%c0_16, %c0_17], %19 {strides = array<i32>} : memref<8x256xbf16, #tpu.memory_space<vmem>>, vector<8x256xbf16>,
    } else {
    }
    return
  }
  func.func @transform_0(%arg0: i32, %arg1: i32, %arg2: i32) -> (i32, i32) {
    %c0_i32 = arith.constant 0 : i32
    return %arg0, %arg2 : i32, i32
  }
  func.func @transform_1(%arg0: i32, %arg1: i32, %arg2: i32) -> (i32, i32) {
    %c0_i32 = arith.constant 0 : i32
    return %arg2, %arg1 : i32, i32
  }
  func.func @transform_2(%arg0: i32, %arg1: i32, %arg2: i32) -> (i32, i32) {
    %c0_i32 = arith.constant 0 : i32
    %c0_i32_0 = arith.constant 0 : i32
    return %c0_i32, %arg1 : i32, i32
  }
  func.func @transform_3(%arg0: i32, %arg1: i32, %arg2: i32) -> (i32, i32) {
    %c0_i32 = arith.constant 0 : i32
    %c0_i32_0 = arith.constant 0 : i32
    return %c0_i32, %arg1 : i32, i32
  }
  func.func @transform_4(%arg0: i32, %arg1: i32, %arg2: i32) -> (i32, i32) {
    %c0_i32 = arith.constant 0 : i32
    return %arg0, %arg1 : i32, i32
  }
}

module attributes {stable_mosaic.version = 11 : i64} {
  func.func @_attn_pool_kernel(%arg0: i32, %arg1: memref<1x1x256xbf16, #tpu.memory_space<vmem>>, %arg2: memref<1x2x256xbf16, #tpu.memory_space<vmem>>, %arg3: memref<1x2x256xbf16, #tpu.memory_space<vmem>>, %arg4: memref<1x1x256xf32, #tpu.memory_space<vmem>>) attributes {dimension_semantics = [#tpu.dimension_semantics<parallel>], iteration_bounds = array<i64: 2>, scalar_prefetch = 0 : i64, scratch_operands = 0 : i64, tpu.core_type = #tpu.core_type<tc>, window_params = [{transform_indices = @transform_0, window_bounds = array<i64: 1, 1, 256>}, {transform_indices = @transform_1, window_bounds = array<i64: 1, 2, 256>}, {transform_indices = @transform_2, window_bounds = array<i64: 1, 2, 256>}, {transform_indices = @transform_3, window_bounds = array<i64: 1, 1, 256>}]} {
    %c0 = arith.constant 0 : index
    %c0_0 = arith.constant 0 : index
    %c0_1 = arith.constant 0 : index
    %0 = vector.load %arg1[%c0, %c0_0, %c0_1] : memref<1x1x256xbf16, #tpu.memory_space<vmem>>, vector<1x1x256xbf16>
    %1 = vector.shape_cast %0 : vector<1x1x256xbf16> to vector<1x256xbf16>
    %2 = arith.extf %1 : vector<1x256xbf16> to vector<1x256xf32>
    %c0_2 = arith.constant 0 : index
    %c0_3 = arith.constant 0 : index
    %c0_4 = arith.constant 0 : index
    %3 = vector.load %arg2[%c0_2, %c0_3, %c0_4] : memref<1x2x256xbf16, #tpu.memory_space<vmem>>, vector<1x2x256xbf16>
    %4 = vector.shape_cast %3 : vector<1x2x256xbf16> to vector<2x256xbf16>
    %5 = arith.extf %4 : vector<2x256xbf16> to vector<2x256xf32>
    %c0_5 = arith.constant 0 : index
    %c0_6 = arith.constant 0 : index
    %c0_7 = arith.constant 0 : index
    %6 = vector.load %arg3[%c0_5, %c0_6, %c0_7] : memref<1x2x256xbf16, #tpu.memory_space<vmem>>, vector<1x2x256xbf16>
    %7 = vector.shape_cast %6 : vector<1x2x256xbf16> to vector<2x256xbf16>
    %8 = arith.extf %7 : vector<2x256xbf16> to vector<2x256xf32>
    %9 = vector.extract_strided_slice %2 {offsets = [0, 0], sizes = [1, 64], strides = [1, 1]} : vector<1x256xf32> to vector<1x64xf32>
    %10 = vector.extract_strided_slice %5 {offsets = [0, 0], sizes = [2, 64], strides = [1, 1]} : vector<2x256xf32> to vector<2x64xf32>
    %cst = arith.constant dense<0.000000e+00> : vector<1x2xf32>
    %11 = tpu.matmul %9, %10, %cst {dimension_numbers = #tpu.dot_dimension_numbers<[1], [1], [0], [0], [0, 0, 1, 0], [], []>} : vector<1x64xf32>, vector<2x64xf32>, vector<1x2xf32> -> vector<1x2xf32>
    %cst_8 = arith.constant 1.250000e-01 : f32
    %12 = vector.broadcast %cst_8 : f32 to vector<1x2xf32>
    %13 = arith.mulf %11, %12 : vector<1x2xf32>
    %cst_9 = arith.constant dense<0xFF800000> : vector<1xf32>
    %14 = vector.multi_reduction <maximumf>, %13, %cst_9 [1] : vector<1x2xf32> to vector<1xf32>
    %15 = vector.shape_cast %14 : vector<1xf32> to vector<1x1xf32>
    %16 = vector.broadcast %15 : vector<1x1xf32> to vector<1x2xf32>
    %17 = arith.subf %13, %16 : vector<1x2xf32>
    %18 = math.exp %17 : vector<1x2xf32>
    %cst_10 = arith.constant dense<0.000000e+00> : vector<1xf32>
    %19 = vector.multi_reduction <add>, %18, %cst_10 [1] : vector<1x2xf32> to vector<1xf32>
    %20 = vector.shape_cast %19 : vector<1xf32> to vector<1x1xf32>
    %21 = tpu.reciprocal %20 {approx = true} : vector<1x1xf32> -> vector<1x1xf32>
    %22 = vector.broadcast %21 : vector<1x1xf32> to vector<1x2xf32>
    %23 = arith.mulf %18, %22 : vector<1x2xf32>
    %24 = vector.extract_strided_slice %8 {offsets = [0, 0], sizes = [2, 64], strides = [1, 1]} : vector<2x256xf32> to vector<2x64xf32>
    %cst_11 = arith.constant dense<0.000000e+00> : vector<1x64xf32>
    %25 = tpu.matmul %23, %24, %cst_11 {dimension_numbers = #tpu.dot_dimension_numbers<[1], [0], [0], [1], [0, 0, 1, 1], [], []>} : vector<1x2xf32>, vector<2x64xf32>, vector<1x64xf32> -> vector<1x64xf32>
    %c0_12 = arith.constant 0 : index
    %c0_13 = arith.constant 0 : index
    %c0_14 = arith.constant 0 : index
    %26 = vector.load %arg4[%c0_12, %c0_13, %c0_14] : memref<1x1x256xf32, #tpu.memory_space<vmem>>, vector<1x1x64xf32>
    %27 = vector.shape_cast %26 : vector<1x1x64xf32> to vector<1x64xf32>
    %28 = vector.shape_cast %25 : vector<1x64xf32> to vector<1x1x64xf32>
    tpu.vector_store %arg4[%c0_12, %c0_13, %c0_14], %28 {strides = array<i32>} : memref<1x1x256xf32, #tpu.memory_space<vmem>>, vector<1x1x64xf32>,
    %29 = vector.extract_strided_slice %2 {offsets = [0, 64], sizes = [1, 64], strides = [1, 1]} : vector<1x256xf32> to vector<1x64xf32>
    %30 = vector.extract_strided_slice %5 {offsets = [0, 64], sizes = [2, 64], strides = [1, 1]} : vector<2x256xf32> to vector<2x64xf32>
    %cst_15 = arith.constant dense<0.000000e+00> : vector<1x2xf32>
    %31 = tpu.matmul %29, %30, %cst_15 {dimension_numbers = #tpu.dot_dimension_numbers<[1], [1], [0], [0], [0, 0, 1, 0], [], []>} : vector<1x64xf32>, vector<2x64xf32>, vector<1x2xf32> -> vector<1x2xf32>
    %cst_16 = arith.constant 1.250000e-01 : f32
    %32 = vector.broadcast %cst_16 : f32 to vector<1x2xf32>
    %33 = arith.mulf %31, %32 : vector<1x2xf32>
    %cst_17 = arith.constant dense<0xFF800000> : vector<1xf32>
    %34 = vector.multi_reduction <maximumf>, %33, %cst_17 [1] : vector<1x2xf32> to vector<1xf32>
    %35 = vector.shape_cast %34 : vector<1xf32> to vector<1x1xf32>
    %36 = vector.broadcast %35 : vector<1x1xf32> to vector<1x2xf32>
    %37 = arith.subf %33, %36 : vector<1x2xf32>
    %38 = math.exp %37 : vector<1x2xf32>
    %cst_18 = arith.constant dense<0.000000e+00> : vector<1xf32>
    %39 = vector.multi_reduction <add>, %38, %cst_18 [1] : vector<1x2xf32> to vector<1xf32>
    %40 = vector.shape_cast %39 : vector<1xf32> to vector<1x1xf32>
    %41 = tpu.reciprocal %40 {approx = true} : vector<1x1xf32> -> vector<1x1xf32>
    %42 = vector.broadcast %41 : vector<1x1xf32> to vector<1x2xf32>
    %43 = arith.mulf %38, %42 : vector<1x2xf32>
    %44 = vector.extract_strided_slice %8 {offsets = [0, 64], sizes = [2, 64], strides = [1, 1]} : vector<2x256xf32> to vector<2x64xf32>
    %cst_19 = arith.constant dense<0.000000e+00> : vector<1x64xf32>
    %45 = tpu.matmul %43, %44, %cst_19 {dimension_numbers = #tpu.dot_dimension_numbers<[1], [0], [0], [1], [0, 0, 1, 1], [], []>} : vector<1x2xf32>, vector<2x64xf32>, vector<1x64xf32> -> vector<1x64xf32>
    %c0_20 = arith.constant 0 : index
    %c0_21 = arith.constant 0 : index
    %c64 = arith.constant 64 : index
    %46 = vector.load %arg4[%c0_20, %c0_21, %c64] : memref<1x1x256xf32, #tpu.memory_space<vmem>>, vector<1x1x64xf32>
    %47 = vector.shape_cast %46 : vector<1x1x64xf32> to vector<1x64xf32>
    %48 = vector.shape_cast %45 : vector<1x64xf32> to vector<1x1x64xf32>
    tpu.vector_store %arg4[%c0_20, %c0_21, %c64], %48 {strides = array<i32>} : memref<1x1x256xf32, #tpu.memory_space<vmem>>, vector<1x1x64xf32>,
    %49 = vector.extract_strided_slice %2 {offsets = [0, 128], sizes = [1, 64], strides = [1, 1]} : vector<1x256xf32> to vector<1x64xf32>
    %50 = vector.extract_strided_slice %5 {offsets = [0, 128], sizes = [2, 64], strides = [1, 1]} : vector<2x256xf32> to vector<2x64xf32>
    %cst_22 = arith.constant dense<0.000000e+00> : vector<1x2xf32>
    %51 = tpu.matmul %49, %50, %cst_22 {dimension_numbers = #tpu.dot_dimension_numbers<[1], [1], [0], [0], [0, 0, 1, 0], [], []>} : vector<1x64xf32>, vector<2x64xf32>, vector<1x2xf32> -> vector<1x2xf32>
    %cst_23 = arith.constant 1.250000e-01 : f32
    %52 = vector.broadcast %cst_23 : f32 to vector<1x2xf32>
    %53 = arith.mulf %51, %52 : vector<1x2xf32>
    %cst_24 = arith.constant dense<0xFF800000> : vector<1xf32>
    %54 = vector.multi_reduction <maximumf>, %53, %cst_24 [1] : vector<1x2xf32> to vector<1xf32>
    %55 = vector.shape_cast %54 : vector<1xf32> to vector<1x1xf32>
    %56 = vector.broadcast %55 : vector<1x1xf32> to vector<1x2xf32>
    %57 = arith.subf %53, %56 : vector<1x2xf32>
    %58 = math.exp %57 : vector<1x2xf32>
    %cst_25 = arith.constant dense<0.000000e+00> : vector<1xf32>
    %59 = vector.multi_reduction <add>, %58, %cst_25 [1] : vector<1x2xf32> to vector<1xf32>
    %60 = vector.shape_cast %59 : vector<1xf32> to vector<1x1xf32>
    %61 = tpu.reciprocal %60 {approx = true} : vector<1x1xf32> -> vector<1x1xf32>
    %62 = vector.broadcast %61 : vector<1x1xf32> to vector<1x2xf32>
    %63 = arith.mulf %58, %62 : vector<1x2xf32>
    %64 = vector.extract_strided_slice %8 {offsets = [0, 128], sizes = [2, 64], strides = [1, 1]} : vector<2x256xf32> to vector<2x64xf32>
    %cst_26 = arith.constant dense<0.000000e+00> : vector<1x64xf32>
    %65 = tpu.matmul %63, %64, %cst_26 {dimension_numbers = #tpu.dot_dimension_numbers<[1], [0], [0], [1], [0, 0, 1, 1], [], []>} : vector<1x2xf32>, vector<2x64xf32>, vector<1x64xf32> -> vector<1x64xf32>
    %c0_27 = arith.constant 0 : index
    %c0_28 = arith.constant 0 : index
    %c128 = arith.constant 128 : index
    %66 = vector.load %arg4[%c0_27, %c0_28, %c128] : memref<1x1x256xf32, #tpu.memory_space<vmem>>, vector<1x1x64xf32>
    %67 = vector.shape_cast %66 : vector<1x1x64xf32> to vector<1x64xf32>
    %68 = vector.shape_cast %65 : vector<1x64xf32> to vector<1x1x64xf32>
    tpu.vector_store %arg4[%c0_27, %c0_28, %c128], %68 {strides = array<i32>} : memref<1x1x256xf32, #tpu.memory_space<vmem>>, vector<1x1x64xf32>,
    %69 = vector.extract_strided_slice %2 {offsets = [0, 192], sizes = [1, 64], strides = [1, 1]} : vector<1x256xf32> to vector<1x64xf32>
    %70 = vector.extract_strided_slice %5 {offsets = [0, 192], sizes = [2, 64], strides = [1, 1]} : vector<2x256xf32> to vector<2x64xf32>
    %cst_29 = arith.constant dense<0.000000e+00> : vector<1x2xf32>
    %71 = tpu.matmul %69, %70, %cst_29 {dimension_numbers = #tpu.dot_dimension_numbers<[1], [1], [0], [0], [0, 0, 1, 0], [], []>} : vector<1x64xf32>, vector<2x64xf32>, vector<1x2xf32> -> vector<1x2xf32>
    %cst_30 = arith.constant 1.250000e-01 : f32
    %72 = vector.broadcast %cst_30 : f32 to vector<1x2xf32>
    %73 = arith.mulf %71, %72 : vector<1x2xf32>
    %cst_31 = arith.constant dense<0xFF800000> : vector<1xf32>
    %74 = vector.multi_reduction <maximumf>, %73, %cst_31 [1] : vector<1x2xf32> to vector<1xf32>
    %75 = vector.shape_cast %74 : vector<1xf32> to vector<1x1xf32>
    %76 = vector.broadcast %75 : vector<1x1xf32> to vector<1x2xf32>
    %77 = arith.subf %73, %76 : vector<1x2xf32>
    %78 = math.exp %77 : vector<1x2xf32>
    %cst_32 = arith.constant dense<0.000000e+00> : vector<1xf32>
    %79 = vector.multi_reduction <add>, %78, %cst_32 [1] : vector<1x2xf32> to vector<1xf32>
    %80 = vector.shape_cast %79 : vector<1xf32> to vector<1x1xf32>
    %81 = tpu.reciprocal %80 {approx = true} : vector<1x1xf32> -> vector<1x1xf32>
    %82 = vector.broadcast %81 : vector<1x1xf32> to vector<1x2xf32>
    %83 = arith.mulf %78, %82 : vector<1x2xf32>
    %84 = vector.extract_strided_slice %8 {offsets = [0, 192], sizes = [2, 64], strides = [1, 1]} : vector<2x256xf32> to vector<2x64xf32>
    %cst_33 = arith.constant dense<0.000000e+00> : vector<1x64xf32>
    %85 = tpu.matmul %83, %84, %cst_33 {dimension_numbers = #tpu.dot_dimension_numbers<[1], [0], [0], [1], [0, 0, 1, 1], [], []>} : vector<1x2xf32>, vector<2x64xf32>, vector<1x64xf32> -> vector<1x64xf32>
    %c0_34 = arith.constant 0 : index
    %c0_35 = arith.constant 0 : index
    %c192 = arith.constant 192 : index
    %86 = vector.load %arg4[%c0_34, %c0_35, %c192] : memref<1x1x256xf32, #tpu.memory_space<vmem>>, vector<1x1x64xf32>
    %87 = vector.shape_cast %86 : vector<1x1x64xf32> to vector<1x64xf32>
    %88 = vector.shape_cast %85 : vector<1x64xf32> to vector<1x1x64xf32>
    tpu.vector_store %arg4[%c0_34, %c0_35, %c192], %88 {strides = array<i32>} : memref<1x1x256xf32, #tpu.memory_space<vmem>>, vector<1x1x64xf32>,
    return
  }
  func.func @transform_0(%arg0: i32) -> (i32, i32, i32) {
    %c0_i32 = arith.constant 0 : i32
    %c0_i32_0 = arith.constant 0 : i32
    %c0_i32_1 = arith.constant 0 : i32
    return %arg0, %c0_i32, %c0_i32_0 : i32, i32, i32
  }
  func.func @transform_1(%arg0: i32) -> (i32, i32, i32) {
    %c0_i32 = arith.constant 0 : i32
    %c0_i32_0 = arith.constant 0 : i32
    %c0_i32_1 = arith.constant 0 : i32
    return %arg0, %c0_i32, %c0_i32_0 : i32, i32, i32
  }
  func.func @transform_2(%arg0: i32) -> (i32, i32, i32) {
    %c0_i32 = arith.constant 0 : i32
    %c0_i32_0 = arith.constant 0 : i32
    %c0_i32_1 = arith.constant 0 : i32
    return %arg0, %c0_i32, %c0_i32_0 : i32, i32, i32
  }
  func.func @transform_3(%arg0: i32) -> (i32, i32, i32) {
    %c0_i32 = arith.constant 0 : i32
    %c0_i32_0 = arith.constant 0 : i32
    %c0_i32_1 = arith.constant 0 : i32
    return %arg0, %c0_i32, %c0_i32_0 : i32, i32, i32
  }
}

module attributes {stable_mosaic.version = 11 : i64} {
  func.func @_mm_affine_kernel(%arg0: i32, %arg1: i32, %arg2: i32, %arg3: memref<8x256xbf16, #tpu.memory_space<vmem>>, %arg4: memref<256x128xbf16, #tpu.memory_space<vmem>>, %arg5: memref<1x128xf32, #tpu.memory_space<vmem>>, %arg6: memref<1x128xf32, #tpu.memory_space<vmem>>, %arg7: memref<8x128xf32, #tpu.memory_space<vmem>>, %arg8: memref<8x128xf32, #tpu.memory_space<vmem>>) attributes {dimension_semantics = [#tpu.dimension_semantics<parallel>, #tpu.dimension_semantics<parallel>, #tpu.dimension_semantics<arbitrary>], iteration_bounds = array<i64: 1, 1, 1>, scalar_prefetch = 0 : i64, scratch_operands = 1 : i64, tpu.core_type = #tpu.core_type<tc>, window_params = [{transform_indices = @transform_0, window_bounds = array<i64: 8, 256>}, {transform_indices = @transform_1, window_bounds = array<i64: 256, 128>}, {transform_indices = @transform_2, window_bounds = array<i64: 1, 128>}, {transform_indices = @transform_3, window_bounds = array<i64: 1, 128>}, {transform_indices = @transform_4, window_bounds = array<i64: 8, 128>}]} {
    %c0_i32 = arith.constant 0 : i32
    %0 = arith.cmpi eq, %arg2, %c0_i32 : i32
    %1 = arith.extui %0 : i1 to i32
    %c0_i32_0 = arith.constant 0 : i32
    %2 = arith.cmpi ne, %1, %c0_i32_0 : i32
    scf.if %2 {
      %cst_10 = arith.constant 0.000000e+00 : f32
      %12 = vector.broadcast %cst_10 : f32 to vector<8x128xf32>
      %c0_11 = arith.constant 0 : index
      %c0_12 = arith.constant 0 : index
      %13 = vector.load %arg8[%c0_11, %c0_12] : memref<8x128xf32, #tpu.memory_space<vmem>>, vector<8x128xf32>
      tpu.vector_store %arg8[%c0_11, %c0_12], %12 {strides = array<i32>} : memref<8x128xf32, #tpu.memory_space<vmem>>, vector<8x128xf32>,
    } else {
    }
    %c0 = arith.constant 0 : index
    %c0_1 = arith.constant 0 : index
    %3 = vector.load %arg8[%c0, %c0_1] : memref<8x128xf32, #tpu.memory_space<vmem>>, vector<8x128xf32>
    %c0_2 = arith.constant 0 : index
    %c0_3 = arith.constant 0 : index
    %4 = vector.load %arg3[%c0_2, %c0_3] : memref<8x256xbf16, #tpu.memory_space<vmem>>, vector<8x256xbf16>
    %c0_4 = arith.constant 0 : index
    %c0_5 = arith.constant 0 : index
    %5 = vector.load %arg4[%c0_4, %c0_5] : memref<256x128xbf16, #tpu.memory_space<vmem>>, vector<256x128xbf16>
    %cst = arith.constant dense<0.000000e+00> : vector<8x128xf32>
    %6 = tpu.matmul %4, %5, %cst {dimension_numbers = #tpu.dot_dimension_numbers<[1], [0], [0], [1], [0, 0, 1, 1], [], []>} : vector<8x256xbf16>, vector<256x128xbf16>, vector<8x128xf32> -> vector<8x128xf32>
    %7 = arith.addf %3, %6 : vector<8x128xf32>
    %c0_6 = arith.constant 0 : index
    %c0_7 = arith.constant 0 : index
    %8 = vector.load %arg8[%c0_6, %c0_7] : memref<8x128xf32, #tpu.memory_space<vmem>>, vector<8x128xf32>
    tpu.vector_store %arg8[%c0_6, %c0_7], %7 {strides = array<i32>} : memref<8x128xf32, #tpu.memory_space<vmem>>, vector<8x128xf32>,
    %c0_i32_8 = arith.constant 0 : i32
    %9 = arith.cmpi eq, %arg2, %c0_i32_8 : i32
    %10 = arith.extui %9 : i1 to i32
    %c0_i32_9 = arith.constant 0 : i32
    %11 = arith.cmpi ne, %10, %c0_i32_9 : i32
    scf.if %11 {
      %c0_10 = arith.constant 0 : index
      %c0_11 = arith.constant 0 : index
      %12 = vector.load %arg8[%c0_10, %c0_11] : memref<8x128xf32, #tpu.memory_space<vmem>>, vector<8x128xf32>
      %c0_12 = arith.constant 0 : index
      %c0_13 = arith.constant 0 : index
      %13 = vector.load %arg5[%c0_12, %c0_13] : memref<1x128xf32, #tpu.memory_space<vmem>>, vector<1x128xf32>
      %14 = vector.broadcast %13 : vector<1x128xf32> to vector<8x128xf32>
      %15 = arith.mulf %12, %14 : vector<8x128xf32>
      %c0_14 = arith.constant 0 : index
      %c0_15 = arith.constant 0 : index
      %16 = vector.load %arg6[%c0_14, %c0_15] : memref<1x128xf32, #tpu.memory_space<vmem>>, vector<1x128xf32>
      %17 = vector.broadcast %16 : vector<1x128xf32> to vector<8x128xf32>
      %18 = arith.addf %15, %17 : vector<8x128xf32>
      %c0_16 = arith.constant 0 : index
      %c0_17 = arith.constant 0 : index
      %19 = vector.load %arg7[%c0_16, %c0_17] : memref<8x128xf32, #tpu.memory_space<vmem>>, vector<8x128xf32>
      tpu.vector_store %arg7[%c0_16, %c0_17], %18 {strides = array<i32>} : memref<8x128xf32, #tpu.memory_space<vmem>>, vector<8x128xf32>,
    } else {
    }
    return
  }
  func.func @transform_0(%arg0: i32, %arg1: i32, %arg2: i32) -> (i32, i32) {
    %c0_i32 = arith.constant 0 : i32
    return %arg0, %arg2 : i32, i32
  }
  func.func @transform_1(%arg0: i32, %arg1: i32, %arg2: i32) -> (i32, i32) {
    %c0_i32 = arith.constant 0 : i32
    return %arg2, %arg1 : i32, i32
  }
  func.func @transform_2(%arg0: i32, %arg1: i32, %arg2: i32) -> (i32, i32) {
    %c0_i32 = arith.constant 0 : i32
    %c0_i32_0 = arith.constant 0 : i32
    return %c0_i32, %arg1 : i32, i32
  }
  func.func @transform_3(%arg0: i32, %arg1: i32, %arg2: i32) -> (i32, i32) {
    %c0_i32 = arith.constant 0 : i32
    %c0_i32_0 = arith.constant 0 : i32
    return %c0_i32, %arg1 : i32, i32
  }
  func.func @transform_4(%arg0: i32, %arg1: i32, %arg2: i32) -> (i32, i32) {
    %c0_i32 = arith.constant 0 : i32
    return %arg0, %arg1 : i32, i32
  }
}

</mosaic_0001>

<llo_original>
// kernel: _lambda_.22
$region0: #{_lambda_.22}
  #allocation0 [shape = 'u32[]', space=smem, size = 0x4, offset = 0x4, fixed_abs, tag = 'smem constant byte address 0x4 - core index']
  #allocation1 [shape = 'u32[72,128]{1,0:T(1,128)}', space=vmem, size = 0x9000, scoped, tag = 'internal scratch']
  #allocation2 [shape = 'f32[256,128]{1,0:T(8,128)}', space=vmem, size = 0x20000, scoped, tag = 'scratch operand']
  %s0 = inlined_call_operand.vmem [shape: bf16[512,128], index: 0, kind: input, shape index: {}]
  %s1 = inlined_call_operand.vmem [shape: bf16[128,128], index: 1, kind: input, shape index: {}]
  %s2 = inlined_call_operand.vmem [shape: f32[1,128], index: 2, kind: input, shape index: {}]
  %s3 = inlined_call_operand.vmem [shape: f32[1,128], index: 3, kind: input, shape index: {}]
  %s4 = inlined_call_operand.vmem [shape: bf16[512,128], index: 4, kind: output, shape index: {}]
  %s5 = sld [smem:[#allocation0]]
  $region57: #{_lambda_.22} parent=0
    _
  %s7 = ssub.s32 1, %s5
  %s8 = scalar_select 0, %s7, %s5
  loop: start=0, step=1, limit=4
  $region2: #{_lambda_.22} parent=0 // loop_pre_header
    _
  $region3: #{_lambda_.22} parent=0 // loop_header
    %s10 = sphi 0, %s14
    %p11 = scmp.ge.s32.totalorder %s10, 4
    %s17 = sphi 0, %s36
    %s18 = sphi 0, %s32
    %s19 = sphi 0, %s28
    %s20 = sphi 0, %s17
    %s21 = sphi 0, %s18
    %s22 = sphi 0, %s19
    %s23 = sphi 0, %s20
    %s24 = sphi 0, %s21
    %s25 = sphi 0, %s22
    %s41 = sphi 0, %s43
    %s44 = sphi 0, %s41
    %s45 = sphi 0, %s44
    %s61 = sphi 0, %s45
    %s69 = sphi 0, %s71
    %s72 = sphi 0, %s69
    %s73 = sphi 0, %s72
    %s89 = sphi 0, %s73
    %s95 = sphi 0, %s97
    %s98 = sphi 0, %s95
    %s99 = sphi 0, %s98
    %s115 = sphi 0, %s99
    %s121 = sphi 0, %s123
    %s124 = sphi 0, %s121
    %s125 = sphi 0, %s124
    %s141 = sphi 0, %s125
    %s149 = sphi 0, %s151
    %s152 = sphi 0, %s149
    %s153 = sphi 0, %s152
    %s169 = sphi 0, %s153
  $region4: #{_lambda_.22} parent=0 // loop_header_branch
    %13 = sbr.rel (%p11) target = $region8
  $region5: #{_lambda_.22} parent=0 // loop_body
    %s15 = ssub.s32 %s10, 1
    %s16 = ssub.s32 %s10, 2
    %s26 = sadd.s32 1, %s19
    %p27 = scmp.ge.s32.totalorder %s26, 1
    %s28 = scalar_select %p27, 0, %s26
    %s29 = sadd.s32 1, %s18
    %s30 = scalar_select %p27, %s29, %s18
    %p31 = scmp.ge.s32.totalorder %s30, 1
    %s32 = scalar_select %p31, 0, %s30
    %s33 = sadd.s32 1, %s17
    %s34 = scalar_select %p31, %s33, %s17
    %p35 = scmp.ge.s32.totalorder %s34, 2
    %s36 = scalar_select %p35, 0, %s34
    %s37 = ssub.s32 %s17, %s36
    %s38 = ssub.s32 %s19, %s28
    %s39 = sor.u32 %s37, %s38
    %p40 = scmp.eq.s32.totalorder %s39, 0
    %s42 = sadd.s32 %s41, 1
    %s43 = scalar_select %p40, %s41, %s42
    %p46 = pneg %p40
    %p47 = scmp.eq.s32.totalorder %s10, 1
    %p48 = por %p46, %p47
    %p49 = scmp.ne.s32.totalorder %s41, %s44
    %p50 = scmp.eq.s32.totalorder %s10, 0
    %p51 = por %p49, %p50
    %p52 = scmp.ne.s32.totalorder %s41, %s44
    %p53 = scmp.eq.s32.totalorder %s15, 1
    %p54 = por %p52, %p53
    %p55 = scmp.ne.s32.totalorder %s44, %s45
    %p56 = scmp.eq.s32.totalorder %s15, 0
    %p57 = por %p55, %p56
    %p58 = scmp.ne.s32.totalorder %s44, %s45
    %p59 = scmp.eq.s32.totalorder %s16, 1
    %p60 = por %p58, %p59
    %p62 = scmp.ne.s32.totalorder %s45, %s61
    %p63 = scmp.eq.s32.totalorder %s16, 0
    %p64 = por %p62, %p63
    %s65 = ssub.s32 %s19, %s28
    %s66 = ssub.s32 %s18, %s32
    %s67 = sor.u32 %s65, %s66
    %p68 = scmp.eq.s32.totalorder %s67, 0
    %s70 = sadd.s32 %s69, 1
    %s71 = scalar_select %p68, %s69, %s70
    %p74 = pneg %p68
    %p75 = scmp.eq.s32.totalorder %s10, 1
    %p76 = por %p74, %p75
    %p77 = scmp.ne.s32.totalorder %s69, %s72
    %p78 = scmp.eq.s32.totalorder %s10, 0
    %p79 = por %p77, %p78
    %p80 = scmp.ne.s32.totalorder %s69, %s72
    %p81 = scmp.eq.s32.totalorder %s15, 1
    %p82 = por %p80, %p81
    %p83 = scmp.ne.s32.totalorder %s72, %s73
    %p84 = scmp.eq.s32.totalorder %s15, 0
    %p85 = por %p83, %p84
    %p86 = scmp.ne.s32.totalorder %s72, %s73
    %p87 = scmp.eq.s32.totalorder %s16, 1
    %p88 = por %p86, %p87
    %p90 = scmp.ne.s32.totalorder %s73, %s89
    %p91 = scmp.eq.s32.totalorder %s16, 0
    %p92 = por %p90, %p91
    %s93 = ssub.s32 %s18, %s32
    %p94 = scmp.eq.s32.totalorder %s93, 0
    %s96 = sadd.s32 %s95, 1
    %s97 = scalar_select %p94, %s95, %s96
    %p100 = pneg %p94
    %p101 = scmp.eq.s32.totalorder %s10, 1
    %p102 = por %p100, %p101
    %p103 = scmp.ne.s32.totalorder %s95, %s98
    %p104 = scmp.eq.s32.totalorder %s10, 0
    %p105 = por %p103, %p104
    %p106 = scmp.ne.s32.totalorder %s95, %s98
    %p107 = scmp.eq.s32.totalorder %s15, 1
    %p108 = por %p106, %p107
    %p109 = scmp.ne.s32.totalorder %s98, %s99
    %p110 = scmp.eq.s32.totalorder %s15, 0
    %p111 = por %p109, %p110
    %p112 = scmp.ne.s32.totalorder %s98, %s99
    %p113 = scmp.eq.s32.totalorder %s16, 1
    %p114 = por %p112, %p113
    %p116 = scmp.ne.s32.totalorder %s99, %s115
    %p117 = scmp.eq.s32.totalorder %s16, 0
    %p118 = por %p116, %p117
    %s119 = ssub.s32 %s18, %s32
    %p120 = scmp.eq.s32.totalorder %s119, 0
    %s122 = sadd.s32 %s121, 1
    %s123 = scalar_select %p120, %s121, %s122
    %p126 = pneg %p120
    %p127 = scmp.eq.s32.totalorder %s10, 1
    %p128 = por %p126, %p127
    %p129 = scmp.ne.s32.totalorder %s121, %s124
    %p130 = scmp.eq.s32.totalorder %s10, 0
    %p131 = por %p129, %p130
    %p132 = scmp.ne.s32.totalorder %s121, %s124
    %p133 = scmp.eq.s32.totalorder %s15, 1
    %p134 = por %p132, %p133
    %p135 = scmp.ne.s32.totalorder %s124, %s125
    %p136 = scmp.eq.s32.totalorder %s15, 0
    %p137 = por %p135, %p136
    %p138 = scmp.ne.s32.totalorder %s124, %s125
    %p139 = scmp.eq.s32.totalorder %s16, 1
    %p140 = por %p138, %p139
    %p142 = scmp.ne.s32.totalorder %s125, %s141
    %p143 = scmp.eq.s32.totalorder %s16, 0
    %p144 = por %p142, %p143
    %s145 = ssub.s32 %s17, %s36
    %s146 = ssub.s32 %s18, %s32
    %s147 = sor.u32 %s145, %s146
    %p148 = scmp.eq.s32.totalorder %s147, 0
    %s150 = sadd.s32 %s149, 1
    %s151 = scalar_select %p148, %s149, %s150
    %p154 = pneg %p148
    %p155 = scmp.eq.s32.totalorder %s10, 1
    %p156 = por %p154, %p155
    %p157 = scmp.ne.s32.totalorder %s149, %s152
    %p158 = scmp.eq.s32.totalorder %s10, 0
    %p159 = por %p157, %p158
    %p160 = scmp.ne.s32.totalorder %s149, %s152
    %p161 = scmp.eq.s32.totalorder %s15, 1
    %p162 = por %p160, %p161
    %p163 = scmp.ne.s32.totalorder %s152, %s153
    %p164 = scmp.eq.s32.totalorder %s15, 0
    %p165 = por %p163, %p164
    %p166 = scmp.ne.s32.totalorder %s152, %s153
    %p167 = scmp.eq.s32.totalorder %s16, 1
    %p168 = por %p166, %p167
    %p170 = scmp.ne.s32.totalorder %s153, %s169
    %p171 = scmp.eq.s32.totalorder %s16, 0
    %p172 = por %p170, %p171
    %p173 = scmp.le.s32.totalorder 1, %s10
    %p174 = scmp.lt.s32.totalorder %s10, 3
    %p175 = pnand %p173, %p174
    %p176 = pneg %p175
    // Predicated region
    $region9: #{_lambda_.22} parent=5 // pred_check
      _
    $region10: #{_lambda_.22} parent=5 // pred_check_branch
      %178 = sbr.rel (%p175) target = $region12
    $region11: #{_lambda_.22} parent=5 // pred_region
      %s179 = ssub.s32 %s10, 1
      // Predicated region
      $region13: #{_lambda_.22} parent=11 // pred_check
        %p180 = pneg %p85
      $region14: #{_lambda_.22} parent=11 // pred_check_branch
        %182 = sbr.rel (%p180) target = $region16
      $region15: #{_lambda_.22} parent=11 // pred_region
        %s183 = smul.u32 16, %s22
        %p184 = scmp.lt.s32.totalorder %s183, 15
        %s185 = scalar_select %p184, %s183, 15
        %p186 = scmp.lt.s32.totalorder %s21, 0
        %s187 = scalar_select %p186, %s21, 0
        %s188 = sadd.s32 %s187, %s185
        %s189 = smul.addr %s188, 4
        %s190 = scalar_lea.vmem %s1, %s189
        %s191 = smul.u32 16, %s22
      $region16: #{_lambda_.22} parent=11 // pred_fallthru
        _
      // Predicated region
      $region17: #{_lambda_.22} parent=11 // pred_check
        %p192 = pneg %p111
      $region18: #{_lambda_.22} parent=11 // pred_check_branch
        %194 = sbr.rel (%p192) target = $region20
      $region19: #{_lambda_.22} parent=11 // pred_region
        %p195 = scmp.lt.s32.totalorder %s21, 0
        %s196 = scalar_select %p195, %s21, 0
        %s197 = scalar_lea.vmem %s2, %s196
      $region20: #{_lambda_.22} parent=11 // pred_fallthru
        _
      // Predicated region
      $region21: #{_lambda_.22} parent=11 // pred_check
        %p198 = pneg %p137
      $region22: #{_lambda_.22} parent=11 // pred_check_branch
        %200 = sbr.rel (%p198) target = $region24
      $region23: #{_lambda_.22} parent=11 // pred_region
        %p201 = scmp.lt.s32.totalorder %s21, 0
        %s202 = scalar_select %p201, %s21, 0
        %s203 = scalar_lea.vmem %s3, %s202
      $region24: #{_lambda_.22} parent=11 // pred_fallthru
        _
    $region12: #{_lambda_.22} parent=5 // pred_fallthru
      _
    %p204 = scmp.lt.s32.totalorder %s10, 2
    // Predicated region
    $region25: #{_lambda_.22} parent=5 // pred_check
      %p205 = pneg %p204
    $region26: #{_lambda_.22} parent=5 // pred_check_branch
      %207 = sbr.rel (%p205) target = $region28
    $region27: #{_lambda_.22} parent=5 // pred_region
      // Predicated region
      $region29: #{_lambda_.22} parent=27 // pred_check
        %p208 = pneg %p51
      $region30: #{_lambda_.22} parent=27 // pred_check_branch
        %210 = sbr.rel (%p208) target = $region32
      $region31: #{_lambda_.22} parent=27 // pred_region
        %s211 = smul.u32 32, %s17
        %p212 = scmp.lt.s32.totalorder %s211, 63
        %s213 = scalar_select %p212, %s211, 63
        %p214 = scmp.lt.s32.totalorder %s19, 0
        %s215 = scalar_select %p214, %s19, 0
        %s216 = sadd.s32 %s215, %s213
        %s217 = smul.addr %s216, 4
        %s218 = scalar_lea.vmem %s0, %s217
        %s219 = smul.u32 32, %s17
      $region32: #{_lambda_.22} parent=27 // pred_fallthru
        _
    $region28: #{_lambda_.22} parent=5 // pred_fallthru
      _
    %p220 = scmp.le.s32.totalorder 1, %s10
    %p221 = scmp.lt.s32.totalorder %s10, 3
    %p222 = pnand %p220, %p221
    %p223 = pneg %p222
    // Predicated region
    $region33: #{_lambda_.22} parent=5 // pred_check
      _
    $region34: #{_lambda_.22} parent=5 // pred_check_branch
      %225 = sbr.rel (%p222) target = $region36
    $region35: #{_lambda_.22} parent=5 // pred_region
      %s226 = ssub.s32 %s10, 1
      %s227 = smul.u32 32, %s20
      %p228 = scmp.lt.s32.totalorder %s227, 63
      %s229 = scalar_select %p228, %s227, 63
      %p230 = scmp.lt.s32.totalorder %s22, 0
      %s231 = scalar_select %p230, %s22, 0
      %s232 = sadd.s32 %s231, %s229
      %s233 = smul.addr %s232, 4
      %s234 = scalar_lea.vmem %s0, %s233
      %p235 = pneg %p57
      %p236 = pneg %p54
      %s237 = smul.u32 16, %s22
      %p238 = scmp.lt.s32.totalorder %s237, 15
      %s239 = scalar_select %p238, %s237, 15
      %p240 = scmp.lt.s32.totalorder %s21, 0
      %s241 = scalar_select %p240, %s21, 0
      %s242 = sadd.s32 %s241, %s239
      %s243 = smul.addr %s242, 4
      %s244 = scalar_lea.vmem %s1, %s243
      %p245 = pneg %p85
      %p246 = pneg %p82
      %p247 = scmp.lt.s32.totalorder %s21, 0
      %s248 = scalar_select %p247, %s21, 0
      %s249 = scalar_lea.vmem %s2, %s248
      %p250 = pneg %p111
      %p251 = pneg %p108
      %p252 = scmp.lt.s32.totalorder %s21, 0
      %s253 = scalar_select %p252, %s21, 0
      %s254 = scalar_lea.vmem %s3, %s253
      %p255 = pneg %p137
      %p256 = pneg %p134
      %p257 = pneg %p165
      %p258 = pneg %p162
      %s259 = smul.u32 32, %s20
      %p260 = scmp.lt.s32.totalorder %s259, 63
      %s261 = scalar_select %p260, %s259, 63
      %p262 = scmp.lt.s32.totalorder %s21, 0
      %s263 = scalar_select %p262, %s21, 0
      %s264 = sadd.s32 %s263, %s261
      %s265 = smul.addr %s264, 4
      %s266 = scalar_lea.vmem %s4, %s265
      %s267 = smul.u32 32, %s20
      %p268 = scmp.lt.s32.totalorder %s267, 63
      %s269 = scalar_select %p268, %s267, 63
      %p270 = scmp.lt.s32.totalorder %s22, 0
      %s271 = scalar_select %p270, %s22, 0
      %s272 = sadd.s32 %s271, %s269
      %s273 = smul.addr %s272, 4
      %s274 = scalar_lea.vmem %s0, %s273
      %s275 = smul.u32 32, %s20
      %s276 = smul.u32 16, %s22
      %p277 = scmp.lt.s32.totalorder %s276, 15
      %s278 = scalar_select %p277, %s276, 15
      %p279 = scmp.lt.s32.totalorder %s21, 0
      %s280 = scalar_select %p279, %s21, 0
      %s281 = sadd.s32 %s280, %s278
      %s282 = smul.addr %s281, 4
      %s283 = scalar_lea.vmem %s1, %s282
      %s284 = smul.u32 16, %s22
      %p285 = scmp.lt.s32.totalorder %s21, 0
      %s286 = scalar_select %p285, %s21, 0
      %s287 = scalar_lea.vmem %s2, %s286
      %p288 = scmp.lt.s32.totalorder %s21, 0
      %s289 = scalar_select %p288, %s21, 0
      %s290 = scalar_lea.vmem %s3, %s289
      %s291 = smul.u32 32, %s20
      %p292 = scmp.lt.s32.totalorder %s291, 63
      %s293 = scalar_select %p292, %s291, 63
      %p294 = scmp.lt.s32.totalorder %s21, 0
      %s295 = scalar_select %p294, %s21, 0
      %s296 = sadd.s32 %s295, %s293
      %s297 = smul.addr %s296, 4
      %s298 = scalar_lea.vmem %s4, %s297
      %s299 = smul.u32 32, %s20
      %p300 = scmp.eq.s32.totalorder %s22, 0
      // Predicated region
      $region37: #{_lambda_.22} parent=35 // pred_check
        %p301 = pneg %p300
      $region38: #{_lambda_.22} parent=35 // pred_check_branch
        %303 = sbr.rel (%p301) target = $region40
      $region39: #{_lambda_.22} parent=35 // pred_region
        %304 = vst [vmem:[#allocation2] sm:$0xff] 0.0
        %305 = vst [vmem:[#allocation2 + $0x8] sm:$0xff] 0.0
        %306 = vst [vmem:[#allocation2 + $0x10] sm:$0xff] 0.0
        %307 = vst [vmem:[#allocation2 + $0x18] sm:$0xff] 0.0
        %308 = vst [vmem:[#allocation2 + $0x20] sm:$0xff] 0.0
        %309 = vst [vmem:[#allocation2 + $0x28] sm:$0xff] 0.0
        %310 = vst [vmem:[#allocation2 + $0x30] sm:$0xff] 0.0
        %311 = vst [vmem:[#allocation2 + $0x38] sm:$0xff] 0.0
        %312 = vst [vmem:[#allocation2 + $0x40] sm:$0xff] 0.0
        %313 = vst [vmem:[#allocation2 + $0x48] sm:$0xff] 0.0
        %314 = vst [vmem:[#allocation2 + $0x50] sm:$0xff] 0.0
        %315 = vst [vmem:[#allocation2 + $0x58] sm:$0xff] 0.0
        %316 = vst [vmem:[#allocation2 + $0x60] sm:$0xff] 0.0
        %317 = vst [vmem:[#allocation2 + $0x68] sm:$0xff] 0.0
        %318 = vst [vmem:[#allocation2 + $0x70] sm:$0xff] 0.0
        %319 = vst [vmem:[#allocation2 + $0x78] sm:$0xff] 0.0
        %320 = vst [vmem:[#allocation2 + $0x80] sm:$0xff] 0.0
        %321 = vst [vmem:[#allocation2 + $0x88] sm:$0xff] 0.0
        %322 = vst [vmem:[#allocation2 + $0x90] sm:$0xff] 0.0
        %323 = vst [vmem:[#allocation2 + $0x98] sm:$0xff] 0.0
        %324 = vst [vmem:[#allocation2 + $0xa0] sm:$0xff] 0.0
        %325 = vst [vmem:[#allocation2 + $0xa8] sm:$0xff] 0.0
        %326 = vst [vmem:[#allocation2 + $0xb0] sm:$0xff] 0.0
        %327 = vst [vmem:[#allocation2 + $0xb8] sm:$0xff] 0.0
        %328 = vst [vmem:[#allocation2 + $0xc0] sm:$0xff] 0.0
        %329 = vst [vmem:[#allocation2 + $0xc8] sm:$0xff] 0.0
        %330 = vst [vmem:[#allocation2 + $0xd0] sm:$0xff] 0.0
        %331 = vst [vmem:[#allocation2 + $0xd8] sm:$0xff] 0.0
        %332 = vst [vmem:[#allocation2 + $0xe0] sm:$0xff] 0.0
        %333 = vst [vmem:[#allocation2 + $0xe8] sm:$0xff] 0.0
        %334 = vst [vmem:[#allocation2 + $0xf0] sm:$0xff] 0.0
        %335 = vst [vmem:[#allocation2 + $0xf8] sm:$0xff] 0.0
      $region40: #{_lambda_.22} parent=35 // pred_fallthru
        _
      %v336 = vld [vmem:[#allocation2] sm:$0xff]
      %v337 = vld [vmem:[#allocation2 + $0x8] sm:$0xff]
      %v338 = vld [vmem:[#allocation2 + $0x10] sm:$0xff]
      %v339 = vld [vmem:[#allocation2 + $0x18] sm:$0xff]
      %v340 = vld [vmem:[#allocation2 + $0x20] sm:$0xff]
      %v341 = vld [vmem:[#allocation2 + $0x28] sm:$0xff]
      %v342 = vld [vmem:[#allocation2 + $0x30] sm:$0xff]
      %v343 = vld [vmem:[#allocation2 + $0x38] sm:$0xff]
      %v344 = vld [vmem:[#allocation2 + $0x40] sm:$0xff]
      %v345 = vld [vmem:[#allocation2 + $0x48] sm:$0xff]
      %v346 = vld [vmem:[#allocation2 + $0x50] sm:$0xff]
      %v347 = vld [vmem:[#allocation2 + $0x58] sm:$0xff]
      %v348 = vld [vmem:[#allocation2 + $0x60] sm:$0xff]
      %v349 = vld [vmem:[#allocation2 + $0x68] sm:$0xff]
      %v350 = vld [vmem:[#allocation2 + $0x70] sm:$0xff]
      %v351 = vld [vmem:[#allocation2 + $0x78] sm:$0xff]
      %v352 = vld [vmem:[#allocation2 + $0x80] sm:$0xff]
      %v353 = vld [vmem:[#allocation2 + $0x88] sm:$0xff]
      %v354 = vld [vmem:[#allocation2 + $0x90] sm:$0xff]
      %v355 = vld [vmem:[#allocation2 + $0x98] sm:$0xff]
      %v356 = vld [vmem:[#allocation2 + $0xa0] sm:$0xff]
      %v357 = vld [vmem:[#allocation2 + $0xa8] sm:$0xff]
      %v358 = vld [vmem:[#allocation2 + $0xb0] sm:$0xff]
      %v359 = vld [vmem:[#allocation2 + $0xb8] sm:$0xff]
      %v360 = vld [vmem:[#allocation2 + $0xc0] sm:$0xff]
      %v361 = vld [vmem:[#allocation2 + $0xc8] sm:$0xff]
      %v362 = vld [vmem:[#allocation2 + $0xd0] sm:$0xff]
      %v363 = vld [vmem:[#allocation2 + $0xd8] sm:$0xff]
      %v364 = vld [vmem:[#allocation2 + $0xe0] sm:$0xff]
      %v365 = vld [vmem:[#allocation2 + $0xe8] sm:$0xff]
      %v366 = vld [vmem:[#allocation2 + $0xf0] sm:$0xff]
      %v367 = vld [vmem:[#allocation2 + $0xf8] sm:$0xff]
      %v368 = vld [vmem:[%s274] sm:$0xf]
      %v369 = vld [vmem:[%s274 + $0x4] sm:$0xf]
      %v370 = vld [vmem:[%s274 + $0x8] sm:$0xf]
      %v371 = vld [vmem:[%s274 + $0xc] sm:$0xf]
      %v372 = vld [vmem:[%s274 + $0x10] sm:$0xf]
      %v373 = vld [vmem:[%s274 + $0x14] sm:$0xf]
      %v374 = vld [vmem:[%s274 + $0x18] sm:$0xf]
      %v375 = vld [vmem:[%s274 + $0x1c] sm:$0xf]
      %v376 = vld [vmem:[%s274 + $0x20] sm:$0xf]
      %v377 = vld [vmem:[%s274 + $0x24] sm:$0xf]
      %v378 = vld [vmem:[%s274 + $0x28] sm:$0xf]
      %v379 = vld [vmem:[%s274 + $0x2c] sm:$0xf]
      %v380 = vld [vmem:[%s274 + $0x30] sm:$0xf]
      %v381 = vld [vmem:[%s274 + $0x34] sm:$0xf]
      %v382 = vld [vmem:[%s274 + $0x38] sm:$0xf]
      %v383 = vld [vmem:[%s274 + $0x3c] sm:$0xf]
      %v384 = vld [vmem:[%s274 + $0x40] sm:$0xf]
      %v385 = vld [vmem:[%s274 + $0x44] sm:$0xf]
      %v386 = vld [vmem:[%s274 + $0x48] sm:$0xf]
      %v387 = vld [vmem:[%s274 + $0x4c] sm:$0xf]
      %v388 = vld [vmem:[%s274 + $0x50] sm:$0xf]
      %v389 = vld [vmem:[%s274 + $0x54] sm:$0xf]
      %v390 = vld [vmem:[%s274 + $0x58] sm:$0xf]
      %v391 = vld [vmem:[%s274 + $0x5c] sm:$0xf]
      %v392 = vld [vmem:[%s274 + $0x60] sm:$0xf]
      %v393 = vld [vmem:[%s274 + $0x64] sm:$0xf]
      %v394 = vld [vmem:[%s274 + $0x68] sm:$0xf]
      %v395 = vld [vmem:[%s274 + $0x6c] sm:$0xf]
      %v396 = vld [vmem:[%s274 + $0x70] sm:$0xf]
      %v397 = vld [vmem:[%s274 + $0x74] sm:$0xf]
      %v398 = vld [vmem:[%s274 + $0x78] sm:$0xf]
      %v399 = vld [vmem:[%s274 + $0x7c] sm:$0xf]
      %v400 = vld [vmem:[%s283] sm:$0xf]
      %v401 = vld [vmem:[%s283 + $0x4] sm:$0xf]
      %v402 = vld [vmem:[%s283 + $0x8] sm:$0xf]
      %v403 = vld [vmem:[%s283 + $0xc] sm:$0xf]
      %v404 = vld [vmem:[%s283 + $0x10] sm:$0xf]
      %v405 = vld [vmem:[%s283 + $0x14] sm:$0xf]
      %v406 = vld [vmem:[%s283 + $0x18] sm:$0xf]
      %v407 = vld [vmem:[%s283 + $0x1c] sm:$0xf]
      %v408 = vld [vmem:[%s283 + $0x20] sm:$0xf]
      %v409 = vld [vmem:[%s283 + $0x24] sm:$0xf]
      %v410 = vld [vmem:[%s283 + $0x28] sm:$0xf]
      %v411 = vld [vmem:[%s283 + $0x2c] sm:$0xf]
      %v412 = vld [vmem:[%s283 + $0x30] sm:$0xf]
      %v413 = vld [vmem:[%s283 + $0x34] sm:$0xf]
      %v414 = vld [vmem:[%s283 + $0x38] sm:$0xf]
      %v415 = vld [vmem:[%s283 + $0x3c] sm:$0xf]
      %v448 = vunpack.c.l.b16 %v368
      %v449 = vunpack.c.l.b16 %v369
      %v450 = vunpack.c.l.b16 %v370
      %v451 = vunpack.c.l.b16 %v371
      %v452 = vunpack.c.l.b16 %v372
      %v453 = vunpack.c.l.b16 %v373
      %v454 = vunpack.c.l.b16 %v374
      %v455 = vunpack.c.l.b16 %v375
      %v456 = vunpack.c.l.b16 %v376
      %v457 = vunpack.c.l.b16 %v377
      %v458 = vunpack.c.l.b16 %v378
      %v459 = vunpack.c.l.b16 %v379
      %v460 = vunpack.c.l.b16 %v380
      %v461 = vunpack.c.l.b16 %v381
      %v462 = vunpack.c.l.b16 %v382
      %v463 = vunpack.c.l.b16 %v383
      %v464 = vunpack.c.l.b16 %v384
      %v465 = vunpack.c.l.b16 %v385
      %v466 = vunpack.c.l.b16 %v386
      %v467 = vunpack.c.l.b16 %v387
      %v468 = vunpack.c.l.b16 %v388
      %v469 = vunpack.c.l.b16 %v389
      %v470 = vunpack.c.l.b16 %v390
      %v471 = vunpack.c.l.b16 %v391
      %v472 = vunpack.c.l.b16 %v392
      %v473 = vunpack.c.l.b16 %v393
      %v474 = vunpack.c.l.b16 %v394
      %v475 = vunpack.c.l.b16 %v395
      %v476 = vunpack.c.l.b16 %v396
      %v477 = vunpack.c.l.b16 %v397
      %v478 = vunpack.c.l.b16 %v398
      %v479 = vunpack.c.l.b16 %v399
      %v480 = vpack.c.b16 %v449, %v448
      %v481 = vpack.c.b16 %v451, %v450
      %v482 = vpack.c.b16 %v453, %v452
      %v483 = vpack.c.b16 %v455, %v454
      %v484 = vpack.c.b16 %v457, %v456
      %v485 = vpack.c.b16 %v459, %v458
      %v486 = vpack.c.b16 %v461, %v460
      %v487 = vpack.c.b16 %v463, %v462
      %v488 = vpack.c.b16 %v465, %v464
      %v489 = vpack.c.b16 %v467, %v466
      %v490 = vpack.c.b16 %v469, %v468
      %v491 = vpack.c.b16 %v471, %v470
      %v492 = vpack.c.b16 %v473, %v472
      %v493 = vpack.c.b16 %v475, %v474
      %v494 = vpack.c.b16 %v477, %v476
      %v495 = vpack.c.b16 %v479, %v478
      %v528 = vunpack.c.l.b16 %v400
      %v529 = vunpack.c.l.b16 %v401
      %v530 = vunpack.c.l.b16 %v402
      %v531 = vunpack.c.l.b16 %v403
      %v532 = vunpack.c.l.b16 %v404
      %v533 = vunpack.c.l.b16 %v405
      %v534 = vunpack.c.l.b16 %v406
      %v535 = vunpack.c.l.b16 %v407
      %v536 = vunpack.c.l.b16 %v408
      %v537 = vunpack.c.l.b16 %v409
      %v538 = vunpack.c.l.b16 %v410
      %v539 = vunpack.c.l.b16 %v411
      %v540 = vunpack.c.l.b16 %v412
      %v541 = vunpack.c.l.b16 %v413
      %v542 = vunpack.c.l.b16 %v414
      %v543 = vunpack.c.l.b16 %v415
      %v544 = vpack.c.b16 %v529, %v528
      %v545 = vpack.c.b16 %v531, %v530
      %v546 = vpack.c.b16 %v533, %v532
      %v547 = vpack.c.b16 %v535, %v534
      %v548 = vpack.c.b16 %v537, %v536
      %v549 = vpack.c.b16 %v539, %v538
      %v550 = vpack.c.b16 %v541, %v540
      %v551 = vpack.c.b16 %v543, %v542
      %560 = vmatpush.bf16.msra.mxu0 %v551
      %561 = vmatpush.bf16.msra.mxu0 %v550
      %562 = vmatpush.bf16.msra.mxu0 %v549
      %563 = vmatpush.bf16.msra.mxu0 %v548
      %564 = vmatpush.bf16.msra.mxu0 %v547
      %565 = vmatpush.bf16.msra.mxu0 %v546
      %566 = vmatpush.bf16.msra.mxu0 %v545
      %567 = vmatpush.bf16.msra.mxu0 %v544
      %568 = vmatmul.bf16.gmra.mxu0 %v480
      %v569 = vpop.f32.mrf.mxu0
      %v570 = vadd.f32 0.0, %v569
      %v571 = vpop.f32.mrf.mxu0
      %v572 = vadd.f32 0.0, %v571
      %573 = vmatmul.bf16.gmra.mxu0 %v481
      %v574 = vpop.f32.mrf.mxu0
      %v575 = vadd.f32 0.0, %v574
      %v576 = vpop.f32.mrf.mxu0
      %v577 = vadd.f32 0.0, %v576
      %578 = vmatmul.bf16.gmra.mxu0 %v482
      %v579 = vpop.f32.mrf.mxu0
      %v580 = vadd.f32 0.0, %v579
      %v581 = vpop.f32.mrf.mxu0
      %v582 = vadd.f32 0.0, %v581
      %583 = vmatmul.bf16.gmra.mxu0 %v483
      %v584 = vpop.f32.mrf.mxu0
      %v585 = vadd.f32 0.0, %v584
      %v586 = vpop.f32.mrf.mxu0
      %v587 = vadd.f32 0.0, %v586
      %588 = vmatmul.bf16.gmra.mxu0 %v484
      %v589 = vpop.f32.mrf.mxu0
      %v590 = vadd.f32 0.0, %v589
      %v591 = vpop.f32.mrf.mxu0
      %v592 = vadd.f32 0.0, %v591
      %593 = vmatmul.bf16.gmra.mxu0 %v485
      %v594 = vpop.f32.mrf.mxu0
      %v595 = vadd.f32 0.0, %v594
      %v596 = vpop.f32.mrf.mxu0
      %v597 = vadd.f32 0.0, %v596
      %598 = vmatmul.bf16.gmra.mxu0 %v486
      %v599 = vpop.f32.mrf.mxu0
      %v600 = vadd.f32 0.0, %v599
      %v601 = vpop.f32.mrf.mxu0
      %v602 = vadd.f32 0.0, %v601
      %603 = vmatmul.bf16.gmra.mxu0 %v487
      %v604 = vpop.f32.mrf.mxu0
      %v605 = vadd.f32 0.0, %v604
      %v606 = vpop.f32.mrf.mxu0
      %v607 = vadd.f32 0.0, %v606
      %608 = vmatmul.bf16.gmra.mxu0 %v488
      %v609 = vpop.f32.mrf.mxu0
      %v610 = vadd.f32 0.0, %v609
      %v611 = vpop.f32.mrf.mxu0
      %v612 = vadd.f32 0.0, %v611
      %613 = vmatmul.bf16.gmra.mxu0 %v489
      %v614 = vpop.f32.mrf.mxu0
      %v615 = vadd.f32 0.0, %v614
      %v616 = vpop.f32.mrf.mxu0
      %v617 = vadd.f32 0.0, %v616
      %618 = vmatmul.bf16.gmra.mxu0 %v490
      %v619 = vpop.f32.mrf.mxu0
      %v620 = vadd.f32 0.0, %v619
      %v621 = vpop.f32.mrf.mxu0
      %v622 = vadd.f32 0.0, %v621
      %623 = vmatmul.bf16.gmra.mxu0 %v491
      %v624 = vpop.f32.mrf.mxu0
      %v625 = vadd.f32 0.0, %v624
      %v626 = vpop.f32.mrf.mxu0
      %v627 = vadd.f32 0.0, %v626
      %628 = vmatmul.bf16.gmra.mxu0 %v492
      %v629 = vpop.f32.mrf.mxu0
      %v630 = vadd.f32 0.0, %v629
      %v631 = vpop.f32.mrf.mxu0
      %v632 = vadd.f32 0.0, %v631
      %633 = vmatmul.bf16.gmra.mxu0 %v493
      %v634 = vpop.f32.mrf.mxu0
      %v635 = vadd.f32 0.0, %v634
      %v636 = vpop.f32.mrf.mxu0
      %v637 = vadd.f32 0.0, %v636
      %638 = vmatmul.bf16.gmra.mxu0 %v494
      %v639 = vpop.f32.mrf.mxu0
      %v640 = vadd.f32 0.0, %v639
      %v641 = vpop.f32.mrf.mxu0
      %v642 = vadd.f32 0.0, %v641
      %643 = vmatmul.bf16.gmra.mxu0 %v495
      %v644 = vpop.f32.mrf.mxu0
      %v645 = vadd.f32 0.0, %v644
      %v646 = vpop.f32.mrf.mxu0
      %v647 = vadd.f32 0.0, %v646
      %648 = vdwg.mxu0
      %v649 = vadd.f32 %v336, %v570
      %v650 = vadd.f32 %v337, %v572
      %v651 = vadd.f32 %v338, %v575
      %v652 = vadd.f32 %v339, %v577
      %v653 = vadd.f32 %v340, %v580
      %v654 = vadd.f32 %v341, %v582
      %v655 = vadd.f32 %v342, %v585
      %v656 = vadd.f32 %v343, %v587
      %v657 = vadd.f32 %v344, %v590
      %v658 = vadd.f32 %v345, %v592
      %v659 = vadd.f32 %v346, %v595
      %v660 = vadd.f32 %v347, %v597
      %v661 = vadd.f32 %v348, %v600
      %v662 = vadd.f32 %v349, %v602
      %v663 = vadd.f32 %v350, %v605
      %v664 = vadd.f32 %v351, %v607
      %v665 = vadd.f32 %v352, %v610
      %v666 = vadd.f32 %v353, %v612
      %v667 = vadd.f32 %v354, %v615
      %v668 = vadd.f32 %v355, %v617
      %v669 = vadd.f32 %v356, %v620
      %v670 = vadd.f32 %v357, %v622
      %v671 = vadd.f32 %v358, %v625
      %v672 = vadd.f32 %v359, %v627
      %v673 = vadd.f32 %v360, %v630
      %v674 = vadd.f32 %v361, %v632
      %v675 = vadd.f32 %v362, %v635
      %v676 = vadd.f32 %v363, %v637
      %v677 = vadd.f32 %v364, %v640
      %v678 = vadd.f32 %v365, %v642
      %v679 = vadd.f32 %v366, %v645
      %v680 = vadd.f32 %v367, %v647
      %681 = vst [vmem:[#allocation2] sm:$0xff] %v649
      %682 = vst [vmem:[#allocation2 + $0x8] sm:$0xff] %v650
      %683 = vst [vmem:[#allocation2 + $0x10] sm:$0xff] %v651
      %684 = vst [vmem:[#allocation2 + $0x18] sm:$0xff] %v652
      %685 = vst [vmem:[#allocation2 + $0x20] sm:$0xff] %v653
      %686 = vst [vmem:[#allocation2 + $0x28] sm:$0xff] %v654
      %687 = vst [vmem:[#allocation2 + $0x30] sm:$0xff] %v655
      %688 = vst [vmem:[#allocation2 + $0x38] sm:$0xff] %v656
      %689 = vst [vmem:[#allocation2 + $0x40] sm:$0xff] %v657
      %690 = vst [vmem:[#allocation2 + $0x48] sm:$0xff] %v658
      %691 = vst [vmem:[#allocation2 + $0x50] sm:$0xff] %v659
      %692 = vst [vmem:[#allocation2 + $0x58] sm:$0xff] %v660
      %693 = vst [vmem:[#allocation2 + $0x60] sm:$0xff] %v661
      %694 = vst [vmem:[#allocation2 + $0x68] sm:$0xff] %v662
      %695 = vst [vmem:[#allocation2 + $0x70] sm:$0xff] %v663
      %696 = vst [vmem:[#allocation2 + $0x78] sm:$0xff] %v664
      %697 = vst [vmem:[#allocation2 + $0x80] sm:$0xff] %v665
      %698 = vst [vmem:[#allocation2 + $0x88] sm:$0xff] %v666
      %699 = vst [vmem:[#allocation2 + $0x90] sm:$0xff] %v667
      %700 = vst [vmem:[#allocation2 + $0x98] sm:$0xff] %v668
      %701 = vst [vmem:[#allocation2 + $0xa0] sm:$0xff] %v669
      %702 = vst [vmem:[#allocation2 + $0xa8] sm:$0xff] %v670
      %703 = vst [vmem:[#allocation2 + $0xb0] sm:$0xff] %v671
      %704 = vst [vmem:[#allocation2 + $0xb8] sm:$0xff] %v672
      %705 = vst [vmem:[#allocation2 + $0xc0] sm:$0xff] %v673
      %706 = vst [vmem:[#allocation2 + $0xc8] sm:$0xff] %v674
      %707 = vst [vmem:[#allocation2 + $0xd0] sm:$0xff] %v675
      %708 = vst [vmem:[#allocation2 + $0xd8] sm:$0xff] %v676
      %709 = vst [vmem:[#allocation2 + $0xe0] sm:$0xff] %v677
      %710 = vst [vmem:[#allocation2 + $0xe8] sm:$0xff] %v678
      %711 = vst [vmem:[#allocation2 + $0xf0] sm:$0xff] %v679
      %712 = vst [vmem:[#allocation2 + $0xf8] sm:$0xff] %v680
      // Predicated region
      $region41: #{_lambda_.22} parent=35 // pred_check
        %p713 = pneg %p300
      $region42: #{_lambda_.22} parent=35 // pred_check_branch
        %715 = sbr.rel (%p713) target = $region44
      $region43: #{_lambda_.22} parent=35 // pred_region
        %v716 = vld [vmem:[#allocation2] sm:$0xff]
        %v717 = vld [vmem:[#allocation2 + $0x8] sm:$0xff]
        %v718 = vld [vmem:[#allocation2 + $0x10] sm:$0xff]
        %v719 = vld [vmem:[#allocation2 + $0x18] sm:$0xff]
        %v720 = vld [vmem:[#allocation2 + $0x20] sm:$0xff]
        %v721 = vld [vmem:[#allocation2 + $0x28] sm:$0xff]
        %v722 = vld [vmem:[#allocation2 + $0x30] sm:$0xff]
        %v723 = vld [vmem:[#allocation2 + $0x38] sm:$0xff]
        %v724 = vld [vmem:[#allocation2 + $0x40] sm:$0xff]
        %v725 = vld [vmem:[#allocation2 + $0x48] sm:$0xff]
        %v726 = vld [vmem:[#allocation2 + $0x50] sm:$0xff]
        %v727 = vld [vmem:[#allocation2 + $0x58] sm:$0xff]
        %v728 = vld [vmem:[#allocation2 + $0x60] sm:$0xff]
        %v729 = vld [vmem:[#allocation2 + $0x68] sm:$0xff]
        %v730 = vld [vmem:[#allocation2 + $0x70] sm:$0xff]
        %v731 = vld [vmem:[#allocation2 + $0x78] sm:$0xff]
        %v732 = vld [vmem:[#allocation2 + $0x80] sm:$0xff]
        %v733 = vld [vmem:[#allocation2 + $0x88] sm:$0xff]
        %v734 = vld [vmem:[#allocation2 + $0x90] sm:$0xff]
        %v735 = vld [vmem:[#allocation2 + $0x98] sm:$0xff]
        %v736 = vld [vmem:[#allocation2 + $0xa0] sm:$0xff]
        %v737 = vld [vmem:[#allocation2 + $0xa8] sm:$0xff]
        %v738 = vld [vmem:[#allocation2 + $0xb0] sm:$0xff]
        %v739 = vld [vmem:[#allocation2 + $0xb8] sm:$0xff]
        %v740 = vld [vmem:[#allocation2 + $0xc0] sm:$0xff]
        %v741 = vld [vmem:[#allocation2 + $0xc8] sm:$0xff]
        %v742 = vld [vmem:[#allocation2 + $0xd0] sm:$0xff]
        %v743 = vld [vmem:[#allocation2 + $0xd8] sm:$0xff]
        %v744 = vld [vmem:[#allocation2 + $0xe0] sm:$0xff]
        %v745 = vld [vmem:[#allocation2 + $0xe8] sm:$0xff]
        %v746 = vld [vmem:[#allocation2 + $0xf0] sm:$0xff]
        %v747 = vld [vmem:[#allocation2 + $0xf8] sm:$0xff]
        %v748 = vld [vmem:[%s287] sm:$0x1]
        %v750 = vperm.slane %v748, 0
        %v752 = vmul.f32 %v716, %v750
        %v753 = vmul.f32 %v717, %v750
        %v754 = vmul.f32 %v718, %v750
        %v755 = vmul.f32 %v719, %v750
        %v756 = vmul.f32 %v720, %v750
        %v757 = vmul.f32 %v721, %v750
        %v758 = vmul.f32 %v722, %v750
        %v759 = vmul.f32 %v723, %v750
        %v760 = vmul.f32 %v724, %v750
        %v761 = vmul.f32 %v725, %v750
        %v762 = vmul.f32 %v726, %v750
        %v763 = vmul.f32 %v727, %v750
        %v764 = vmul.f32 %v728, %v750
        %v765 = vmul.f32 %v729, %v750
        %v766 = vmul.f32 %v730, %v750
        %v767 = vmul.f32 %v731, %v750
        %v768 = vmul.f32 %v732, %v750
        %v769 = vmul.f32 %v733, %v750
        %v770 = vmul.f32 %v734, %v750
        %v771 = vmul.f32 %v735, %v750
        %v772 = vmul.f32 %v736, %v750
        %v773 = vmul.f32 %v737, %v750
        %v774 = vmul.f32 %v738, %v750
        %v775 = vmul.f32 %v739, %v750
        %v776 = vmul.f32 %v740, %v750
        %v777 = vmul.f32 %v741, %v750
        %v778 = vmul.f32 %v742, %v750
        %v779 = vmul.f32 %v743, %v750
        %v780 = vmul.f32 %v744, %v750
        %v781 = vmul.f32 %v745, %v750
        %v782 = vmul.f32 %v746, %v750
        %v783 = vmul.f32 %v747, %v750
        %v784 = vld [vmem:[%s290] sm:$0x1]
        %v786 = vperm.slane %v784, 0
        %v788 = vadd.f32 %v752, %v786
        %v789 = vadd.f32 %v753, %v786
        %v790 = vadd.f32 %v754, %v786
        %v791 = vadd.f32 %v755, %v786
        %v792 = vadd.f32 %v756, %v786
        %v793 = vadd.f32 %v757, %v786
        %v794 = vadd.f32 %v758, %v786
        %v795 = vadd.f32 %v759, %v786
        %v796 = vadd.f32 %v760, %v786
        %v797 = vadd.f32 %v761, %v786
        %v798 = vadd.f32 %v762, %v786
        %v799 = vadd.f32 %v763, %v786
        %v800 = vadd.f32 %v764, %v786
        %v801 = vadd.f32 %v765, %v786
        %v802 = vadd.f32 %v766, %v786
        %v803 = vadd.f32 %v767, %v786
        %v804 = vadd.f32 %v768, %v786
        %v805 = vadd.f32 %v769, %v786
        %v806 = vadd.f32 %v770, %v786
        %v807 = vadd.f32 %v771, %v786
        %v808 = vadd.f32 %v772, %v786
        %v809 = vadd.f32 %v773, %v786
        %v810 = vadd.f32 %v774, %v786
        %v811 = vadd.f32 %v775, %v786
        %v812 = vadd.f32 %v776, %v786
        %v813 = vadd.f32 %v777, %v786
        %v814 = vadd.f32 %v778, %v786
        %v815 = vadd.f32 %v779, %v786
        %v816 = vadd.f32 %v780, %v786
        %v817 = vadd.f32 %v781, %v786
        %v818 = vadd.f32 %v782, %v786
        %v819 = vadd.f32 %v783, %v786
        %v820 = vmax.f32 %v788, 0.0
        %v821 = vmax.f32 %v789, 0.0
        %v822 = vmax.f32 %v790, 0.0
        %v823 = vmax.f32 %v791, 0.0
        %v824 = vmax.f32 %v792, 0.0
        %v825 = vmax.f32 %v793, 0.0
        %v826 = vmax.f32 %v794, 0.0
        %v827 = vmax.f32 %v795, 0.0
        %v828 = vmax.f32 %v796, 0.0
        %v829 = vmax.f32 %v797, 0.0
        %v830 = vmax.f32 %v798, 0.0
        %v831 = vmax.f32 %v799, 0.0
        %v832 = vmax.f32 %v800, 0.0
        %v833 = vmax.f32 %v801, 0.0
        %v834 = vmax.f32 %v802, 0.0
        %v835 = vmax.f32 %v803, 0.0
        %v836 = vmax.f32 %v804, 0.0
        %v837 = vmax.f32 %v805, 0.0
        %v838 = vmax.f32 %v806, 0.0
        %v839 = vmax.f32 %v807, 0.0
        %v840 = vmax.f32 %v808, 0.0
        %v841 = vmax.f32 %v809, 0.0
        %v842 = vmax.f32 %v810, 0.0
        %v843 = vmax.f32 %v811, 0.0
        %v844 = vmax.f32 %v812, 0.0
        %v845 = vmax.f32 %v813, 0.0
        %v846 = vmax.f32 %v814, 0.0
        %v847 = vmax.f32 %v815, 0.0
        %v848 = vmax.f32 %v816, 0.0
        %v849 = vmax.f32 %v817, 0.0
        %v850 = vmax.f32 %v818, 0.0
        %v851 = vmax.f32 %v819, 0.0
        %v852 = vpack.c.bf16 %v820, %v820
        %v853 = vpack.c.bf16 %v821, %v821
        %v854 = vpack.c.bf16 %v822, %v822
        %v855 = vpack.c.bf16 %v823, %v823
        %v856 = vpack.c.bf16 %v824, %v824
        %v857 = vpack.c.bf16 %v825, %v825
        %v858 = vpack.c.bf16 %v826, %v826
        %v859 = vpack.c.bf16 %v827, %v827
        %v860 = vpack.c.bf16 %v828, %v828
        %v861 = vpack.c.bf16 %v829, %v829
        %v862 = vpack.c.bf16 %v830, %v830
        %v863 = vpack.c.bf16 %v831, %v831
        %v864 = vpack.c.bf16 %v832, %v832
        %v865 = vpack.c.bf16 %v833, %v833
        %v866 = vpack.c.bf16 %v834, %v834
        %v867 = vpack.c.bf16 %v835, %v835
        %v868 = vpack.c.bf16 %v836, %v836
        %v869 = vpack.c.bf16 %v837, %v837
        %v870 = vpack.c.bf16 %v838, %v838
        %v871 = vpack.c.bf16 %v839, %v839
        %v872 = vpack.c.bf16 %v840, %v840
        %v873 = vpack.c.bf16 %v841, %v841
        %v874 = vpack.c.bf16 %v842, %v842
        %v875 = vpack.c.bf16 %v843, %v843
        %v876 = vpack.c.bf16 %v844, %v844
        %v877 = vpack.c.bf16 %v845, %v845
        %v878 = vpack.c.bf16 %v846, %v846
        %v879 = vpack.c.bf16 %v847, %v847
        %v880 = vpack.c.bf16 %v848, %v848
        %v881 = vpack.c.bf16 %v849, %v849
        %v882 = vpack.c.bf16 %v850, %v850
        %v883 = vpack.c.bf16 %v851, %v851
        %884 = vst [vmem:[%s298] sm:$0xf] %v852
        %885 = vst [vmem:[%s298 + $0x4] sm:$0xf] %v853
        %886 = vst [vmem:[%s298 + $0x8] sm:$0xf] %v854
        %887 = vst [vmem:[%s298 + $0xc] sm:$0xf] %v855
        %888 = vst [vmem:[%s298 + $0x10] sm:$0xf] %v856
        %889 = vst [vmem:[%s298 + $0x14] sm:$0xf] %v857
        %890 = vst [vmem:[%s298 + $0x18] sm:$0xf] %v858
        %891 = vst [vmem:[%s298 + $0x1c] sm:$0xf] %v859
        %892 = vst [vmem:[%s298 + $0x20] sm:$0xf] %v860
        %893 = vst [vmem:[%s298 + $0x24] sm:$0xf] %v861
        %894 = vst [vmem:[%s298 + $0x28] sm:$0xf] %v862
        %895 = vst [vmem:[%s298 + $0x2c] sm:$0xf] %v863
        %896 = vst [vmem:[%s298 + $0x30] sm:$0xf] %v864
        %897 = vst [vmem:[%s298 + $0x34] sm:$0xf] %v865
        %898 = vst [vmem:[%s298 + $0x38] sm:$0xf] %v866
        %899 = vst [vmem:[%s298 + $0x3c] sm:$0xf] %v867
        %900 = vst [vmem:[%s298 + $0x40] sm:$0xf] %v868
        %901 = vst [vmem:[%s298 + $0x44] sm:$0xf] %v869
        %902 = vst [vmem:[%s298 + $0x48] sm:$0xf] %v870
        %903 = vst [vmem:[%s298 + $0x4c] sm:$0xf] %v871
        %904 = vst [vmem:[%s298 + $0x50] sm:$0xf] %v872
        %905 = vst [vmem:[%s298 + $0x54] sm:$0xf] %v873
        %906 = vst [vmem:[%s298 + $0x58] sm:$0xf] %v874
        %907 = vst [vmem:[%s298 + $0x5c] sm:$0xf] %v875
        %908 = vst [vmem:[%s298 + $0x60] sm:$0xf] %v876
        %909 = vst [vmem:[%s298 + $0x64] sm:$0xf] %v877
        %910 = vst [vmem:[%s298 + $0x68] sm:$0xf] %v878
        %911 = vst [vmem:[%s298 + $0x6c] sm:$0xf] %v879
        %912 = vst [vmem:[%s298 + $0x70] sm:$0xf] %v880
        %913 = vst [vmem:[%s298 + $0x74] sm:$0xf] %v881
        %914 = vst [vmem:[%s298 + $0x78] sm:$0xf] %v882
        %915 = vst [vmem:[%s298 + $0x7c] sm:$0xf] %v883
      $region44: #{_lambda_.22} parent=35 // pred_fallthru
        _
      %s916 = smul.u32 32, %s20
      %p917 = scmp.lt.s32.totalorder %s916, 63
      %s918 = scalar_select %p917, %s916, 63
      %p919 = scmp.lt.s32.totalorder %s21, 0
      %s920 = scalar_select %p919, %s21, 0
      %s921 = sadd.s32 %s920, %s918
      %s922 = smul.addr %s921, 4
      %s923 = scalar_lea.vmem %s4, %s922
      // Predicated region
      $region45: #{_lambda_.22} parent=35 // pred_check
        %p924 = pneg %p162
      $region46: #{_lambda_.22} parent=35 // pred_check_branch
        %926 = sbr.rel (%p924) target = $region48
      $region47: #{_lambda_.22} parent=35 // pred_region
        %s927 = smul.u32 32, %s20
      $region48: #{_lambda_.22} parent=35 // pred_fallthru
        _
    $region36: #{_lambda_.22} parent=5 // pred_fallthru
      _
    %p928 = scmp.le.s32.totalorder 2, %s10
    // Predicated region
    $region49: #{_lambda_.22} parent=5 // pred_check
      %p929 = pneg %p928
    $region50: #{_lambda_.22} parent=5 // pred_check_branch
      %931 = sbr.rel (%p929) target = $region52
    $region51: #{_lambda_.22} parent=5 // pred_region
      %s932 = ssub.s32 %s10, 2
      // Predicated region
      $region53: #{_lambda_.22} parent=51 // pred_check
        %p933 = pneg %p168
      $region54: #{_lambda_.22} parent=51 // pred_check_branch
        %935 = sbr.rel (%p933) target = $region56
      $region55: #{_lambda_.22} parent=51 // pred_region
        %s936 = smul.u32 32, %s23
        %p937 = scmp.lt.s32.totalorder %s936, 63
        %s938 = scalar_select %p937, %s936, 63
        %p939 = scmp.lt.s32.totalorder %s24, 0
        %s940 = scalar_select %p939, %s24, 0
        %s941 = sadd.s32 %s940, %s938
        %s942 = smul.addr %s941, 4
        %s943 = scalar_lea.vmem %s4, %s942
      $region56: #{_lambda_.22} parent=51 // pred_fallthru
        _
    $region52: #{_lambda_.22} parent=5 // pred_fallthru
      _
  $region6: #{_lambda_.22} parent=0 // loop_footer
    %s14 = sadd.s32 1, %s10
  $region7: #{_lambda_.22} parent=0 // loop_footer_branch
    %9 = sbr.rel target = $region3
  $region8: #{_lambda_.22} parent=0 // loop_exit
    _

// kernel: _lambda_.27
$region0: #{_lambda_.27}
  #allocation0 [shape = 'u32[]', space=smem, size = 0x4, offset = 0x4, fixed_abs, tag = 'smem constant byte address 0x4 - core index']
  #allocation1 [shape = 'u32[72,128]{1,0:T(1,128)}', space=vmem, size = 0x9000, scoped, tag = 'internal scratch']
  #allocation2 [shape = 'f32[128,128]{1,0:T(8,128)}', space=vmem, size = 0x10000, scoped, tag = 'scratch operand']
  %s0 = inlined_call_operand.vmem [shape: bf16[128,128], index: 0, kind: input, shape index: {}]
  %s1 = inlined_call_operand.vmem [shape: bf16[128,128], index: 1, kind: input, shape index: {}]
  %s2 = inlined_call_operand.vmem [shape: f32[1,128], index: 2, kind: input, shape index: {}]
  %s3 = inlined_call_operand.vmem [shape: f32[1,128], index: 3, kind: input, shape index: {}]
  %s4 = inlined_call_operand.vmem [shape: bf16[128,128], index: 4, kind: output, shape index: {}]
  %s5 = sld [smem:[#allocation0]]
  $region34: #{_lambda_.27} parent=0
    _
  %s7 = ssub.s32 1, %s5
  %s8 = scalar_select 0, %s7, %s5
  // Predicated region
  $region2: #{_lambda_.27} parent=0 // pred_check
    _
  $region3: #{_lambda_.27} parent=0 // pred_check_branch
    %10 = sbr.rel (0) target = $region5
  $region4: #{_lambda_.27} parent=0 // pred_region
    _
  $region5: #{_lambda_.27} parent=0 // pred_fallthru
    _
  // Predicated region
  $region6: #{_lambda_.27} parent=0 // pred_check
    _
  $region7: #{_lambda_.27} parent=0 // pred_check_branch
    %12 = sbr.rel (0) target = $region9
  $region8: #{_lambda_.27} parent=0 // pred_region
    _
  $region9: #{_lambda_.27} parent=0 // pred_fallthru
    _
  // Predicated region
  $region10: #{_lambda_.27} parent=0 // pred_check
    _
  $region11: #{_lambda_.27} parent=0 // pred_check_branch
    %14 = sbr.rel (0) target = $region13
  $region12: #{_lambda_.27} parent=0 // pred_region
    _
  $region13: #{_lambda_.27} parent=0 // pred_fallthru
    _
  // Predicated region
  $region14: #{_lambda_.27} parent=0 // pred_check
    _
  $region15: #{_lambda_.27} parent=0 // pred_check_branch
    %16 = sbr.rel (0) target = $region17
  $region16: #{_lambda_.27} parent=0 // pred_region
    _
  $region17: #{_lambda_.27} parent=0 // pred_fallthru
    _
  %p17 = scmp.eq.s32.totalorder 0, 0
  // Predicated region
  $region18: #{_lambda_.27} parent=0 // pred_check
    %p18 = pneg %p17
  $region19: #{_lambda_.27} parent=0 // pred_check_branch
    %20 = sbr.rel (%p18) target = $region21
  $region20: #{_lambda_.27} parent=0 // pred_region
    %21 = vst [vmem:[#allocation2] sm:$0xff] 0.0
    %22 = vst [vmem:[#allocation2 + $0x8] sm:$0xff] 0.0
    %23 = vst [vmem:[#allocation2 + $0x10] sm:$0xff] 0.0
    %24 = vst [vmem:[#allocation2 + $0x18] sm:$0xff] 0.0
    %25 = vst [vmem:[#allocation2 + $0x20] sm:$0xff] 0.0
    %26 = vst [vmem:[#allocation2 + $0x28] sm:$0xff] 0.0
    %27 = vst [vmem:[#allocation2 + $0x30] sm:$0xff] 0.0
    %28 = vst [vmem:[#allocation2 + $0x38] sm:$0xff] 0.0
    %29 = vst [vmem:[#allocation2 + $0x40] sm:$0xff] 0.0
    %30 = vst [vmem:[#allocation2 + $0x48] sm:$0xff] 0.0
    %31 = vst [vmem:[#allocation2 + $0x50] sm:$0xff] 0.0
    %32 = vst [vmem:[#allocation2 + $0x58] sm:$0xff] 0.0
    %33 = vst [vmem:[#allocation2 + $0x60] sm:$0xff] 0.0
    %34 = vst [vmem:[#allocation2 + $0x68] sm:$0xff] 0.0
    %35 = vst [vmem:[#allocation2 + $0x70] sm:$0xff] 0.0
    %36 = vst [vmem:[#allocation2 + $0x78] sm:$0xff] 0.0
  $region21: #{_lambda_.27} parent=0 // pred_fallthru
    _
  %v37 = vld [vmem:[#allocation2] sm:$0xff]
  %v38 = vld [vmem:[#allocation2 + $0x8] sm:$0xff]
  %v39 = vld [vmem:[#allocation2 + $0x10] sm:$0xff]
  %v40 = vld [vmem:[#allocation2 + $0x18] sm:$0xff]
  %v41 = vld [vmem:[#allocation2 + $0x20] sm:$0xff]
  %v42 = vld [vmem:[#allocation2 + $0x28] sm:$0xff]
  %v43 = vld [vmem:[#allocation2 + $0x30] sm:$0xff]
  %v44 = vld [vmem:[#allocation2 + $0x38] sm:$0xff]
  %v45 = vld [vmem:[#allocation2 + $0x40] sm:$0xff]
  %v46 = vld [vmem:[#allocation2 + $0x48] sm:$0xff]
  %v47 = vld [vmem:[#allocation2 + $0x50] sm:$0xff]
  %v48 = vld [vmem:[#allocation2 + $0x58] sm:$0xff]
  %v49 = vld [vmem:[#allocation2 + $0x60] sm:$0xff]
  %v50 = vld [vmem:[#allocation2 + $0x68] sm:$0xff]
  %v51 = vld [vmem:[#allocation2 + $0x70] sm:$0xff]
  %v52 = vld [vmem:[#allocation2 + $0x78] sm:$0xff]
  %v53 = vld [vmem:[%s0] sm:$0xf]
  %v54 = vld [vmem:[%s0 + $0x4] sm:$0xf]
  %v55 = vld [vmem:[%s0 + $0x8] sm:$0xf]
  %v56 = vld [vmem:[%s0 + $0xc] sm:$0xf]
  %v57 = vld [vmem:[%s0 + $0x10] sm:$0xf]
  %v58 = vld [vmem:[%s0 + $0x14] sm:$0xf]
  %v59 = vld [vmem:[%s0 + $0x18] sm:$0xf]
  %v60 = vld [vmem:[%s0 + $0x1c] sm:$0xf]
  %v61 = vld [vmem:[%s0 + $0x20] sm:$0xf]
  %v62 = vld [vmem:[%s0 + $0x24] sm:$0xf]
  %v63 = vld [vmem:[%s0 + $0x28] sm:$0xf]
  %v64 = vld [vmem:[%s0 + $0x2c] sm:$0xf]
  %v65 = vld [vmem:[%s0 + $0x30] sm:$0xf]
  %v66 = vld [vmem:[%s0 + $0x34] sm:$0xf]
  %v67 = vld [vmem:[%s0 + $0x38] sm:$0xf]
  %v68 = vld [vmem:[%s0 + $0x3c] sm:$0xf]
  %v69 = vld [vmem:[%s1] sm:$0xf]
  %v70 = vld [vmem:[%s1 + $0x4] sm:$0xf]
  %v71 = vld [vmem:[%s1 + $0x8] sm:$0xf]
  %v72 = vld [vmem:[%s1 + $0xc] sm:$0xf]
  %v73 = vld [vmem:[%s1 + $0x10] sm:$0xf]
  %v74 = vld [vmem:[%s1 + $0x14] sm:$0xf]
  %v75 = vld [vmem:[%s1 + $0x18] sm:$0xf]
  %v76 = vld [vmem:[%s1 + $0x1c] sm:$0xf]
  %v77 = vld [vmem:[%s1 + $0x20] sm:$0xf]
  %v78 = vld [vmem:[%s1 + $0x24] sm:$0xf]
  %v79 = vld [vmem:[%s1 + $0x28] sm:$0xf]
  %v80 = vld [vmem:[%s1 + $0x2c] sm:$0xf]
  %v81 = vld [vmem:[%s1 + $0x30] sm:$0xf]
  %v82 = vld [vmem:[%s1 + $0x34] sm:$0xf]
  %v83 = vld [vmem:[%s1 + $0x38] sm:$0xf]
  %v84 = vld [vmem:[%s1 + $0x3c] sm:$0xf]
  %v101 = vunpack.c.l.b16 %v53
  %v102 = vunpack.c.l.b16 %v54
  %v103 = vunpack.c.l.b16 %v55
  %v104 = vunpack.c.l.b16 %v56
  %v105 = vunpack.c.l.b16 %v57
  %v106 = vunpack.c.l.b16 %v58
  %v107 = vunpack.c.l.b16 %v59
  %v108 = vunpack.c.l.b16 %v60
  %v109 = vunpack.c.l.b16 %v61
  %v110 = vunpack.c.l.b16 %v62
  %v111 = vunpack.c.l.b16 %v63
  %v112 = vunpack.c.l.b16 %v64
  %v113 = vunpack.c.l.b16 %v65
  %v114 = vunpack.c.l.b16 %v66
  %v115 = vunpack.c.l.b16 %v67
  %v116 = vunpack.c.l.b16 %v68
  %v117 = vpack.c.b16 %v102, %v101
  %v118 = vpack.c.b16 %v104, %v103
  %v119 = vpack.c.b16 %v106, %v105
  %v120 = vpack.c.b16 %v108, %v107
  %v121 = vpack.c.b16 %v110, %v109
  %v122 = vpack.c.b16 %v112, %v111
  %v123 = vpack.c.b16 %v114, %v113
  %v124 = vpack.c.b16 %v116, %v115
  %v149 = vunpack.c.l.b16 %v69
  %v150 = vunpack.c.l.b16 %v70
  %v151 = vunpack.c.l.b16 %v71
  %v152 = vunpack.c.l.b16 %v72
  %v153 = vunpack.c.l.b16 %v73
  %v154 = vunpack.c.l.b16 %v74
  %v155 = vunpack.c.l.b16 %v75
  %v156 = vunpack.c.l.b16 %v76
  %v157 = vunpack.c.l.b16 %v77
  %v158 = vunpack.c.l.b16 %v78
  %v159 = vunpack.c.l.b16 %v79
  %v160 = vunpack.c.l.b16 %v80
  %v161 = vunpack.c.l.b16 %v81
  %v162 = vunpack.c.l.b16 %v82
  %v163 = vunpack.c.l.b16 %v83
  %v164 = vunpack.c.l.b16 %v84
  %v165 = vpack.c.b16 %v150, %v149
  %v166 = vpack.c.b16 %v152, %v151
  %v167 = vpack.c.b16 %v154, %v153
  %v168 = vpack.c.b16 %v156, %v155
  %v169 = vpack.c.b16 %v158, %v157
  %v170 = vpack.c.b16 %v160, %v159
  %v171 = vpack.c.b16 %v162, %v161
  %v172 = vpack.c.b16 %v164, %v163
  %181 = vmatpush.bf16.msra.mxu0 %v172
  %182 = vmatpush.bf16.msra.mxu0 %v171
  %183 = vmatpush.bf16.msra.mxu0 %v170
  %184 = vmatpush.bf16.msra.mxu0 %v169
  %185 = vmatpush.bf16.msra.mxu0 %v168
  %186 = vmatpush.bf16.msra.mxu0 %v167
  %187 = vmatpush.bf16.msra.mxu0 %v166
  %188 = vmatpush.bf16.msra.mxu0 %v165
  %189 = vmatmul.bf16.gmra.mxu0 %v117
  %v190 = vpop.f32.mrf.mxu0
  %v191 = vadd.f32 0.0, %v190
  %v192 = vpop.f32.mrf.mxu0
  %v193 = vadd.f32 0.0, %v192
  %194 = vmatmul.bf16.gmra.mxu0 %v118
  %v195 = vpop.f32.mrf.mxu0
  %v196 = vadd.f32 0.0, %v195
  %v197 = vpop.f32.mrf.mxu0
  %v198 = vadd.f32 0.0, %v197
  %199 = vmatmul.bf16.gmra.mxu0 %v119
  %v200 = vpop.f32.mrf.mxu0
  %v201 = vadd.f32 0.0, %v200
  %v202 = vpop.f32.mrf.mxu0
  %v203 = vadd.f32 0.0, %v202
  %204 = vmatmul.bf16.gmra.mxu0 %v120
  %v205 = vpop.f32.mrf.mxu0
  %v206 = vadd.f32 0.0, %v205
  %v207 = vpop.f32.mrf.mxu0
  %v208 = vadd.f32 0.0, %v207
  %209 = vmatmul.bf16.gmra.mxu0 %v121
  %v210 = vpop.f32.mrf.mxu0
  %v211 = vadd.f32 0.0, %v210
  %v212 = vpop.f32.mrf.mxu0
  %v213 = vadd.f32 0.0, %v212
  %214 = vmatmul.bf16.gmra.mxu0 %v122
  %v215 = vpop.f32.mrf.mxu0
  %v216 = vadd.f32 0.0, %v215
  %v217 = vpop.f32.mrf.mxu0
  %v218 = vadd.f32 0.0, %v217
  %219 = vmatmul.bf16.gmra.mxu0 %v123
  %v220 = vpop.f32.mrf.mxu0
  %v221 = vadd.f32 0.0, %v220
  %v222 = vpop.f32.mrf.mxu0
  %v223 = vadd.f32 0.0, %v222
  %224 = vmatmul.bf16.gmra.mxu0 %v124
  %v225 = vpop.f32.mrf.mxu0
  %v226 = vadd.f32 0.0, %v225
  %v227 = vpop.f32.mrf.mxu0
  %v228 = vadd.f32 0.0, %v227
  %229 = vdwg.mxu0
  %v230 = vadd.f32 %v37, %v191
  %v231 = vadd.f32 %v38, %v193
  %v232 = vadd.f32 %v39, %v196
  %v233 = vadd.f32 %v40, %v198
  %v234 = vadd.f32 %v41, %v201
  %v235 = vadd.f32 %v42, %v203
  %v236 = vadd.f32 %v43, %v206
  %v237 = vadd.f32 %v44, %v208
  %v238 = vadd.f32 %v45, %v211
  %v239 = vadd.f32 %v46, %v213
  %v240 = vadd.f32 %v47, %v216
  %v241 = vadd.f32 %v48, %v218
  %v242 = vadd.f32 %v49, %v221
  %v243 = vadd.f32 %v50, %v223
  %v244 = vadd.f32 %v51, %v226
  %v245 = vadd.f32 %v52, %v228
  %246 = vst [vmem:[#allocation2] sm:$0xff] %v230
  %247 = vst [vmem:[#allocation2 + $0x8] sm:$0xff] %v231
  %248 = vst [vmem:[#allocation2 + $0x10] sm:$0xff] %v232
  %249 = vst [vmem:[#allocation2 + $0x18] sm:$0xff] %v233
  %250 = vst [vmem:[#allocation2 + $0x20] sm:$0xff] %v234
  %251 = vst [vmem:[#allocation2 + $0x28] sm:$0xff] %v235
  %252 = vst [vmem:[#allocation2 + $0x30] sm:$0xff] %v236
  %253 = vst [vmem:[#allocation2 + $0x38] sm:$0xff] %v237
  %254 = vst [vmem:[#allocation2 + $0x40] sm:$0xff] %v238
  %255 = vst [vmem:[#allocation2 + $0x48] sm:$0xff] %v239
  %256 = vst [vmem:[#allocation2 + $0x50] sm:$0xff] %v240
  %257 = vst [vmem:[#allocation2 + $0x58] sm:$0xff] %v241
  %258 = vst [vmem:[#allocation2 + $0x60] sm:$0xff] %v242
  %259 = vst [vmem:[#allocation2 + $0x68] sm:$0xff] %v243
  %260 = vst [vmem:[#allocation2 + $0x70] sm:$0xff] %v244
  %261 = vst [vmem:[#allocation2 + $0x78] sm:$0xff] %v245
  // Predicated region
  $region22: #{_lambda_.27} parent=0 // pred_check
    %p262 = pneg %p17
  $region23: #{_lambda_.27} parent=0 // pred_check_branch
    %264 = sbr.rel (%p262) target = $region25
  $region24: #{_lambda_.27} parent=0 // pred_region
    %v265 = vld [vmem:[#allocation2] sm:$0xff]
    %v266 = vld [vmem:[#allocation2 + $0x8] sm:$0xff]
    %v267 = vld [vmem:[#allocation2 + $0x10] sm:$0xff]
    %v268 = vld [vmem:[#allocation2 + $0x18] sm:$0xff]
    %v269 = vld [vmem:[#allocation2 + $0x20] sm:$0xff]
    %v270 = vld [vmem:[#allocation2 + $0x28] sm:$0xff]
    %v271 = vld [vmem:[#allocation2 + $0x30] sm:$0xff]
    %v272 = vld [vmem:[#allocation2 + $0x38] sm:$0xff]
    %v273 = vld [vmem:[#allocation2 + $0x40] sm:$0xff]
    %v274 = vld [vmem:[#allocation2 + $0x48] sm:$0xff]
    %v275 = vld [vmem:[#allocation2 + $0x50] sm:$0xff]
    %v276 = vld [vmem:[#allocation2 + $0x58] sm:$0xff]
    %v277 = vld [vmem:[#allocation2 + $0x60] sm:$0xff]
    %v278 = vld [vmem:[#allocation2 + $0x68] sm:$0xff]
    %v279 = vld [vmem:[#allocation2 + $0x70] sm:$0xff]
    %v280 = vld [vmem:[#allocation2 + $0x78] sm:$0xff]
    %v281 = vld [vmem:[%s2] sm:$0x1]
    %v283 = vperm.slane %v281, 0
    %v285 = vmul.f32 %v265, %v283
    %v286 = vmul.f32 %v266, %v283
    %v287 = vmul.f32 %v267, %v283
    %v288 = vmul.f32 %v268, %v283
    %v289 = vmul.f32 %v269, %v283
    %v290 = vmul.f32 %v270, %v283
    %v291 = vmul.f32 %v271, %v283
    %v292 = vmul.f32 %v272, %v283
    %v293 = vmul.f32 %v273, %v283
    %v294 = vmul.f32 %v274, %v283
    %v295 = vmul.f32 %v275, %v283
    %v296 = vmul.f32 %v276, %v283
    %v297 = vmul.f32 %v277, %v283
    %v298 = vmul.f32 %v278, %v283
    %v299 = vmul.f32 %v279, %v283
    %v300 = vmul.f32 %v280, %v283
    %v301 = vld [vmem:[%s3] sm:$0x1]
    %v303 = vperm.slane %v301, 0
    %v305 = vadd.f32 %v285, %v303
    %v306 = vadd.f32 %v286, %v303
    %v307 = vadd.f32 %v287, %v303
    %v308 = vadd.f32 %v288, %v303
    %v309 = vadd.f32 %v289, %v303
    %v310 = vadd.f32 %v290, %v303
    %v311 = vadd.f32 %v291, %v303
    %v312 = vadd.f32 %v292, %v303
    %v313 = vadd.f32 %v293, %v303
    %v314 = vadd.f32 %v294, %v303
    %v315 = vadd.f32 %v295, %v303
    %v316 = vadd.f32 %v296, %v303
    %v317 = vadd.f32 %v297, %v303
    %v318 = vadd.f32 %v298, %v303
    %v319 = vadd.f32 %v299, %v303
    %v320 = vadd.f32 %v300, %v303
    %v321 = vpack.c.bf16 %v305, %v305
    %v322 = vpack.c.bf16 %v306, %v306
    %v323 = vpack.c.bf16 %v307, %v307
    %v324 = vpack.c.bf16 %v308, %v308
    %v325 = vpack.c.bf16 %v309, %v309
    %v326 = vpack.c.bf16 %v310, %v310
    %v327 = vpack.c.bf16 %v311, %v311
    %v328 = vpack.c.bf16 %v312, %v312
    %v329 = vpack.c.bf16 %v313, %v313
    %v330 = vpack.c.bf16 %v314, %v314
    %v331 = vpack.c.bf16 %v315, %v315
    %v332 = vpack.c.bf16 %v316, %v316
    %v333 = vpack.c.bf16 %v317, %v317
    %v334 = vpack.c.bf16 %v318, %v318
    %v335 = vpack.c.bf16 %v319, %v319
    %v336 = vpack.c.bf16 %v320, %v320
    %337 = vst [vmem:[%s4] sm:$0xf] %v321
    %338 = vst [vmem:[%s4 + $0x4] sm:$0xf] %v322
    %339 = vst [vmem:[%s4 + $0x8] sm:$0xf] %v323
    %340 = vst [vmem:[%s4 + $0xc] sm:$0xf] %v324
    %341 = vst [vmem:[%s4 + $0x10] sm:$0xf] %v325
    %342 = vst [vmem:[%s4 + $0x14] sm:$0xf] %v326
    %343 = vst [vmem:[%s4 + $0x18] sm:$0xf] %v327
    %344 = vst [vmem:[%s4 + $0x1c] sm:$0xf] %v328
    %345 = vst [vmem:[%s4 + $0x20] sm:$0xf] %v329
    %346 = vst [vmem:[%s4 + $0x24] sm:$0xf] %v330
    %347 = vst [vmem:[%s4 + $0x28] sm:$0xf] %v331
    %348 = vst [vmem:[%s4 + $0x2c] sm:$0xf] %v332
    %349 = vst [vmem:[%s4 + $0x30] sm:$0xf] %v333
    %350 = vst [vmem:[%s4 + $0x34] sm:$0xf] %v334
    %351 = vst [vmem:[%s4 + $0x38] sm:$0xf] %v335
    %352 = vst [vmem:[%s4 + $0x3c] sm:$0xf] %v336
  $region25: #{_lambda_.27} parent=0 // pred_fallthru
    _
  // Predicated region
  $region26: #{_lambda_.27} parent=0 // pred_check
    _
  $region27: #{_lambda_.27} parent=0 // pred_check_branch
    %354 = sbr.rel (0) target = $region29
  $region28: #{_lambda_.27} parent=0 // pred_region
    _
  $region29: #{_lambda_.27} parent=0 // pred_fallthru
    _
  // Predicated region
  $region30: #{_lambda_.27} parent=0 // pred_check
    _
  $region31: #{_lambda_.27} parent=0 // pred_check_branch
    %356 = sbr.rel (0) target = $region33
  $region32: #{_lambda_.27} parent=0 // pred_region
    _
  $region33: #{_lambda_.27} parent=0 // pred_fallthru
    _

// kernel: _lambda_.25
$region0: #{_lambda_.25}
  #allocation0 [shape = 'u32[]', space=smem, size = 0x4, offset = 0x4, fixed_abs, tag = 'smem constant byte address 0x4 - core index']
  #allocation1 [shape = 'u32[72,128]{1,0:T(1,128)}', space=vmem, size = 0x9000, scoped, tag = 'internal scratch']
  #allocation2 [shape = 'f32[128,128]{1,0:T(8,128)}', space=vmem, size = 0x10000, scoped, tag = 'scratch operand']
  %s0 = inlined_call_operand.vmem [shape: bf16[128,128], index: 0, kind: input, shape index: {}]
  %s1 = inlined_call_operand.vmem [shape: bf16[128,128], index: 1, kind: input, shape index: {}]
  %s2 = inlined_call_operand.vmem [shape: f32[1,128], index: 2, kind: input, shape index: {}]
  %s3 = inlined_call_operand.vmem [shape: f32[1,128], index: 3, kind: input, shape index: {}]
  %s4 = inlined_call_operand.vmem [shape: bf16[128,128], index: 4, kind: output, shape index: {}]
  %s5 = sld [smem:[#allocation0]]
  $region34: #{_lambda_.25} parent=0
    _
  %s7 = ssub.s32 1, %s5
  %s8 = scalar_select 0, %s7, %s5
  // Predicated region
  $region2: #{_lambda_.25} parent=0 // pred_check
    _
  $region3: #{_lambda_.25} parent=0 // pred_check_branch
    %10 = sbr.rel (0) target = $region5
  $region4: #{_lambda_.25} parent=0 // pred_region
    _
  $region5: #{_lambda_.25} parent=0 // pred_fallthru
    _
  // Predicated region
  $region6: #{_lambda_.25} parent=0 // pred_check
    _
  $region7: #{_lambda_.25} parent=0 // pred_check_branch
    %12 = sbr.rel (0) target = $region9
  $region8: #{_lambda_.25} parent=0 // pred_region
    _
  $region9: #{_lambda_.25} parent=0 // pred_fallthru
    _
  // Predicated region
  $region10: #{_lambda_.25} parent=0 // pred_check
    _
  $region11: #{_lambda_.25} parent=0 // pred_check_branch
    %14 = sbr.rel (0) target = $region13
  $region12: #{_lambda_.25} parent=0 // pred_region
    _
  $region13: #{_lambda_.25} parent=0 // pred_fallthru
    _
  // Predicated region
  $region14: #{_lambda_.25} parent=0 // pred_check
    _
  $region15: #{_lambda_.25} parent=0 // pred_check_branch
    %16 = sbr.rel (0) target = $region17
  $region16: #{_lambda_.25} parent=0 // pred_region
    _
  $region17: #{_lambda_.25} parent=0 // pred_fallthru
    _
  %p17 = scmp.eq.s32.totalorder 0, 0
  // Predicated region
  $region18: #{_lambda_.25} parent=0 // pred_check
    %p18 = pneg %p17
  $region19: #{_lambda_.25} parent=0 // pred_check_branch
    %20 = sbr.rel (%p18) target = $region21
  $region20: #{_lambda_.25} parent=0 // pred_region
    %21 = vst [vmem:[#allocation2] sm:$0xff] 0.0
    %22 = vst [vmem:[#allocation2 + $0x8] sm:$0xff] 0.0
    %23 = vst [vmem:[#allocation2 + $0x10] sm:$0xff] 0.0
    %24 = vst [vmem:[#allocation2 + $0x18] sm:$0xff] 0.0
    %25 = vst [vmem:[#allocation2 + $0x20] sm:$0xff] 0.0
    %26 = vst [vmem:[#allocation2 + $0x28] sm:$0xff] 0.0
    %27 = vst [vmem:[#allocation2 + $0x30] sm:$0xff] 0.0
    %28 = vst [vmem:[#allocation2 + $0x38] sm:$0xff] 0.0
    %29 = vst [vmem:[#allocation2 + $0x40] sm:$0xff] 0.0
    %30 = vst [vmem:[#allocation2 + $0x48] sm:$0xff] 0.0
    %31 = vst [vmem:[#allocation2 + $0x50] sm:$0xff] 0.0
    %32 = vst [vmem:[#allocation2 + $0x58] sm:$0xff] 0.0
    %33 = vst [vmem:[#allocation2 + $0x60] sm:$0xff] 0.0
    %34 = vst [vmem:[#allocation2 + $0x68] sm:$0xff] 0.0
    %35 = vst [vmem:[#allocation2 + $0x70] sm:$0xff] 0.0
    %36 = vst [vmem:[#allocation2 + $0x78] sm:$0xff] 0.0
  $region21: #{_lambda_.25} parent=0 // pred_fallthru
    _
  %v37 = vld [vmem:[#allocation2] sm:$0xff]
  %v38 = vld [vmem:[#allocation2 + $0x8] sm:$0xff]
  %v39 = vld [vmem:[#allocation2 + $0x10] sm:$0xff]
  %v40 = vld [vmem:[#allocation2 + $0x18] sm:$0xff]
  %v41 = vld [vmem:[#allocation2 + $0x20] sm:$0xff]
  %v42 = vld [vmem:[#allocation2 + $0x28] sm:$0xff]
  %v43 = vld [vmem:[#allocation2 + $0x30] sm:$0xff]
  %v44 = vld [vmem:[#allocation2 + $0x38] sm:$0xff]
  %v45 = vld [vmem:[#allocation2 + $0x40] sm:$0xff]
  %v46 = vld [vmem:[#allocation2 + $0x48] sm:$0xff]
  %v47 = vld [vmem:[#allocation2 + $0x50] sm:$0xff]
  %v48 = vld [vmem:[#allocation2 + $0x58] sm:$0xff]
  %v49 = vld [vmem:[#allocation2 + $0x60] sm:$0xff]
  %v50 = vld [vmem:[#allocation2 + $0x68] sm:$0xff]
  %v51 = vld [vmem:[#allocation2 + $0x70] sm:$0xff]
  %v52 = vld [vmem:[#allocation2 + $0x78] sm:$0xff]
  %v53 = vld [vmem:[%s0] sm:$0xf]
  %v54 = vld [vmem:[%s0 + $0x4] sm:$0xf]
  %v55 = vld [vmem:[%s0 + $0x8] sm:$0xf]
  %v56 = vld [vmem:[%s0 + $0xc] sm:$0xf]
  %v57 = vld [vmem:[%s0 + $0x10] sm:$0xf]
  %v58 = vld [vmem:[%s0 + $0x14] sm:$0xf]
  %v59 = vld [vmem:[%s0 + $0x18] sm:$0xf]
  %v60 = vld [vmem:[%s0 + $0x1c] sm:$0xf]
  %v61 = vld [vmem:[%s0 + $0x20] sm:$0xf]
  %v62 = vld [vmem:[%s0 + $0x24] sm:$0xf]
  %v63 = vld [vmem:[%s0 + $0x28] sm:$0xf]
  %v64 = vld [vmem:[%s0 + $0x2c] sm:$0xf]
  %v65 = vld [vmem:[%s0 + $0x30] sm:$0xf]
  %v66 = vld [vmem:[%s0 + $0x34] sm:$0xf]
  %v67 = vld [vmem:[%s0 + $0x38] sm:$0xf]
  %v68 = vld [vmem:[%s0 + $0x3c] sm:$0xf]
  %v69 = vld [vmem:[%s1] sm:$0xf]
  %v70 = vld [vmem:[%s1 + $0x4] sm:$0xf]
  %v71 = vld [vmem:[%s1 + $0x8] sm:$0xf]
  %v72 = vld [vmem:[%s1 + $0xc] sm:$0xf]
  %v73 = vld [vmem:[%s1 + $0x10] sm:$0xf]
  %v74 = vld [vmem:[%s1 + $0x14] sm:$0xf]
  %v75 = vld [vmem:[%s1 + $0x18] sm:$0xf]
  %v76 = vld [vmem:[%s1 + $0x1c] sm:$0xf]
  %v77 = vld [vmem:[%s1 + $0x20] sm:$0xf]
  %v78 = vld [vmem:[%s1 + $0x24] sm:$0xf]
  %v79 = vld [vmem:[%s1 + $0x28] sm:$0xf]
  %v80 = vld [vmem:[%s1 + $0x2c] sm:$0xf]
  %v81 = vld [vmem:[%s1 + $0x30] sm:$0xf]
  %v82 = vld [vmem:[%s1 + $0x34] sm:$0xf]
  %v83 = vld [vmem:[%s1 + $0x38] sm:$0xf]
  %v84 = vld [vmem:[%s1 + $0x3c] sm:$0xf]
  %v101 = vunpack.c.l.b16 %v53
  %v102 = vunpack.c.l.b16 %v54
  %v103 = vunpack.c.l.b16 %v55
  %v104 = vunpack.c.l.b16 %v56
  %v105 = vunpack.c.l.b16 %v57
  %v106 = vunpack.c.l.b16 %v58
  %v107 = vunpack.c.l.b16 %v59
  %v108 = vunpack.c.l.b16 %v60
  %v109 = vunpack.c.l.b16 %v61
  %v110 = vunpack.c.l.b16 %v62
  %v111 = vunpack.c.l.b16 %v63
  %v112 = vunpack.c.l.b16 %v64
  %v113 = vunpack.c.l.b16 %v65
  %v114 = vunpack.c.l.b16 %v66
  %v115 = vunpack.c.l.b16 %v67
  %v116 = vunpack.c.l.b16 %v68
  %v117 = vpack.c.b16 %v102, %v101
  %v118 = vpack.c.b16 %v104, %v103
  %v119 = vpack.c.b16 %v106, %v105
  %v120 = vpack.c.b16 %v108, %v107
  %v121 = vpack.c.b16 %v110, %v109
  %v122 = vpack.c.b16 %v112, %v111
  %v123 = vpack.c.b16 %v114, %v113
  %v124 = vpack.c.b16 %v116, %v115
  %v149 = vunpack.c.l.b16 %v69
  %v150 = vunpack.c.l.b16 %v70
  %v151 = vunpack.c.l.b16 %v71
  %v152 = vunpack.c.l.b16 %v72
  %v153 = vunpack.c.l.b16 %v73
  %v154 = vunpack.c.l.b16 %v74
  %v155 = vunpack.c.l.b16 %v75
  %v156 = vunpack.c.l.b16 %v76
  %v157 = vunpack.c.l.b16 %v77
  %v158 = vunpack.c.l.b16 %v78
  %v159 = vunpack.c.l.b16 %v79
  %v160 = vunpack.c.l.b16 %v80
  %v161 = vunpack.c.l.b16 %v81
  %v162 = vunpack.c.l.b16 %v82
  %v163 = vunpack.c.l.b16 %v83
  %v164 = vunpack.c.l.b16 %v84
  %v165 = vpack.c.b16 %v150, %v149
  %v166 = vpack.c.b16 %v152, %v151
  %v167 = vpack.c.b16 %v154, %v153
  %v168 = vpack.c.b16 %v156, %v155
  %v169 = vpack.c.b16 %v158, %v157
  %v170 = vpack.c.b16 %v160, %v159
  %v171 = vpack.c.b16 %v162, %v161
  %v172 = vpack.c.b16 %v164, %v163
  %181 = vmatpush.bf16.msra.mxu0 %v172
  %182 = vmatpush.bf16.msra.mxu0 %v171
  %183 = vmatpush.bf16.msra.mxu0 %v170
  %184 = vmatpush.bf16.msra.mxu0 %v169
  %185 = vmatpush.bf16.msra.mxu0 %v168
  %186 = vmatpush.bf16.msra.mxu0 %v167
  %187 = vmatpush.bf16.msra.mxu0 %v166
  %188 = vmatpush.bf16.msra.mxu0 %v165
  %189 = vmatmul.bf16.gmra.mxu0 %v117
  %v190 = vpop.f32.mrf.mxu0
  %v191 = vadd.f32 0.0, %v190
  %v192 = vpop.f32.mrf.mxu0
  %v193 = vadd.f32 0.0, %v192
  %194 = vmatmul.bf16.gmra.mxu0 %v118
  %v195 = vpop.f32.mrf.mxu0
  %v196 = vadd.f32 0.0, %v195
  %v197 = vpop.f32.mrf.mxu0
  %v198 = vadd.f32 0.0, %v197
  %199 = vmatmul.bf16.gmra.mxu0 %v119
  %v200 = vpop.f32.mrf.mxu0
  %v201 = vadd.f32 0.0, %v200
  %v202 = vpop.f32.mrf.mxu0
  %v203 = vadd.f32 0.0, %v202
  %204 = vmatmul.bf16.gmra.mxu0 %v120
  %v205 = vpop.f32.mrf.mxu0
  %v206 = vadd.f32 0.0, %v205
  %v207 = vpop.f32.mrf.mxu0
  %v208 = vadd.f32 0.0, %v207
  %209 = vmatmul.bf16.gmra.mxu0 %v121
  %v210 = vpop.f32.mrf.mxu0
  %v211 = vadd.f32 0.0, %v210
  %v212 = vpop.f32.mrf.mxu0
  %v213 = vadd.f32 0.0, %v212
  %214 = vmatmul.bf16.gmra.mxu0 %v122
  %v215 = vpop.f32.mrf.mxu0
  %v216 = vadd.f32 0.0, %v215
  %v217 = vpop.f32.mrf.mxu0
  %v218 = vadd.f32 0.0, %v217
  %219 = vmatmul.bf16.gmra.mxu0 %v123
  %v220 = vpop.f32.mrf.mxu0
  %v221 = vadd.f32 0.0, %v220
  %v222 = vpop.f32.mrf.mxu0
  %v223 = vadd.f32 0.0, %v222
  %224 = vmatmul.bf16.gmra.mxu0 %v124
  %v225 = vpop.f32.mrf.mxu0
  %v226 = vadd.f32 0.0, %v225
  %v227 = vpop.f32.mrf.mxu0
  %v228 = vadd.f32 0.0, %v227
  %229 = vdwg.mxu0
  %v230 = vadd.f32 %v37, %v191
  %v231 = vadd.f32 %v38, %v193
  %v232 = vadd.f32 %v39, %v196
  %v233 = vadd.f32 %v40, %v198
  %v234 = vadd.f32 %v41, %v201
  %v235 = vadd.f32 %v42, %v203
  %v236 = vadd.f32 %v43, %v206
  %v237 = vadd.f32 %v44, %v208
  %v238 = vadd.f32 %v45, %v211
  %v239 = vadd.f32 %v46, %v213
  %v240 = vadd.f32 %v47, %v216
  %v241 = vadd.f32 %v48, %v218
  %v242 = vadd.f32 %v49, %v221
  %v243 = vadd.f32 %v50, %v223
  %v244 = vadd.f32 %v51, %v226
  %v245 = vadd.f32 %v52, %v228
  %246 = vst [vmem:[#allocation2] sm:$0xff] %v230
  %247 = vst [vmem:[#allocation2 + $0x8] sm:$0xff] %v231
  %248 = vst [vmem:[#allocation2 + $0x10] sm:$0xff] %v232
  %249 = vst [vmem:[#allocation2 + $0x18] sm:$0xff] %v233
  %250 = vst [vmem:[#allocation2 + $0x20] sm:$0xff] %v234
  %251 = vst [vmem:[#allocation2 + $0x28] sm:$0xff] %v235
  %252 = vst [vmem:[#allocation2 + $0x30] sm:$0xff] %v236
  %253 = vst [vmem:[#allocation2 + $0x38] sm:$0xff] %v237
  %254 = vst [vmem:[#allocation2 + $0x40] sm:$0xff] %v238
  %255 = vst [vmem:[#allocation2 + $0x48] sm:$0xff] %v239
  %256 = vst [vmem:[#allocation2 + $0x50] sm:$0xff] %v240
  %257 = vst [vmem:[#allocation2 + $0x58] sm:$0xff] %v241
  %258 = vst [vmem:[#allocation2 + $0x60] sm:$0xff] %v242
  %259 = vst [vmem:[#allocation2 + $0x68] sm:$0xff] %v243
  %260 = vst [vmem:[#allocation2 + $0x70] sm:$0xff] %v244
  %261 = vst [vmem:[#allocation2 + $0x78] sm:$0xff] %v245
  // Predicated region
  $region22: #{_lambda_.25} parent=0 // pred_check
    %p262 = pneg %p17
  $region23: #{_lambda_.25} parent=0 // pred_check_branch
    %264 = sbr.rel (%p262) target = $region25
  $region24: #{_lambda_.25} parent=0 // pred_region
    %v265 = vld [vmem:[#allocation2] sm:$0xff]
    %v266 = vld [vmem:[#allocation2 + $0x8] sm:$0xff]
    %v267 = vld [vmem:[#allocation2 + $0x10] sm:$0xff]
    %v268 = vld [vmem:[#allocation2 + $0x18] sm:$0xff]
    %v269 = vld [vmem:[#allocation2 + $0x20] sm:$0xff]
    %v270 = vld [vmem:[#allocation2 + $0x28] sm:$0xff]
    %v271 = vld [vmem:[#allocation2 + $0x30] sm:$0xff]
    %v272 = vld [vmem:[#allocation2 + $0x38] sm:$0xff]
    %v273 = vld [vmem:[#allocation2 + $0x40] sm:$0xff]
    %v274 = vld [vmem:[#allocation2 + $0x48] sm:$0xff]
    %v275 = vld [vmem:[#allocation2 + $0x50] sm:$0xff]
    %v276 = vld [vmem:[#allocation2 + $0x58] sm:$0xff]
    %v277 = vld [vmem:[#allocation2 + $0x60] sm:$0xff]
    %v278 = vld [vmem:[#allocation2 + $0x68] sm:$0xff]
    %v279 = vld [vmem:[#allocation2 + $0x70] sm:$0xff]
    %v280 = vld [vmem:[#allocation2 + $0x78] sm:$0xff]
    %v281 = vld [vmem:[%s2] sm:$0x1]
    %v283 = vperm.slane %v281, 0
    %v285 = vmul.f32 %v265, %v283
    %v286 = vmul.f32 %v266, %v283
    %v287 = vmul.f32 %v267, %v283
    %v288 = vmul.f32 %v268, %v283
    %v289 = vmul.f32 %v269, %v283
    %v290 = vmul.f32 %v270, %v283
    %v291 = vmul.f32 %v271, %v283
    %v292 = vmul.f32 %v272, %v283
    %v293 = vmul.f32 %v273, %v283
    %v294 = vmul.f32 %v274, %v283
    %v295 = vmul.f32 %v275, %v283
    %v296 = vmul.f32 %v276, %v283
    %v297 = vmul.f32 %v277, %v283
    %v298 = vmul.f32 %v278, %v283
    %v299 = vmul.f32 %v279, %v283
    %v300 = vmul.f32 %v280, %v283
    %v301 = vld [vmem:[%s3] sm:$0x1]
    %v303 = vperm.slane %v301, 0
    %v305 = vadd.f32 %v285, %v303
    %v306 = vadd.f32 %v286, %v303
    %v307 = vadd.f32 %v287, %v303
    %v308 = vadd.f32 %v288, %v303
    %v309 = vadd.f32 %v289, %v303
    %v310 = vadd.f32 %v290, %v303
    %v311 = vadd.f32 %v291, %v303
    %v312 = vadd.f32 %v292, %v303
    %v313 = vadd.f32 %v293, %v303
    %v314 = vadd.f32 %v294, %v303
    %v315 = vadd.f32 %v295, %v303
    %v316 = vadd.f32 %v296, %v303
    %v317 = vadd.f32 %v297, %v303
    %v318 = vadd.f32 %v298, %v303
    %v319 = vadd.f32 %v299, %v303
    %v320 = vadd.f32 %v300, %v303
    %v321 = vmax.f32 %v305, 0.0
    %v322 = vmax.f32 %v306, 0.0
    %v323 = vmax.f32 %v307, 0.0
    %v324 = vmax.f32 %v308, 0.0
    %v325 = vmax.f32 %v309, 0.0
    %v326 = vmax.f32 %v310, 0.0
    %v327 = vmax.f32 %v311, 0.0
    %v328 = vmax.f32 %v312, 0.0
    %v329 = vmax.f32 %v313, 0.0
    %v330 = vmax.f32 %v314, 0.0
    %v331 = vmax.f32 %v315, 0.0
    %v332 = vmax.f32 %v316, 0.0
    %v333 = vmax.f32 %v317, 0.0
    %v334 = vmax.f32 %v318, 0.0
    %v335 = vmax.f32 %v319, 0.0
    %v336 = vmax.f32 %v320, 0.0
    %v337 = vpack.c.bf16 %v321, %v321
    %v338 = vpack.c.bf16 %v322, %v322
    %v339 = vpack.c.bf16 %v323, %v323
    %v340 = vpack.c.bf16 %v324, %v324
    %v341 = vpack.c.bf16 %v325, %v325
    %v342 = vpack.c.bf16 %v326, %v326
    %v343 = vpack.c.bf16 %v327, %v327
    %v344 = vpack.c.bf16 %v328, %v328
    %v345 = vpack.c.bf16 %v329, %v329
    %v346 = vpack.c.bf16 %v330, %v330
    %v347 = vpack.c.bf16 %v331, %v331
    %v348 = vpack.c.bf16 %v332, %v332
    %v349 = vpack.c.bf16 %v333, %v333
    %v350 = vpack.c.bf16 %v334, %v334
    %v351 = vpack.c.bf16 %v335, %v335
    %v352 = vpack.c.bf16 %v336, %v336
    %353 = vst [vmem:[%s4] sm:$0xf] %v337
    %354 = vst [vmem:[%s4 + $0x4] sm:$0xf] %v338
    %355 = vst [vmem:[%s4 + $0x8] sm:$0xf] %v339
    %356 = vst [vmem:[%s4 + $0xc] sm:$0xf] %v340
    %357 = vst [vmem:[%s4 + $0x10] sm:$0xf] %v341
    %358 = vst [vmem:[%s4 + $0x14] sm:$0xf] %v342
    %359 = vst [vmem:[%s4 + $0x18] sm:$0xf] %v343
    %360 = vst [vmem:[%s4 + $0x1c] sm:$0xf] %v344
    %361 = vst [vmem:[%s4 + $0x20] sm:$0xf] %v345
    %362 = vst [vmem:[%s4 + $0x24] sm:$0xf] %v346
    %363 = vst [vmem:[%s4 + $0x28] sm:$0xf] %v347
    %364 = vst [vmem:[%s4 + $0x2c] sm:$0xf] %v348
    %365 = vst [vmem:[%s4 + $0x30] sm:$0xf] %v349
    %366 = vst [vmem:[%s4 + $0x34] sm:$0xf] %v350
    %367 = vst [vmem:[%s4 + $0x38] sm:$0xf] %v351
    %368 = vst [vmem:[%s4 + $0x3c] sm:$0xf] %v352
  $region25: #{_lambda_.25} parent=0 // pred_fallthru
    _
  // Predicated region
  $region26: #{_lambda_.25} parent=0 // pred_check
    _
  $region27: #{_lambda_.25} parent=0 // pred_check_branch
    %370 = sbr.rel (0) target = $region29
  $region28: #{_lambda_.25} parent=0 // pred_region
    _
  $region29: #{_lambda_.25} parent=0 // pred_fallthru
    _
  // Predicated region
  $region30: #{_lambda_.25} parent=0 // pred_check
    _
  $region31: #{_lambda_.25} parent=0 // pred_check_branch
    %372 = sbr.rel (0) target = $region33
  $region32: #{_lambda_.25} parent=0 // pred_region
    _
  $region33: #{_lambda_.25} parent=0 // pred_fallthru
    _

// kernel: _lambda_.28
$region0: #{_lambda_.28}
  #allocation0 [shape = 'u32[]', space=smem, size = 0x4, offset = 0x4, fixed_abs, tag = 'smem constant byte address 0x4 - core index']
  #allocation1 [shape = 'u32[72,128]{1,0:T(1,128)}', space=vmem, size = 0x9000, scoped, tag = 'internal scratch']
  #allocation2 [shape = 'f32[128,128]{1,0:T(8,128)}', space=vmem, size = 0x10000, scoped, tag = 'scratch operand']
  %s0 = inlined_call_operand.vmem [shape: bf16[128,128], index: 0, kind: input, shape index: {}]
  %s1 = inlined_call_operand.vmem [shape: bf16[128,128], index: 1, kind: input, shape index: {}]
  %s2 = inlined_call_operand.vmem [shape: f32[1,128], index: 2, kind: input, shape index: {}]
  %s3 = inlined_call_operand.vmem [shape: f32[1,128], index: 3, kind: input, shape index: {}]
  %s4 = inlined_call_operand.vmem [shape: bf16[128,128], index: 4, kind: input, shape index: {}]
  %s5 = inlined_call_operand.vmem [shape: bf16[128,128], index: 5, kind: output, shape index: {}]
  %s6 = sld [smem:[#allocation0]]
  $region38: #{_lambda_.28} parent=0
    _
  %s8 = ssub.s32 1, %s6
  %s9 = scalar_select 0, %s8, %s6
  // Predicated region
  $region2: #{_lambda_.28} parent=0 // pred_check
    _
  $region3: #{_lambda_.28} parent=0 // pred_check_branch
    %11 = sbr.rel (0) target = $region5
  $region4: #{_lambda_.28} parent=0 // pred_region
    _
  $region5: #{_lambda_.28} parent=0 // pred_fallthru
    _
  // Predicated region
  $region6: #{_lambda_.28} parent=0 // pred_check
    _
  $region7: #{_lambda_.28} parent=0 // pred_check_branch
    %13 = sbr.rel (0) target = $region9
  $region8: #{_lambda_.28} parent=0 // pred_region
    _
  $region9: #{_lambda_.28} parent=0 // pred_fallthru
    _
  // Predicated region
  $region10: #{_lambda_.28} parent=0 // pred_check
    _
  $region11: #{_lambda_.28} parent=0 // pred_check_branch
    %15 = sbr.rel (0) target = $region13
  $region12: #{_lambda_.28} parent=0 // pred_region
    _
  $region13: #{_lambda_.28} parent=0 // pred_fallthru
    _
  // Predicated region
  $region14: #{_lambda_.28} parent=0 // pred_check
    _
  $region15: #{_lambda_.28} parent=0 // pred_check_branch
    %17 = sbr.rel (0) target = $region17
  $region16: #{_lambda_.28} parent=0 // pred_region
    _
  $region17: #{_lambda_.28} parent=0 // pred_fallthru
    _
  // Predicated region
  $region18: #{_lambda_.28} parent=0 // pred_check
    _
  $region19: #{_lambda_.28} parent=0 // pred_check_branch
    %19 = sbr.rel (0) target = $region21
  $region20: #{_lambda_.28} parent=0 // pred_region
    _
  $region21: #{_lambda_.28} parent=0 // pred_fallthru
    _
  %p20 = scmp.eq.s32.totalorder 0, 0
  // Predicated region
  $region22: #{_lambda_.28} parent=0 // pred_check
    %p21 = pneg %p20
  $region23: #{_lambda_.28} parent=0 // pred_check_branch
    %23 = sbr.rel (%p21) target = $region25
  $region24: #{_lambda_.28} parent=0 // pred_region
    %24 = vst [vmem:[#allocation2] sm:$0xff] 0.0
    %25 = vst [vmem:[#allocation2 + $0x8] sm:$0xff] 0.0
    %26 = vst [vmem:[#allocation2 + $0x10] sm:$0xff] 0.0
    %27 = vst [vmem:[#allocation2 + $0x18] sm:$0xff] 0.0
    %28 = vst [vmem:[#allocation2 + $0x20] sm:$0xff] 0.0
    %29 = vst [vmem:[#allocation2 + $0x28] sm:$0xff] 0.0
    %30 = vst [vmem:[#allocation2 + $0x30] sm:$0xff] 0.0
    %31 = vst [vmem:[#allocation2 + $0x38] sm:$0xff] 0.0
    %32 = vst [vmem:[#allocation2 + $0x40] sm:$0xff] 0.0
    %33 = vst [vmem:[#allocation2 + $0x48] sm:$0xff] 0.0
    %34 = vst [vmem:[#allocation2 + $0x50] sm:$0xff] 0.0
    %35 = vst [vmem:[#allocation2 + $0x58] sm:$0xff] 0.0
    %36 = vst [vmem:[#allocation2 + $0x60] sm:$0xff] 0.0
    %37 = vst [vmem:[#allocation2 + $0x68] sm:$0xff] 0.0
    %38 = vst [vmem:[#allocation2 + $0x70] sm:$0xff] 0.0
    %39 = vst [vmem:[#allocation2 + $0x78] sm:$0xff] 0.0
  $region25: #{_lambda_.28} parent=0 // pred_fallthru
    _
  %v40 = vld [vmem:[#allocation2] sm:$0xff]
  %v41 = vld [vmem:[#allocation2 + $0x8] sm:$0xff]
  %v42 = vld [vmem:[#allocation2 + $0x10] sm:$0xff]
  %v43 = vld [vmem:[#allocation2 + $0x18] sm:$0xff]
  %v44 = vld [vmem:[#allocation2 + $0x20] sm:$0xff]
  %v45 = vld [vmem:[#allocation2 + $0x28] sm:$0xff]
  %v46 = vld [vmem:[#allocation2 + $0x30] sm:$0xff]
  %v47 = vld [vmem:[#allocation2 + $0x38] sm:$0xff]
  %v48 = vld [vmem:[#allocation2 + $0x40] sm:$0xff]
  %v49 = vld [vmem:[#allocation2 + $0x48] sm:$0xff]
  %v50 = vld [vmem:[#allocation2 + $0x50] sm:$0xff]
  %v51 = vld [vmem:[#allocation2 + $0x58] sm:$0xff]
  %v52 = vld [vmem:[#allocation2 + $0x60] sm:$0xff]
  %v53 = vld [vmem:[#allocation2 + $0x68] sm:$0xff]
  %v54 = vld [vmem:[#allocation2 + $0x70] sm:$0xff]
  %v55 = vld [vmem:[#allocation2 + $0x78] sm:$0xff]
  %v56 = vld [vmem:[%s0] sm:$0xf]
  %v57 = vld [vmem:[%s0 + $0x4] sm:$0xf]
  %v58 = vld [vmem:[%s0 + $0x8] sm:$0xf]
  %v59 = vld [vmem:[%s0 + $0xc] sm:$0xf]
  %v60 = vld [vmem:[%s0 + $0x10] sm:$0xf]
  %v61 = vld [vmem:[%s0 + $0x14] sm:$0xf]
  %v62 = vld [vmem:[%s0 + $0x18] sm:$0xf]
  %v63 = vld [vmem:[%s0 + $0x1c] sm:$0xf]
  %v64 = vld [vmem:[%s0 + $0x20] sm:$0xf]
  %v65 = vld [vmem:[%s0 + $0x24] sm:$0xf]
  %v66 = vld [vmem:[%s0 + $0x28] sm:$0xf]
  %v67 = vld [vmem:[%s0 + $0x2c] sm:$0xf]
  %v68 = vld [vmem:[%s0 + $0x30] sm:$0xf]
  %v69 = vld [vmem:[%s0 + $0x34] sm:$0xf]
  %v70 = vld [vmem:[%s0 + $0x38] sm:$0xf]
  %v71 = vld [vmem:[%s0 + $0x3c] sm:$0xf]
  %v72 = vld [vmem:[%s1] sm:$0xf]
  %v73 = vld [vmem:[%s1 + $0x4] sm:$0xf]
  %v74 = vld [vmem:[%s1 + $0x8] sm:$0xf]
  %v75 = vld [vmem:[%s1 + $0xc] sm:$0xf]
  %v76 = vld [vmem:[%s1 + $0x10] sm:$0xf]
  %v77 = vld [vmem:[%s1 + $0x14] sm:$0xf]
  %v78 = vld [vmem:[%s1 + $0x18] sm:$0xf]
  %v79 = vld [vmem:[%s1 + $0x1c] sm:$0xf]
  %v80 = vld [vmem:[%s1 + $0x20] sm:$0xf]
  %v81 = vld [vmem:[%s1 + $0x24] sm:$0xf]
  %v82 = vld [vmem:[%s1 + $0x28] sm:$0xf]
  %v83 = vld [vmem:[%s1 + $0x2c] sm:$0xf]
  %v84 = vld [vmem:[%s1 + $0x30] sm:$0xf]
  %v85 = vld [vmem:[%s1 + $0x34] sm:$0xf]
  %v86 = vld [vmem:[%s1 + $0x38] sm:$0xf]
  %v87 = vld [vmem:[%s1 + $0x3c] sm:$0xf]
  %v104 = vunpack.c.l.b16 %v56
  %v105 = vunpack.c.l.b16 %v57
  %v106 = vunpack.c.l.b16 %v58
  %v107 = vunpack.c.l.b16 %v59
  %v108 = vunpack.c.l.b16 %v60
  %v109 = vunpack.c.l.b16 %v61
  %v110 = vunpack.c.l.b16 %v62
  %v111 = vunpack.c.l.b16 %v63
  %v112 = vunpack.c.l.b16 %v64
  %v113 = vunpack.c.l.b16 %v65
  %v114 = vunpack.c.l.b16 %v66
  %v115 = vunpack.c.l.b16 %v67
  %v116 = vunpack.c.l.b16 %v68
  %v117 = vunpack.c.l.b16 %v69
  %v118 = vunpack.c.l.b16 %v70
  %v119 = vunpack.c.l.b16 %v71
  %v120 = vpack.c.b16 %v105, %v104
  %v121 = vpack.c.b16 %v107, %v106
  %v122 = vpack.c.b16 %v109, %v108
  %v123 = vpack.c.b16 %v111, %v110
  %v124 = vpack.c.b16 %v113, %v112
  %v125 = vpack.c.b16 %v115, %v114
  %v126 = vpack.c.b16 %v117, %v116
  %v127 = vpack.c.b16 %v119, %v118
  %v152 = vunpack.c.l.b16 %v72
  %v153 = vunpack.c.l.b16 %v73
  %v154 = vunpack.c.l.b16 %v74
  %v155 = vunpack.c.l.b16 %v75
  %v156 = vunpack.c.l.b16 %v76
  %v157 = vunpack.c.l.b16 %v77
  %v158 = vunpack.c.l.b16 %v78
  %v159 = vunpack.c.l.b16 %v79
  %v160 = vunpack.c.l.b16 %v80
  %v161 = vunpack.c.l.b16 %v81
  %v162 = vunpack.c.l.b16 %v82
  %v163 = vunpack.c.l.b16 %v83
  %v164 = vunpack.c.l.b16 %v84
  %v165 = vunpack.c.l.b16 %v85
  %v166 = vunpack.c.l.b16 %v86
  %v167 = vunpack.c.l.b16 %v87
  %v168 = vpack.c.b16 %v153, %v152
  %v169 = vpack.c.b16 %v155, %v154
  %v170 = vpack.c.b16 %v157, %v156
  %v171 = vpack.c.b16 %v159, %v158
  %v172 = vpack.c.b16 %v161, %v160
  %v173 = vpack.c.b16 %v163, %v162
  %v174 = vpack.c.b16 %v165, %v164
  %v175 = vpack.c.b16 %v167, %v166
  %184 = vmatpush.bf16.msra.mxu0 %v175
  %185 = vmatpush.bf16.msra.mxu0 %v174
  %186 = vmatpush.bf16.msra.mxu0 %v173
  %187 = vmatpush.bf16.msra.mxu0 %v172
  %188 = vmatpush.bf16.msra.mxu0 %v171
  %189 = vmatpush.bf16.msra.mxu0 %v170
  %190 = vmatpush.bf16.msra.mxu0 %v169
  %191 = vmatpush.bf16.msra.mxu0 %v168
  %192 = vmatmul.bf16.gmra.mxu0 %v120
  %v193 = vpop.f32.mrf.mxu0
  %v194 = vadd.f32 0.0, %v193
  %v195 = vpop.f32.mrf.mxu0
  %v196 = vadd.f32 0.0, %v195
  %197 = vmatmul.bf16.gmra.mxu0 %v121
  %v198 = vpop.f32.mrf.mxu0
  %v199 = vadd.f32 0.0, %v198
  %v200 = vpop.f32.mrf.mxu0
  %v201 = vadd.f32 0.0, %v200
  %202 = vmatmul.bf16.gmra.mxu0 %v122
  %v203 = vpop.f32.mrf.mxu0
  %v204 = vadd.f32 0.0, %v203
  %v205 = vpop.f32.mrf.mxu0
  %v206 = vadd.f32 0.0, %v205
  %207 = vmatmul.bf16.gmra.mxu0 %v123
  %v208 = vpop.f32.mrf.mxu0
  %v209 = vadd.f32 0.0, %v208
  %v210 = vpop.f32.mrf.mxu0
  %v211 = vadd.f32 0.0, %v210
  %212 = vmatmul.bf16.gmra.mxu0 %v124
  %v213 = vpop.f32.mrf.mxu0
  %v214 = vadd.f32 0.0, %v213
  %v215 = vpop.f32.mrf.mxu0
  %v216 = vadd.f32 0.0, %v215
  %217 = vmatmul.bf16.gmra.mxu0 %v125
  %v218 = vpop.f32.mrf.mxu0
  %v219 = vadd.f32 0.0, %v218
  %v220 = vpop.f32.mrf.mxu0
  %v221 = vadd.f32 0.0, %v220
  %222 = vmatmul.bf16.gmra.mxu0 %v126
  %v223 = vpop.f32.mrf.mxu0
  %v224 = vadd.f32 0.0, %v223
  %v225 = vpop.f32.mrf.mxu0
  %v226 = vadd.f32 0.0, %v225
  %227 = vmatmul.bf16.gmra.mxu0 %v127
  %v228 = vpop.f32.mrf.mxu0
  %v229 = vadd.f32 0.0, %v228
  %v230 = vpop.f32.mrf.mxu0
  %v231 = vadd.f32 0.0, %v230
  %232 = vdwg.mxu0
  %v233 = vadd.f32 %v40, %v194
  %v234 = vadd.f32 %v41, %v196
  %v235 = vadd.f32 %v42, %v199
  %v236 = vadd.f32 %v43, %v201
  %v237 = vadd.f32 %v44, %v204
  %v238 = vadd.f32 %v45, %v206
  %v239 = vadd.f32 %v46, %v209
  %v240 = vadd.f32 %v47, %v211
  %v241 = vadd.f32 %v48, %v214
  %v242 = vadd.f32 %v49, %v216
  %v243 = vadd.f32 %v50, %v219
  %v244 = vadd.f32 %v51, %v221
  %v245 = vadd.f32 %v52, %v224
  %v246 = vadd.f32 %v53, %v226
  %v247 = vadd.f32 %v54, %v229
  %v248 = vadd.f32 %v55, %v231
  %249 = vst [vmem:[#allocation2] sm:$0xff] %v233
  %250 = vst [vmem:[#allocation2 + $0x8] sm:$0xff] %v234
  %251 = vst [vmem:[#allocation2 + $0x10] sm:$0xff] %v235
  %252 = vst [vmem:[#allocation2 + $0x18] sm:$0xff] %v236
  %253 = vst [vmem:[#allocation2 + $0x20] sm:$0xff] %v237
  %254 = vst [vmem:[#allocation2 + $0x28] sm:$0xff] %v238
  %255 = vst [vmem:[#allocation2 + $0x30] sm:$0xff] %v239
  %256 = vst [vmem:[#allocation2 + $0x38] sm:$0xff] %v240
  %257 = vst [vmem:[#allocation2 + $0x40] sm:$0xff] %v241
  %258 = vst [vmem:[#allocation2 + $0x48] sm:$0xff] %v242
  %259 = vst [vmem:[#allocation2 + $0x50] sm:$0xff] %v243
  %260 = vst [vmem:[#allocation2 + $0x58] sm:$0xff] %v244
  %261 = vst [vmem:[#allocation2 + $0x60] sm:$0xff] %v245
  %262 = vst [vmem:[#allocation2 + $0x68] sm:$0xff] %v246
  %263 = vst [vmem:[#allocation2 + $0x70] sm:$0xff] %v247
  %264 = vst [vmem:[#allocation2 + $0x78] sm:$0xff] %v248
  // Predicated region
  $region26: #{_lambda_.28} parent=0 // pred_check
    %p265 = pneg %p20
  $region27: #{_lambda_.28} parent=0 // pred_check_branch
    %267 = sbr.rel (%p265) target = $region29
  $region28: #{_lambda_.28} parent=0 // pred_region
    %v268 = vld [vmem:[#allocation2] sm:$0xff]
    %v269 = vld [vmem:[#allocation2 + $0x8] sm:$0xff]
    %v270 = vld [vmem:[#allocation2 + $0x10] sm:$0xff]
    %v271 = vld [vmem:[#allocation2 + $0x18] sm:$0xff]
    %v272 = vld [vmem:[#allocation2 + $0x20] sm:$0xff]
    %v273 = vld [vmem:[#allocation2 + $0x28] sm:$0xff]
    %v274 = vld [vmem:[#allocation2 + $0x30] sm:$0xff]
    %v275 = vld [vmem:[#allocation2 + $0x38] sm:$0xff]
    %v276 = vld [vmem:[#allocation2 + $0x40] sm:$0xff]
    %v277 = vld [vmem:[#allocation2 + $0x48] sm:$0xff]
    %v278 = vld [vmem:[#allocation2 + $0x50] sm:$0xff]
    %v279 = vld [vmem:[#allocation2 + $0x58] sm:$0xff]
    %v280 = vld [vmem:[#allocation2 + $0x60] sm:$0xff]
    %v281 = vld [vmem:[#allocation2 + $0x68] sm:$0xff]
    %v282 = vld [vmem:[#allocation2 + $0x70] sm:$0xff]
    %v283 = vld [vmem:[#allocation2 + $0x78] sm:$0xff]
    %v284 = vld [vmem:[%s2] sm:$0x1]
    %v286 = vperm.slane %v284, 0
    %v288 = vmul.f32 %v268, %v286
    %v289 = vmul.f32 %v269, %v286
    %v290 = vmul.f32 %v270, %v286
    %v291 = vmul.f32 %v271, %v286
    %v292 = vmul.f32 %v272, %v286
    %v293 = vmul.f32 %v273, %v286
    %v294 = vmul.f32 %v274, %v286
    %v295 = vmul.f32 %v275, %v286
    %v296 = vmul.f32 %v276, %v286
    %v297 = vmul.f32 %v277, %v286
    %v298 = vmul.f32 %v278, %v286
    %v299 = vmul.f32 %v279, %v286
    %v300 = vmul.f32 %v280, %v286
    %v301 = vmul.f32 %v281, %v286
    %v302 = vmul.f32 %v282, %v286
    %v303 = vmul.f32 %v283, %v286
    %v304 = vld [vmem:[%s3] sm:$0x1]
    %v306 = vperm.slane %v304, 0
    %v308 = vadd.f32 %v288, %v306
    %v309 = vadd.f32 %v289, %v306
    %v310 = vadd.f32 %v290, %v306
    %v311 = vadd.f32 %v291, %v306
    %v312 = vadd.f32 %v292, %v306
    %v313 = vadd.f32 %v293, %v306
    %v314 = vadd.f32 %v294, %v306
    %v315 = vadd.f32 %v295, %v306
    %v316 = vadd.f32 %v296, %v306
    %v317 = vadd.f32 %v297, %v306
    %v318 = vadd.f32 %v298, %v306
    %v319 = vadd.f32 %v299, %v306
    %v320 = vadd.f32 %v300, %v306
    %v321 = vadd.f32 %v301, %v306
    %v322 = vadd.f32 %v302, %v306
    %v323 = vadd.f32 %v303, %v306
    %v324 = vld [vmem:[%s4] sm:$0xf]
    %v325 = vld [vmem:[%s4 + $0x4] sm:$0xf]
    %v326 = vld [vmem:[%s4 + $0x8] sm:$0xf]
    %v327 = vld [vmem:[%s4 + $0xc] sm:$0xf]
    %v328 = vld [vmem:[%s4 + $0x10] sm:$0xf]
    %v329 = vld [vmem:[%s4 + $0x14] sm:$0xf]
    %v330 = vld [vmem:[%s4 + $0x18] sm:$0xf]
    %v331 = vld [vmem:[%s4 + $0x1c] sm:$0xf]
    %v332 = vld [vmem:[%s4 + $0x20] sm:$0xf]
    %v333 = vld [vmem:[%s4 + $0x24] sm:$0xf]
    %v334 = vld [vmem:[%s4 + $0x28] sm:$0xf]
    %v335 = vld [vmem:[%s4 + $0x2c] sm:$0xf]
    %v336 = vld [vmem:[%s4 + $0x30] sm:$0xf]
    %v337 = vld [vmem:[%s4 + $0x34] sm:$0xf]
    %v338 = vld [vmem:[%s4 + $0x38] sm:$0xf]
    %v339 = vld [vmem:[%s4 + $0x3c] sm:$0xf]
    %v340 = vunpack.c.l.bf16 %v324
    %v341 = vunpack.c.l.bf16 %v325
    %v342 = vunpack.c.l.bf16 %v326
    %v343 = vunpack.c.l.bf16 %v327
    %v344 = vunpack.c.l.bf16 %v328
    %v345 = vunpack.c.l.bf16 %v329
    %v346 = vunpack.c.l.bf16 %v330
    %v347 = vunpack.c.l.bf16 %v331
    %v348 = vunpack.c.l.bf16 %v332
    %v349 = vunpack.c.l.bf16 %v333
    %v350 = vunpack.c.l.bf16 %v334
    %v351 = vunpack.c.l.bf16 %v335
    %v352 = vunpack.c.l.bf16 %v336
    %v353 = vunpack.c.l.bf16 %v337
    %v354 = vunpack.c.l.bf16 %v338
    %v355 = vunpack.c.l.bf16 %v339
    %v356 = vadd.f32 %v308, %v340
    %v357 = vadd.f32 %v309, %v341
    %v358 = vadd.f32 %v310, %v342
    %v359 = vadd.f32 %v311, %v343
    %v360 = vadd.f32 %v312, %v344
    %v361 = vadd.f32 %v313, %v345
    %v362 = vadd.f32 %v314, %v346
    %v363 = vadd.f32 %v315, %v347
    %v364 = vadd.f32 %v316, %v348
    %v365 = vadd.f32 %v317, %v349
    %v366 = vadd.f32 %v318, %v350
    %v367 = vadd.f32 %v319, %v351
    %v368 = vadd.f32 %v320, %v352
    %v369 = vadd.f32 %v321, %v353
    %v370 = vadd.f32 %v322, %v354
    %v371 = vadd.f32 %v323, %v355
    %v372 = vmax.f32 %v356, 0.0
    %v373 = vmax.f32 %v357, 0.0
    %v374 = vmax.f32 %v358, 0.0
    %v375 = vmax.f32 %v359, 0.0
    %v376 = vmax.f32 %v360, 0.0
    %v377 = vmax.f32 %v361, 0.0
    %v378 = vmax.f32 %v362, 0.0
    %v379 = vmax.f32 %v363, 0.0
    %v380 = vmax.f32 %v364, 0.0
    %v381 = vmax.f32 %v365, 0.0
    %v382 = vmax.f32 %v366, 0.0
    %v383 = vmax.f32 %v367, 0.0
    %v384 = vmax.f32 %v368, 0.0
    %v385 = vmax.f32 %v369, 0.0
    %v386 = vmax.f32 %v370, 0.0
    %v387 = vmax.f32 %v371, 0.0
    %v388 = vpack.c.bf16 %v372, %v372
    %v389 = vpack.c.bf16 %v373, %v373
    %v390 = vpack.c.bf16 %v374, %v374
    %v391 = vpack.c.bf16 %v375, %v375
    %v392 = vpack.c.bf16 %v376, %v376
    %v393 = vpack.c.bf16 %v377, %v377
    %v394 = vpack.c.bf16 %v378, %v378
    %v395 = vpack.c.bf16 %v379, %v379
    %v396 = vpack.c.bf16 %v380, %v380
    %v397 = vpack.c.bf16 %v381, %v381
    %v398 = vpack.c.bf16 %v382, %v382
    %v399 = vpack.c.bf16 %v383, %v383
    %v400 = vpack.c.bf16 %v384, %v384
    %v401 = vpack.c.bf16 %v385, %v385
    %v402 = vpack.c.bf16 %v386, %v386
    %v403 = vpack.c.bf16 %v387, %v387
    %404 = vst [vmem:[%s5] sm:$0xf] %v388
    %405 = vst [vmem:[%s5 + $0x4] sm:$0xf] %v389
    %406 = vst [vmem:[%s5 + $0x8] sm:$0xf] %v390
    %407 = vst [vmem:[%s5 + $0xc] sm:$0xf] %v391
    %408 = vst [vmem:[%s5 + $0x10] sm:$0xf] %v392
    %409 = vst [vmem:[%s5 + $0x14] sm:$0xf] %v393
    %410 = vst [vmem:[%s5 + $0x18] sm:$0xf] %v394
    %411 = vst [vmem:[%s5 + $0x1c] sm:$0xf] %v395
    %412 = vst [vmem:[%s5 + $0x20] sm:$0xf] %v396
    %413 = vst [vmem:[%s5 + $0x24] sm:$0xf] %v397
    %414 = vst [vmem:[%s5 + $0x28] sm:$0xf] %v398
    %415 = vst [vmem:[%s5 + $0x2c] sm:$0xf] %v399
    %416 = vst [vmem:[%s5 + $0x30] sm:$0xf] %v400
    %417 = vst [vmem:[%s5 + $0x34] sm:$0xf] %v401
    %418 = vst [vmem:[%s5 + $0x38] sm:$0xf] %v402
    %419 = vst [vmem:[%s5 + $0x3c] sm:$0xf] %v403
  $region29: #{_lambda_.28} parent=0 // pred_fallthru
    _
  // Predicated region
  $region30: #{_lambda_.28} parent=0 // pred_check
    _
  $region31: #{_lambda_.28} parent=0 // pred_check_branch
    %421 = sbr.rel (0) target = $region33
  $region32: #{_lambda_.28} parent=0 // pred_region
    _
  $region33: #{_lambda_.28} parent=0 // pred_fallthru
    _
  // Predicated region
  $region34: #{_lambda_.28} parent=0 // pred_check
    _
  $region35: #{_lambda_.28} parent=0 // pred_check_branch
    %423 = sbr.rel (0) target = $region37
  $region36: #{_lambda_.28} parent=0 // pred_region
    _
  $region37: #{_lambda_.28} parent=0 // pred_fallthru
    _

// kernel: _lambda_.31
$region0: #{_lambda_.31}
  #allocation0 [shape = 'u32[]', space=smem, size = 0x4, offset = 0x4, fixed_abs, tag = 'smem constant byte address 0x4 - core index']
  #allocation1 [shape = 'u32[72,128]{1,0:T(1,128)}', space=vmem, size = 0x9000, scoped, tag = 'internal scratch']
  #allocation2 [shape = 'f32[32,128]{1,0:T(8,128)}', space=vmem, size = 0x4000, scoped, tag = 'scratch operand']
  %s0 = inlined_call_operand.vmem [shape: bf16[32,128], index: 0, kind: input, shape index: {}]
  %s1 = inlined_call_operand.vmem [shape: bf16[128,128], index: 1, kind: input, shape index: {}]
  %s2 = inlined_call_operand.vmem [shape: f32[1,128], index: 2, kind: input, shape index: {}]
  %s3 = inlined_call_operand.vmem [shape: f32[1,128], index: 3, kind: input, shape index: {}]
  %s4 = inlined_call_operand.vmem [shape: bf16[32,128], index: 4, kind: output, shape index: {}]
  %s5 = sld [smem:[#allocation0]]
  $region34: #{_lambda_.31} parent=0
    _
  %s7 = ssub.s32 1, %s5
  %s8 = scalar_select 0, %s7, %s5
  // Predicated region
  $region2: #{_lambda_.31} parent=0 // pred_check
    _
  $region3: #{_lambda_.31} parent=0 // pred_check_branch
    %10 = sbr.rel (0) target = $region5
  $region4: #{_lambda_.31} parent=0 // pred_region
    _
  $region5: #{_lambda_.31} parent=0 // pred_fallthru
    _
  // Predicated region
  $region6: #{_lambda_.31} parent=0 // pred_check
    _
  $region7: #{_lambda_.31} parent=0 // pred_check_branch
    %12 = sbr.rel (0) target = $region9
  $region8: #{_lambda_.31} parent=0 // pred_region
    _
  $region9: #{_lambda_.31} parent=0 // pred_fallthru
    _
  // Predicated region
  $region10: #{_lambda_.31} parent=0 // pred_check
    _
  $region11: #{_lambda_.31} parent=0 // pred_check_branch
    %14 = sbr.rel (0) target = $region13
  $region12: #{_lambda_.31} parent=0 // pred_region
    _
  $region13: #{_lambda_.31} parent=0 // pred_fallthru
    _
  // Predicated region
  $region14: #{_lambda_.31} parent=0 // pred_check
    _
  $region15: #{_lambda_.31} parent=0 // pred_check_branch
    %16 = sbr.rel (0) target = $region17
  $region16: #{_lambda_.31} parent=0 // pred_region
    _
  $region17: #{_lambda_.31} parent=0 // pred_fallthru
    _
  %p17 = scmp.eq.s32.totalorder 0, 0
  // Predicated region
  $region18: #{_lambda_.31} parent=0 // pred_check
    %p18 = pneg %p17
  $region19: #{_lambda_.31} parent=0 // pred_check_branch
    %20 = sbr.rel (%p18) target = $region21
  $region20: #{_lambda_.31} parent=0 // pred_region
    %21 = vst [vmem:[#allocation2] sm:$0xff] 0.0
    %22 = vst [vmem:[#allocation2 + $0x8] sm:$0xff] 0.0
    %23 = vst [vmem:[#allocation2 + $0x10] sm:$0xff] 0.0
    %24 = vst [vmem:[#allocation2 + $0x18] sm:$0xff] 0.0
  $region21: #{_lambda_.31} parent=0 // pred_fallthru
    _
  %v25 = vld [vmem:[#allocation2] sm:$0xff]
  %v26 = vld [vmem:[#allocation2 + $0x8] sm:$0xff]
  %v27 = vld [vmem:[#allocation2 + $0x10] sm:$0xff]
  %v28 = vld [vmem:[#allocation2 + $0x18] sm:$0xff]
  %v29 = vld [vmem:[%s0] sm:$0xf]
  %v30 = vld [vmem:[%s0 + $0x4] sm:$0xf]
  %v31 = vld [vmem:[%s0 + $0x8] sm:$0xf]
  %v32 = vld [vmem:[%s0 + $0xc] sm:$0xf]
  %v33 = vld [vmem:[%s1] sm:$0xf]
  %v34 = vld [vmem:[%s1 + $0x4] sm:$0xf]
  %v35 = vld [vmem:[%s1 + $0x8] sm:$0xf]
  %v36 = vld [vmem:[%s1 + $0xc] sm:$0xf]
  %v37 = vld [vmem:[%s1 + $0x10] sm:$0xf]
  %v38 = vld [vmem:[%s1 + $0x14] sm:$0xf]
  %v39 = vld [vmem:[%s1 + $0x18] sm:$0xf]
  %v40 = vld [vmem:[%s1 + $0x1c] sm:$0xf]
  %v41 = vld [vmem:[%s1 + $0x20] sm:$0xf]
  %v42 = vld [vmem:[%s1 + $0x24] sm:$0xf]
  %v43 = vld [vmem:[%s1 + $0x28] sm:$0xf]
  %v44 = vld [vmem:[%s1 + $0x2c] sm:$0xf]
  %v45 = vld [vmem:[%s1 + $0x30] sm:$0xf]
  %v46 = vld [vmem:[%s1 + $0x34] sm:$0xf]
  %v47 = vld [vmem:[%s1 + $0x38] sm:$0xf]
  %v48 = vld [vmem:[%s1 + $0x3c] sm:$0xf]
  %v53 = vunpack.c.l.b16 %v29
  %v54 = vunpack.c.l.b16 %v30
  %v55 = vunpack.c.l.b16 %v31
  %v56 = vunpack.c.l.b16 %v32
  %v57 = vpack.c.b16 %v54, %v53
  %v58 = vpack.c.b16 %v56, %v55
  %v77 = vunpack.c.l.b16 %v33
  %v78 = vunpack.c.l.b16 %v34
  %v79 = vunpack.c.l.b16 %v35
  %v80 = vunpack.c.l.b16 %v36
  %v81 = vunpack.c.l.b16 %v37
  %v82 = vunpack.c.l.b16 %v38
  %v83 = vunpack.c.l.b16 %v39
  %v84 = vunpack.c.l.b16 %v40
  %v85 = vunpack.c.l.b16 %v41
  %v86 = vunpack.c.l.b16 %v42
  %v87 = vunpack.c.l.b16 %v43
  %v88 = vunpack.c.l.b16 %v44
  %v89 = vunpack.c.l.b16 %v45
  %v90 = vunpack.c.l.b16 %v46
  %v91 = vunpack.c.l.b16 %v47
  %v92 = vunpack.c.l.b16 %v48
  %v93 = vpack.c.b16 %v78, %v77
  %v94 = vpack.c.b16 %v80, %v79
  %v95 = vpack.c.b16 %v82, %v81
  %v96 = vpack.c.b16 %v84, %v83
  %v97 = vpack.c.b16 %v86, %v85
  %v98 = vpack.c.b16 %v88, %v87
  %v99 = vpack.c.b16 %v90, %v89
  %v100 = vpack.c.b16 %v92, %v91
  %109 = vmatpush.bf16.msra.mxu0 %v100
  %110 = vmatpush.bf16.msra.mxu0 %v99
  %111 = vmatpush.bf16.msra.mxu0 %v98
  %112 = vmatpush.bf16.msra.mxu0 %v97
  %113 = vmatpush.bf16.msra.mxu0 %v96
  %114 = vmatpush.bf16.msra.mxu0 %v95
  %115 = vmatpush.bf16.msra.mxu0 %v94
  %116 = vmatpush.bf16.msra.mxu0 %v93
  %117 = vmatmul.bf16.gmra.mxu0 %v57
  %v118 = vpop.f32.mrf.mxu0
  %v119 = vadd.f32 0.0, %v118
  %v120 = vpop.f32.mrf.mxu0
  %v121 = vadd.f32 0.0, %v120
  %122 = vmatmul.bf16.gmra.mxu0 %v58
  %v123 = vpop.f32.mrf.mxu0
  %v124 = vadd.f32 0.0, %v123
  %v125 = vpop.f32.mrf.mxu0
  %v126 = vadd.f32 0.0, %v125
  %127 = vdwg.mxu0
  %v128 = vadd.f32 %v25, %v119
  %v129 = vadd.f32 %v26, %v121
  %v130 = vadd.f32 %v27, %v124
  %v131 = vadd.f32 %v28, %v126
  %132 = vst [vmem:[#allocation2] sm:$0xff] %v128
  %133 = vst [vmem:[#allocation2 + $0x8] sm:$0xff] %v129
  %134 = vst [vmem:[#allocation2 + $0x10] sm:$0xff] %v130
  %135 = vst [vmem:[#allocation2 + $0x18] sm:$0xff] %v131
  // Predicated region
  $region22: #{_lambda_.31} parent=0 // pred_check
    %p136 = pneg %p17
  $region23: #{_lambda_.31} parent=0 // pred_check_branch
    %138 = sbr.rel (%p136) target = $region25
  $region24: #{_lambda_.31} parent=0 // pred_region
    %v139 = vld [vmem:[#allocation2] sm:$0xff]
    %v140 = vld [vmem:[#allocation2 + $0x8] sm:$0xff]
    %v141 = vld [vmem:[#allocation2 + $0x10] sm:$0xff]
    %v142 = vld [vmem:[#allocation2 + $0x18] sm:$0xff]
    %v143 = vld [vmem:[%s2] sm:$0x1]
    %v145 = vperm.slane %v143, 0
    %v147 = vmul.f32 %v139, %v145
    %v148 = vmul.f32 %v140, %v145
    %v149 = vmul.f32 %v141, %v145
    %v150 = vmul.f32 %v142, %v145
    %v151 = vld [vmem:[%s3] sm:$0x1]
    %v153 = vperm.slane %v151, 0
    %v155 = vadd.f32 %v147, %v153
    %v156 = vadd.f32 %v148, %v153
    %v157 = vadd.f32 %v149, %v153
    %v158 = vadd.f32 %v150, %v153
    %v159 = vpack.c.bf16 %v155, %v155
    %v160 = vpack.c.bf16 %v156, %v156
    %v161 = vpack.c.bf16 %v157, %v157
    %v162 = vpack.c.bf16 %v158, %v158
    %163 = vst [vmem:[%s4] sm:$0xf] %v159
    %164 = vst [vmem:[%s4 + $0x4] sm:$0xf] %v160
    %165 = vst [vmem:[%s4 + $0x8] sm:$0xf] %v161
    %166 = vst [vmem:[%s4 + $0xc] sm:$0xf] %v162
  $region25: #{_lambda_.31} parent=0 // pred_fallthru
    _
  // Predicated region
  $region26: #{_lambda_.31} parent=0 // pred_check
    _
  $region27: #{_lambda_.31} parent=0 // pred_check_branch
    %168 = sbr.rel (0) target = $region29
  $region28: #{_lambda_.31} parent=0 // pred_region
    _
  $region29: #{_lambda_.31} parent=0 // pred_fallthru
    _
  // Predicated region
  $region30: #{_lambda_.31} parent=0 // pred_check
    _
  $region31: #{_lambda_.31} parent=0 // pred_check_branch
    %170 = sbr.rel (0) target = $region33
  $region32: #{_lambda_.31} parent=0 // pred_region
    _
  $region33: #{_lambda_.31} parent=0 // pred_fallthru
    _

// kernel: _lambda_.30
$region0: #{_lambda_.30}
  #allocation0 [shape = 'u32[]', space=smem, size = 0x4, offset = 0x4, fixed_abs, tag = 'smem constant byte address 0x4 - core index']
  #allocation1 [shape = 'u32[72,128]{1,0:T(1,128)}', space=vmem, size = 0x9000, scoped, tag = 'internal scratch']
  #allocation2 [shape = 'f32[128,128]{1,0:T(8,128)}', space=vmem, size = 0x10000, scoped, tag = 'scratch operand']
  %s0 = inlined_call_operand.vmem [shape: bf16[128,256], index: 0, kind: input, shape index: {}]
  %s1 = inlined_call_operand.vmem [shape: bf16[256,128], index: 1, kind: input, shape index: {}]
  %s2 = inlined_call_operand.vmem [shape: f32[1,128], index: 2, kind: input, shape index: {}]
  %s3 = inlined_call_operand.vmem [shape: f32[1,128], index: 3, kind: input, shape index: {}]
  %s4 = inlined_call_operand.vmem [shape: bf16[128,128], index: 4, kind: output, shape index: {}]
  %s5 = sld [smem:[#allocation0]]
  $region34: #{_lambda_.30} parent=0
    _
  %s7 = ssub.s32 1, %s5
  %s8 = scalar_select 0, %s7, %s5
  // Predicated region
  $region2: #{_lambda_.30} parent=0 // pred_check
    _
  $region3: #{_lambda_.30} parent=0 // pred_check_branch
    %10 = sbr.rel (0) target = $region5
  $region4: #{_lambda_.30} parent=0 // pred_region
    _
  $region5: #{_lambda_.30} parent=0 // pred_fallthru
    _
  // Predicated region
  $region6: #{_lambda_.30} parent=0 // pred_check
    _
  $region7: #{_lambda_.30} parent=0 // pred_check_branch
    %12 = sbr.rel (0) target = $region9
  $region8: #{_lambda_.30} parent=0 // pred_region
    _
  $region9: #{_lambda_.30} parent=0 // pred_fallthru
    _
  // Predicated region
  $region10: #{_lambda_.30} parent=0 // pred_check
    _
  $region11: #{_lambda_.30} parent=0 // pred_check_branch
    %14 = sbr.rel (0) target = $region13
  $region12: #{_lambda_.30} parent=0 // pred_region
    _
  $region13: #{_lambda_.30} parent=0 // pred_fallthru
    _
  // Predicated region
  $region14: #{_lambda_.30} parent=0 // pred_check
    _
  $region15: #{_lambda_.30} parent=0 // pred_check_branch
    %16 = sbr.rel (0) target = $region17
  $region16: #{_lambda_.30} parent=0 // pred_region
    _
  $region17: #{_lambda_.30} parent=0 // pred_fallthru
    _
  %p17 = scmp.eq.s32.totalorder 0, 0
  // Predicated region
  $region18: #{_lambda_.30} parent=0 // pred_check
    %p18 = pneg %p17
  $region19: #{_lambda_.30} parent=0 // pred_check_branch
    %20 = sbr.rel (%p18) target = $region21
  $region20: #{_lambda_.30} parent=0 // pred_region
    %21 = vst [vmem:[#allocation2] sm:$0xff] 0.0
    %22 = vst [vmem:[#allocation2 + $0x8] sm:$0xff] 0.0
    %23 = vst [vmem:[#allocation2 + $0x10] sm:$0xff] 0.0
    %24 = vst [vmem:[#allocation2 + $0x18] sm:$0xff] 0.0
    %25 = vst [vmem:[#allocation2 + $0x20] sm:$0xff] 0.0
    %26 = vst [vmem:[#allocation2 + $0x28] sm:$0xff] 0.0
    %27 = vst [vmem:[#allocation2 + $0x30] sm:$0xff] 0.0
    %28 = vst [vmem:[#allocation2 + $0x38] sm:$0xff] 0.0
    %29 = vst [vmem:[#allocation2 + $0x40] sm:$0xff] 0.0
    %30 = vst [vmem:[#allocation2 + $0x48] sm:$0xff] 0.0
    %31 = vst [vmem:[#allocation2 + $0x50] sm:$0xff] 0.0
    %32 = vst [vmem:[#allocation2 + $0x58] sm:$0xff] 0.0
    %33 = vst [vmem:[#allocation2 + $0x60] sm:$0xff] 0.0
    %34 = vst [vmem:[#allocation2 + $0x68] sm:$0xff] 0.0
    %35 = vst [vmem:[#allocation2 + $0x70] sm:$0xff] 0.0
    %36 = vst [vmem:[#allocation2 + $0x78] sm:$0xff] 0.0
  $region21: #{_lambda_.30} parent=0 // pred_fallthru
    _
  %v37 = vld [vmem:[#allocation2] sm:$0xff]
  %v38 = vld [vmem:[#allocation2 + $0x8] sm:$0xff]
  %v39 = vld [vmem:[#allocation2 + $0x10] sm:$0xff]
  %v40 = vld [vmem:[#allocation2 + $0x18] sm:$0xff]
  %v41 = vld [vmem:[#allocation2 + $0x20] sm:$0xff]
  %v42 = vld [vmem:[#allocation2 + $0x28] sm:$0xff]
  %v43 = vld [vmem:[#allocation2 + $0x30] sm:$0xff]
  %v44 = vld [vmem:[#allocation2 + $0x38] sm:$0xff]
  %v45 = vld [vmem:[#allocation2 + $0x40] sm:$0xff]
  %v46 = vld [vmem:[#allocation2 + $0x48] sm:$0xff]
  %v47 = vld [vmem:[#allocation2 + $0x50] sm:$0xff]
  %v48 = vld [vmem:[#allocation2 + $0x58] sm:$0xff]
  %v49 = vld [vmem:[#allocation2 + $0x60] sm:$0xff]
  %v50 = vld [vmem:[#allocation2 + $0x68] sm:$0xff]
  %v51 = vld [vmem:[#allocation2 + $0x70] sm:$0xff]
  %v52 = vld [vmem:[#allocation2 + $0x78] sm:$0xff]
  %v53 = vld [vmem:[%s0] sm:$0xff]
  %v54 = vld [vmem:[%s0 + $0x8] sm:$0xff]
  %v55 = vld [vmem:[%s0 + $0x10] sm:$0xff]
  %v56 = vld [vmem:[%s0 + $0x18] sm:$0xff]
  %v57 = vld [vmem:[%s0 + $0x20] sm:$0xff]
  %v58 = vld [vmem:[%s0 + $0x28] sm:$0xff]
  %v59 = vld [vmem:[%s0 + $0x30] sm:$0xff]
  %v60 = vld [vmem:[%s0 + $0x38] sm:$0xff]
  %v61 = vld [vmem:[%s0 + $0x40] sm:$0xff]
  %v62 = vld [vmem:[%s0 + $0x48] sm:$0xff]
  %v63 = vld [vmem:[%s0 + $0x50] sm:$0xff]
  %v64 = vld [vmem:[%s0 + $0x58] sm:$0xff]
  %v65 = vld [vmem:[%s0 + $0x60] sm:$0xff]
  %v66 = vld [vmem:[%s0 + $0x68] sm:$0xff]
  %v67 = vld [vmem:[%s0 + $0x70] sm:$0xff]
  %v68 = vld [vmem:[%s0 + $0x78] sm:$0xff]
  %v69 = vld [vmem:[%s1] sm:$0xf]
  %v70 = vld [vmem:[%s1 + $0x4] sm:$0xf]
  %v71 = vld [vmem:[%s1 + $0x8] sm:$0xf]
  %v72 = vld [vmem:[%s1 + $0xc] sm:$0xf]
  %v73 = vld [vmem:[%s1 + $0x10] sm:$0xf]
  %v74 = vld [vmem:[%s1 + $0x14] sm:$0xf]
  %v75 = vld [vmem:[%s1 + $0x18] sm:$0xf]
  %v76 = vld [vmem:[%s1 + $0x1c] sm:$0xf]
  %v77 = vld [vmem:[%s1 + $0x20] sm:$0xf]
  %v78 = vld [vmem:[%s1 + $0x24] sm:$0xf]
  %v79 = vld [vmem:[%s1 + $0x28] sm:$0xf]
  %v80 = vld [vmem:[%s1 + $0x2c] sm:$0xf]
  %v81 = vld [vmem:[%s1 + $0x30] sm:$0xf]
  %v82 = vld [vmem:[%s1 + $0x34] sm:$0xf]
  %v83 = vld [vmem:[%s1 + $0x38] sm:$0xf]
  %v84 = vld [vmem:[%s1 + $0x3c] sm:$0xf]
  %v85 = vld [vmem:[%s1 + $0x40] sm:$0xf]
  %v86 = vld [vmem:[%s1 + $0x44] sm:$0xf]
  %v87 = vld [vmem:[%s1 + $0x48] sm:$0xf]
  %v88 = vld [vmem:[%s1 + $0x4c] sm:$0xf]
  %v89 = vld [vmem:[%s1 + $0x50] sm:$0xf]
  %v90 = vld [vmem:[%s1 + $0x54] sm:$0xf]
  %v91 = vld [vmem:[%s1 + $0x58] sm:$0xf]
  %v92 = vld [vmem:[%s1 + $0x5c] sm:$0xf]
  %v93 = vld [vmem:[%s1 + $0x60] sm:$0xf]
  %v94 = vld [vmem:[%s1 + $0x64] sm:$0xf]
  %v95 = vld [vmem:[%s1 + $0x68] sm:$0xf]
  %v96 = vld [vmem:[%s1 + $0x6c] sm:$0xf]
  %v97 = vld [vmem:[%s1 + $0x70] sm:$0xf]
  %v98 = vld [vmem:[%s1 + $0x74] sm:$0xf]
  %v99 = vld [vmem:[%s1 + $0x78] sm:$0xf]
  %v100 = vld [vmem:[%s1 + $0x7c] sm:$0xf]
  %v117 = vunpack.c.l.b16 %v53
  %v118 = vunpack.c.h.b16 %v53
  %v119 = vunpack.c.l.b16 %v54
  %v120 = vunpack.c.h.b16 %v54
  %v121 = vunpack.c.l.b16 %v55
  %v122 = vunpack.c.h.b16 %v55
  %v123 = vunpack.c.l.b16 %v56
  %v124 = vunpack.c.h.b16 %v56
  %v125 = vunpack.c.l.b16 %v57
  %v126 = vunpack.c.h.b16 %v57
  %v127 = vunpack.c.l.b16 %v58
  %v128 = vunpack.c.h.b16 %v58
  %v129 = vunpack.c.l.b16 %v59
  %v130 = vunpack.c.h.b16 %v59
  %v131 = vunpack.c.l.b16 %v60
  %v132 = vunpack.c.h.b16 %v60
  %v133 = vunpack.c.l.b16 %v61
  %v134 = vunpack.c.h.b16 %v61
  %v135 = vunpack.c.l.b16 %v62
  %v136 = vunpack.c.h.b16 %v62
  %v137 = vunpack.c.l.b16 %v63
  %v138 = vunpack.c.h.b16 %v63
  %v139 = vunpack.c.l.b16 %v64
  %v140 = vunpack.c.h.b16 %v64
  %v141 = vunpack.c.l.b16 %v65
  %v142 = vunpack.c.h.b16 %v65
  %v143 = vunpack.c.l.b16 %v66
  %v144 = vunpack.c.h.b16 %v66
  %v145 = vunpack.c.l.b16 %v67
  %v146 = vunpack.c.h.b16 %v67
  %v147 = vunpack.c.l.b16 %v68
  %v148 = vunpack.c.h.b16 %v68
  %v149 = vpack.c.b16 %v119, %v117
  %v150 = vpack.c.b16 %v120, %v118
  %v151 = vpack.c.b16 %v123, %v121
  %v152 = vpack.c.b16 %v124, %v122
  %v153 = vpack.c.b16 %v127, %v125
  %v154 = vpack.c.b16 %v128, %v126
  %v155 = vpack.c.b16 %v131, %v129
  %v156 = vpack.c.b16 %v132, %v130
  %v157 = vpack.c.b16 %v135, %v133
  %v158 = vpack.c.b16 %v136, %v134
  %v159 = vpack.c.b16 %v139, %v137
  %v160 = vpack.c.b16 %v140, %v138
  %v161 = vpack.c.b16 %v143, %v141
  %v162 = vpack.c.b16 %v144, %v142
  %v163 = vpack.c.b16 %v147, %v145
  %v164 = vpack.c.b16 %v148, %v146
  %v213 = vunpack.c.l.b16 %v69
  %v214 = vunpack.c.l.b16 %v70
  %v215 = vunpack.c.l.b16 %v71
  %v216 = vunpack.c.l.b16 %v72
  %v217 = vunpack.c.l.b16 %v73
  %v218 = vunpack.c.l.b16 %v74
  %v219 = vunpack.c.l.b16 %v75
  %v220 = vunpack.c.l.b16 %v76
  %v221 = vunpack.c.l.b16 %v77
  %v222 = vunpack.c.l.b16 %v78
  %v223 = vunpack.c.l.b16 %v79
  %v224 = vunpack.c.l.b16 %v80
  %v225 = vunpack.c.l.b16 %v81
  %v226 = vunpack.c.l.b16 %v82
  %v227 = vunpack.c.l.b16 %v83
  %v228 = vunpack.c.l.b16 %v84
  %v229 = vunpack.c.l.b16 %v85
  %v230 = vunpack.c.l.b16 %v86
  %v231 = vunpack.c.l.b16 %v87
  %v232 = vunpack.c.l.b16 %v88
  %v233 = vunpack.c.l.b16 %v89
  %v234 = vunpack.c.l.b16 %v90
  %v235 = vunpack.c.l.b16 %v91
  %v236 = vunpack.c.l.b16 %v92
  %v237 = vunpack.c.l.b16 %v93
  %v238 = vunpack.c.l.b16 %v94
  %v239 = vunpack.c.l.b16 %v95
  %v240 = vunpack.c.l.b16 %v96
  %v241 = vunpack.c.l.b16 %v97
  %v242 = vunpack.c.l.b16 %v98
  %v243 = vunpack.c.l.b16 %v99
  %v244 = vunpack.c.l.b16 %v100
  %v245 = vpack.c.b16 %v214, %v213
  %v246 = vpack.c.b16 %v216, %v215
  %v247 = vpack.c.b16 %v218, %v217
  %v248 = vpack.c.b16 %v220, %v219
  %v249 = vpack.c.b16 %v222, %v221
  %v250 = vpack.c.b16 %v224, %v223
  %v251 = vpack.c.b16 %v226, %v225
  %v252 = vpack.c.b16 %v228, %v227
  %v253 = vpack.c.b16 %v230, %v229
  %v254 = vpack.c.b16 %v232, %v231
  %v255 = vpack.c.b16 %v234, %v233
  %v256 = vpack.c.b16 %v236, %v235
  %v257 = vpack.c.b16 %v238, %v237
  %v258 = vpack.c.b16 %v240, %v239
  %v259 = vpack.c.b16 %v242, %v241
  %v260 = vpack.c.b16 %v244, %v243
  %277 = vmatpush.bf16.msra.mxu0 %v252
  %278 = vmatpush.bf16.msra.mxu0 %v251
  %279 = vmatpush.bf16.msra.mxu0 %v250
  %280 = vmatpush.bf16.msra.mxu0 %v249
  %281 = vmatpush.bf16.msra.mxu0 %v248
  %282 = vmatpush.bf16.msra.mxu0 %v247
  %283 = vmatpush.bf16.msra.mxu0 %v246
  %284 = vmatpush.bf16.msra.mxu0 %v245
  %285 = vmatmul.bf16.gmra.mxu0 %v149
  %v286 = vpop.f32.mrf.mxu0
  %v287 = vadd.f32 0.0, %v286
  %v288 = vpop.f32.mrf.mxu0
  %v289 = vadd.f32 0.0, %v288
  %290 = vmatmul.bf16.gmra.mxu0 %v151
  %v291 = vpop.f32.mrf.mxu0
  %v292 = vadd.f32 0.0, %v291
  %v293 = vpop.f32.mrf.mxu0
  %v294 = vadd.f32 0.0, %v293
  %295 = vmatmul.bf16.gmra.mxu0 %v153
  %v296 = vpop.f32.mrf.mxu0
  %v297 = vadd.f32 0.0, %v296
  %v298 = vpop.f32.mrf.mxu0
  %v299 = vadd.f32 0.0, %v298
  %300 = vmatmul.bf16.gmra.mxu0 %v155
  %v301 = vpop.f32.mrf.mxu0
  %v302 = vadd.f32 0.0, %v301
  %v303 = vpop.f32.mrf.mxu0
  %v304 = vadd.f32 0.0, %v303
  %305 = vmatmul.bf16.gmra.mxu0 %v157
  %v306 = vpop.f32.mrf.mxu0
  %v307 = vadd.f32 0.0, %v306
  %v308 = vpop.f32.mrf.mxu0
  %v309 = vadd.f32 0.0, %v308
  %310 = vmatmul.bf16.gmra.mxu0 %v159
  %v311 = vpop.f32.mrf.mxu0
  %v312 = vadd.f32 0.0, %v311
  %v313 = vpop.f32.mrf.mxu0
  %v314 = vadd.f32 0.0, %v313
  %315 = vmatmul.bf16.gmra.mxu0 %v161
  %v316 = vpop.f32.mrf.mxu0
  %v317 = vadd.f32 0.0, %v316
  %v318 = vpop.f32.mrf.mxu0
  %v319 = vadd.f32 0.0, %v318
  %320 = vmatmul.bf16.gmra.mxu0 %v163
  %v321 = vpop.f32.mrf.mxu0
  %v322 = vadd.f32 0.0, %v321
  %v323 = vpop.f32.mrf.mxu0
  %v324 = vadd.f32 0.0, %v323
  %325 = vdwg.mxu0
  %326 = vmatpush.bf16.msra.mxu0 %v260
  %327 = vmatpush.bf16.msra.mxu0 %v259
  %328 = vmatpush.bf16.msra.mxu0 %v258
  %329 = vmatpush.bf16.msra.mxu0 %v257
  %330 = vmatpush.bf16.msra.mxu0 %v256
  %331 = vmatpush.bf16.msra.mxu0 %v255
  %332 = vmatpush.bf16.msra.mxu0 %v254
  %333 = vmatpush.bf16.msra.mxu0 %v253
  %334 = vmatmul.bf16.gmra.mxu0 %v150
  %v335 = vpop.f32.mrf.mxu0
  %v336 = vadd.f32 %v287, %v335
  %v337 = vpop.f32.mrf.mxu0
  %v338 = vadd.f32 %v289, %v337
  %339 = vmatmul.bf16.gmra.mxu0 %v152
  %v340 = vpop.f32.mrf.mxu0
  %v341 = vadd.f32 %v292, %v340
  %v342 = vpop.f32.mrf.mxu0
  %v343 = vadd.f32 %v294, %v342
  %344 = vmatmul.bf16.gmra.mxu0 %v154
  %v345 = vpop.f32.mrf.mxu0
  %v346 = vadd.f32 %v297, %v345
  %v347 = vpop.f32.mrf.mxu0
  %v348 = vadd.f32 %v299, %v347
  %349 = vmatmul.bf16.gmra.mxu0 %v156
  %v350 = vpop.f32.mrf.mxu0
  %v351 = vadd.f32 %v302, %v350
  %v352 = vpop.f32.mrf.mxu0
  %v353 = vadd.f32 %v304, %v352
  %354 = vmatmul.bf16.gmra.mxu0 %v158
  %v355 = vpop.f32.mrf.mxu0
  %v356 = vadd.f32 %v307, %v355
  %v357 = vpop.f32.mrf.mxu0
  %v358 = vadd.f32 %v309, %v357
  %359 = vmatmul.bf16.gmra.mxu0 %v160
  %v360 = vpop.f32.mrf.mxu0
  %v361 = vadd.f32 %v312, %v360
  %v362 = vpop.f32.mrf.mxu0
  %v363 = vadd.f32 %v314, %v362
  %364 = vmatmul.bf16.gmra.mxu0 %v162
  %v365 = vpop.f32.mrf.mxu0
  %v366 = vadd.f32 %v317, %v365
  %v367 = vpop.f32.mrf.mxu0
  %v368 = vadd.f32 %v319, %v367
  %369 = vmatmul.bf16.gmra.mxu0 %v164
  %v370 = vpop.f32.mrf.mxu0
  %v371 = vadd.f32 %v322, %v370
  %v372 = vpop.f32.mrf.mxu0
  %v373 = vadd.f32 %v324, %v372
  %374 = vdwg.mxu0
  %v375 = vadd.f32 %v37, %v336
  %v376 = vadd.f32 %v38, %v338
  %v377 = vadd.f32 %v39, %v341
  %v378 = vadd.f32 %v40, %v343
  %v379 = vadd.f32 %v41, %v346
  %v380 = vadd.f32 %v42, %v348
  %v381 = vadd.f32 %v43, %v351
  %v382 = vadd.f32 %v44, %v353
  %v383 = vadd.f32 %v45, %v356
  %v384 = vadd.f32 %v46, %v358
  %v385 = vadd.f32 %v47, %v361
  %v386 = vadd.f32 %v48, %v363
  %v387 = vadd.f32 %v49, %v366
  %v388 = vadd.f32 %v50, %v368
  %v389 = vadd.f32 %v51, %v371
  %v390 = vadd.f32 %v52, %v373
  %391 = vst [vmem:[#allocation2] sm:$0xff] %v375
  %392 = vst [vmem:[#allocation2 + $0x8] sm:$0xff] %v376
  %393 = vst [vmem:[#allocation2 + $0x10] sm:$0xff] %v377
  %394 = vst [vmem:[#allocation2 + $0x18] sm:$0xff] %v378
  %395 = vst [vmem:[#allocation2 + $0x20] sm:$0xff] %v379
  %396 = vst [vmem:[#allocation2 + $0x28] sm:$0xff] %v380
  %397 = vst [vmem:[#allocation2 + $0x30] sm:$0xff] %v381
  %398 = vst [vmem:[#allocation2 + $0x38] sm:$0xff] %v382
  %399 = vst [vmem:[#allocation2 + $0x40] sm:$0xff] %v383
  %400 = vst [vmem:[#allocation2 + $0x48] sm:$0xff] %v384
  %401 = vst [vmem:[#allocation2 + $0x50] sm:$0xff] %v385
  %402 = vst [vmem:[#allocation2 + $0x58] sm:$0xff] %v386
  %403 = vst [vmem:[#allocation2 + $0x60] sm:$0xff] %v387
  %404 = vst [vmem:[#allocation2 + $0x68] sm:$0xff] %v388
  %405 = vst [vmem:[#allocation2 + $0x70] sm:$0xff] %v389
  %406 = vst [vmem:[#allocation2 + $0x78] sm:$0xff] %v390
  // Predicated region
  $region22: #{_lambda_.30} parent=0 // pred_check
    %p407 = pneg %p17
  $region23: #{_lambda_.30} parent=0 // pred_check_branch
    %409 = sbr.rel (%p407) target = $region25
  $region24: #{_lambda_.30} parent=0 // pred_region
    %v410 = vld [vmem:[#allocation2] sm:$0xff]
    %v411 = vld [vmem:[#allocation2 + $0x8] sm:$0xff]
    %v412 = vld [vmem:[#allocation2 + $0x10] sm:$0xff]
    %v413 = vld [vmem:[#allocation2 + $0x18] sm:$0xff]
    %v414 = vld [vmem:[#allocation2 + $0x20] sm:$0xff]
    %v415 = vld [vmem:[#allocation2 + $0x28] sm:$0xff]
    %v416 = vld [vmem:[#allocation2 + $0x30] sm:$0xff]
    %v417 = vld [vmem:[#allocation2 + $0x38] sm:$0xff]
    %v418 = vld [vmem:[#allocation2 + $0x40] sm:$0xff]
    %v419 = vld [vmem:[#allocation2 + $0x48] sm:$0xff]
    %v420 = vld [vmem:[#allocation2 + $0x50] sm:$0xff]
    %v421 = vld [vmem:[#allocation2 + $0x58] sm:$0xff]
    %v422 = vld [vmem:[#allocation2 + $0x60] sm:$0xff]
    %v423 = vld [vmem:[#allocation2 + $0x68] sm:$0xff]
    %v424 = vld [vmem:[#allocation2 + $0x70] sm:$0xff]
    %v425 = vld [vmem:[#allocation2 + $0x78] sm:$0xff]
    %v426 = vld [vmem:[%s2] sm:$0x1]
    %v428 = vperm.slane %v426, 0
    %v430 = vmul.f32 %v410, %v428
    %v431 = vmul.f32 %v411, %v428
    %v432 = vmul.f32 %v412, %v428
    %v433 = vmul.f32 %v413, %v428
    %v434 = vmul.f32 %v414, %v428
    %v435 = vmul.f32 %v415, %v428
    %v436 = vmul.f32 %v416, %v428
    %v437 = vmul.f32 %v417, %v428
    %v438 = vmul.f32 %v418, %v428
    %v439 = vmul.f32 %v419, %v428
    %v440 = vmul.f32 %v420, %v428
    %v441 = vmul.f32 %v421, %v428
    %v442 = vmul.f32 %v422, %v428
    %v443 = vmul.f32 %v423, %v428
    %v444 = vmul.f32 %v424, %v428
    %v445 = vmul.f32 %v425, %v428
    %v446 = vld [vmem:[%s3] sm:$0x1]
    %v448 = vperm.slane %v446, 0
    %v450 = vadd.f32 %v430, %v448
    %v451 = vadd.f32 %v431, %v448
    %v452 = vadd.f32 %v432, %v448
    %v453 = vadd.f32 %v433, %v448
    %v454 = vadd.f32 %v434, %v448
    %v455 = vadd.f32 %v435, %v448
    %v456 = vadd.f32 %v436, %v448
    %v457 = vadd.f32 %v437, %v448
    %v458 = vadd.f32 %v438, %v448
    %v459 = vadd.f32 %v439, %v448
    %v460 = vadd.f32 %v440, %v448
    %v461 = vadd.f32 %v441, %v448
    %v462 = vadd.f32 %v442, %v448
    %v463 = vadd.f32 %v443, %v448
    %v464 = vadd.f32 %v444, %v448
    %v465 = vadd.f32 %v445, %v448
    %v466 = vmax.f32 %v450, 0.0
    %v467 = vmax.f32 %v451, 0.0
    %v468 = vmax.f32 %v452, 0.0
    %v469 = vmax.f32 %v453, 0.0
    %v470 = vmax.f32 %v454, 0.0
    %v471 = vmax.f32 %v455, 0.0
    %v472 = vmax.f32 %v456, 0.0
    %v473 = vmax.f32 %v457, 0.0
    %v474 = vmax.f32 %v458, 0.0
    %v475 = vmax.f32 %v459, 0.0
    %v476 = vmax.f32 %v460, 0.0
    %v477 = vmax.f32 %v461, 0.0
    %v478 = vmax.f32 %v462, 0.0
    %v479 = vmax.f32 %v463, 0.0
    %v480 = vmax.f32 %v464, 0.0
    %v481 = vmax.f32 %v465, 0.0
    %v482 = vpack.c.bf16 %v466, %v466
    %v483 = vpack.c.bf16 %v467, %v467
    %v484 = vpack.c.bf16 %v468, %v468
    %v485 = vpack.c.bf16 %v469, %v469
    %v486 = vpack.c.bf16 %v470, %v470
    %v487 = vpack.c.bf16 %v471, %v471
    %v488 = vpack.c.bf16 %v472, %v472
    %v489 = vpack.c.bf16 %v473, %v473
    %v490 = vpack.c.bf16 %v474, %v474
    %v491 = vpack.c.bf16 %v475, %v475
    %v492 = vpack.c.bf16 %v476, %v476
    %v493 = vpack.c.bf16 %v477, %v477
    %v494 = vpack.c.bf16 %v478, %v478
    %v495 = vpack.c.bf16 %v479, %v479
    %v496 = vpack.c.bf16 %v480, %v480
    %v497 = vpack.c.bf16 %v481, %v481
    %498 = vst [vmem:[%s4] sm:$0xf] %v482
    %499 = vst [vmem:[%s4 + $0x4] sm:$0xf] %v483
    %500 = vst [vmem:[%s4 + $0x8] sm:$0xf] %v484
    %501 = vst [vmem:[%s4 + $0xc] sm:$0xf] %v485
    %502 = vst [vmem:[%s4 + $0x10] sm:$0xf] %v486
    %503 = vst [vmem:[%s4 + $0x14] sm:$0xf] %v487
    %504 = vst [vmem:[%s4 + $0x18] sm:$0xf] %v488
    %505 = vst [vmem:[%s4 + $0x1c] sm:$0xf] %v489
    %506 = vst [vmem:[%s4 + $0x20] sm:$0xf] %v490
    %507 = vst [vmem:[%s4 + $0x24] sm:$0xf] %v491
    %508 = vst [vmem:[%s4 + $0x28] sm:$0xf] %v492
    %509 = vst [vmem:[%s4 + $0x2c] sm:$0xf] %v493
    %510 = vst [vmem:[%s4 + $0x30] sm:$0xf] %v494
    %511 = vst [vmem:[%s4 + $0x34] sm:$0xf] %v495
    %512 = vst [vmem:[%s4 + $0x38] sm:$0xf] %v496
    %513 = vst [vmem:[%s4 + $0x3c] sm:$0xf] %v497
  $region25: #{_lambda_.30} parent=0 // pred_fallthru
    _
  // Predicated region
  $region26: #{_lambda_.30} parent=0 // pred_check
    _
  $region27: #{_lambda_.30} parent=0 // pred_check_branch
    %515 = sbr.rel (0) target = $region29
  $region28: #{_lambda_.30} parent=0 // pred_region
    _
  $region29: #{_lambda_.30} parent=0 // pred_fallthru
    _
  // Predicated region
  $region30: #{_lambda_.30} parent=0 // pred_check
    _
  $region31: #{_lambda_.30} parent=0 // pred_check_branch
    %517 = sbr.rel (0) target = $region33
  $region32: #{_lambda_.30} parent=0 // pred_region
    _
  $region33: #{_lambda_.30} parent=0 // pred_fallthru
    _

// kernel: _lambda_.32
$region0: #{_lambda_.32}
  #allocation0 [shape = 'u32[]', space=smem, size = 0x4, offset = 0x4, fixed_abs, tag = 'smem constant byte address 0x4 - core index']
  #allocation1 [shape = 'u32[72,128]{1,0:T(1,128)}', space=vmem, size = 0x9000, scoped, tag = 'internal scratch']
  #allocation2 [shape = 'f32[32,128]{1,0:T(8,128)}', space=vmem, size = 0x4000, scoped, tag = 'scratch operand']
  %s0 = inlined_call_operand.vmem [shape: bf16[32,128], index: 0, kind: input, shape index: {}]
  %s1 = inlined_call_operand.vmem [shape: bf16[128,128], index: 1, kind: input, shape index: {}]
  %s2 = inlined_call_operand.vmem [shape: f32[1,128], index: 2, kind: input, shape index: {}]
  %s3 = inlined_call_operand.vmem [shape: f32[1,128], index: 3, kind: input, shape index: {}]
  %s4 = inlined_call_operand.vmem [shape: bf16[32,128], index: 4, kind: input, shape index: {}]
  %s5 = inlined_call_operand.vmem [shape: bf16[32,128], index: 5, kind: output, shape index: {}]
  %s6 = sld [smem:[#allocation0]]
  $region38: #{_lambda_.32} parent=0
    _
  %s8 = ssub.s32 1, %s6
  %s9 = scalar_select 0, %s8, %s6
  // Predicated region
  $region2: #{_lambda_.32} parent=0 // pred_check
    _
  $region3: #{_lambda_.32} parent=0 // pred_check_branch
    %11 = sbr.rel (0) target = $region5
  $region4: #{_lambda_.32} parent=0 // pred_region
    _
  $region5: #{_lambda_.32} parent=0 // pred_fallthru
    _
  // Predicated region
  $region6: #{_lambda_.32} parent=0 // pred_check
    _
  $region7: #{_lambda_.32} parent=0 // pred_check_branch
    %13 = sbr.rel (0) target = $region9
  $region8: #{_lambda_.32} parent=0 // pred_region
    _
  $region9: #{_lambda_.32} parent=0 // pred_fallthru
    _
  // Predicated region
  $region10: #{_lambda_.32} parent=0 // pred_check
    _
  $region11: #{_lambda_.32} parent=0 // pred_check_branch
    %15 = sbr.rel (0) target = $region13
  $region12: #{_lambda_.32} parent=0 // pred_region
    _
  $region13: #{_lambda_.32} parent=0 // pred_fallthru
    _
  // Predicated region
  $region14: #{_lambda_.32} parent=0 // pred_check
    _
  $region15: #{_lambda_.32} parent=0 // pred_check_branch
    %17 = sbr.rel (0) target = $region17
  $region16: #{_lambda_.32} parent=0 // pred_region
    _
  $region17: #{_lambda_.32} parent=0 // pred_fallthru
    _
  // Predicated region
  $region18: #{_lambda_.32} parent=0 // pred_check
    _
  $region19: #{_lambda_.32} parent=0 // pred_check_branch
    %19 = sbr.rel (0) target = $region21
  $region20: #{_lambda_.32} parent=0 // pred_region
    _
  $region21: #{_lambda_.32} parent=0 // pred_fallthru
    _
  %p20 = scmp.eq.s32.totalorder 0, 0
  // Predicated region
  $region22: #{_lambda_.32} parent=0 // pred_check
    %p21 = pneg %p20
  $region23: #{_lambda_.32} parent=0 // pred_check_branch
    %23 = sbr.rel (%p21) target = $region25
  $region24: #{_lambda_.32} parent=0 // pred_region
    %24 = vst [vmem:[#allocation2] sm:$0xff] 0.0
    %25 = vst [vmem:[#allocation2 + $0x8] sm:$0xff] 0.0
    %26 = vst [vmem:[#allocation2 + $0x10] sm:$0xff] 0.0
    %27 = vst [vmem:[#allocation2 + $0x18] sm:$0xff] 0.0
  $region25: #{_lambda_.32} parent=0 // pred_fallthru
    _
  %v28 = vld [vmem:[#allocation2] sm:$0xff]
  %v29 = vld [vmem:[#allocation2 + $0x8] sm:$0xff]
  %v30 = vld [vmem:[#allocation2 + $0x10] sm:$0xff]
  %v31 = vld [vmem:[#allocation2 + $0x18] sm:$0xff]
  %v32 = vld [vmem:[%s0] sm:$0xf]
  %v33 = vld [vmem:[%s0 + $0x4] sm:$0xf]
  %v34 = vld [vmem:[%s0 + $0x8] sm:$0xf]
  %v35 = vld [vmem:[%s0 + $0xc] sm:$0xf]
  %v36 = vld [vmem:[%s1] sm:$0xf]
  %v37 = vld [vmem:[%s1 + $0x4] sm:$0xf]
  %v38 = vld [vmem:[%s1 + $0x8] sm:$0xf]
  %v39 = vld [vmem:[%s1 + $0xc] sm:$0xf]
  %v40 = vld [vmem:[%s1 + $0x10] sm:$0xf]
  %v41 = vld [vmem:[%s1 + $0x14] sm:$0xf]
  %v42 = vld [vmem:[%s1 + $0x18] sm:$0xf]
  %v43 = vld [vmem:[%s1 + $0x1c] sm:$0xf]
  %v44 = vld [vmem:[%s1 + $0x20] sm:$0xf]
  %v45 = vld [vmem:[%s1 + $0x24] sm:$0xf]
  %v46 = vld [vmem:[%s1 + $0x28] sm:$0xf]
  %v47 = vld [vmem:[%s1 + $0x2c] sm:$0xf]
  %v48 = vld [vmem:[%s1 + $0x30] sm:$0xf]
  %v49 = vld [vmem:[%s1 + $0x34] sm:$0xf]
  %v50 = vld [vmem:[%s1 + $0x38] sm:$0xf]
  %v51 = vld [vmem:[%s1 + $0x3c] sm:$0xf]
  %v56 = vunpack.c.l.b16 %v32
  %v57 = vunpack.c.l.b16 %v33
  %v58 = vunpack.c.l.b16 %v34
  %v59 = vunpack.c.l.b16 %v35
  %v60 = vpack.c.b16 %v57, %v56
  %v61 = vpack.c.b16 %v59, %v58
  %v80 = vunpack.c.l.b16 %v36
  %v81 = vunpack.c.l.b16 %v37
  %v82 = vunpack.c.l.b16 %v38
  %v83 = vunpack.c.l.b16 %v39
  %v84 = vunpack.c.l.b16 %v40
  %v85 = vunpack.c.l.b16 %v41
  %v86 = vunpack.c.l.b16 %v42
  %v87 = vunpack.c.l.b16 %v43
  %v88 = vunpack.c.l.b16 %v44
  %v89 = vunpack.c.l.b16 %v45
  %v90 = vunpack.c.l.b16 %v46
  %v91 = vunpack.c.l.b16 %v47
  %v92 = vunpack.c.l.b16 %v48
  %v93 = vunpack.c.l.b16 %v49
  %v94 = vunpack.c.l.b16 %v50
  %v95 = vunpack.c.l.b16 %v51
  %v96 = vpack.c.b16 %v81, %v80
  %v97 = vpack.c.b16 %v83, %v82
  %v98 = vpack.c.b16 %v85, %v84
  %v99 = vpack.c.b16 %v87, %v86
  %v100 = vpack.c.b16 %v89, %v88
  %v101 = vpack.c.b16 %v91, %v90
  %v102 = vpack.c.b16 %v93, %v92
  %v103 = vpack.c.b16 %v95, %v94
  %112 = vmatpush.bf16.msra.mxu0 %v103
  %113 = vmatpush.bf16.msra.mxu0 %v102
  %114 = vmatpush.bf16.msra.mxu0 %v101
  %115 = vmatpush.bf16.msra.mxu0 %v100
  %116 = vmatpush.bf16.msra.mxu0 %v99
  %117 = vmatpush.bf16.msra.mxu0 %v98
  %118 = vmatpush.bf16.msra.mxu0 %v97
  %119 = vmatpush.bf16.msra.mxu0 %v96
  %120 = vmatmul.bf16.gmra.mxu0 %v60
  %v121 = vpop.f32.mrf.mxu0
  %v122 = vadd.f32 0.0, %v121
  %v123 = vpop.f32.mrf.mxu0
  %v124 = vadd.f32 0.0, %v123
  %125 = vmatmul.bf16.gmra.mxu0 %v61
  %v126 = vpop.f32.mrf.mxu0
  %v127 = vadd.f32 0.0, %v126
  %v128 = vpop.f32.mrf.mxu0
  %v129 = vadd.f32 0.0, %v128
  %130 = vdwg.mxu0
  %v131 = vadd.f32 %v28, %v122
  %v132 = vadd.f32 %v29, %v124
  %v133 = vadd.f32 %v30, %v127
  %v134 = vadd.f32 %v31, %v129
  %135 = vst [vmem:[#allocation2] sm:$0xff] %v131
  %136 = vst [vmem:[#allocation2 + $0x8] sm:$0xff] %v132
  %137 = vst [vmem:[#allocation2 + $0x10] sm:$0xff] %v133
  %138 = vst [vmem:[#allocation2 + $0x18] sm:$0xff] %v134
  // Predicated region
  $region26: #{_lambda_.32} parent=0 // pred_check
    %p139 = pneg %p20
  $region27: #{_lambda_.32} parent=0 // pred_check_branch
    %141 = sbr.rel (%p139) target = $region29
  $region28: #{_lambda_.32} parent=0 // pred_region
    %v142 = vld [vmem:[#allocation2] sm:$0xff]
    %v143 = vld [vmem:[#allocation2 + $0x8] sm:$0xff]
    %v144 = vld [vmem:[#allocation2 + $0x10] sm:$0xff]
    %v145 = vld [vmem:[#allocation2 + $0x18] sm:$0xff]
    %v146 = vld [vmem:[%s2] sm:$0x1]
    %v148 = vperm.slane %v146, 0
    %v150 = vmul.f32 %v142, %v148
    %v151 = vmul.f32 %v143, %v148
    %v152 = vmul.f32 %v144, %v148
    %v153 = vmul.f32 %v145, %v148
    %v154 = vld [vmem:[%s3] sm:$0x1]
    %v156 = vperm.slane %v154, 0
    %v158 = vadd.f32 %v150, %v156
    %v159 = vadd.f32 %v151, %v156
    %v160 = vadd.f32 %v152, %v156
    %v161 = vadd.f32 %v153, %v156
    %v162 = vld [vmem:[%s4] sm:$0xf]
    %v163 = vld [vmem:[%s4 + $0x4] sm:$0xf]
    %v164 = vld [vmem:[%s4 + $0x8] sm:$0xf]
    %v165 = vld [vmem:[%s4 + $0xc] sm:$0xf]
    %v166 = vunpack.c.l.bf16 %v162
    %v167 = vunpack.c.l.bf16 %v163
    %v168 = vunpack.c.l.bf16 %v164
    %v169 = vunpack.c.l.bf16 %v165
    %v170 = vadd.f32 %v158, %v166
    %v171 = vadd.f32 %v159, %v167
    %v172 = vadd.f32 %v160, %v168
    %v173 = vadd.f32 %v161, %v169
    %v174 = vmax.f32 %v170, 0.0
    %v175 = vmax.f32 %v171, 0.0
    %v176 = vmax.f32 %v172, 0.0
    %v177 = vmax.f32 %v173, 0.0
    %v178 = vpack.c.bf16 %v174, %v174
    %v179 = vpack.c.bf16 %v175, %v175
    %v180 = vpack.c.bf16 %v176, %v176
    %v181 = vpack.c.bf16 %v177, %v177
    %182 = vst [vmem:[%s5] sm:$0xf] %v178
    %183 = vst [vmem:[%s5 + $0x4] sm:$0xf] %v179
    %184 = vst [vmem:[%s5 + $0x8] sm:$0xf] %v180
    %185 = vst [vmem:[%s5 + $0xc] sm:$0xf] %v181
  $region29: #{_lambda_.32} parent=0 // pred_fallthru
    _
  // Predicated region
  $region30: #{_lambda_.32} parent=0 // pred_check
    _
  $region31: #{_lambda_.32} parent=0 // pred_check_branch
    %187 = sbr.rel (0) target = $region33
  $region32: #{_lambda_.32} parent=0 // pred_region
    _
  $region33: #{_lambda_.32} parent=0 // pred_fallthru
    _
  // Predicated region
  $region34: #{_lambda_.32} parent=0 // pred_check
    _
  $region35: #{_lambda_.32} parent=0 // pred_check_branch
    %189 = sbr.rel (0) target = $region37
  $region36: #{_lambda_.32} parent=0 // pred_region
    _
  $region37: #{_lambda_.32} parent=0 // pred_fallthru
    _

// kernel: _lambda_.33
$region0: #{_lambda_.33}
  #allocation0 [shape = 'u32[]', space=smem, size = 0x4, offset = 0x4, fixed_abs, tag = 'smem constant byte address 0x4 - core index']
  #allocation1 [shape = 'u32[72,128]{1,0:T(1,128)}', space=vmem, size = 0x9000, scoped, tag = 'internal scratch']
  #allocation2 [shape = 'f32[32,128]{1,0:T(8,128)}', space=vmem, size = 0x4000, scoped, tag = 'scratch operand']
  %s0 = inlined_call_operand.vmem [shape: bf16[32,128], index: 0, kind: input, shape index: {}]
  %s1 = inlined_call_operand.vmem [shape: bf16[128,128], index: 1, kind: input, shape index: {}]
  %s2 = inlined_call_operand.vmem [shape: f32[1,128], index: 2, kind: input, shape index: {}]
  %s3 = inlined_call_operand.vmem [shape: f32[1,128], index: 3, kind: input, shape index: {}]
  %s4 = inlined_call_operand.vmem [shape: bf16[32,128], index: 4, kind: output, shape index: {}]
  %s5 = sld [smem:[#allocation0]]
  $region34: #{_lambda_.33} parent=0
    _
  %s7 = ssub.s32 1, %s5
  %s8 = scalar_select 0, %s7, %s5
  // Predicated region
  $region2: #{_lambda_.33} parent=0 // pred_check
    _
  $region3: #{_lambda_.33} parent=0 // pred_check_branch
    %10 = sbr.rel (0) target = $region5
  $region4: #{_lambda_.33} parent=0 // pred_region
    _
  $region5: #{_lambda_.33} parent=0 // pred_fallthru
    _
  // Predicated region
  $region6: #{_lambda_.33} parent=0 // pred_check
    _
  $region7: #{_lambda_.33} parent=0 // pred_check_branch
    %12 = sbr.rel (0) target = $region9
  $region8: #{_lambda_.33} parent=0 // pred_region
    _
  $region9: #{_lambda_.33} parent=0 // pred_fallthru
    _
  // Predicated region
  $region10: #{_lambda_.33} parent=0 // pred_check
    _
  $region11: #{_lambda_.33} parent=0 // pred_check_branch
    %14 = sbr.rel (0) target = $region13
  $region12: #{_lambda_.33} parent=0 // pred_region
    _
  $region13: #{_lambda_.33} parent=0 // pred_fallthru
    _
  // Predicated region
  $region14: #{_lambda_.33} parent=0 // pred_check
    _
  $region15: #{_lambda_.33} parent=0 // pred_check_branch
    %16 = sbr.rel (0) target = $region17
  $region16: #{_lambda_.33} parent=0 // pred_region
    _
  $region17: #{_lambda_.33} parent=0 // pred_fallthru
    _
  %p17 = scmp.eq.s32.totalorder 0, 0
  // Predicated region
  $region18: #{_lambda_.33} parent=0 // pred_check
    %p18 = pneg %p17
  $region19: #{_lambda_.33} parent=0 // pred_check_branch
    %20 = sbr.rel (%p18) target = $region21
  $region20: #{_lambda_.33} parent=0 // pred_region
    %21 = vst [vmem:[#allocation2] sm:$0xff] 0.0
    %22 = vst [vmem:[#allocation2 + $0x8] sm:$0xff] 0.0
    %23 = vst [vmem:[#allocation2 + $0x10] sm:$0xff] 0.0
    %24 = vst [vmem:[#allocation2 + $0x18] sm:$0xff] 0.0
  $region21: #{_lambda_.33} parent=0 // pred_fallthru
    _
  %v25 = vld [vmem:[#allocation2] sm:$0xff]
  %v26 = vld [vmem:[#allocation2 + $0x8] sm:$0xff]
  %v27 = vld [vmem:[#allocation2 + $0x10] sm:$0xff]
  %v28 = vld [vmem:[#allocation2 + $0x18] sm:$0xff]
  %v29 = vld [vmem:[%s0] sm:$0xf]
  %v30 = vld [vmem:[%s0 + $0x4] sm:$0xf]
  %v31 = vld [vmem:[%s0 + $0x8] sm:$0xf]
  %v32 = vld [vmem:[%s0 + $0xc] sm:$0xf]
  %v33 = vld [vmem:[%s1] sm:$0xf]
  %v34 = vld [vmem:[%s1 + $0x4] sm:$0xf]
  %v35 = vld [vmem:[%s1 + $0x8] sm:$0xf]
  %v36 = vld [vmem:[%s1 + $0xc] sm:$0xf]
  %v37 = vld [vmem:[%s1 + $0x10] sm:$0xf]
  %v38 = vld [vmem:[%s1 + $0x14] sm:$0xf]
  %v39 = vld [vmem:[%s1 + $0x18] sm:$0xf]
  %v40 = vld [vmem:[%s1 + $0x1c] sm:$0xf]
  %v41 = vld [vmem:[%s1 + $0x20] sm:$0xf]
  %v42 = vld [vmem:[%s1 + $0x24] sm:$0xf]
  %v43 = vld [vmem:[%s1 + $0x28] sm:$0xf]
  %v44 = vld [vmem:[%s1 + $0x2c] sm:$0xf]
  %v45 = vld [vmem:[%s1 + $0x30] sm:$0xf]
  %v46 = vld [vmem:[%s1 + $0x34] sm:$0xf]
  %v47 = vld [vmem:[%s1 + $0x38] sm:$0xf]
  %v48 = vld [vmem:[%s1 + $0x3c] sm:$0xf]
  %v53 = vunpack.c.l.b16 %v29
  %v54 = vunpack.c.l.b16 %v30
  %v55 = vunpack.c.l.b16 %v31
  %v56 = vunpack.c.l.b16 %v32
  %v57 = vpack.c.b16 %v54, %v53
  %v58 = vpack.c.b16 %v56, %v55
  %v77 = vunpack.c.l.b16 %v33
  %v78 = vunpack.c.l.b16 %v34
  %v79 = vunpack.c.l.b16 %v35
  %v80 = vunpack.c.l.b16 %v36
  %v81 = vunpack.c.l.b16 %v37
  %v82 = vunpack.c.l.b16 %v38
  %v83 = vunpack.c.l.b16 %v39
  %v84 = vunpack.c.l.b16 %v40
  %v85 = vunpack.c.l.b16 %v41
  %v86 = vunpack.c.l.b16 %v42
  %v87 = vunpack.c.l.b16 %v43
  %v88 = vunpack.c.l.b16 %v44
  %v89 = vunpack.c.l.b16 %v45
  %v90 = vunpack.c.l.b16 %v46
  %v91 = vunpack.c.l.b16 %v47
  %v92 = vunpack.c.l.b16 %v48
  %v93 = vpack.c.b16 %v78, %v77
  %v94 = vpack.c.b16 %v80, %v79
  %v95 = vpack.c.b16 %v82, %v81
  %v96 = vpack.c.b16 %v84, %v83
  %v97 = vpack.c.b16 %v86, %v85
  %v98 = vpack.c.b16 %v88, %v87
  %v99 = vpack.c.b16 %v90, %v89
  %v100 = vpack.c.b16 %v92, %v91
  %109 = vmatpush.bf16.msra.mxu0 %v100
  %110 = vmatpush.bf16.msra.mxu0 %v99
  %111 = vmatpush.bf16.msra.mxu0 %v98
  %112 = vmatpush.bf16.msra.mxu0 %v97
  %113 = vmatpush.bf16.msra.mxu0 %v96
  %114 = vmatpush.bf16.msra.mxu0 %v95
  %115 = vmatpush.bf16.msra.mxu0 %v94
  %116 = vmatpush.bf16.msra.mxu0 %v93
  %117 = vmatmul.bf16.gmra.mxu0 %v57
  %v118 = vpop.f32.mrf.mxu0
  %v119 = vadd.f32 0.0, %v118
  %v120 = vpop.f32.mrf.mxu0
  %v121 = vadd.f32 0.0, %v120
  %122 = vmatmul.bf16.gmra.mxu0 %v58
  %v123 = vpop.f32.mrf.mxu0
  %v124 = vadd.f32 0.0, %v123
  %v125 = vpop.f32.mrf.mxu0
  %v126 = vadd.f32 0.0, %v125
  %127 = vdwg.mxu0
  %v128 = vadd.f32 %v25, %v119
  %v129 = vadd.f32 %v26, %v121
  %v130 = vadd.f32 %v27, %v124
  %v131 = vadd.f32 %v28, %v126
  %132 = vst [vmem:[#allocation2] sm:$0xff] %v128
  %133 = vst [vmem:[#allocation2 + $0x8] sm:$0xff] %v129
  %134 = vst [vmem:[#allocation2 + $0x10] sm:$0xff] %v130
  %135 = vst [vmem:[#allocation2 + $0x18] sm:$0xff] %v131
  // Predicated region
  $region22: #{_lambda_.33} parent=0 // pred_check
    %p136 = pneg %p17
  $region23: #{_lambda_.33} parent=0 // pred_check_branch
    %138 = sbr.rel (%p136) target = $region25
  $region24: #{_lambda_.33} parent=0 // pred_region
    %v139 = vld [vmem:[#allocation2] sm:$0xff]
    %v140 = vld [vmem:[#allocation2 + $0x8] sm:$0xff]
    %v141 = vld [vmem:[#allocation2 + $0x10] sm:$0xff]
    %v142 = vld [vmem:[#allocation2 + $0x18] sm:$0xff]
    %v143 = vld [vmem:[%s2] sm:$0x1]
    %v145 = vperm.slane %v143, 0
    %v147 = vmul.f32 %v139, %v145
    %v148 = vmul.f32 %v140, %v145
    %v149 = vmul.f32 %v141, %v145
    %v150 = vmul.f32 %v142, %v145
    %v151 = vld [vmem:[%s3] sm:$0x1]
    %v153 = vperm.slane %v151, 0
    %v155 = vadd.f32 %v147, %v153
    %v156 = vadd.f32 %v148, %v153
    %v157 = vadd.f32 %v149, %v153
    %v158 = vadd.f32 %v150, %v153
    %v159 = vmax.f32 %v155, 0.0
    %v160 = vmax.f32 %v156, 0.0
    %v161 = vmax.f32 %v157, 0.0
    %v162 = vmax.f32 %v158, 0.0
    %v163 = vpack.c.bf16 %v159, %v159
    %v164 = vpack.c.bf16 %v160, %v160
    %v165 = vpack.c.bf16 %v161, %v161
    %v166 = vpack.c.bf16 %v162, %v162
    %167 = vst [vmem:[%s4] sm:$0xf] %v163
    %168 = vst [vmem:[%s4 + $0x4] sm:$0xf] %v164
    %169 = vst [vmem:[%s4 + $0x8] sm:$0xf] %v165
    %170 = vst [vmem:[%s4 + $0xc] sm:$0xf] %v166
  $region25: #{_lambda_.33} parent=0 // pred_fallthru
    _
  // Predicated region
  $region26: #{_lambda_.33} parent=0 // pred_check
    _
  $region27: #{_lambda_.33} parent=0 // pred_check_branch
    %172 = sbr.rel (0) target = $region29
  $region28: #{_lambda_.33} parent=0 // pred_region
    _
  $region29: #{_lambda_.33} parent=0 // pred_fallthru
    _
  // Predicated region
  $region30: #{_lambda_.33} parent=0 // pred_check
    _
  $region31: #{_lambda_.33} parent=0 // pred_check_branch
    %174 = sbr.rel (0) target = $region33
  $region32: #{_lambda_.33} parent=0 // pred_region
    _
  $region33: #{_lambda_.33} parent=0 // pred_fallthru
    _

// kernel: _lambda_.35
$region0: #{_lambda_.35}
  #allocation0 [shape = 'u32[]', space=smem, size = 0x4, offset = 0x4, fixed_abs, tag = 'smem constant byte address 0x4 - core index']
  #allocation1 [shape = 'u32[72,128]{1,0:T(1,128)}', space=vmem, size = 0x9000, scoped, tag = 'internal scratch']
  #allocation2 [shape = 'f32[8,128]{1,0:T(8,128)}', space=vmem, size = 0x1000, scoped, tag = 'scratch operand']
  %s0 = inlined_call_operand.vmem [shape: bf16[8,128], index: 0, kind: input, shape index: {}]
  %s1 = inlined_call_operand.vmem [shape: bf16[128,128], index: 1, kind: input, shape index: {}]
  %s2 = inlined_call_operand.vmem [shape: f32[1,128], index: 2, kind: input, shape index: {}]
  %s3 = inlined_call_operand.vmem [shape: f32[1,128], index: 3, kind: input, shape index: {}]
  %s4 = inlined_call_operand.vmem [shape: bf16[8,128], index: 4, kind: output, shape index: {}]
  %s5 = sld [smem:[#allocation0]]
  $region34: #{_lambda_.35} parent=0
    _
  %s7 = ssub.s32 1, %s5
  %s8 = scalar_select 0, %s7, %s5
  // Predicated region
  $region2: #{_lambda_.35} parent=0 // pred_check
    _
  $region3: #{_lambda_.35} parent=0 // pred_check_branch
    %10 = sbr.rel (0) target = $region5
  $region4: #{_lambda_.35} parent=0 // pred_region
    _
  $region5: #{_lambda_.35} parent=0 // pred_fallthru
    _
  // Predicated region
  $region6: #{_lambda_.35} parent=0 // pred_check
    _
  $region7: #{_lambda_.35} parent=0 // pred_check_branch
    %12 = sbr.rel (0) target = $region9
  $region8: #{_lambda_.35} parent=0 // pred_region
    _
  $region9: #{_lambda_.35} parent=0 // pred_fallthru
    _
  // Predicated region
  $region10: #{_lambda_.35} parent=0 // pred_check
    _
  $region11: #{_lambda_.35} parent=0 // pred_check_branch
    %14 = sbr.rel (0) target = $region13
  $region12: #{_lambda_.35} parent=0 // pred_region
    _
  $region13: #{_lambda_.35} parent=0 // pred_fallthru
    _
  // Predicated region
  $region14: #{_lambda_.35} parent=0 // pred_check
    _
  $region15: #{_lambda_.35} parent=0 // pred_check_branch
    %16 = sbr.rel (0) target = $region17
  $region16: #{_lambda_.35} parent=0 // pred_region
    _
  $region17: #{_lambda_.35} parent=0 // pred_fallthru
    _
  %p17 = scmp.eq.s32.totalorder 0, 0
  // Predicated region
  $region18: #{_lambda_.35} parent=0 // pred_check
    %p18 = pneg %p17
  $region19: #{_lambda_.35} parent=0 // pred_check_branch
    %20 = sbr.rel (%p18) target = $region21
  $region20: #{_lambda_.35} parent=0 // pred_region
    %21 = vst [vmem:[#allocation2] sm:$0xff] 0.0
  $region21: #{_lambda_.35} parent=0 // pred_fallthru
    _
  %v22 = vld [vmem:[#allocation2] sm:$0xff]
  %v23 = vld [vmem:[%s0] sm:$0xf]
  %v24 = vld [vmem:[%s1] sm:$0xf]
  %v25 = vld [vmem:[%s1 + $0x4] sm:$0xf]
  %v26 = vld [vmem:[%s1 + $0x8] sm:$0xf]
  %v27 = vld [vmem:[%s1 + $0xc] sm:$0xf]
  %v28 = vld [vmem:[%s1 + $0x10] sm:$0xf]
  %v29 = vld [vmem:[%s1 + $0x14] sm:$0xf]
  %v30 = vld [vmem:[%s1 + $0x18] sm:$0xf]
  %v31 = vld [vmem:[%s1 + $0x1c] sm:$0xf]
  %v32 = vld [vmem:[%s1 + $0x20] sm:$0xf]
  %v33 = vld [vmem:[%s1 + $0x24] sm:$0xf]
  %v34 = vld [vmem:[%s1 + $0x28] sm:$0xf]
  %v35 = vld [vmem:[%s1 + $0x2c] sm:$0xf]
  %v36 = vld [vmem:[%s1 + $0x30] sm:$0xf]
  %v37 = vld [vmem:[%s1 + $0x34] sm:$0xf]
  %v38 = vld [vmem:[%s1 + $0x38] sm:$0xf]
  %v39 = vld [vmem:[%s1 + $0x3c] sm:$0xf]
  %v56 = vunpack.c.l.b16 %v24
  %v57 = vunpack.c.l.b16 %v25
  %v58 = vunpack.c.l.b16 %v26
  %v59 = vunpack.c.l.b16 %v27
  %v60 = vunpack.c.l.b16 %v28
  %v61 = vunpack.c.l.b16 %v29
  %v62 = vunpack.c.l.b16 %v30
  %v63 = vunpack.c.l.b16 %v31
  %v64 = vunpack.c.l.b16 %v32
  %v65 = vunpack.c.l.b16 %v33
  %v66 = vunpack.c.l.b16 %v34
  %v67 = vunpack.c.l.b16 %v35
  %v68 = vunpack.c.l.b16 %v36
  %v69 = vunpack.c.l.b16 %v37
  %v70 = vunpack.c.l.b16 %v38
  %v71 = vunpack.c.l.b16 %v39
  %v72 = vpack.c.b16 %v57, %v56
  %v73 = vpack.c.b16 %v59, %v58
  %v74 = vpack.c.b16 %v61, %v60
  %v75 = vpack.c.b16 %v63, %v62
  %v76 = vpack.c.b16 %v65, %v64
  %v77 = vpack.c.b16 %v67, %v66
  %v78 = vpack.c.b16 %v69, %v68
  %v79 = vpack.c.b16 %v71, %v70
  %88 = vmatpush.bf16.msra.mxu0 %v79
  %89 = vmatpush.bf16.msra.mxu0 %v78
  %90 = vmatpush.bf16.msra.mxu0 %v77
  %91 = vmatpush.bf16.msra.mxu0 %v76
  %92 = vmatpush.bf16.msra.mxu0 %v75
  %93 = vmatpush.bf16.msra.mxu0 %v74
  %94 = vmatpush.bf16.msra.mxu0 %v73
  %95 = vmatpush.bf16.msra.mxu0 %v72
  %96 = vmatmul.bf16.gmra.mxu0 %v23
  %v97 = vpop.f32.mrf.mxu0
  %v98 = vadd.f32 0.0, %v97
  %v99 = vpop.f32.mrf.mxu0
  %100 = vdwg.mxu0
  %v101 = vadd.f32 %v22, %v98
  %102 = vst [vmem:[#allocation2] sm:$0xff] %v101
  // Predicated region
  $region22: #{_lambda_.35} parent=0 // pred_check
    %p103 = pneg %p17
  $region23: #{_lambda_.35} parent=0 // pred_check_branch
    %105 = sbr.rel (%p103) target = $region25
  $region24: #{_lambda_.35} parent=0 // pred_region
    %v106 = vld [vmem:[#allocation2] sm:$0xff]
    %v107 = vld [vmem:[%s2] sm:$0x1]
    %v109 = vperm.slane %v107, 0
    %v111 = vmul.f32 %v106, %v109
    %v112 = vld [vmem:[%s3] sm:$0x1]
    %v114 = vperm.slane %v112, 0
    %v116 = vadd.f32 %v111, %v114
    %v117 = vpack.c.bf16 %v116, %v116
    %118 = vst [vmem:[%s4] sm:$0xf] %v117
  $region25: #{_lambda_.35} parent=0 // pred_fallthru
    _
  // Predicated region
  $region26: #{_lambda_.35} parent=0 // pred_check
    _
  $region27: #{_lambda_.35} parent=0 // pred_check_branch
    %120 = sbr.rel (0) target = $region29
  $region28: #{_lambda_.35} parent=0 // pred_region
    _
  $region29: #{_lambda_.35} parent=0 // pred_fallthru
    _
  // Predicated region
  $region30: #{_lambda_.35} parent=0 // pred_check
    _
  $region31: #{_lambda_.35} parent=0 // pred_check_branch
    %122 = sbr.rel (0) target = $region33
  $region32: #{_lambda_.35} parent=0 // pred_region
    _
  $region33: #{_lambda_.35} parent=0 // pred_fallthru
    _

// kernel: _lambda_.34
$region0: #{_lambda_.34}
  #allocation0 [shape = 'u32[]', space=smem, size = 0x4, offset = 0x4, fixed_abs, tag = 'smem constant byte address 0x4 - core index']
  #allocation1 [shape = 'u32[72,128]{1,0:T(1,128)}', space=vmem, size = 0x9000, scoped, tag = 'internal scratch']
  #allocation2 [shape = 'f32[32,128]{1,0:T(8,128)}', space=vmem, size = 0x4000, scoped, tag = 'scratch operand']
  %s0 = inlined_call_operand.vmem [shape: bf16[32,384], index: 0, kind: input, shape index: {}]
  %s1 = inlined_call_operand.vmem [shape: bf16[384,128], index: 1, kind: input, shape index: {}]
  %s2 = inlined_call_operand.vmem [shape: f32[1,128], index: 2, kind: input, shape index: {}]
  %s3 = inlined_call_operand.vmem [shape: f32[1,128], index: 3, kind: input, shape index: {}]
  %s4 = inlined_call_operand.vmem [shape: bf16[32,128], index: 4, kind: output, shape index: {}]
  %s5 = sld [smem:[#allocation0]]
  $region34: #{_lambda_.34} parent=0
    _
  %s7 = ssub.s32 1, %s5
  %s8 = scalar_select 0, %s7, %s5
  // Predicated region
  $region2: #{_lambda_.34} parent=0 // pred_check
    _
  $region3: #{_lambda_.34} parent=0 // pred_check_branch
    %10 = sbr.rel (0) target = $region5
  $region4: #{_lambda_.34} parent=0 // pred_region
    _
  $region5: #{_lambda_.34} parent=0 // pred_fallthru
    _
  // Predicated region
  $region6: #{_lambda_.34} parent=0 // pred_check
    _
  $region7: #{_lambda_.34} parent=0 // pred_check_branch
    %12 = sbr.rel (0) target = $region9
  $region8: #{_lambda_.34} parent=0 // pred_region
    _
  $region9: #{_lambda_.34} parent=0 // pred_fallthru
    _
  // Predicated region
  $region10: #{_lambda_.34} parent=0 // pred_check
    _
  $region11: #{_lambda_.34} parent=0 // pred_check_branch
    %14 = sbr.rel (0) target = $region13
  $region12: #{_lambda_.34} parent=0 // pred_region
    _
  $region13: #{_lambda_.34} parent=0 // pred_fallthru
    _
  // Predicated region
  $region14: #{_lambda_.34} parent=0 // pred_check
    _
  $region15: #{_lambda_.34} parent=0 // pred_check_branch
    %16 = sbr.rel (0) target = $region17
  $region16: #{_lambda_.34} parent=0 // pred_region
    _
  $region17: #{_lambda_.34} parent=0 // pred_fallthru
    _
  %p17 = scmp.eq.s32.totalorder 0, 0
  // Predicated region
  $region18: #{_lambda_.34} parent=0 // pred_check
    %p18 = pneg %p17
  $region19: #{_lambda_.34} parent=0 // pred_check_branch
    %20 = sbr.rel (%p18) target = $region21
  $region20: #{_lambda_.34} parent=0 // pred_region
    %21 = vst [vmem:[#allocation2] sm:$0xff] 0.0
    %22 = vst [vmem:[#allocation2 + $0x8] sm:$0xff] 0.0
    %23 = vst [vmem:[#allocation2 + $0x10] sm:$0xff] 0.0
    %24 = vst [vmem:[#allocation2 + $0x18] sm:$0xff] 0.0
  $region21: #{_lambda_.34} parent=0 // pred_fallthru
    _
  %v25 = vld [vmem:[#allocation2] sm:$0xff]
  %v26 = vld [vmem:[#allocation2 + $0x8] sm:$0xff]
  %v27 = vld [vmem:[#allocation2 + $0x10] sm:$0xff]
  %v28 = vld [vmem:[#allocation2 + $0x18] sm:$0xff]
  %v29 = vld [vmem:[%s0] sm:$0xff]
  %v30 = vld [vmem:[%s0 + $0x8] sm:$0xf]
  %v31 = vld [vmem:[%s0 + $0xc] sm:$0xff]
  %v32 = vld [vmem:[%s0 + $0x14] sm:$0xf]
  %v33 = vld [vmem:[%s0 + $0x18] sm:$0xff]
  %v34 = vld [vmem:[%s0 + $0x20] sm:$0xf]
  %v35 = vld [vmem:[%s0 + $0x24] sm:$0xff]
  %v36 = vld [vmem:[%s0 + $0x2c] sm:$0xf]
  %v37 = vld [vmem:[%s1] sm:$0xf]
  %v38 = vld [vmem:[%s1 + $0x4] sm:$0xf]
  %v39 = vld [vmem:[%s1 + $0x8] sm:$0xf]
  %v40 = vld [vmem:[%s1 + $0xc] sm:$0xf]
  %v41 = vld [vmem:[%s1 + $0x10] sm:$0xf]
  %v42 = vld [vmem:[%s1 + $0x14] sm:$0xf]
  %v43 = vld [vmem:[%s1 + $0x18] sm:$0xf]
  %v44 = vld [vmem:[%s1 + $0x1c] sm:$0xf]
  %v45 = vld [vmem:[%s1 + $0x20] sm:$0xf]
  %v46 = vld [vmem:[%s1 + $0x24] sm:$0xf]
  %v47 = vld [vmem:[%s1 + $0x28] sm:$0xf]
  %v48 = vld [vmem:[%s1 + $0x2c] sm:$0xf]
  %v49 = vld [vmem:[%s1 + $0x30] sm:$0xf]
  %v50 = vld [vmem:[%s1 + $0x34] sm:$0xf]
  %v51 = vld [vmem:[%s1 + $0x38] sm:$0xf]
  %v52 = vld [vmem:[%s1 + $0x3c] sm:$0xf]
  %v53 = vld [vmem:[%s1 + $0x40] sm:$0xf]
  %v54 = vld [vmem:[%s1 + $0x44] sm:$0xf]
  %v55 = vld [vmem:[%s1 + $0x48] sm:$0xf]
  %v56 = vld [vmem:[%s1 + $0x4c] sm:$0xf]
  %v57 = vld [vmem:[%s1 + $0x50] sm:$0xf]
  %v58 = vld [vmem:[%s1 + $0x54] sm:$0xf]
  %v59 = vld [vmem:[%s1 + $0x58] sm:$0xf]
  %v60 = vld [vmem:[%s1 + $0x5c] sm:$0xf]
  %v61 = vld [vmem:[%s1 + $0x60] sm:$0xf]
  %v62 = vld [vmem:[%s1 + $0x64] sm:$0xf]
  %v63 = vld [vmem:[%s1 + $0x68] sm:$0xf]
  %v64 = vld [vmem:[%s1 + $0x6c] sm:$0xf]
  %v65 = vld [vmem:[%s1 + $0x70] sm:$0xf]
  %v66 = vld [vmem:[%s1 + $0x74] sm:$0xf]
  %v67 = vld [vmem:[%s1 + $0x78] sm:$0xf]
  %v68 = vld [vmem:[%s1 + $0x7c] sm:$0xf]
  %v69 = vld [vmem:[%s1 + $0x80] sm:$0xf]
  %v70 = vld [vmem:[%s1 + $0x84] sm:$0xf]
  %v71 = vld [vmem:[%s1 + $0x88] sm:$0xf]
  %v72 = vld [vmem:[%s1 + $0x8c] sm:$0xf]
  %v73 = vld [vmem:[%s1 + $0x90] sm:$0xf]
  %v74 = vld [vmem:[%s1 + $0x94] sm:$0xf]
  %v75 = vld [vmem:[%s1 + $0x98] sm:$0xf]
  %v76 = vld [vmem:[%s1 + $0x9c] sm:$0xf]
  %v77 = vld [vmem:[%s1 + $0xa0] sm:$0xf]
  %v78 = vld [vmem:[%s1 + $0xa4] sm:$0xf]
  %v79 = vld [vmem:[%s1 + $0xa8] sm:$0xf]
  %v80 = vld [vmem:[%s1 + $0xac] sm:$0xf]
  %v81 = vld [vmem:[%s1 + $0xb0] sm:$0xf]
  %v82 = vld [vmem:[%s1 + $0xb4] sm:$0xf]
  %v83 = vld [vmem:[%s1 + $0xb8] sm:$0xf]
  %v84 = vld [vmem:[%s1 + $0xbc] sm:$0xf]
  %v93 = vunpack.c.l.b16 %v29
  %v94 = vunpack.c.h.b16 %v29
  %v95 = vunpack.c.l.b16 %v30
  %v96 = vunpack.c.l.b16 %v31
  %v97 = vunpack.c.h.b16 %v31
  %v98 = vunpack.c.l.b16 %v32
  %v99 = vunpack.c.l.b16 %v33
  %v100 = vunpack.c.h.b16 %v33
  %v101 = vunpack.c.l.b16 %v34
  %v102 = vunpack.c.l.b16 %v35
  %v103 = vunpack.c.h.b16 %v35
  %v104 = vunpack.c.l.b16 %v36
  %v105 = vpack.c.b16 %v96, %v93
  %v106 = vpack.c.b16 %v97, %v94
  %v107 = vpack.c.b16 %v98, %v95
  %v108 = vpack.c.b16 %v102, %v99
  %v109 = vpack.c.b16 %v103, %v100
  %v110 = vpack.c.b16 %v104, %v101
  %v165 = vunpack.c.l.b16 %v37
  %v166 = vunpack.c.l.b16 %v38
  %v167 = vunpack.c.l.b16 %v39
  %v168 = vunpack.c.l.b16 %v40
  %v169 = vunpack.c.l.b16 %v41
  %v170 = vunpack.c.l.b16 %v42
  %v171 = vunpack.c.l.b16 %v43
  %v172 = vunpack.c.l.b16 %v44
  %v173 = vunpack.c.l.b16 %v45
  %v174 = vunpack.c.l.b16 %v46
  %v175 = vunpack.c.l.b16 %v47
  %v176 = vunpack.c.l.b16 %v48
  %v177 = vunpack.c.l.b16 %v49
  %v178 = vunpack.c.l.b16 %v50
  %v179 = vunpack.c.l.b16 %v51
  %v180 = vunpack.c.l.b16 %v52
  %v181 = vunpack.c.l.b16 %v53
  %v182 = vunpack.c.l.b16 %v54
  %v183 = vunpack.c.l.b16 %v55
  %v184 = vunpack.c.l.b16 %v56
  %v185 = vunpack.c.l.b16 %v57
  %v186 = vunpack.c.l.b16 %v58
  %v187 = vunpack.c.l.b16 %v59
  %v188 = vunpack.c.l.b16 %v60
  %v189 = vunpack.c.l.b16 %v61
  %v190 = vunpack.c.l.b16 %v62
  %v191 = vunpack.c.l.b16 %v63
  %v192 = vunpack.c.l.b16 %v64
  %v193 = vunpack.c.l.b16 %v65
  %v194 = vunpack.c.l.b16 %v66
  %v195 = vunpack.c.l.b16 %v67
  %v196 = vunpack.c.l.b16 %v68
  %v197 = vunpack.c.l.b16 %v69
  %v198 = vunpack.c.l.b16 %v70
  %v199 = vunpack.c.l.b16 %v71
  %v200 = vunpack.c.l.b16 %v72
  %v201 = vunpack.c.l.b16 %v73
  %v202 = vunpack.c.l.b16 %v74
  %v203 = vunpack.c.l.b16 %v75
  %v204 = vunpack.c.l.b16 %v76
  %v205 = vunpack.c.l.b16 %v77
  %v206 = vunpack.c.l.b16 %v78
  %v207 = vunpack.c.l.b16 %v79
  %v208 = vunpack.c.l.b16 %v80
  %v209 = vunpack.c.l.b16 %v81
  %v210 = vunpack.c.l.b16 %v82
  %v211 = vunpack.c.l.b16 %v83
  %v212 = vunpack.c.l.b16 %v84
  %v213 = vpack.c.b16 %v166, %v165
  %v214 = vpack.c.b16 %v168, %v167
  %v215 = vpack.c.b16 %v170, %v169
  %v216 = vpack.c.b16 %v172, %v171
  %v217 = vpack.c.b16 %v174, %v173
  %v218 = vpack.c.b16 %v176, %v175
  %v219 = vpack.c.b16 %v178, %v177
  %v220 = vpack.c.b16 %v180, %v179
  %v221 = vpack.c.b16 %v182, %v181
  %v222 = vpack.c.b16 %v184, %v183
  %v223 = vpack.c.b16 %v186, %v185
  %v224 = vpack.c.b16 %v188, %v187
  %v225 = vpack.c.b16 %v190, %v189
  %v226 = vpack.c.b16 %v192, %v191
  %v227 = vpack.c.b16 %v194, %v193
  %v228 = vpack.c.b16 %v196, %v195
  %v229 = vpack.c.b16 %v198, %v197
  %v230 = vpack.c.b16 %v200, %v199
  %v231 = vpack.c.b16 %v202, %v201
  %v232 = vpack.c.b16 %v204, %v203
  %v233 = vpack.c.b16 %v206, %v205
  %v234 = vpack.c.b16 %v208, %v207
  %v235 = vpack.c.b16 %v210, %v209
  %v236 = vpack.c.b16 %v212, %v211
  %261 = vmatpush.bf16.msra.mxu0 %v220
  %262 = vmatpush.bf16.msra.mxu0 %v219
  %263 = vmatpush.bf16.msra.mxu0 %v218
  %264 = vmatpush.bf16.msra.mxu0 %v217
  %265 = vmatpush.bf16.msra.mxu0 %v216
  %266 = vmatpush.bf16.msra.mxu0 %v215
  %267 = vmatpush.bf16.msra.mxu0 %v214
  %268 = vmatpush.bf16.msra.mxu0 %v213
  %269 = vmatmul.bf16.gmra.mxu0 %v105
  %v270 = vpop.f32.mrf.mxu0
  %v271 = vadd.f32 0.0, %v270
  %v272 = vpop.f32.mrf.mxu0
  %v273 = vadd.f32 0.0, %v272
  %274 = vmatmul.bf16.gmra.mxu0 %v108
  %v275 = vpop.f32.mrf.mxu0
  %v276 = vadd.f32 0.0, %v275
  %v277 = vpop.f32.mrf.mxu0
  %v278 = vadd.f32 0.0, %v277
  %279 = vdwg.mxu0
  %280 = vmatpush.bf16.msra.mxu0 %v228
  %281 = vmatpush.bf16.msra.mxu0 %v227
  %282 = vmatpush.bf16.msra.mxu0 %v226
  %283 = vmatpush.bf16.msra.mxu0 %v225
  %284 = vmatpush.bf16.msra.mxu0 %v224
  %285 = vmatpush.bf16.msra.mxu0 %v223
  %286 = vmatpush.bf16.msra.mxu0 %v222
  %287 = vmatpush.bf16.msra.mxu0 %v221
  %288 = vmatmul.bf16.gmra.mxu0 %v106
  %v289 = vpop.f32.mrf.mxu0
  %v290 = vadd.f32 %v271, %v289
  %v291 = vpop.f32.mrf.mxu0
  %v292 = vadd.f32 %v273, %v291
  %293 = vmatmul.bf16.gmra.mxu0 %v109
  %v294 = vpop.f32.mrf.mxu0
  %v295 = vadd.f32 %v276, %v294
  %v296 = vpop.f32.mrf.mxu0
  %v297 = vadd.f32 %v278, %v296
  %298 = vdwg.mxu0
  %299 = vmatpush.bf16.msra.mxu0 %v236
  %300 = vmatpush.bf16.msra.mxu0 %v235
  %301 = vmatpush.bf16.msra.mxu0 %v234
  %302 = vmatpush.bf16.msra.mxu0 %v233
  %303 = vmatpush.bf16.msra.mxu0 %v232
  %304 = vmatpush.bf16.msra.mxu0 %v231
  %305 = vmatpush.bf16.msra.mxu0 %v230
  %306 = vmatpush.bf16.msra.mxu0 %v229
  %307 = vmatmul.bf16.gmra.mxu0 %v107
  %v308 = vpop.f32.mrf.mxu0
  %v309 = vadd.f32 %v290, %v308
  %v310 = vpop.f32.mrf.mxu0
  %v311 = vadd.f32 %v292, %v310
  %312 = vmatmul.bf16.gmra.mxu0 %v110
  %v313 = vpop.f32.mrf.mxu0
  %v314 = vadd.f32 %v295, %v313
  %v315 = vpop.f32.mrf.mxu0
  %v316 = vadd.f32 %v297, %v315
  %317 = vdwg.mxu0
  %v318 = vadd.f32 %v25, %v309
  %v319 = vadd.f32 %v26, %v311
  %v320 = vadd.f32 %v27, %v314
  %v321 = vadd.f32 %v28, %v316
  %322 = vst [vmem:[#allocation2] sm:$0xff] %v318
  %323 = vst [vmem:[#allocation2 + $0x8] sm:$0xff] %v319
  %324 = vst [vmem:[#allocation2 + $0x10] sm:$0xff] %v320
  %325 = vst [vmem:[#allocation2 + $0x18] sm:$0xff] %v321
  // Predicated region
  $region22: #{_lambda_.34} parent=0 // pred_check
    %p326 = pneg %p17
  $region23: #{_lambda_.34} parent=0 // pred_check_branch
    %328 = sbr.rel (%p326) target = $region25
  $region24: #{_lambda_.34} parent=0 // pred_region
    %v329 = vld [vmem:[#allocation2] sm:$0xff]
    %v330 = vld [vmem:[#allocation2 + $0x8] sm:$0xff]
    %v331 = vld [vmem:[#allocation2 + $0x10] sm:$0xff]
    %v332 = vld [vmem:[#allocation2 + $0x18] sm:$0xff]
    %v333 = vld [vmem:[%s2] sm:$0x1]
    %v335 = vperm.slane %v333, 0
    %v337 = vmul.f32 %v329, %v335
    %v338 = vmul.f32 %v330, %v335
    %v339 = vmul.f32 %v331, %v335
    %v340 = vmul.f32 %v332, %v335
    %v341 = vld [vmem:[%s3] sm:$0x1]
    %v343 = vperm.slane %v341, 0
    %v345 = vadd.f32 %v337, %v343
    %v346 = vadd.f32 %v338, %v343
    %v347 = vadd.f32 %v339, %v343
    %v348 = vadd.f32 %v340, %v343
    %v349 = vmax.f32 %v345, 0.0
    %v350 = vmax.f32 %v346, 0.0
    %v351 = vmax.f32 %v347, 0.0
    %v352 = vmax.f32 %v348, 0.0
    %v353 = vpack.c.bf16 %v349, %v349
    %v354 = vpack.c.bf16 %v350, %v350
    %v355 = vpack.c.bf16 %v351, %v351
    %v356 = vpack.c.bf16 %v352, %v352
    %357 = vst [vmem:[%s4] sm:$0xf] %v353
    %358 = vst [vmem:[%s4 + $0x4] sm:$0xf] %v354
    %359 = vst [vmem:[%s4 + $0x8] sm:$0xf] %v355
    %360 = vst [vmem:[%s4 + $0xc] sm:$0xf] %v356
  $region25: #{_lambda_.34} parent=0 // pred_fallthru
    _
  // Predicated region
  $region26: #{_lambda_.34} parent=0 // pred_check
    _
  $region27: #{_lambda_.34} parent=0 // pred_check_branch
    %362 = sbr.rel (0) target = $region29
  $region28: #{_lambda_.34} parent=0 // pred_region
    _
  $region29: #{_lambda_.34} parent=0 // pred_fallthru
    _
  // Predicated region
  $region30: #{_lambda_.34} parent=0 // pred_check
    _
  $region31: #{_lambda_.34} parent=0 // pred_check_branch
    %364 = sbr.rel (0) target = $region33
  $region32: #{_lambda_.34} parent=0 // pred_region
    _
  $region33: #{_lambda_.34} parent=0 // pred_fallthru
    _

// kernel: _lambda_.36
$region0: #{_lambda_.36}
  #allocation0 [shape = 'u32[]', space=smem, size = 0x4, offset = 0x4, fixed_abs, tag = 'smem constant byte address 0x4 - core index']
  #allocation1 [shape = 'u32[72,128]{1,0:T(1,128)}', space=vmem, size = 0x9000, scoped, tag = 'internal scratch']
  #allocation2 [shape = 'f32[8,128]{1,0:T(8,128)}', space=vmem, size = 0x1000, scoped, tag = 'scratch operand']
  %s0 = inlined_call_operand.vmem [shape: bf16[8,128], index: 0, kind: input, shape index: {}]
  %s1 = inlined_call_operand.vmem [shape: bf16[128,128], index: 1, kind: input, shape index: {}]
  %s2 = inlined_call_operand.vmem [shape: f32[1,128], index: 2, kind: input, shape index: {}]
  %s3 = inlined_call_operand.vmem [shape: f32[1,128], index: 3, kind: input, shape index: {}]
  %s4 = inlined_call_operand.vmem [shape: bf16[8,128], index: 4, kind: input, shape index: {}]
  %s5 = inlined_call_operand.vmem [shape: bf16[8,128], index: 5, kind: output, shape index: {}]
  %s6 = sld [smem:[#allocation0]]
  $region38: #{_lambda_.36} parent=0
    _
  %s8 = ssub.s32 1, %s6
  %s9 = scalar_select 0, %s8, %s6
  // Predicated region
  $region2: #{_lambda_.36} parent=0 // pred_check
    _
  $region3: #{_lambda_.36} parent=0 // pred_check_branch
    %11 = sbr.rel (0) target = $region5
  $region4: #{_lambda_.36} parent=0 // pred_region
    _
  $region5: #{_lambda_.36} parent=0 // pred_fallthru
    _
  // Predicated region
  $region6: #{_lambda_.36} parent=0 // pred_check
    _
  $region7: #{_lambda_.36} parent=0 // pred_check_branch
    %13 = sbr.rel (0) target = $region9
  $region8: #{_lambda_.36} parent=0 // pred_region
    _
  $region9: #{_lambda_.36} parent=0 // pred_fallthru
    _
  // Predicated region
  $region10: #{_lambda_.36} parent=0 // pred_check
    _
  $region11: #{_lambda_.36} parent=0 // pred_check_branch
    %15 = sbr.rel (0) target = $region13
  $region12: #{_lambda_.36} parent=0 // pred_region
    _
  $region13: #{_lambda_.36} parent=0 // pred_fallthru
    _
  // Predicated region
  $region14: #{_lambda_.36} parent=0 // pred_check
    _
  $region15: #{_lambda_.36} parent=0 // pred_check_branch
    %17 = sbr.rel (0) target = $region17
  $region16: #{_lambda_.36} parent=0 // pred_region
    _
  $region17: #{_lambda_.36} parent=0 // pred_fallthru
    _
  // Predicated region
  $region18: #{_lambda_.36} parent=0 // pred_check
    _
  $region19: #{_lambda_.36} parent=0 // pred_check_branch
    %19 = sbr.rel (0) target = $region21
  $region20: #{_lambda_.36} parent=0 // pred_region
    _
  $region21: #{_lambda_.36} parent=0 // pred_fallthru
    _
  %p20 = scmp.eq.s32.totalorder 0, 0
  // Predicated region
  $region22: #{_lambda_.36} parent=0 // pred_check
    %p21 = pneg %p20
  $region23: #{_lambda_.36} parent=0 // pred_check_branch
    %23 = sbr.rel (%p21) target = $region25
  $region24: #{_lambda_.36} parent=0 // pred_region
    %24 = vst [vmem:[#allocation2] sm:$0xff] 0.0
  $region25: #{_lambda_.36} parent=0 // pred_fallthru
    _
  %v25 = vld [vmem:[#allocation2] sm:$0xff]
  %v26 = vld [vmem:[%s0] sm:$0xf]
  %v27 = vld [vmem:[%s1] sm:$0xf]
  %v28 = vld [vmem:[%s1 + $0x4] sm:$0xf]
  %v29 = vld [vmem:[%s1 + $0x8] sm:$0xf]
  %v30 = vld [vmem:[%s1 + $0xc] sm:$0xf]
  %v31 = vld [vmem:[%s1 + $0x10] sm:$0xf]
  %v32 = vld [vmem:[%s1 + $0x14] sm:$0xf]
  %v33 = vld [vmem:[%s1 + $0x18] sm:$0xf]
  %v34 = vld [vmem:[%s1 + $0x1c] sm:$0xf]
  %v35 = vld [vmem:[%s1 + $0x20] sm:$0xf]
  %v36 = vld [vmem:[%s1 + $0x24] sm:$0xf]
  %v37 = vld [vmem:[%s1 + $0x28] sm:$0xf]
  %v38 = vld [vmem:[%s1 + $0x2c] sm:$0xf]
  %v39 = vld [vmem:[%s1 + $0x30] sm:$0xf]
  %v40 = vld [vmem:[%s1 + $0x34] sm:$0xf]
  %v41 = vld [vmem:[%s1 + $0x38] sm:$0xf]
  %v42 = vld [vmem:[%s1 + $0x3c] sm:$0xf]
  %v59 = vunpack.c.l.b16 %v27
  %v60 = vunpack.c.l.b16 %v28
  %v61 = vunpack.c.l.b16 %v29
  %v62 = vunpack.c.l.b16 %v30
  %v63 = vunpack.c.l.b16 %v31
  %v64 = vunpack.c.l.b16 %v32
  %v65 = vunpack.c.l.b16 %v33
  %v66 = vunpack.c.l.b16 %v34
  %v67 = vunpack.c.l.b16 %v35
  %v68 = vunpack.c.l.b16 %v36
  %v69 = vunpack.c.l.b16 %v37
  %v70 = vunpack.c.l.b16 %v38
  %v71 = vunpack.c.l.b16 %v39
  %v72 = vunpack.c.l.b16 %v40
  %v73 = vunpack.c.l.b16 %v41
  %v74 = vunpack.c.l.b16 %v42
  %v75 = vpack.c.b16 %v60, %v59
  %v76 = vpack.c.b16 %v62, %v61
  %v77 = vpack.c.b16 %v64, %v63
  %v78 = vpack.c.b16 %v66, %v65
  %v79 = vpack.c.b16 %v68, %v67
  %v80 = vpack.c.b16 %v70, %v69
  %v81 = vpack.c.b16 %v72, %v71
  %v82 = vpack.c.b16 %v74, %v73
  %91 = vmatpush.bf16.msra.mxu0 %v82
  %92 = vmatpush.bf16.msra.mxu0 %v81
  %93 = vmatpush.bf16.msra.mxu0 %v80
  %94 = vmatpush.bf16.msra.mxu0 %v79
  %95 = vmatpush.bf16.msra.mxu0 %v78
  %96 = vmatpush.bf16.msra.mxu0 %v77
  %97 = vmatpush.bf16.msra.mxu0 %v76
  %98 = vmatpush.bf16.msra.mxu0 %v75
  %99 = vmatmul.bf16.gmra.mxu0 %v26
  %v100 = vpop.f32.mrf.mxu0
  %v101 = vadd.f32 0.0, %v100
  %v102 = vpop.f32.mrf.mxu0
  %103 = vdwg.mxu0
  %v104 = vadd.f32 %v25, %v101
  %105 = vst [vmem:[#allocation2] sm:$0xff] %v104
  // Predicated region
  $region26: #{_lambda_.36} parent=0 // pred_check
    %p106 = pneg %p20
  $region27: #{_lambda_.36} parent=0 // pred_check_branch
    %108 = sbr.rel (%p106) target = $region29
  $region28: #{_lambda_.36} parent=0 // pred_region
    %v109 = vld [vmem:[#allocation2] sm:$0xff]
    %v110 = vld [vmem:[%s2] sm:$0x1]
    %v112 = vperm.slane %v110, 0
    %v114 = vmul.f32 %v109, %v112
    %v115 = vld [vmem:[%s3] sm:$0x1]
    %v117 = vperm.slane %v115, 0
    %v119 = vadd.f32 %v114, %v117
    %v120 = vld [vmem:[%s4] sm:$0xf]
    %v121 = vunpack.c.l.bf16 %v120
    %v122 = vadd.f32 %v119, %v121
    %v123 = vmax.f32 %v122, 0.0
    %v124 = vpack.c.bf16 %v123, %v123
    %125 = vst [vmem:[%s5] sm:$0xf] %v124
  $region29: #{_lambda_.36} parent=0 // pred_fallthru
    _
  // Predicated region
  $region30: #{_lambda_.36} parent=0 // pred_check
    _
  $region31: #{_lambda_.36} parent=0 // pred_check_branch
    %127 = sbr.rel (0) target = $region33
  $region32: #{_lambda_.36} parent=0 // pred_region
    _
  $region33: #{_lambda_.36} parent=0 // pred_fallthru
    _
  // Predicated region
  $region34: #{_lambda_.36} parent=0 // pred_check
    _
  $region35: #{_lambda_.36} parent=0 // pred_check_branch
    %129 = sbr.rel (0) target = $region37
  $region36: #{_lambda_.36} parent=0 // pred_region
    _
  $region37: #{_lambda_.36} parent=0 // pred_fallthru
    _

// kernel: _lambda_.39
$region0: #{_lambda_.39}
  #allocation0 [shape = 'u32[]', space=smem, size = 0x4, offset = 0x4, fixed_abs, tag = 'smem constant byte address 0x4 - core index']
  #allocation1 [shape = 'u32[72,128]{1,0:T(1,128)}', space=vmem, size = 0x9000, scoped, tag = 'internal scratch']
  #allocation2 [shape = 'f32[8,256]{1,0:T(8,128)}', space=vmem, size = 0x2000, scoped, tag = 'scratch operand']
  %s0 = inlined_call_operand.vmem [shape: bf16[8,128], index: 0, kind: input, shape index: {}]
  %s1 = inlined_call_operand.vmem [shape: bf16[128,256], index: 1, kind: input, shape index: {}]
  %s2 = inlined_call_operand.vmem [shape: f32[1,256], index: 2, kind: input, shape index: {}]
  %s3 = inlined_call_operand.vmem [shape: f32[1,256], index: 3, kind: input, shape index: {}]
  %s4 = inlined_call_operand.vmem [shape: bf16[8,256], index: 4, kind: output, shape index: {}]
  %s5 = sld [smem:[#allocation0]]
  $region34: #{_lambda_.39} parent=0
    _
  %s7 = ssub.s32 1, %s5
  %s8 = scalar_select 0, %s7, %s5
  // Predicated region
  $region2: #{_lambda_.39} parent=0 // pred_check
    _
  $region3: #{_lambda_.39} parent=0 // pred_check_branch
    %10 = sbr.rel (0) target = $region5
  $region4: #{_lambda_.39} parent=0 // pred_region
    _
  $region5: #{_lambda_.39} parent=0 // pred_fallthru
    _
  // Predicated region
  $region6: #{_lambda_.39} parent=0 // pred_check
    _
  $region7: #{_lambda_.39} parent=0 // pred_check_branch
    %12 = sbr.rel (0) target = $region9
  $region8: #{_lambda_.39} parent=0 // pred_region
    _
  $region9: #{_lambda_.39} parent=0 // pred_fallthru
    _
  // Predicated region
  $region10: #{_lambda_.39} parent=0 // pred_check
    _
  $region11: #{_lambda_.39} parent=0 // pred_check_branch
    %14 = sbr.rel (0) target = $region13
  $region12: #{_lambda_.39} parent=0 // pred_region
    _
  $region13: #{_lambda_.39} parent=0 // pred_fallthru
    _
  // Predicated region
  $region14: #{_lambda_.39} parent=0 // pred_check
    _
  $region15: #{_lambda_.39} parent=0 // pred_check_branch
    %16 = sbr.rel (0) target = $region17
  $region16: #{_lambda_.39} parent=0 // pred_region
    _
  $region17: #{_lambda_.39} parent=0 // pred_fallthru
    _
  %p17 = scmp.eq.s32.totalorder 0, 0
  // Predicated region
  $region18: #{_lambda_.39} parent=0 // pred_check
    %p18 = pneg %p17
  $region19: #{_lambda_.39} parent=0 // pred_check_branch
    %20 = sbr.rel (%p18) target = $region21
  $region20: #{_lambda_.39} parent=0 // pred_region
    %21 = vst [vmem:[#allocation2] sm:$0xff] 0.0
    %22 = vst [vmem:[#allocation2 + $0x8] sm:$0xff] 0.0
  $region21: #{_lambda_.39} parent=0 // pred_fallthru
    _
  %v23 = vld [vmem:[#allocation2] sm:$0xff]
  %v24 = vld [vmem:[#allocation2 + $0x8] sm:$0xff]
  %v25 = vld [vmem:[%s0] sm:$0xf]
  %v26 = vld [vmem:[%s1] sm:$0xff]
  %v27 = vld [vmem:[%s1 + $0x8] sm:$0xff]
  %v28 = vld [vmem:[%s1 + $0x10] sm:$0xff]
  %v29 = vld [vmem:[%s1 + $0x18] sm:$0xff]
  %v30 = vld [vmem:[%s1 + $0x20] sm:$0xff]
  %v31 = vld [vmem:[%s1 + $0x28] sm:$0xff]
  %v32 = vld [vmem:[%s1 + $0x30] sm:$0xff]
  %v33 = vld [vmem:[%s1 + $0x38] sm:$0xff]
  %v34 = vld [vmem:[%s1 + $0x40] sm:$0xff]
  %v35 = vld [vmem:[%s1 + $0x48] sm:$0xff]
  %v36 = vld [vmem:[%s1 + $0x50] sm:$0xff]
  %v37 = vld [vmem:[%s1 + $0x58] sm:$0xff]
  %v38 = vld [vmem:[%s1 + $0x60] sm:$0xff]
  %v39 = vld [vmem:[%s1 + $0x68] sm:$0xff]
  %v40 = vld [vmem:[%s1 + $0x70] sm:$0xff]
  %v41 = vld [vmem:[%s1 + $0x78] sm:$0xff]
  %v58 = vunpack.c.l.b16 %v26
  %v59 = vunpack.c.h.b16 %v26
  %v60 = vunpack.c.l.b16 %v27
  %v61 = vunpack.c.h.b16 %v27
  %v62 = vunpack.c.l.b16 %v28
  %v63 = vunpack.c.h.b16 %v28
  %v64 = vunpack.c.l.b16 %v29
  %v65 = vunpack.c.h.b16 %v29
  %v66 = vunpack.c.l.b16 %v30
  %v67 = vunpack.c.h.b16 %v30
  %v68 = vunpack.c.l.b16 %v31
  %v69 = vunpack.c.h.b16 %v31
  %v70 = vunpack.c.l.b16 %v32
  %v71 = vunpack.c.h.b16 %v32
  %v72 = vunpack.c.l.b16 %v33
  %v73 = vunpack.c.h.b16 %v33
  %v74 = vunpack.c.l.b16 %v34
  %v75 = vunpack.c.h.b16 %v34
  %v76 = vunpack.c.l.b16 %v35
  %v77 = vunpack.c.h.b16 %v35
  %v78 = vunpack.c.l.b16 %v36
  %v79 = vunpack.c.h.b16 %v36
  %v80 = vunpack.c.l.b16 %v37
  %v81 = vunpack.c.h.b16 %v37
  %v82 = vunpack.c.l.b16 %v38
  %v83 = vunpack.c.h.b16 %v38
  %v84 = vunpack.c.l.b16 %v39
  %v85 = vunpack.c.h.b16 %v39
  %v86 = vunpack.c.l.b16 %v40
  %v87 = vunpack.c.h.b16 %v40
  %v88 = vunpack.c.l.b16 %v41
  %v89 = vunpack.c.h.b16 %v41
  %v90 = vpack.c.b16 %v60, %v58
  %v91 = vpack.c.b16 %v61, %v59
  %v92 = vpack.c.b16 %v64, %v62
  %v93 = vpack.c.b16 %v65, %v63
  %v94 = vpack.c.b16 %v68, %v66
  %v95 = vpack.c.b16 %v69, %v67
  %v96 = vpack.c.b16 %v72, %v70
  %v97 = vpack.c.b16 %v73, %v71
  %v98 = vpack.c.b16 %v76, %v74
  %v99 = vpack.c.b16 %v77, %v75
  %v100 = vpack.c.b16 %v80, %v78
  %v101 = vpack.c.b16 %v81, %v79
  %v102 = vpack.c.b16 %v84, %v82
  %v103 = vpack.c.b16 %v85, %v83
  %v104 = vpack.c.b16 %v88, %v86
  %v105 = vpack.c.b16 %v89, %v87
  %122 = vmatpush.bf16.msra.mxu0 %v104
  %123 = vmatpush.bf16.msra.mxu0 %v102
  %124 = vmatpush.bf16.msra.mxu0 %v100
  %125 = vmatpush.bf16.msra.mxu0 %v98
  %126 = vmatpush.bf16.msra.mxu0 %v96
  %127 = vmatpush.bf16.msra.mxu0 %v94
  %128 = vmatpush.bf16.msra.mxu0 %v92
  %129 = vmatpush.bf16.msra.mxu0 %v90
  %130 = vmatmul.bf16.gmra.mxu0 %v25
  %v131 = vpop.f32.mrf.mxu0
  %v132 = vadd.f32 0.0, %v131
  %v133 = vpop.f32.mrf.mxu0
  %134 = vdwg.mxu0
  %135 = vmatpush.bf16.msra.mxu0 %v105
  %136 = vmatpush.bf16.msra.mxu0 %v103
  %137 = vmatpush.bf16.msra.mxu0 %v101
  %138 = vmatpush.bf16.msra.mxu0 %v99
  %139 = vmatpush.bf16.msra.mxu0 %v97
  %140 = vmatpush.bf16.msra.mxu0 %v95
  %141 = vmatpush.bf16.msra.mxu0 %v93
  %142 = vmatpush.bf16.msra.mxu0 %v91
  %143 = vmatmul.bf16.gmra.mxu0 %v25
  %v144 = vpop.f32.mrf.mxu0
  %v145 = vadd.f32 0.0, %v144
  %v146 = vpop.f32.mrf.mxu0
  %147 = vdwg.mxu0
  %v148 = vadd.f32 %v23, %v132
  %v149 = vadd.f32 %v24, %v145
  %150 = vst [vmem:[#allocation2] sm:$0xff] %v148
  %151 = vst [vmem:[#allocation2 + $0x8] sm:$0xff] %v149
  // Predicated region
  $region22: #{_lambda_.39} parent=0 // pred_check
    %p152 = pneg %p17
  $region23: #{_lambda_.39} parent=0 // pred_check_branch
    %154 = sbr.rel (%p152) target = $region25
  $region24: #{_lambda_.39} parent=0 // pred_region
    %v155 = vld [vmem:[#allocation2] sm:$0xff]
    %v156 = vld [vmem:[#allocation2 + $0x8] sm:$0xff]
    %v157 = vld [vmem:[%s2] sm:$0x3]
    %v159 = vperm.slane %v157, 0
    %v160 = vperm.slane %v157, 1
    %v163 = vmul.f32 %v155, %v159
    %v164 = vmul.f32 %v156, %v160
    %v165 = vld [vmem:[%s3] sm:$0x3]
    %v167 = vperm.slane %v165, 0
    %v168 = vperm.slane %v165, 1
    %v171 = vadd.f32 %v163, %v167
    %v172 = vadd.f32 %v164, %v168
    %v173 = vpack.c.bf16 %v172, %v171
    %174 = vst [vmem:[%s4] sm:$0xff] %v173
  $region25: #{_lambda_.39} parent=0 // pred_fallthru
    _
  // Predicated region
  $region26: #{_lambda_.39} parent=0 // pred_check
    _
  $region27: #{_lambda_.39} parent=0 // pred_check_branch
    %176 = sbr.rel (0) target = $region29
  $region28: #{_lambda_.39} parent=0 // pred_region
    _
  $region29: #{_lambda_.39} parent=0 // pred_fallthru
    _
  // Predicated region
  $region30: #{_lambda_.39} parent=0 // pred_check
    _
  $region31: #{_lambda_.39} parent=0 // pred_check_branch
    %178 = sbr.rel (0) target = $region33
  $region32: #{_lambda_.39} parent=0 // pred_region
    _
  $region33: #{_lambda_.39} parent=0 // pred_fallthru
    _

// kernel: _lambda_.37
$region0: #{_lambda_.37}
  #allocation0 [shape = 'u32[]', space=smem, size = 0x4, offset = 0x4, fixed_abs, tag = 'smem constant byte address 0x4 - core index']
  #allocation1 [shape = 'u32[72,128]{1,0:T(1,128)}', space=vmem, size = 0x9000, scoped, tag = 'internal scratch']
  #allocation2 [shape = 'f32[8,128]{1,0:T(8,128)}', space=vmem, size = 0x1000, scoped, tag = 'scratch operand']
  %s0 = inlined_call_operand.vmem [shape: bf16[8,128], index: 0, kind: input, shape index: {}]
  %s1 = inlined_call_operand.vmem [shape: bf16[128,128], index: 1, kind: input, shape index: {}]
  %s2 = inlined_call_operand.vmem [shape: f32[1,128], index: 2, kind: input, shape index: {}]
  %s3 = inlined_call_operand.vmem [shape: f32[1,128], index: 3, kind: input, shape index: {}]
  %s4 = inlined_call_operand.vmem [shape: bf16[8,128], index: 4, kind: output, shape index: {}]
  %s5 = sld [smem:[#allocation0]]
  $region34: #{_lambda_.37} parent=0
    _
  %s7 = ssub.s32 1, %s5
  %s8 = scalar_select 0, %s7, %s5
  // Predicated region
  $region2: #{_lambda_.37} parent=0 // pred_check
    _
  $region3: #{_lambda_.37} parent=0 // pred_check_branch
    %10 = sbr.rel (0) target = $region5
  $region4: #{_lambda_.37} parent=0 // pred_region
    _
  $region5: #{_lambda_.37} parent=0 // pred_fallthru
    _
  // Predicated region
  $region6: #{_lambda_.37} parent=0 // pred_check
    _
  $region7: #{_lambda_.37} parent=0 // pred_check_branch
    %12 = sbr.rel (0) target = $region9
  $region8: #{_lambda_.37} parent=0 // pred_region
    _
  $region9: #{_lambda_.37} parent=0 // pred_fallthru
    _
  // Predicated region
  $region10: #{_lambda_.37} parent=0 // pred_check
    _
  $region11: #{_lambda_.37} parent=0 // pred_check_branch
    %14 = sbr.rel (0) target = $region13
  $region12: #{_lambda_.37} parent=0 // pred_region
    _
  $region13: #{_lambda_.37} parent=0 // pred_fallthru
    _
  // Predicated region
  $region14: #{_lambda_.37} parent=0 // pred_check
    _
  $region15: #{_lambda_.37} parent=0 // pred_check_branch
    %16 = sbr.rel (0) target = $region17
  $region16: #{_lambda_.37} parent=0 // pred_region
    _
  $region17: #{_lambda_.37} parent=0 // pred_fallthru
    _
  %p17 = scmp.eq.s32.totalorder 0, 0
  // Predicated region
  $region18: #{_lambda_.37} parent=0 // pred_check
    %p18 = pneg %p17
  $region19: #{_lambda_.37} parent=0 // pred_check_branch
    %20 = sbr.rel (%p18) target = $region21
  $region20: #{_lambda_.37} parent=0 // pred_region
    %21 = vst [vmem:[#allocation2] sm:$0xff] 0.0
  $region21: #{_lambda_.37} parent=0 // pred_fallthru
    _
  %v22 = vld [vmem:[#allocation2] sm:$0xff]
  %v23 = vld [vmem:[%s0] sm:$0xf]
  %v24 = vld [vmem:[%s1] sm:$0xf]
  %v25 = vld [vmem:[%s1 + $0x4] sm:$0xf]
  %v26 = vld [vmem:[%s1 + $0x8] sm:$0xf]
  %v27 = vld [vmem:[%s1 + $0xc] sm:$0xf]
  %v28 = vld [vmem:[%s1 + $0x10] sm:$0xf]
  %v29 = vld [vmem:[%s1 + $0x14] sm:$0xf]
  %v30 = vld [vmem:[%s1 + $0x18] sm:$0xf]
  %v31 = vld [vmem:[%s1 + $0x1c] sm:$0xf]
  %v32 = vld [vmem:[%s1 + $0x20] sm:$0xf]
  %v33 = vld [vmem:[%s1 + $0x24] sm:$0xf]
  %v34 = vld [vmem:[%s1 + $0x28] sm:$0xf]
  %v35 = vld [vmem:[%s1 + $0x2c] sm:$0xf]
  %v36 = vld [vmem:[%s1 + $0x30] sm:$0xf]
  %v37 = vld [vmem:[%s1 + $0x34] sm:$0xf]
  %v38 = vld [vmem:[%s1 + $0x38] sm:$0xf]
  %v39 = vld [vmem:[%s1 + $0x3c] sm:$0xf]
  %v56 = vunpack.c.l.b16 %v24
  %v57 = vunpack.c.l.b16 %v25
  %v58 = vunpack.c.l.b16 %v26
  %v59 = vunpack.c.l.b16 %v27
  %v60 = vunpack.c.l.b16 %v28
  %v61 = vunpack.c.l.b16 %v29
  %v62 = vunpack.c.l.b16 %v30
  %v63 = vunpack.c.l.b16 %v31
  %v64 = vunpack.c.l.b16 %v32
  %v65 = vunpack.c.l.b16 %v33
  %v66 = vunpack.c.l.b16 %v34
  %v67 = vunpack.c.l.b16 %v35
  %v68 = vunpack.c.l.b16 %v36
  %v69 = vunpack.c.l.b16 %v37
  %v70 = vunpack.c.l.b16 %v38
  %v71 = vunpack.c.l.b16 %v39
  %v72 = vpack.c.b16 %v57, %v56
  %v73 = vpack.c.b16 %v59, %v58
  %v74 = vpack.c.b16 %v61, %v60
  %v75 = vpack.c.b16 %v63, %v62
  %v76 = vpack.c.b16 %v65, %v64
  %v77 = vpack.c.b16 %v67, %v66
  %v78 = vpack.c.b16 %v69, %v68
  %v79 = vpack.c.b16 %v71, %v70
  %88 = vmatpush.bf16.msra.mxu0 %v79
  %89 = vmatpush.bf16.msra.mxu0 %v78
  %90 = vmatpush.bf16.msra.mxu0 %v77
  %91 = vmatpush.bf16.msra.mxu0 %v76
  %92 = vmatpush.bf16.msra.mxu0 %v75
  %93 = vmatpush.bf16.msra.mxu0 %v74
  %94 = vmatpush.bf16.msra.mxu0 %v73
  %95 = vmatpush.bf16.msra.mxu0 %v72
  %96 = vmatmul.bf16.gmra.mxu0 %v23
  %v97 = vpop.f32.mrf.mxu0
  %v98 = vadd.f32 0.0, %v97
  %v99 = vpop.f32.mrf.mxu0
  %100 = vdwg.mxu0
  %v101 = vadd.f32 %v22, %v98
  %102 = vst [vmem:[#allocation2] sm:$0xff] %v101
  // Predicated region
  $region22: #{_lambda_.37} parent=0 // pred_check
    %p103 = pneg %p17
  $region23: #{_lambda_.37} parent=0 // pred_check_branch
    %105 = sbr.rel (%p103) target = $region25
  $region24: #{_lambda_.37} parent=0 // pred_region
    %v106 = vld [vmem:[#allocation2] sm:$0xff]
    %v107 = vld [vmem:[%s2] sm:$0x1]
    %v109 = vperm.slane %v107, 0
    %v111 = vmul.f32 %v106, %v109
    %v112 = vld [vmem:[%s3] sm:$0x1]
    %v114 = vperm.slane %v112, 0
    %v116 = vadd.f32 %v111, %v114
    %v117 = vmax.f32 %v116, 0.0
    %v118 = vpack.c.bf16 %v117, %v117
    %119 = vst [vmem:[%s4] sm:$0xf] %v118
  $region25: #{_lambda_.37} parent=0 // pred_fallthru
    _
  // Predicated region
  $region26: #{_lambda_.37} parent=0 // pred_check
    _
  $region27: #{_lambda_.37} parent=0 // pred_check_branch
    %121 = sbr.rel (0) target = $region29
  $region28: #{_lambda_.37} parent=0 // pred_region
    _
  $region29: #{_lambda_.37} parent=0 // pred_fallthru
    _
  // Predicated region
  $region30: #{_lambda_.37} parent=0 // pred_check
    _
  $region31: #{_lambda_.37} parent=0 // pred_check_branch
    %123 = sbr.rel (0) target = $region33
  $region32: #{_lambda_.37} parent=0 // pred_region
    _
  $region33: #{_lambda_.37} parent=0 // pred_fallthru
    _

// kernel: _lambda_.40
$region0: #{_lambda_.40}
  #allocation0 [shape = 'u32[]', space=smem, size = 0x4, offset = 0x4, fixed_abs, tag = 'smem constant byte address 0x4 - core index']
  #allocation1 [shape = 'u32[72,128]{1,0:T(1,128)}', space=vmem, size = 0x9000, scoped, tag = 'internal scratch']
  #allocation2 [shape = 'f32[8,256]{1,0:T(8,128)}', space=vmem, size = 0x2000, scoped, tag = 'scratch operand']
  %s0 = inlined_call_operand.vmem [shape: bf16[8,128], index: 0, kind: input, shape index: {}]
  %s1 = inlined_call_operand.vmem [shape: bf16[128,256], index: 1, kind: input, shape index: {}]
  %s2 = inlined_call_operand.vmem [shape: f32[1,256], index: 2, kind: input, shape index: {}]
  %s3 = inlined_call_operand.vmem [shape: f32[1,256], index: 3, kind: input, shape index: {}]
  %s4 = inlined_call_operand.vmem [shape: bf16[8,256], index: 4, kind: input, shape index: {}]
  %s5 = inlined_call_operand.vmem [shape: bf16[8,256], index: 5, kind: output, shape index: {}]
  %s6 = sld [smem:[#allocation0]]
  $region38: #{_lambda_.40} parent=0
    _
  %s8 = ssub.s32 1, %s6
  %s9 = scalar_select 0, %s8, %s6
  // Predicated region
  $region2: #{_lambda_.40} parent=0 // pred_check
    _
  $region3: #{_lambda_.40} parent=0 // pred_check_branch
    %11 = sbr.rel (0) target = $region5
  $region4: #{_lambda_.40} parent=0 // pred_region
    _
  $region5: #{_lambda_.40} parent=0 // pred_fallthru
    _
  // Predicated region
  $region6: #{_lambda_.40} parent=0 // pred_check
    _
  $region7: #{_lambda_.40} parent=0 // pred_check_branch
    %13 = sbr.rel (0) target = $region9
  $region8: #{_lambda_.40} parent=0 // pred_region
    _
  $region9: #{_lambda_.40} parent=0 // pred_fallthru
    _
  // Predicated region
  $region10: #{_lambda_.40} parent=0 // pred_check
    _
  $region11: #{_lambda_.40} parent=0 // pred_check_branch
    %15 = sbr.rel (0) target = $region13
  $region12: #{_lambda_.40} parent=0 // pred_region
    _
  $region13: #{_lambda_.40} parent=0 // pred_fallthru
    _
  // Predicated region
  $region14: #{_lambda_.40} parent=0 // pred_check
    _
  $region15: #{_lambda_.40} parent=0 // pred_check_branch
    %17 = sbr.rel (0) target = $region17
  $region16: #{_lambda_.40} parent=0 // pred_region
    _
  $region17: #{_lambda_.40} parent=0 // pred_fallthru
    _
  // Predicated region
  $region18: #{_lambda_.40} parent=0 // pred_check
    _
  $region19: #{_lambda_.40} parent=0 // pred_check_branch
    %19 = sbr.rel (0) target = $region21
  $region20: #{_lambda_.40} parent=0 // pred_region
    _
  $region21: #{_lambda_.40} parent=0 // pred_fallthru
    _
  %p20 = scmp.eq.s32.totalorder 0, 0
  // Predicated region
  $region22: #{_lambda_.40} parent=0 // pred_check
    %p21 = pneg %p20
  $region23: #{_lambda_.40} parent=0 // pred_check_branch
    %23 = sbr.rel (%p21) target = $region25
  $region24: #{_lambda_.40} parent=0 // pred_region
    %24 = vst [vmem:[#allocation2] sm:$0xff] 0.0
    %25 = vst [vmem:[#allocation2 + $0x8] sm:$0xff] 0.0
  $region25: #{_lambda_.40} parent=0 // pred_fallthru
    _
  %v26 = vld [vmem:[#allocation2] sm:$0xff]
  %v27 = vld [vmem:[#allocation2 + $0x8] sm:$0xff]
  %v28 = vld [vmem:[%s0] sm:$0xf]
  %v29 = vld [vmem:[%s1] sm:$0xff]
  %v30 = vld [vmem:[%s1 + $0x8] sm:$0xff]
  %v31 = vld [vmem:[%s1 + $0x10] sm:$0xff]
  %v32 = vld [vmem:[%s1 + $0x18] sm:$0xff]
  %v33 = vld [vmem:[%s1 + $0x20] sm:$0xff]
  %v34 = vld [vmem:[%s1 + $0x28] sm:$0xff]
  %v35 = vld [vmem:[%s1 + $0x30] sm:$0xff]
  %v36 = vld [vmem:[%s1 + $0x38] sm:$0xff]
  %v37 = vld [vmem:[%s1 + $0x40] sm:$0xff]
  %v38 = vld [vmem:[%s1 + $0x48] sm:$0xff]
  %v39 = vld [vmem:[%s1 + $0x50] sm:$0xff]
  %v40 = vld [vmem:[%s1 + $0x58] sm:$0xff]
  %v41 = vld [vmem:[%s1 + $0x60] sm:$0xff]
  %v42 = vld [vmem:[%s1 + $0x68] sm:$0xff]
  %v43 = vld [vmem:[%s1 + $0x70] sm:$0xff]
  %v44 = vld [vmem:[%s1 + $0x78] sm:$0xff]
  %v61 = vunpack.c.l.b16 %v29
  %v62 = vunpack.c.h.b16 %v29
  %v63 = vunpack.c.l.b16 %v30
  %v64 = vunpack.c.h.b16 %v30
  %v65 = vunpack.c.l.b16 %v31
  %v66 = vunpack.c.h.b16 %v31
  %v67 = vunpack.c.l.b16 %v32
  %v68 = vunpack.c.h.b16 %v32
  %v69 = vunpack.c.l.b16 %v33
  %v70 = vunpack.c.h.b16 %v33
  %v71 = vunpack.c.l.b16 %v34
  %v72 = vunpack.c.h.b16 %v34
  %v73 = vunpack.c.l.b16 %v35
  %v74 = vunpack.c.h.b16 %v35
  %v75 = vunpack.c.l.b16 %v36
  %v76 = vunpack.c.h.b16 %v36
  %v77 = vunpack.c.l.b16 %v37
  %v78 = vunpack.c.h.b16 %v37
  %v79 = vunpack.c.l.b16 %v38
  %v80 = vunpack.c.h.b16 %v38
  %v81 = vunpack.c.l.b16 %v39
  %v82 = vunpack.c.h.b16 %v39
  %v83 = vunpack.c.l.b16 %v40
  %v84 = vunpack.c.h.b16 %v40
  %v85 = vunpack.c.l.b16 %v41
  %v86 = vunpack.c.h.b16 %v41
  %v87 = vunpack.c.l.b16 %v42
  %v88 = vunpack.c.h.b16 %v42
  %v89 = vunpack.c.l.b16 %v43
  %v90 = vunpack.c.h.b16 %v43
  %v91 = vunpack.c.l.b16 %v44
  %v92 = vunpack.c.h.b16 %v44
  %v93 = vpack.c.b16 %v63, %v61
  %v94 = vpack.c.b16 %v64, %v62
  %v95 = vpack.c.b16 %v67, %v65
  %v96 = vpack.c.b16 %v68, %v66
  %v97 = vpack.c.b16 %v71, %v69
  %v98 = vpack.c.b16 %v72, %v70
  %v99 = vpack.c.b16 %v75, %v73
  %v100 = vpack.c.b16 %v76, %v74
  %v101 = vpack.c.b16 %v79, %v77
  %v102 = vpack.c.b16 %v80, %v78
  %v103 = vpack.c.b16 %v83, %v81
  %v104 = vpack.c.b16 %v84, %v82
  %v105 = vpack.c.b16 %v87, %v85
  %v106 = vpack.c.b16 %v88, %v86
  %v107 = vpack.c.b16 %v91, %v89
  %v108 = vpack.c.b16 %v92, %v90
  %125 = vmatpush.bf16.msra.mxu0 %v107
  %126 = vmatpush.bf16.msra.mxu0 %v105
  %127 = vmatpush.bf16.msra.mxu0 %v103
  %128 = vmatpush.bf16.msra.mxu0 %v101
  %129 = vmatpush.bf16.msra.mxu0 %v99
  %130 = vmatpush.bf16.msra.mxu0 %v97
  %131 = vmatpush.bf16.msra.mxu0 %v95
  %132 = vmatpush.bf16.msra.mxu0 %v93
  %133 = vmatmul.bf16.gmra.mxu0 %v28
  %v134 = vpop.f32.mrf.mxu0
  %v135 = vadd.f32 0.0, %v134
  %v136 = vpop.f32.mrf.mxu0
  %137 = vdwg.mxu0
  %138 = vmatpush.bf16.msra.mxu0 %v108
  %139 = vmatpush.bf16.msra.mxu0 %v106
  %140 = vmatpush.bf16.msra.mxu0 %v104
  %141 = vmatpush.bf16.msra.mxu0 %v102
  %142 = vmatpush.bf16.msra.mxu0 %v100
  %143 = vmatpush.bf16.msra.mxu0 %v98
  %144 = vmatpush.bf16.msra.mxu0 %v96
  %145 = vmatpush.bf16.msra.mxu0 %v94
  %146 = vmatmul.bf16.gmra.mxu0 %v28
  %v147 = vpop.f32.mrf.mxu0
  %v148 = vadd.f32 0.0, %v147
  %v149 = vpop.f32.mrf.mxu0
  %150 = vdwg.mxu0
  %v151 = vadd.f32 %v26, %v135
  %v152 = vadd.f32 %v27, %v148
  %153 = vst [vmem:[#allocation2] sm:$0xff] %v151
  %154 = vst [vmem:[#allocation2 + $0x8] sm:$0xff] %v152
  // Predicated region
  $region26: #{_lambda_.40} parent=0 // pred_check
    %p155 = pneg %p20
  $region27: #{_lambda_.40} parent=0 // pred_check_branch
    %157 = sbr.rel (%p155) target = $region29
  $region28: #{_lambda_.40} parent=0 // pred_region
    %v158 = vld [vmem:[#allocation2] sm:$0xff]
    %v159 = vld [vmem:[#allocation2 + $0x8] sm:$0xff]
    %v160 = vld [vmem:[%s2] sm:$0x3]
    %v162 = vperm.slane %v160, 0
    %v163 = vperm.slane %v160, 1
    %v166 = vmul.f32 %v158, %v162
    %v167 = vmul.f32 %v159, %v163
    %v168 = vld [vmem:[%s3] sm:$0x3]
    %v170 = vperm.slane %v168, 0
    %v171 = vperm.slane %v168, 1
    %v174 = vadd.f32 %v166, %v170
    %v175 = vadd.f32 %v167, %v171
    %v176 = vld [vmem:[%s4] sm:$0xff]
    %v177 = vunpack.c.l.bf16 %v176
    %v178 = vunpack.c.h.bf16 %v176
    %v179 = vadd.f32 %v174, %v177
    %v180 = vadd.f32 %v175, %v178
    %v181 = vmax.f32 %v179, 0.0
    %v182 = vmax.f32 %v180, 0.0
    %v183 = vpack.c.bf16 %v182, %v181
    %184 = vst [vmem:[%s5] sm:$0xff] %v183
  $region29: #{_lambda_.40} parent=0 // pred_fallthru
    _
  // Predicated region
  $region30: #{_lambda_.40} parent=0 // pred_check
    _
  $region31: #{_lambda_.40} parent=0 // pred_check_branch
    %186 = sbr.rel (0) target = $region33
  $region32: #{_lambda_.40} parent=0 // pred_region
    _
  $region33: #{_lambda_.40} parent=0 // pred_fallthru
    _
  // Predicated region
  $region34: #{_lambda_.40} parent=0 // pred_check
    _
  $region35: #{_lambda_.40} parent=0 // pred_check_branch
    %188 = sbr.rel (0) target = $region37
  $region36: #{_lambda_.40} parent=0 // pred_region
    _
  $region37: #{_lambda_.40} parent=0 // pred_fallthru
    _

// kernel: _lambda_.38
$region0: #{_lambda_.38}
  #allocation0 [shape = 'u32[]', space=smem, size = 0x4, offset = 0x4, fixed_abs, tag = 'smem constant byte address 0x4 - core index']
  #allocation1 [shape = 'u32[72,128]{1,0:T(1,128)}', space=vmem, size = 0x9000, scoped, tag = 'internal scratch']
  #allocation2 [shape = 'f32[8,128]{1,0:T(8,128)}', space=vmem, size = 0x1000, scoped, tag = 'scratch operand']
  %s0 = inlined_call_operand.vmem [shape: bf16[8,1024], index: 0, kind: input, shape index: {}]
  %s1 = inlined_call_operand.vmem [shape: bf16[1024,128], index: 1, kind: input, shape index: {}]
  %s2 = inlined_call_operand.vmem [shape: f32[1,128], index: 2, kind: input, shape index: {}]
  %s3 = inlined_call_operand.vmem [shape: f32[1,128], index: 3, kind: input, shape index: {}]
  %s4 = inlined_call_operand.vmem [shape: bf16[8,128], index: 4, kind: output, shape index: {}]
  %s5 = sld [smem:[#allocation0]]
  $region57: #{_lambda_.38} parent=0
    _
  %s7 = ssub.s32 1, %s5
  %s8 = scalar_select 0, %s7, %s5
  loop: start=0, step=1, limit=4
  $region2: #{_lambda_.38} parent=0 // loop_pre_header
    _
  $region3: #{_lambda_.38} parent=0 // loop_header
    %s10 = sphi 0, %s14
    %p11 = scmp.ge.s32.totalorder %s10, 4
    %s17 = sphi 0, %s36
    %s18 = sphi 0, %s32
    %s19 = sphi 0, %s28
    %s20 = sphi 0, %s17
    %s21 = sphi 0, %s18
    %s22 = sphi 0, %s19
    %s23 = sphi 0, %s20
    %s24 = sphi 0, %s21
    %s25 = sphi 0, %s22
    %s41 = sphi 0, %s43
    %s44 = sphi 0, %s41
    %s45 = sphi 0, %s44
    %s61 = sphi 0, %s45
    %s69 = sphi 0, %s71
    %s72 = sphi 0, %s69
    %s73 = sphi 0, %s72
    %s89 = sphi 0, %s73
    %s95 = sphi 0, %s97
    %s98 = sphi 0, %s95
    %s99 = sphi 0, %s98
    %s115 = sphi 0, %s99
    %s121 = sphi 0, %s123
    %s124 = sphi 0, %s121
    %s125 = sphi 0, %s124
    %s141 = sphi 0, %s125
    %s149 = sphi 0, %s151
    %s152 = sphi 0, %s149
    %s153 = sphi 0, %s152
    %s169 = sphi 0, %s153
  $region4: #{_lambda_.38} parent=0 // loop_header_branch
    %13 = sbr.rel (%p11) target = $region8
  $region5: #{_lambda_.38} parent=0 // loop_body
    %s15 = ssub.s32 %s10, 1
    %s16 = ssub.s32 %s10, 2
    %s26 = sadd.s32 1, %s19
    %p27 = scmp.ge.s32.totalorder %s26, 2
    %s28 = scalar_select %p27, 0, %s26
    %s29 = sadd.s32 1, %s18
    %s30 = scalar_select %p27, %s29, %s18
    %p31 = scmp.ge.s32.totalorder %s30, 1
    %s32 = scalar_select %p31, 0, %s30
    %s33 = sadd.s32 1, %s17
    %s34 = scalar_select %p31, %s33, %s17
    %p35 = scmp.ge.s32.totalorder %s34, 1
    %s36 = scalar_select %p35, 0, %s34
    %s37 = ssub.s32 %s17, %s36
    %s38 = ssub.s32 %s19, %s28
    %s39 = sor.u32 %s37, %s38
    %p40 = scmp.eq.s32.totalorder %s39, 0
    %s42 = sadd.s32 %s41, 1
    %s43 = scalar_select %p40, %s41, %s42
    %p46 = pneg %p40
    %p47 = scmp.eq.s32.totalorder %s10, 1
    %p48 = por %p46, %p47
    %p49 = scmp.ne.s32.totalorder %s41, %s44
    %p50 = scmp.eq.s32.totalorder %s10, 0
    %p51 = por %p49, %p50
    %p52 = scmp.ne.s32.totalorder %s41, %s44
    %p53 = scmp.eq.s32.totalorder %s15, 1
    %p54 = por %p52, %p53
    %p55 = scmp.ne.s32.totalorder %s44, %s45
    %p56 = scmp.eq.s32.totalorder %s15, 0
    %p57 = por %p55, %p56
    %p58 = scmp.ne.s32.totalorder %s44, %s45
    %p59 = scmp.eq.s32.totalorder %s16, 1
    %p60 = por %p58, %p59
    %p62 = scmp.ne.s32.totalorder %s45, %s61
    %p63 = scmp.eq.s32.totalorder %s16, 0
    %p64 = por %p62, %p63
    %s65 = ssub.s32 %s19, %s28
    %s66 = ssub.s32 %s18, %s32
    %s67 = sor.u32 %s65, %s66
    %p68 = scmp.eq.s32.totalorder %s67, 0
    %s70 = sadd.s32 %s69, 1
    %s71 = scalar_select %p68, %s69, %s70
    %p74 = pneg %p68
    %p75 = scmp.eq.s32.totalorder %s10, 1
    %p76 = por %p74, %p75
    %p77 = scmp.ne.s32.totalorder %s69, %s72
    %p78 = scmp.eq.s32.totalorder %s10, 0
    %p79 = por %p77, %p78
    %p80 = scmp.ne.s32.totalorder %s69, %s72
    %p81 = scmp.eq.s32.totalorder %s15, 1
    %p82 = por %p80, %p81
    %p83 = scmp.ne.s32.totalorder %s72, %s73
    %p84 = scmp.eq.s32.totalorder %s15, 0
    %p85 = por %p83, %p84
    %p86 = scmp.ne.s32.totalorder %s72, %s73
    %p87 = scmp.eq.s32.totalorder %s16, 1
    %p88 = por %p86, %p87
    %p90 = scmp.ne.s32.totalorder %s73, %s89
    %p91 = scmp.eq.s32.totalorder %s16, 0
    %p92 = por %p90, %p91
    %s93 = ssub.s32 %s18, %s32
    %p94 = scmp.eq.s32.totalorder %s93, 0
    %s96 = sadd.s32 %s95, 1
    %s97 = scalar_select %p94, %s95, %s96
    %p100 = pneg %p94
    %p101 = scmp.eq.s32.totalorder %s10, 1
    %p102 = por %p100, %p101
    %p103 = scmp.ne.s32.totalorder %s95, %s98
    %p104 = scmp.eq.s32.totalorder %s10, 0
    %p105 = por %p103, %p104
    %p106 = scmp.ne.s32.totalorder %s95, %s98
    %p107 = scmp.eq.s32.totalorder %s15, 1
    %p108 = por %p106, %p107
    %p109 = scmp.ne.s32.totalorder %s98, %s99
    %p110 = scmp.eq.s32.totalorder %s15, 0
    %p111 = por %p109, %p110
    %p112 = scmp.ne.s32.totalorder %s98, %s99
    %p113 = scmp.eq.s32.totalorder %s16, 1
    %p114 = por %p112, %p113
    %p116 = scmp.ne.s32.totalorder %s99, %s115
    %p117 = scmp.eq.s32.totalorder %s16, 0
    %p118 = por %p116, %p117
    %s119 = ssub.s32 %s18, %s32
    %p120 = scmp.eq.s32.totalorder %s119, 0
    %s122 = sadd.s32 %s121, 1
    %s123 = scalar_select %p120, %s121, %s122
    %p126 = pneg %p120
    %p127 = scmp.eq.s32.totalorder %s10, 1
    %p128 = por %p126, %p127
    %p129 = scmp.ne.s32.totalorder %s121, %s124
    %p130 = scmp.eq.s32.totalorder %s10, 0
    %p131 = por %p129, %p130
    %p132 = scmp.ne.s32.totalorder %s121, %s124
    %p133 = scmp.eq.s32.totalorder %s15, 1
    %p134 = por %p132, %p133
    %p135 = scmp.ne.s32.totalorder %s124, %s125
    %p136 = scmp.eq.s32.totalorder %s15, 0
    %p137 = por %p135, %p136
    %p138 = scmp.ne.s32.totalorder %s124, %s125
    %p139 = scmp.eq.s32.totalorder %s16, 1
    %p140 = por %p138, %p139
    %p142 = scmp.ne.s32.totalorder %s125, %s141
    %p143 = scmp.eq.s32.totalorder %s16, 0
    %p144 = por %p142, %p143
    %s145 = ssub.s32 %s17, %s36
    %s146 = ssub.s32 %s18, %s32
    %s147 = sor.u32 %s145, %s146
    %p148 = scmp.eq.s32.totalorder %s147, 0
    %s150 = sadd.s32 %s149, 1
    %s151 = scalar_select %p148, %s149, %s150
    %p154 = pneg %p148
    %p155 = scmp.eq.s32.totalorder %s10, 1
    %p156 = por %p154, %p155
    %p157 = scmp.ne.s32.totalorder %s149, %s152
    %p158 = scmp.eq.s32.totalorder %s10, 0
    %p159 = por %p157, %p158
    %p160 = scmp.ne.s32.totalorder %s149, %s152
    %p161 = scmp.eq.s32.totalorder %s15, 1
    %p162 = por %p160, %p161
    %p163 = scmp.ne.s32.totalorder %s152, %s153
    %p164 = scmp.eq.s32.totalorder %s15, 0
    %p165 = por %p163, %p164
    %p166 = scmp.ne.s32.totalorder %s152, %s153
    %p167 = scmp.eq.s32.totalorder %s16, 1
    %p168 = por %p166, %p167
    %p170 = scmp.ne.s32.totalorder %s153, %s169
    %p171 = scmp.eq.s32.totalorder %s16, 0
    %p172 = por %p170, %p171
    %p173 = scmp.le.s32.totalorder 1, %s10
    %p174 = scmp.lt.s32.totalorder %s10, 3
    %p175 = pnand %p173, %p174
    %p176 = pneg %p175
    // Predicated region
    $region9: #{_lambda_.38} parent=5 // pred_check
      _
    $region10: #{_lambda_.38} parent=5 // pred_check_branch
      %178 = sbr.rel (%p175) target = $region12
    $region11: #{_lambda_.38} parent=5 // pred_region
      %s179 = ssub.s32 %s10, 1
      // Predicated region
      $region13: #{_lambda_.38} parent=11 // pred_check
        %p180 = pneg %p111
      $region14: #{_lambda_.38} parent=11 // pred_check_branch
        %182 = sbr.rel (%p180) target = $region16
      $region15: #{_lambda_.38} parent=11 // pred_region
        %p183 = scmp.lt.s32.totalorder %s21, 0
        %s184 = scalar_select %p183, %s21, 0
        %s185 = scalar_lea.vmem %s2, %s184
      $region16: #{_lambda_.38} parent=11 // pred_fallthru
        _
      // Predicated region
      $region17: #{_lambda_.38} parent=11 // pred_check
        %p186 = pneg %p137
      $region18: #{_lambda_.38} parent=11 // pred_check_branch
        %188 = sbr.rel (%p186) target = $region20
      $region19: #{_lambda_.38} parent=11 // pred_region
        %p189 = scmp.lt.s32.totalorder %s21, 0
        %s190 = scalar_select %p189, %s21, 0
        %s191 = scalar_lea.vmem %s3, %s190
      $region20: #{_lambda_.38} parent=11 // pred_fallthru
        _
    $region12: #{_lambda_.38} parent=5 // pred_fallthru
      _
    %p192 = scmp.lt.s32.totalorder %s10, 2
    // Predicated region
    $region21: #{_lambda_.38} parent=5 // pred_check
      %p193 = pneg %p192
    $region22: #{_lambda_.38} parent=5 // pred_check_branch
      %195 = sbr.rel (%p193) target = $region24
    $region23: #{_lambda_.38} parent=5 // pred_region
      // Predicated region
      $region25: #{_lambda_.38} parent=23 // pred_check
        %p196 = pneg %p51
      $region26: #{_lambda_.38} parent=23 // pred_check_branch
        %198 = sbr.rel (%p196) target = $region28
      $region27: #{_lambda_.38} parent=23 // pred_region
        %s199 = smul.u32 4, %s19
        %p200 = scmp.lt.s32.totalorder %s17, 0
        %s201 = scalar_select %p200, %s17, 0
        %p202 = scmp.lt.s32.totalorder %s199, 7
        %s203 = scalar_select %p202, %s199, 7
        %s204 = smul.addr %s201, 8
        %s205 = sadd.s32 %s203, %s204
        %s206 = smul.addr %s205, 4
        %s207 = scalar_lea.vmem %s0, %s206
        %s208 = smul.u32 4, %s19
      $region28: #{_lambda_.38} parent=23 // pred_fallthru
        _
      // Predicated region
      $region29: #{_lambda_.38} parent=23 // pred_check
        %p209 = pneg %p79
      $region30: #{_lambda_.38} parent=23 // pred_check_branch
        %211 = sbr.rel (%p209) target = $region32
      $region31: #{_lambda_.38} parent=23 // pred_region
        %s212 = smul.u32 64, %s19
        %p213 = scmp.lt.s32.totalorder %s212, 127
        %s214 = scalar_select %p213, %s212, 127
        %p215 = scmp.lt.s32.totalorder %s18, 0
        %s216 = scalar_select %p215, %s18, 0
        %s217 = sadd.s32 %s216, %s214
        %s218 = smul.addr %s217, 4
        %s219 = scalar_lea.vmem %s1, %s218
        %s220 = smul.u32 64, %s19
      $region32: #{_lambda_.38} parent=23 // pred_fallthru
        _
    $region24: #{_lambda_.38} parent=5 // pred_fallthru
      _
    %p221 = scmp.le.s32.totalorder 1, %s10
    %p222 = scmp.lt.s32.totalorder %s10, 3
    %p223 = pnand %p221, %p222
    %p224 = pneg %p223
    // Predicated region
    $region33: #{_lambda_.38} parent=5 // pred_check
      _
    $region34: #{_lambda_.38} parent=5 // pred_check_branch
      %226 = sbr.rel (%p223) target = $region36
    $region35: #{_lambda_.38} parent=5 // pred_region
      %s227 = ssub.s32 %s10, 1
      %s228 = smul.u32 4, %s22
      %p229 = scmp.lt.s32.totalorder %s20, 0
      %s230 = scalar_select %p229, %s20, 0
      %p231 = scmp.lt.s32.totalorder %s228, 7
      %s232 = scalar_select %p231, %s228, 7
      %s233 = smul.addr %s230, 8
      %s234 = sadd.s32 %s232, %s233
      %s235 = smul.addr %s234, 4
      %s236 = scalar_lea.vmem %s0, %s235
      %p237 = pneg %p57
      %p238 = pneg %p54
      %s239 = smul.u32 64, %s22
      %p240 = scmp.lt.s32.totalorder %s239, 127
      %s241 = scalar_select %p240, %s239, 127
      %p242 = scmp.lt.s32.totalorder %s21, 0
      %s243 = scalar_select %p242, %s21, 0
      %s244 = sadd.s32 %s243, %s241
      %s245 = smul.addr %s244, 4
      %s246 = scalar_lea.vmem %s1, %s245
      %p247 = pneg %p85
      %p248 = pneg %p82
      %p249 = scmp.lt.s32.totalorder %s21, 0
      %s250 = scalar_select %p249, %s21, 0
      %s251 = scalar_lea.vmem %s2, %s250
      %p252 = pneg %p111
      %p253 = pneg %p108
      %p254 = scmp.lt.s32.totalorder %s21, 0
      %s255 = scalar_select %p254, %s21, 0
      %s256 = scalar_lea.vmem %s3, %s255
      %p257 = pneg %p137
      %p258 = pneg %p134
      %p259 = pneg %p165
      %p260 = pneg %p162
      %p261 = scmp.lt.s32.totalorder %s20, 0
      %s262 = scalar_select %p261, %s20, 0
      %p263 = scmp.lt.s32.totalorder %s21, 0
      %s264 = scalar_select %p263, %s21, 0
      %s265 = sadd.s32 %s264, %s262
      %s266 = smul.addr %s265, 4
      %s267 = scalar_lea.vmem %s4, %s266
      %s268 = smul.u32 4, %s22
      %p269 = scmp.lt.s32.totalorder %s20, 0
      %s270 = scalar_select %p269, %s20, 0
      %p271 = scmp.lt.s32.totalorder %s268, 7
      %s272 = scalar_select %p271, %s268, 7
      %s273 = smul.addr %s270, 8
      %s274 = sadd.s32 %s272, %s273
      %s275 = smul.addr %s274, 4
      %s276 = scalar_lea.vmem %s0, %s275
      %s277 = smul.u32 4, %s22
      %s278 = smul.u32 64, %s22
      %p279 = scmp.lt.s32.totalorder %s278, 127
      %s280 = scalar_select %p279, %s278, 127
      %p281 = scmp.lt.s32.totalorder %s21, 0
      %s282 = scalar_select %p281, %s21, 0
      %s283 = sadd.s32 %s282, %s280
      %s284 = smul.addr %s283, 4
      %s285 = scalar_lea.vmem %s1, %s284
      %s286 = smul.u32 64, %s22
      %p287 = scmp.lt.s32.totalorder %s21, 0
      %s288 = scalar_select %p287, %s21, 0
      %s289 = scalar_lea.vmem %s2, %s288
      %p290 = scmp.lt.s32.totalorder %s21, 0
      %s291 = scalar_select %p290, %s21, 0
      %s292 = scalar_lea.vmem %s3, %s291
      %p293 = scmp.lt.s32.totalorder %s20, 0
      %s294 = scalar_select %p293, %s20, 0
      %p295 = scmp.lt.s32.totalorder %s21, 0
      %s296 = scalar_select %p295, %s21, 0
      %s297 = sadd.s32 %s296, %s294
      %s298 = smul.addr %s297, 4
      %s299 = scalar_lea.vmem %s4, %s298
      %p300 = scmp.eq.s32.totalorder %s22, 0
      // Predicated region
      $region37: #{_lambda_.38} parent=35 // pred_check
        %p301 = pneg %p300
      $region38: #{_lambda_.38} parent=35 // pred_check_branch
        %303 = sbr.rel (%p301) target = $region40
      $region39: #{_lambda_.38} parent=35 // pred_region
        %304 = vst [vmem:[#allocation2] sm:$0xff] 0.0
      $region40: #{_lambda_.38} parent=35 // pred_fallthru
        _
      %v305 = vld [vmem:[#allocation2] sm:$0xff]
      %v306 = vld [vmem:[%s276] sm:$0xff]
      %v307 = vld [vmem:[%s276 + $0x8] sm:$0xff]
      %v308 = vld [vmem:[%s285] sm:$0xf]
      %v309 = vld [vmem:[%s285 + $0x4] sm:$0xf]
      %v310 = vld [vmem:[%s285 + $0x8] sm:$0xf]
      %v311 = vld [vmem:[%s285 + $0xc] sm:$0xf]
      %v312 = vld [vmem:[%s285 + $0x10] sm:$0xf]
      %v313 = vld [vmem:[%s285 + $0x14] sm:$0xf]
      %v314 = vld [vmem:[%s285 + $0x18] sm:$0xf]
      %v315 = vld [vmem:[%s285 + $0x1c] sm:$0xf]
      %v316 = vld [vmem:[%s285 + $0x20] sm:$0xf]
      %v317 = vld [vmem:[%s285 + $0x24] sm:$0xf]
      %v318 = vld [vmem:[%s285 + $0x28] sm:$0xf]
      %v319 = vld [vmem:[%s285 + $0x2c] sm:$0xf]
      %v320 = vld [vmem:[%s285 + $0x30] sm:$0xf]
      %v321 = vld [vmem:[%s285 + $0x34] sm:$0xf]
      %v322 = vld [vmem:[%s285 + $0x38] sm:$0xf]
      %v323 = vld [vmem:[%s285 + $0x3c] sm:$0xf]
      %v324 = vld [vmem:[%s285 + $0x40] sm:$0xf]
      %v325 = vld [vmem:[%s285 + $0x44] sm:$0xf]
      %v326 = vld [vmem:[%s285 + $0x48] sm:$0xf]
      %v327 = vld [vmem:[%s285 + $0x4c] sm:$0xf]
      %v328 = vld [vmem:[%s285 + $0x50] sm:$0xf]
      %v329 = vld [vmem:[%s285 + $0x54] sm:$0xf]
      %v330 = vld [vmem:[%s285 + $0x58] sm:$0xf]
      %v331 = vld [vmem:[%s285 + $0x5c] sm:$0xf]
      %v332 = vld [vmem:[%s285 + $0x60] sm:$0xf]
      %v333 = vld [vmem:[%s285 + $0x64] sm:$0xf]
      %v334 = vld [vmem:[%s285 + $0x68] sm:$0xf]
      %v335 = vld [vmem:[%s285 + $0x6c] sm:$0xf]
      %v336 = vld [vmem:[%s285 + $0x70] sm:$0xf]
      %v337 = vld [vmem:[%s285 + $0x74] sm:$0xf]
      %v338 = vld [vmem:[%s285 + $0x78] sm:$0xf]
      %v339 = vld [vmem:[%s285 + $0x7c] sm:$0xf]
      %v340 = vld [vmem:[%s285 + $0x80] sm:$0xf]
      %v341 = vld [vmem:[%s285 + $0x84] sm:$0xf]
      %v342 = vld [vmem:[%s285 + $0x88] sm:$0xf]
      %v343 = vld [vmem:[%s285 + $0x8c] sm:$0xf]
      %v344 = vld [vmem:[%s285 + $0x90] sm:$0xf]
      %v345 = vld [vmem:[%s285 + $0x94] sm:$0xf]
      %v346 = vld [vmem:[%s285 + $0x98] sm:$0xf]
      %v347 = vld [vmem:[%s285 + $0x9c] sm:$0xf]
      %v348 = vld [vmem:[%s285 + $0xa0] sm:$0xf]
      %v349 = vld [vmem:[%s285 + $0xa4] sm:$0xf]
      %v350 = vld [vmem:[%s285 + $0xa8] sm:$0xf]
      %v351 = vld [vmem:[%s285 + $0xac] sm:$0xf]
      %v352 = vld [vmem:[%s285 + $0xb0] sm:$0xf]
      %v353 = vld [vmem:[%s285 + $0xb4] sm:$0xf]
      %v354 = vld [vmem:[%s285 + $0xb8] sm:$0xf]
      %v355 = vld [vmem:[%s285 + $0xbc] sm:$0xf]
      %v356 = vld [vmem:[%s285 + $0xc0] sm:$0xf]
      %v357 = vld [vmem:[%s285 + $0xc4] sm:$0xf]
      %v358 = vld [vmem:[%s285 + $0xc8] sm:$0xf]
      %v359 = vld [vmem:[%s285 + $0xcc] sm:$0xf]
      %v360 = vld [vmem:[%s285 + $0xd0] sm:$0xf]
      %v361 = vld [vmem:[%s285 + $0xd4] sm:$0xf]
      %v362 = vld [vmem:[%s285 + $0xd8] sm:$0xf]
      %v363 = vld [vmem:[%s285 + $0xdc] sm:$0xf]
      %v364 = vld [vmem:[%s285 + $0xe0] sm:$0xf]
      %v365 = vld [vmem:[%s285 + $0xe4] sm:$0xf]
      %v366 = vld [vmem:[%s285 + $0xe8] sm:$0xf]
      %v367 = vld [vmem:[%s285 + $0xec] sm:$0xf]
      %v368 = vld [vmem:[%s285 + $0xf0] sm:$0xf]
      %v369 = vld [vmem:[%s285 + $0xf4] sm:$0xf]
      %v370 = vld [vmem:[%s285 + $0xf8] sm:$0xf]
      %v371 = vld [vmem:[%s285 + $0xfc] sm:$0xf]
      %v374 = vunpack.c.l.b16 %v306
      %v375 = vunpack.c.h.b16 %v306
      %v376 = vunpack.c.l.b16 %v307
      %v377 = vunpack.c.h.b16 %v307
      %v378 = vpack.c.b16 %v374, %v374
      %v379 = vpack.c.b16 %v375, %v375
      %v380 = vpack.c.b16 %v376, %v376
      %v381 = vpack.c.b16 %v377, %v377
      %v450 = vunpack.c.l.b16 %v308
      %v451 = vunpack.c.l.b16 %v309
      %v452 = vunpack.c.l.b16 %v310
      %v453 = vunpack.c.l.b16 %v311
      %v454 = vunpack.c.l.b16 %v312
      %v455 = vunpack.c.l.b16 %v313
      %v456 = vunpack.c.l.b16 %v314
      %v457 = vunpack.c.l.b16 %v315
      %v458 = vunpack.c.l.b16 %v316
      %v459 = vunpack.c.l.b16 %v317
      %v460 = vunpack.c.l.b16 %v318
      %v461 = vunpack.c.l.b16 %v319
      %v462 = vunpack.c.l.b16 %v320
      %v463 = vunpack.c.l.b16 %v321
      %v464 = vunpack.c.l.b16 %v322
      %v465 = vunpack.c.l.b16 %v323
      %v466 = vunpack.c.l.b16 %v324
      %v467 = vunpack.c.l.b16 %v325
      %v468 = vunpack.c.l.b16 %v326
      %v469 = vunpack.c.l.b16 %v327
      %v470 = vunpack.c.l.b16 %v328
      %v471 = vunpack.c.l.b16 %v329
      %v472 = vunpack.c.l.b16 %v330
      %v473 = vunpack.c.l.b16 %v331
      %v474 = vunpack.c.l.b16 %v332
      %v475 = vunpack.c.l.b16 %v333
      %v476 = vunpack.c.l.b16 %v334
      %v477 = vunpack.c.l.b16 %v335
      %v478 = vunpack.c.l.b16 %v336
      %v479 = vunpack.c.l.b16 %v337
      %v480 = vunpack.c.l.b16 %v338
      %v481 = vunpack.c.l.b16 %v339
      %v482 = vunpack.c.l.b16 %v340
      %v483 = vunpack.c.l.b16 %v341
      %v484 = vunpack.c.l.b16 %v342
      %v485 = vunpack.c.l.b16 %v343
      %v486 = vunpack.c.l.b16 %v344
      %v487 = vunpack.c.l.b16 %v345
      %v488 = vunpack.c.l.b16 %v346
      %v489 = vunpack.c.l.b16 %v347
      %v490 = vunpack.c.l.b16 %v348
      %v491 = vunpack.c.l.b16 %v349
      %v492 = vunpack.c.l.b16 %v350
      %v493 = vunpack.c.l.b16 %v351
      %v494 = vunpack.c.l.b16 %v352
      %v495 = vunpack.c.l.b16 %v353
      %v496 = vunpack.c.l.b16 %v354
      %v497 = vunpack.c.l.b16 %v355
      %v498 = vunpack.c.l.b16 %v356
      %v499 = vunpack.c.l.b16 %v357
      %v500 = vunpack.c.l.b16 %v358
      %v501 = vunpack.c.l.b16 %v359
      %v502 = vunpack.c.l.b16 %v360
      %v503 = vunpack.c.l.b16 %v361
      %v504 = vunpack.c.l.b16 %v362
      %v505 = vunpack.c.l.b16 %v363
      %v506 = vunpack.c.l.b16 %v364
      %v507 = vunpack.c.l.b16 %v365
      %v508 = vunpack.c.l.b16 %v366
      %v509 = vunpack.c.l.b16 %v367
      %v510 = vunpack.c.l.b16 %v368
      %v511 = vunpack.c.l.b16 %v369
      %v512 = vunpack.c.l.b16 %v370
      %v513 = vunpack.c.l.b16 %v371
      %v514 = vpack.c.b16 %v451, %v450
      %v515 = vpack.c.b16 %v453, %v452
      %v516 = vpack.c.b16 %v455, %v454
      %v517 = vpack.c.b16 %v457, %v456
      %v518 = vpack.c.b16 %v459, %v458
      %v519 = vpack.c.b16 %v461, %v460
      %v520 = vpack.c.b16 %v463, %v462
      %v521 = vpack.c.b16 %v465, %v464
      %v522 = vpack.c.b16 %v467, %v466
      %v523 = vpack.c.b16 %v469, %v468
      %v524 = vpack.c.b16 %v471, %v470
      %v525 = vpack.c.b16 %v473, %v472
      %v526 = vpack.c.b16 %v475, %v474
      %v527 = vpack.c.b16 %v477, %v476
      %v528 = vpack.c.b16 %v479, %v478
      %v529 = vpack.c.b16 %v481, %v480
      %v530 = vpack.c.b16 %v483, %v482
      %v531 = vpack.c.b16 %v485, %v484
      %v532 = vpack.c.b16 %v487, %v486
      %v533 = vpack.c.b16 %v489, %v488
      %v534 = vpack.c.b16 %v491, %v490
      %v535 = vpack.c.b16 %v493, %v492
      %v536 = vpack.c.b16 %v495, %v494
      %v537 = vpack.c.b16 %v497, %v496
      %v538 = vpack.c.b16 %v499, %v498
      %v539 = vpack.c.b16 %v501, %v500
      %v540 = vpack.c.b16 %v503, %v502
      %v541 = vpack.c.b16 %v505, %v504
      %v542 = vpack.c.b16 %v507, %v506
      %v543 = vpack.c.b16 %v509, %v508
      %v544 = vpack.c.b16 %v511, %v510
      %v545 = vpack.c.b16 %v513, %v512
      %578 = vmatpush.bf16.msra.mxu0 %v521
      %579 = vmatpush.bf16.msra.mxu0 %v520
      %580 = vmatpush.bf16.msra.mxu0 %v519
      %581 = vmatpush.bf16.msra.mxu0 %v518
      %582 = vmatpush.bf16.msra.mxu0 %v517
      %583 = vmatpush.bf16.msra.mxu0 %v516
      %584 = vmatpush.bf16.msra.mxu0 %v515
      %585 = vmatpush.bf16.msra.mxu0 %v514
      %586 = vmatmul.bf16.gmra.mxu0 %v378
      %v587 = vpop.f32.mrf.mxu0
      %v588 = vadd.f32 0.0, %v587
      %v589 = vpop.f32.mrf.mxu0
      %590 = vdwg.mxu0
      %591 = vmatpush.bf16.msra.mxu0 %v529
      %592 = vmatpush.bf16.msra.mxu0 %v528
      %593 = vmatpush.bf16.msra.mxu0 %v527
      %594 = vmatpush.bf16.msra.mxu0 %v526
      %595 = vmatpush.bf16.msra.mxu0 %v525
      %596 = vmatpush.bf16.msra.mxu0 %v524
      %597 = vmatpush.bf16.msra.mxu0 %v523
      %598 = vmatpush.bf16.msra.mxu0 %v522
      %599 = vmatmul.bf16.gmra.mxu0 %v379
      %v600 = vpop.f32.mrf.mxu0
      %v601 = vadd.f32 %v588, %v600
      %v602 = vpop.f32.mrf.mxu0
      %603 = vdwg.mxu0
      %604 = vmatpush.bf16.msra.mxu0 %v537
      %605 = vmatpush.bf16.msra.mxu0 %v536
      %606 = vmatpush.bf16.msra.mxu0 %v535
      %607 = vmatpush.bf16.msra.mxu0 %v534
      %608 = vmatpush.bf16.msra.mxu0 %v533
      %609 = vmatpush.bf16.msra.mxu0 %v532
      %610 = vmatpush.bf16.msra.mxu0 %v531
      %611 = vmatpush.bf16.msra.mxu0 %v530
      %612 = vmatmul.bf16.gmra.mxu0 %v380
      %v613 = vpop.f32.mrf.mxu0
      %v614 = vadd.f32 %v601, %v613
      %v615 = vpop.f32.mrf.mxu0
      %616 = vdwg.mxu0
      %617 = vmatpush.bf16.msra.mxu0 %v545
      %618 = vmatpush.bf16.msra.mxu0 %v544
      %619 = vmatpush.bf16.msra.mxu0 %v543
      %620 = vmatpush.bf16.msra.mxu0 %v542
      %621 = vmatpush.bf16.msra.mxu0 %v541
      %622 = vmatpush.bf16.msra.mxu0 %v540
      %623 = vmatpush.bf16.msra.mxu0 %v539
      %624 = vmatpush.bf16.msra.mxu0 %v538
      %625 = vmatmul.bf16.gmra.mxu0 %v381
      %v626 = vpop.f32.mrf.mxu0
      %v627 = vadd.f32 %v614, %v626
      %v628 = vpop.f32.mrf.mxu0
      %629 = vdwg.mxu0
      %v630 = vadd.f32 %v305, %v627
      %631 = vst [vmem:[#allocation2] sm:$0xff] %v630
      %p632 = scmp.eq.s32.totalorder %s22, 1
      // Predicated region
      $region41: #{_lambda_.38} parent=35 // pred_check
        %p633 = pneg %p632
      $region42: #{_lambda_.38} parent=35 // pred_check_branch
        %635 = sbr.rel (%p633) target = $region44
      $region43: #{_lambda_.38} parent=35 // pred_region
        %v636 = vld [vmem:[#allocation2] sm:$0xff]
        %v637 = vld [vmem:[%s289] sm:$0x1]
        %v639 = vperm.slane %v637, 0
        %v641 = vmul.f32 %v636, %v639
        %v642 = vld [vmem:[%s292] sm:$0x1]
        %v644 = vperm.slane %v642, 0
        %v646 = vadd.f32 %v641, %v644
        %v647 = vmax.f32 %v646, 0.0
        %v648 = vpack.c.bf16 %v647, %v647
        %649 = vst [vmem:[%s299] sm:$0xf] %v648
      $region44: #{_lambda_.38} parent=35 // pred_fallthru
        _
      %p650 = scmp.lt.s32.totalorder %s20, 0
      %s651 = scalar_select %p650, %s20, 0
      %p652 = scmp.lt.s32.totalorder %s21, 0
      %s653 = scalar_select %p652, %s21, 0
      %s654 = sadd.s32 %s653, %s651
      %s655 = smul.addr %s654, 4
      %s656 = scalar_lea.vmem %s4, %s655
      // Predicated region
      $region45: #{_lambda_.38} parent=35 // pred_check
        %p657 = pneg %p162
      $region46: #{_lambda_.38} parent=35 // pred_check_branch
        %659 = sbr.rel (%p657) target = $region48
      $region47: #{_lambda_.38} parent=35 // pred_region
        _
      $region48: #{_lambda_.38} parent=35 // pred_fallthru
        _
      // Predicated region
      $region49: #{_lambda_.38} parent=35 // pred_check
        %p660 = pneg %p162
      $region50: #{_lambda_.38} parent=35 // pred_check_branch
        %662 = sbr.rel (%p660) target = $region52
      $region51: #{_lambda_.38} parent=35 // pred_region
        %p663 = scmp.lt.s32.totalorder %s20, 0
        %s664 = scalar_select %p663, %s20, 0
        %p665 = scmp.lt.s32.totalorder %s21, 0
        %s666 = scalar_select %p665, %s21, 0
        %s667 = sadd.s32 %s666, %s664
        %s668 = smul.addr %s667, 4
        %s669 = scalar_lea.vmem %s4, %s668
      $region52: #{_lambda_.38} parent=35 // pred_fallthru
        _
    $region36: #{_lambda_.38} parent=5 // pred_fallthru
      _
    %p670 = scmp.le.s32.totalorder 2, %s10
    // Predicated region
    $region53: #{_lambda_.38} parent=5 // pred_check
      %p671 = pneg %p670
    $region54: #{_lambda_.38} parent=5 // pred_check_branch
      %673 = sbr.rel (%p671) target = $region56
    $region55: #{_lambda_.38} parent=5 // pred_region
      %s674 = ssub.s32 %s10, 2
    $region56: #{_lambda_.38} parent=5 // pred_fallthru
      _
  $region6: #{_lambda_.38} parent=0 // loop_footer
    %s14 = sadd.s32 1, %s10
  $region7: #{_lambda_.38} parent=0 // loop_footer_branch
    %9 = sbr.rel target = $region3
  $region8: #{_lambda_.38} parent=0 // loop_exit
    _

// kernel: _lambda_.41
$region0: #{_lambda_.41}
  #allocation0 [shape = 'u32[]', space=smem, size = 0x4, offset = 0x4, fixed_abs, tag = 'smem constant byte address 0x4 - core index']
  #allocation1 [shape = 'u32[72,128]{1,0:T(1,128)}', space=vmem, size = 0x9000, scoped, tag = 'internal scratch']
  #allocation2 [shape = 'f32[8,256]{1,0:T(8,128)}', space=vmem, size = 0x2000, scoped, tag = 'scratch operand']
  %s0 = inlined_call_operand.vmem [shape: bf16[8,256], index: 0, kind: input, shape index: {}]
  %s1 = inlined_call_operand.vmem [shape: bf16[256,768], index: 1, kind: input, shape index: {}]
  %s2 = inlined_call_operand.vmem [shape: f32[1,768], index: 2, kind: input, shape index: {}]
  %s3 = inlined_call_operand.vmem [shape: f32[1,768], index: 3, kind: input, shape index: {}]
  %s4 = inlined_call_operand.vmem [shape: bf16[8,768], index: 4, kind: output, shape index: {}]
  %s5 = sld [smem:[#allocation0]]
  $region95: #{_lambda_.41} parent=0
    _
  %s7 = ssub.s32 1, %s5
  %s8 = scalar_select 0, %s7, %s5
  $region1: #{_lambda_.41} parent=0
    #allocation3 [shape = 'u8[262144]{0}', space=vmem, size = 0x40000, scoped, tag = 'input window, operand 1']
    loop: start=0, step=1, limit=5
    $region2: #{_lambda_.41} parent=1 // loop_pre_header
      _
    $region3: #{_lambda_.41} parent=1 // loop_header
      %s10 = sphi 0, %s14
      %p11 = scmp.ge.s32.totalorder %s10, 5
      %s17 = sphi 0, %s36
      %s18 = sphi 0, %s32
      %s19 = sphi 0, %s28
      %s20 = sphi 0, %s17
      %s21 = sphi 0, %s18
      %s22 = sphi 0, %s19
      %s23 = sphi 0, %s20
      %s24 = sphi 0, %s21
      %s25 = sphi 0, %s22
      %s41 = sphi 0, %s43
      %s44 = sphi 0, %s41
      %s45 = sphi 0, %s44
      %s61 = sphi 0, %s45
      %s69 = sphi 0, %s71
      %s72 = sphi 0, %s69
      %s73 = sphi 0, %s72
      %s89 = sphi 0, %s73
      %s95 = sphi 0, %s97
      %s98 = sphi 0, %s95
      %s99 = sphi 0, %s98
      %s115 = sphi 0, %s99
      %s121 = sphi 0, %s123
      %s124 = sphi 0, %s121
      %s125 = sphi 0, %s124
      %s141 = sphi 0, %s125
      %s149 = sphi 0, %s151
      %s152 = sphi 0, %s149
      %s153 = sphi 0, %s152
      %s169 = sphi 0, %s153
    $region4: #{_lambda_.41} parent=1 // loop_header_branch
      %13 = sbr.rel (%p11) target = $region8
    $region5: #{_lambda_.41} parent=1 // loop_body
      %s15 = ssub.s32 %s10, 1
      %s16 = ssub.s32 %s10, 2
      %s26 = sadd.s32 1, %s19
      %p27 = scmp.ge.s32.totalorder %s26, 1
      %s28 = scalar_select %p27, 0, %s26
      %s29 = sadd.s32 1, %s18
      %s30 = scalar_select %p27, %s29, %s18
      %p31 = scmp.ge.s32.totalorder %s30, 3
      %s32 = scalar_select %p31, 0, %s30
      %s33 = sadd.s32 1, %s17
      %s34 = scalar_select %p31, %s33, %s17
      %p35 = scmp.ge.s32.totalorder %s34, 1
      %s36 = scalar_select %p35, 0, %s34
      %s37 = ssub.s32 %s17, %s36
      %s38 = ssub.s32 %s19, %s28
      %s39 = sor.u32 %s37, %s38
      %p40 = scmp.eq.s32.totalorder %s39, 0
      %s42 = sadd.s32 %s41, 1
      %s43 = scalar_select %p40, %s41, %s42
      %p46 = pneg %p40
      %p47 = scmp.eq.s32.totalorder %s10, 2
      %p48 = por %p46, %p47
      %p49 = scmp.ne.s32.totalorder %s41, %s44
      %p50 = scmp.eq.s32.totalorder %s10, 0
      %p51 = por %p49, %p50
      %p52 = scmp.ne.s32.totalorder %s41, %s44
      %p53 = scmp.eq.s32.totalorder %s15, 2
      %p54 = por %p52, %p53
      %p55 = scmp.ne.s32.totalorder %s44, %s45
      %p56 = scmp.eq.s32.totalorder %s15, 0
      %p57 = por %p55, %p56
      %p58 = scmp.ne.s32.totalorder %s44, %s45
      %p59 = scmp.eq.s32.totalorder %s16, 2
      %p60 = por %p58, %p59
      %p62 = scmp.ne.s32.totalorder %s45, %s61
      %p63 = scmp.eq.s32.totalorder %s16, 0
      %p64 = por %p62, %p63
      %s65 = ssub.s32 %s19, %s28
      %s66 = ssub.s32 %s18, %s32
      %s67 = sor.u32 %s65, %s66
      %p68 = scmp.eq.s32.totalorder %s67, 0
      %s70 = sadd.s32 %s69, 1
      %s71 = scalar_select %p68, %s69, %s70
      %p74 = pneg %p68
      %p75 = scmp.eq.s32.totalorder %s10, 2
      %p76 = por %p74, %p75
      %p77 = scmp.ne.s32.totalorder %s69, %s72
      %p78 = scmp.eq.s32.totalorder %s10, 0
      %p79 = por %p77, %p78
      %p80 = scmp.ne.s32.totalorder %s69, %s72
      %p81 = scmp.eq.s32.totalorder %s15, 2
      %p82 = por %p80, %p81
      %p83 = scmp.ne.s32.totalorder %s72, %s73
      %p84 = scmp.eq.s32.totalorder %s15, 0
      %p85 = por %p83, %p84
      %p86 = scmp.ne.s32.totalorder %s72, %s73
      %p87 = scmp.eq.s32.totalorder %s16, 2
      %p88 = por %p86, %p87
      %p90 = scmp.ne.s32.totalorder %s73, %s89
      %p91 = scmp.eq.s32.totalorder %s16, 0
      %p92 = por %p90, %p91
      %s93 = ssub.s32 %s18, %s32
      %p94 = scmp.eq.s32.totalorder %s93, 0
      %s96 = sadd.s32 %s95, 1
      %s97 = scalar_select %p94, %s95, %s96
      %p100 = pneg %p94
      %p101 = scmp.eq.s32.totalorder %s10, 2
      %p102 = por %p100, %p101
      %p103 = scmp.ne.s32.totalorder %s95, %s98
      %p104 = scmp.eq.s32.totalorder %s10, 0
      %p105 = por %p103, %p104
      %p106 = scmp.ne.s32.totalorder %s95, %s98
      %p107 = scmp.eq.s32.totalorder %s15, 2
      %p108 = por %p106, %p107
      %p109 = scmp.ne.s32.totalorder %s98, %s99
      %p110 = scmp.eq.s32.totalorder %s15, 0
      %p111 = por %p109, %p110
      %p112 = scmp.ne.s32.totalorder %s98, %s99
      %p113 = scmp.eq.s32.totalorder %s16, 2
      %p114 = por %p112, %p113
      %p116 = scmp.ne.s32.totalorder %s99, %s115
      %p117 = scmp.eq.s32.totalorder %s16, 0
      %p118 = por %p116, %p117
      %s119 = ssub.s32 %s18, %s32
      %p120 = scmp.eq.s32.totalorder %s119, 0
      %s122 = sadd.s32 %s121, 1
      %s123 = scalar_select %p120, %s121, %s122
      %p126 = pneg %p120
      %p127 = scmp.eq.s32.totalorder %s10, 2
      %p128 = por %p126, %p127
      %p129 = scmp.ne.s32.totalorder %s121, %s124
      %p130 = scmp.eq.s32.totalorder %s10, 0
      %p131 = por %p129, %p130
      %p132 = scmp.ne.s32.totalorder %s121, %s124
      %p133 = scmp.eq.s32.totalorder %s15, 2
      %p134 = por %p132, %p133
      %p135 = scmp.ne.s32.totalorder %s124, %s125
      %p136 = scmp.eq.s32.totalorder %s15, 0
      %p137 = por %p135, %p136
      %p138 = scmp.ne.s32.totalorder %s124, %s125
      %p139 = scmp.eq.s32.totalorder %s16, 2
      %p140 = por %p138, %p139
      %p142 = scmp.ne.s32.totalorder %s125, %s141
      %p143 = scmp.eq.s32.totalorder %s16, 0
      %p144 = por %p142, %p143
      %s145 = ssub.s32 %s17, %s36
      %s146 = ssub.s32 %s18, %s32
      %s147 = sor.u32 %s145, %s146
      %p148 = scmp.eq.s32.totalorder %s147, 0
      %s150 = sadd.s32 %s149, 1
      %s151 = scalar_select %p148, %s149, %s150
      %p154 = pneg %p148
      %p155 = scmp.eq.s32.totalorder %s10, 2
      %p156 = por %p154, %p155
      %p157 = scmp.ne.s32.totalorder %s149, %s152
      %p158 = scmp.eq.s32.totalorder %s10, 0
      %p159 = por %p157, %p158
      %p160 = scmp.ne.s32.totalorder %s149, %s152
      %p161 = scmp.eq.s32.totalorder %s15, 2
      %p162 = por %p160, %p161
      %p163 = scmp.ne.s32.totalorder %s152, %s153
      %p164 = scmp.eq.s32.totalorder %s15, 0
      %p165 = por %p163, %p164
      %p166 = scmp.ne.s32.totalorder %s152, %s153
      %p167 = scmp.eq.s32.totalorder %s16, 2
      %p168 = por %p166, %p167
      %p170 = scmp.ne.s32.totalorder %s153, %s169
      %p171 = scmp.eq.s32.totalorder %s16, 0
      %p172 = por %p170, %p171
      %p173 = scmp.le.s32.totalorder 1, %s10
      %p174 = scmp.lt.s32.totalorder %s10, 4
      %p175 = pnand %p173, %p174
      %p176 = pneg %p175
      // Predicated region
      $region9: #{_lambda_.41} parent=5 // pred_check
        _
      $region10: #{_lambda_.41} parent=5 // pred_check_branch
        %178 = sbr.rel (%p175) target = $region12
      $region11: #{_lambda_.41} parent=5 // pred_region
        %s179 = ssub.s32 %s10, 1
        // Predicated region
        $region13: #{_lambda_.41} parent=11 // pred_check
          %p180 = pneg %p57
        $region14: #{_lambda_.41} parent=11 // pred_check_branch
          %182 = sbr.rel (%p180) target = $region16
        $region15: #{_lambda_.41} parent=11 // pred_region
          %s183 = smul.u32 2, %s22
          %p184 = scmp.lt.s32.totalorder %s20, 0
          %s185 = scalar_select %p184, %s20, 0
          %p186 = scmp.lt.s32.totalorder %s183, 1
          %s187 = scalar_select %p186, %s183, 1
          %s188 = smul.addr %s185, 2
          %s189 = sadd.s32 %s187, %s188
          %s190 = smul.addr %s189, 4
          %s191 = scalar_lea.vmem %s0, %s190
          %s192 = smul.u32 2, %s22
        $region16: #{_lambda_.41} parent=11 // pred_fallthru
          _
      $region12: #{_lambda_.41} parent=5 // pred_fallthru
        _
      %p193 = scmp.lt.s32.totalorder %s10, 3
      // Predicated region
      $region17: #{_lambda_.41} parent=5 // pred_check
        %p194 = pneg %p193
      $region18: #{_lambda_.41} parent=5 // pred_check_branch
        %196 = sbr.rel (%p194) target = $region20
      $region19: #{_lambda_.41} parent=5 // pred_region
        // Predicated region
        $region21: #{_lambda_.41} parent=19 // pred_check
          %p197 = pneg %p79
        $region22: #{_lambda_.41} parent=19 // pred_check_branch
          %199 = sbr.rel (%p197) target = $region24
        $region23: #{_lambda_.41} parent=19 // pred_region
          %s200 = sand.u32 %s69, 1
          %s201 = sand.u32 %s69, 1
          %s202 = smul.addr %s201, 256
          %s203 = scalar_lea.vmem [#allocation3], %s202
          %s204 = smul.u32 32, %s19
          %s205 = smul.u32 2, %s18
          %s206 = smul.addr %s204, 6
          %s207 = sadd.s32 %s205, %s206
          %s208 = smul.addr %s207, 4
          %s209 = scalar_lea.vmem %s1, %s208
          // Predicated region
          $region25: #{_lambda_.41} parent=23 // pred_check
            _
          $region26: #{_lambda_.41} parent=23 // pred_check_branch
            %211 = sbr.rel (0) target = $region28
          $region27: #{_lambda_.41} parent=23 // pred_region
            // Predicated region
            $region29: #{_lambda_.41} parent=27 // pred_check
              _
            $region30: #{_lambda_.41} parent=27 // pred_check_branch
              %213 = sbr.rel (0) target = $region32
            $region31: #{_lambda_.41} parent=27 // pred_region
              // Predicated region
              $region44: #{_lambda_.41} parent=31 // pred_check
                _
              $region45: #{_lambda_.41} parent=31 // pred_check_branch
                %291 = sbr.rel (0) target = $region47
              $region46: #{_lambda_.41} parent=31 // pred_region
                loop: start=0, step=1, limit=1
                $region48: #{_lambda_.41} parent=46 // loop_pre_header
                  _
                $region49: #{_lambda_.41} parent=46 // loop_header
                  %s293 = sphi 0, %s297
                  %p294 = scmp.ge.s32.totalorder %s293, 1
                  %s298 = sphi %s209, %s209
                  %s299 = sphi %s203, %s203
                $region50: #{_lambda_.41} parent=46 // loop_header_branch
                  %296 = sbr.rel (%p294) target = $region54
                $region51: #{_lambda_.41} parent=46 // loop_body
                  %v300 = vld [vmem:[%s298] sm:$0xff]
                  %301 = vst [vmem:[%s299] sm:$0xff] %v300
                  %v302 = vld [vmem:[%s298 + $0x18] sm:$0xff]
                  %303 = vst [vmem:[%s299 + $0x8] sm:$0xff] %v302
                  %v304 = vld [vmem:[%s298 + $0x30] sm:$0xff]
                  %305 = vst [vmem:[%s299 + $0x10] sm:$0xff] %v304
                  %v306 = vld [vmem:[%s298 + $0x48] sm:$0xff]
                  %307 = vst [vmem:[%s299 + $0x18] sm:$0xff] %v306
                  %v308 = vld [vmem:[%s298 + $0x60] sm:$0xff]
                  %309 = vst [vmem:[%s299 + $0x20] sm:$0xff] %v308
                  %v310 = vld [vmem:[%s298 + $0x78] sm:$0xff]
                  %311 = vst [vmem:[%s299 + $0x28] sm:$0xff] %v310
                  %v312 = vld [vmem:[%s298 + $0x90] sm:$0xff]
                  %313 = vst [vmem:[%s299 + $0x30] sm:$0xff] %v312
                  %v314 = vld [vmem:[%s298 + $0xa8] sm:$0xff]
                  %315 = vst [vmem:[%s299 + $0x38] sm:$0xff] %v314
                  %v316 = vld [vmem:[%s298 + $0xc0] sm:$0xff]
                  %317 = vst [vmem:[%s299 + $0x40] sm:$0xff] %v316
                  %v318 = vld [vmem:[%s298 + $0xd8] sm:$0xff]
                  %319 = vst [vmem:[%s299 + $0x48] sm:$0xff] %v318
                  %v320 = vld [vmem:[%s298 + $0xf0] sm:$0xff]
                  %321 = vst [vmem:[%s299 + $0x50] sm:$0xff] %v320
                  %v322 = vld [vmem:[%s298 + $0x108] sm:$0xff]
                  %323 = vst [vmem:[%s299 + $0x58] sm:$0xff] %v322
                  %v324 = vld [vmem:[%s298 + $0x120] sm:$0xff]
                  %325 = vst [vmem:[%s299 + $0x60] sm:$0xff] %v324
                  %v326 = vld [vmem:[%s298 + $0x138] sm:$0xff]
                  %327 = vst [vmem:[%s299 + $0x68] sm:$0xff] %v326
                  %v328 = vld [vmem:[%s298 + $0x150] sm:$0xff]
                  %329 = vst [vmem:[%s299 + $0x70] sm:$0xff] %v328
                  %v330 = vld [vmem:[%s298 + $0x168] sm:$0xff]
                  %331 = vst [vmem:[%s299 + $0x78] sm:$0xff] %v330
                  %v332 = vld [vmem:[%s298 + $0x180] sm:$0xff]
                  %333 = vst [vmem:[%s299 + $0x80] sm:$0xff] %v332
                  %v334 = vld [vmem:[%s298 + $0x198] sm:$0xff]
                  %335 = vst [vmem:[%s299 + $0x88] sm:$0xff] %v334
                  %v336 = vld [vmem:[%s298 + $0x1b0] sm:$0xff]
                  %337 = vst [vmem:[%s299 + $0x90] sm:$0xff] %v336
                  %v338 = vld [vmem:[%s298 + $0x1c8] sm:$0xff]
                  %339 = vst [vmem:[%s299 + $0x98] sm:$0xff] %v338
                  %v340 = vld [vmem:[%s298 + $0x1e0] sm:$0xff]
                  %341 = vst [vmem:[%s299 + $0xa0] sm:$0xff] %v340
                  %v342 = vld [vmem:[%s298 + $0x1f8] sm:$0xff]
                  %343 = vst [vmem:[%s299 + $0xa8] sm:$0xff] %v342
                  %v344 = vld [vmem:[%s298 + $0x210] sm:$0xff]
                  %345 = vst [vmem:[%s299 + $0xb0] sm:$0xff] %v344
                  %v346 = vld [vmem:[%s298 + $0x228] sm:$0xff]
                  %347 = vst [vmem:[%s299 + $0xb8] sm:$0xff] %v346
                  %v348 = vld [vmem:[%s298 + $0x240] sm:$0xff]
                  %349 = vst [vmem:[%s299 + $0xc0] sm:$0xff] %v348
                  %v350 = vld [vmem:[%s298 + $0x258] sm:$0xff]
                  %351 = vst [vmem:[%s299 + $0xc8] sm:$0xff] %v350
                  %v352 = vld [vmem:[%s298 + $0x270] sm:$0xff]
                  %353 = vst [vmem:[%s299 + $0xd0] sm:$0xff] %v352
                  %v354 = vld [vmem:[%s298 + $0x288] sm:$0xff]
                  %355 = vst [vmem:[%s299 + $0xd8] sm:$0xff] %v354
                  %v356 = vld [vmem:[%s298 + $0x2a0] sm:$0xff]
                  %357 = vst [vmem:[%s299 + $0xe0] sm:$0xff] %v356
                  %v358 = vld [vmem:[%s298 + $0x2b8] sm:$0xff]
                  %359 = vst [vmem:[%s299 + $0xe8] sm:$0xff] %v358
                  %v360 = vld [vmem:[%s298 + $0x2d0] sm:$0xff]
                  %361 = vst [vmem:[%s299 + $0xf0] sm:$0xff] %v360
                  %v362 = vld [vmem:[%s298 + $0x2e8] sm:$0xff]
                  %363 = vst [vmem:[%s299 + $0xf8] sm:$0xff] %v362
                $region52: #{_lambda_.41} parent=46 // loop_footer
                  %s297 = sadd.s32 1, %s293
                $region53: #{_lambda_.41} parent=46 // loop_footer_branch
                  %292 = sbr.rel target = $region49
                $region54: #{_lambda_.41} parent=46 // loop_exit
                  _
              $region47: #{_lambda_.41} parent=31 // pred_fallthru
                _
              // Predicated region
              $region55: #{_lambda_.41} parent=31 // pred_check
                _
              $region56: #{_lambda_.41} parent=31 // pred_check_branch
                %365 = sbr.rel target = $region58
              $region57: #{_lambda_.41} parent=31 // pred_region
                _
              $region58: #{_lambda_.41} parent=31 // pred_fallthru
                _
            $region32: #{_lambda_.41} parent=27 // pred_fallthru
              _
            // Predicated region
            $region33: #{_lambda_.41} parent=27 // pred_check
              _
            $region34: #{_lambda_.41} parent=27 // pred_check_branch
              %215 = sbr.rel target = $region36
            $region35: #{_lambda_.41} parent=27 // pred_region
              %s217 = ssub.s32 256, 1
              loop: start=0, step=1, limit=1
              $region37: #{_lambda_.41} parent=35 // loop_pre_header
                _
              $region38: #{_lambda_.41} parent=35 // loop_header
                %s219 = sphi 0, %s223
                %p220 = scmp.ge.s32.totalorder %s219, 1
                %s224 = sphi %s209, %s209
                %s225 = sphi %s203, %s203
              $region39: #{_lambda_.41} parent=35 // loop_header_branch
                %222 = sbr.rel (%p220) target = $region43
              $region40: #{_lambda_.41} parent=35 // loop_body
                %v226 = vld [vmem:[%s224] sm:%s217]
                %227 = vst [vmem:[%s225] sm:%s217] %v226
                %v228 = vld [vmem:[%s224 + $0x18] sm:%s217]
                %229 = vst [vmem:[%s225 + $0x8] sm:%s217] %v228
                %v230 = vld [vmem:[%s224 + $0x30] sm:%s217]
                %231 = vst [vmem:[%s225 + $0x10] sm:%s217] %v230
                %v232 = vld [vmem:[%s224 + $0x48] sm:%s217]
                %233 = vst [vmem:[%s225 + $0x18] sm:%s217] %v232
                %v234 = vld [vmem:[%s224 + $0x60] sm:%s217]
                %235 = vst [vmem:[%s225 + $0x20] sm:%s217] %v234
                %v236 = vld [vmem:[%s224 + $0x78] sm:%s217]
                %237 = vst [vmem:[%s225 + $0x28] sm:%s217] %v236
                %v238 = vld [vmem:[%s224 + $0x90] sm:%s217]
                %239 = vst [vmem:[%s225 + $0x30] sm:%s217] %v238
                %v240 = vld [vmem:[%s224 + $0xa8] sm:%s217]
                %241 = vst [vmem:[%s225 + $0x38] sm:%s217] %v240
                %v242 = vld [vmem:[%s224 + $0xc0] sm:%s217]
                %243 = vst [vmem:[%s225 + $0x40] sm:%s217] %v242
                %v244 = vld [vmem:[%s224 + $0xd8] sm:%s217]
                %245 = vst [vmem:[%s225 + $0x48] sm:%s217] %v244
                %v246 = vld [vmem:[%s224 + $0xf0] sm:%s217]
                %247 = vst [vmem:[%s225 + $0x50] sm:%s217] %v246
                %v248 = vld [vmem:[%s224 + $0x108] sm:%s217]
                %249 = vst [vmem:[%s225 + $0x58] sm:%s217] %v248
                %v250 = vld [vmem:[%s224 + $0x120] sm:%s217]
                %251 = vst [vmem:[%s225 + $0x60] sm:%s217] %v250
                %v252 = vld [vmem:[%s224 + $0x138] sm:%s217]
                %253 = vst [vmem:[%s225 + $0x68] sm:%s217] %v252
                %v254 = vld [vmem:[%s224 + $0x150] sm:%s217]
                %255 = vst [vmem:[%s225 + $0x70] sm:%s217] %v254
                %v256 = vld [vmem:[%s224 + $0x168] sm:%s217]
                %257 = vst [vmem:[%s225 + $0x78] sm:%s217] %v256
                %v258 = vld [vmem:[%s224 + $0x180] sm:%s217]
                %259 = vst [vmem:[%s225 + $0x80] sm:%s217] %v258
                %v260 = vld [vmem:[%s224 + $0x198] sm:%s217]
                %261 = vst [vmem:[%s225 + $0x88] sm:%s217] %v260
                %v262 = vld [vmem:[%s224 + $0x1b0] sm:%s217]
                %263 = vst [vmem:[%s225 + $0x90] sm:%s217] %v262
                %v264 = vld [vmem:[%s224 + $0x1c8] sm:%s217]
                %265 = vst [vmem:[%s225 + $0x98] sm:%s217] %v264
                %v266 = vld [vmem:[%s224 + $0x1e0] sm:%s217]
                %267 = vst [vmem:[%s225 + $0xa0] sm:%s217] %v266
                %v268 = vld [vmem:[%s224 + $0x1f8] sm:%s217]
                %269 = vst [vmem:[%s225 + $0xa8] sm:%s217] %v268
                %v270 = vld [vmem:[%s224 + $0x210] sm:%s217]
                %271 = vst [vmem:[%s225 + $0xb0] sm:%s217] %v270
                %v272 = vld [vmem:[%s224 + $0x228] sm:%s217]
                %273 = vst [vmem:[%s225 + $0xb8] sm:%s217] %v272
                %v274 = vld [vmem:[%s224 + $0x240] sm:%s217]
                %275 = vst [vmem:[%s225 + $0xc0] sm:%s217] %v274
                %v276 = vld [vmem:[%s224 + $0x258] sm:%s217]
                %277 = vst [vmem:[%s225 + $0xc8] sm:%s217] %v276
                %v278 = vld [vmem:[%s224 + $0x270] sm:%s217]
                %279 = vst [vmem:[%s225 + $0xd0] sm:%s217] %v278
                %v280 = vld [vmem:[%s224 + $0x288] sm:%s217]
                %281 = vst [vmem:[%s225 + $0xd8] sm:%s217] %v280
                %v282 = vld [vmem:[%s224 + $0x2a0] sm:%s217]
                %283 = vst [vmem:[%s225 + $0xe0] sm:%s217] %v282
                %v284 = vld [vmem:[%s224 + $0x2b8] sm:%s217]
                %285 = vst [vmem:[%s225 + $0xe8] sm:%s217] %v284
                %v286 = vld [vmem:[%s224 + $0x2d0] sm:%s217]
                %287 = vst [vmem:[%s225 + $0xf0] sm:%s217] %v286
                %v288 = vld [vmem:[%s224 + $0x2e8] sm:%s217]
                %289 = vst [vmem:[%s225 + $0xf8] sm:%s217] %v288
              $region41: #{_lambda_.41} parent=35 // loop_footer
                %s223 = sadd.s32 1, %s219
              $region42: #{_lambda_.41} parent=35 // loop_footer_branch
                %218 = sbr.rel target = $region38
              $region43: #{_lambda_.41} parent=35 // loop_exit
                _
            $region36: #{_lambda_.41} parent=27 // pred_fallthru
              _
          $region28: #{_lambda_.41} parent=23 // pred_fallthru
            _
          %366 = vnop
        $region24: #{_lambda_.41} parent=19 // pred_fallthru
          _
        // Predicated region
        $region59: #{_lambda_.41} parent=19 // pred_check
          %p367 = pneg %p105
        $region60: #{_lambda_.41} parent=19 // pred_check_branch
          %369 = sbr.rel (%p367) target = $region62
        $region61: #{_lambda_.41} parent=19 // pred_region
          %s370 = smul.u32 2, %s18
          %p371 = scmp.lt.s32.totalorder %s370, 5
          %s372 = scalar_select %p371, %s370, 5
          %s373 = scalar_lea.vmem %s2, %s372
          %s374 = smul.u32 2, %s18
        $region62: #{_lambda_.41} parent=19 // pred_fallthru
          _
        // Predicated region
        $region63: #{_lambda_.41} parent=19 // pred_check
          %p375 = pneg %p131
        $region64: #{_lambda_.41} parent=19 // pred_check_branch
          %377 = sbr.rel (%p375) target = $region66
        $region65: #{_lambda_.41} parent=19 // pred_region
          %s378 = smul.u32 2, %s18
          %p379 = scmp.lt.s32.totalorder %s378, 5
          %s380 = scalar_select %p379, %s378, 5
          %s381 = scalar_lea.vmem %s3, %s380
          %s382 = smul.u32 2, %s18
        $region66: #{_lambda_.41} parent=19 // pred_fallthru
          _
      $region20: #{_lambda_.41} parent=5 // pred_fallthru
        _
      %p383 = scmp.le.s32.totalorder 1, %s10
      %p384 = scmp.lt.s32.totalorder %s10, 4
      %p385 = pnand %p383, %p384
      %p386 = pneg %p385
      // Predicated region
      $region67: #{_lambda_.41} parent=5 // pred_check
        _
      $region68: #{_lambda_.41} parent=5 // pred_check_branch
        %388 = sbr.rel (%p385) target = $region70
      $region69: #{_lambda_.41} parent=5 // pred_region
        %s389 = ssub.s32 %s10, 1
        %s390 = sand.u32 %s72, 1
        %s391 = sand.u32 %s72, 1
        %s392 = smul.addr %s391, 256
        %s393 = scalar_lea.vmem [#allocation3], %s392
        // Predicated region
        $region71: #{_lambda_.41} parent=69 // pred_check
          %p394 = pneg %p85
        $region72: #{_lambda_.41} parent=69 // pred_check_branch
          %396 = sbr.rel (%p394) target = $region74
        $region73: #{_lambda_.41} parent=69 // pred_region
          _
        $region74: #{_lambda_.41} parent=69 // pred_fallthru
          _
        %s397 = smul.u32 2, %s22
        %p398 = scmp.lt.s32.totalorder %s20, 0
        %s399 = scalar_select %p398, %s20, 0
        %p400 = scmp.lt.s32.totalorder %s397, 1
        %s401 = scalar_select %p400, %s397, 1
        %s402 = smul.addr %s399, 2
        %s403 = sadd.s32 %s401, %s402
        %s404 = smul.addr %s403, 4
        %s405 = scalar_lea.vmem %s0, %s404
        %p406 = pneg %p57
        %p407 = pneg %p54
        %s408 = sand.u32 %s72, 1
        %s409 = sand.u32 %s72, 1
        %s410 = smul.addr %s409, 256
        %s411 = scalar_lea.vmem [#allocation3], %s410
        %p412 = pneg %p85
        %p413 = pneg %p82
        %s414 = smul.u32 2, %s21
        %p415 = scmp.lt.s32.totalorder %s414, 5
        %s416 = scalar_select %p415, %s414, 5
        %s417 = scalar_lea.vmem %s2, %s416
        %p418 = pneg %p111
        %p419 = pneg %p108
        %s420 = smul.u32 2, %s21
        %p421 = scmp.lt.s32.totalorder %s420, 5
        %s422 = scalar_select %p421, %s420, 5
        %s423 = scalar_lea.vmem %s3, %s422
        %p424 = pneg %p137
        %p425 = pneg %p134
        %p426 = pneg %p165
        %p427 = pneg %p162
        %s428 = smul.u32 2, %s21
        %p429 = scmp.lt.s32.totalorder %s20, 0
        %s430 = scalar_select %p429, %s20, 0
        %p431 = scmp.lt.s32.totalorder %s428, 5
        %s432 = scalar_select %p431, %s428, 5
        %s433 = smul.addr %s430, 6
        %s434 = sadd.s32 %s432, %s433
        %s435 = smul.addr %s434, 4
        %s436 = scalar_lea.vmem %s4, %s435
        %s437 = smul.u32 2, %s22
        %p438 = scmp.lt.s32.totalorder %s20, 0
        %s439 = scalar_select %p438, %s20, 0
        %p440 = scmp.lt.s32.totalorder %s437, 1
        %s441 = scalar_select %p440, %s437, 1
        %s442 = smul.addr %s439, 2
        %s443 = sadd.s32 %s441, %s442
        %s444 = smul.addr %s443, 4
        %s445 = scalar_lea.vmem %s0, %s444
        %s446 = smul.u32 2, %s22
        %s447 = smul.u32 32, %s22
        %s448 = smul.u32 2, %s21
        %s449 = smul.u32 2, %s21
        %p450 = scmp.lt.s32.totalorder %s449, 5
        %s451 = scalar_select %p450, %s449, 5
        %s452 = scalar_lea.vmem %s2, %s451
        %s453 = smul.u32 2, %s21
        %s454 = smul.u32 2, %s21
        %p455 = scmp.lt.s32.totalorder %s454, 5
        %s456 = scalar_select %p455, %s454, 5
        %s457 = scalar_lea.vmem %s3, %s456
        %s458 = smul.u32 2, %s21
        %s459 = smul.u32 2, %s21
        %p460 = scmp.lt.s32.totalorder %s20, 0
        %s461 = scalar_select %p460, %s20, 0
        %p462 = scmp.lt.s32.totalorder %s459, 5
        %s463 = scalar_select %p462, %s459, 5
        %s464 = smul.addr %s461, 6
        %s465 = sadd.s32 %s463, %s464
        %s466 = smul.addr %s465, 4
        %s467 = scalar_lea.vmem %s4, %s466
        %s468 = smul.u32 2, %s21
        %p469 = scmp.eq.s32.totalorder %s22, 0
        // Predicated region
        $region75: #{_lambda_.41} parent=69 // pred_check
          %p470 = pneg %p469
        $region76: #{_lambda_.41} parent=69 // pred_check_branch
          %472 = sbr.rel (%p470) target = $region78
        $region77: #{_lambda_.41} parent=69 // pred_region
          %473 = vst [vmem:[#allocation2] sm:$0xff] 0.0
          %474 = vst [vmem:[#allocation2 + $0x8] sm:$0xff] 0.0
        $region78: #{_lambda_.41} parent=69 // pred_fallthru
          _
        %v475 = vld [vmem:[#allocation2] sm:$0xff]
        %v476 = vld [vmem:[#allocation2 + $0x8] sm:$0xff]
        %v477 = vld [vmem:[%s445] sm:$0xff]
        %v478 = vld [vmem:[%s393] sm:$0xff]
        %v479 = vld [vmem:[%s393 + $0x8] sm:$0xff]
        %v480 = vld [vmem:[%s393 + $0x10] sm:$0xff]
        %v481 = vld [vmem:[%s393 + $0x18] sm:$0xff]
        %v482 = vld [vmem:[%s393 + $0x20] sm:$0xff]
        %v483 = vld [vmem:[%s393 + $0x28] sm:$0xff]
        %v484 = vld [vmem:[%s393 + $0x30] sm:$0xff]
        %v485 = vld [vmem:[%s393 + $0x38] sm:$0xff]
        %v486 = vld [vmem:[%s393 + $0x40] sm:$0xff]
        %v487 = vld [vmem:[%s393 + $0x48] sm:$0xff]
        %v488 = vld [vmem:[%s393 + $0x50] sm:$0xff]
        %v489 = vld [vmem:[%s393 + $0x58] sm:$0xff]
        %v490 = vld [vmem:[%s393 + $0x60] sm:$0xff]
        %v491 = vld [vmem:[%s393 + $0x68] sm:$0xff]
        %v492 = vld [vmem:[%s393 + $0x70] sm:$0xff]
        %v493 = vld [vmem:[%s393 + $0x78] sm:$0xff]
        %v494 = vld [vmem:[%s393 + $0x80] sm:$0xff]
        %v495 = vld [vmem:[%s393 + $0x88] sm:$0xff]
        %v496 = vld [vmem:[%s393 + $0x90] sm:$0xff]
        %v497 = vld [vmem:[%s393 + $0x98] sm:$0xff]
        %v498 = vld [vmem:[%s393 + $0xa0] sm:$0xff]
        %v499 = vld [vmem:[%s393 + $0xa8] sm:$0xff]
        %v500 = vld [vmem:[%s393 + $0xb0] sm:$0xff]
        %v501 = vld [vmem:[%s393 + $0xb8] sm:$0xff]
        %v502 = vld [vmem:[%s393 + $0xc0] sm:$0xff]
        %v503 = vld [vmem:[%s393 + $0xc8] sm:$0xff]
        %v504 = vld [vmem:[%s393 + $0xd0] sm:$0xff]
        %v505 = vld [vmem:[%s393 + $0xd8] sm:$0xff]
        %v506 = vld [vmem:[%s393 + $0xe0] sm:$0xff]
        %v507 = vld [vmem:[%s393 + $0xe8] sm:$0xff]
        %v508 = vld [vmem:[%s393 + $0xf0] sm:$0xff]
        %v509 = vld [vmem:[%s393 + $0xf8] sm:$0xff]
        %v511 = vunpack.c.l.b16 %v477
        %v512 = vunpack.c.h.b16 %v477
        %v513 = vpack.c.b16 %v511, %v511
        %v514 = vpack.c.b16 %v512, %v512
        %v549 = vunpack.c.l.b16 %v478
        %v550 = vunpack.c.h.b16 %v478
        %v551 = vunpack.c.l.b16 %v479
        %v552 = vunpack.c.h.b16 %v479
        %v553 = vunpack.c.l.b16 %v480
        %v554 = vunpack.c.h.b16 %v480
        %v555 = vunpack.c.l.b16 %v481
        %v556 = vunpack.c.h.b16 %v481
        %v557 = vunpack.c.l.b16 %v482
        %v558 = vunpack.c.h.b16 %v482
        %v559 = vunpack.c.l.b16 %v483
        %v560 = vunpack.c.h.b16 %v483
        %v561 = vunpack.c.l.b16 %v484
        %v562 = vunpack.c.h.b16 %v484
        %v563 = vunpack.c.l.b16 %v485
        %v564 = vunpack.c.h.b16 %v485
        %v565 = vunpack.c.l.b16 %v486
        %v566 = vunpack.c.h.b16 %v486
        %v567 = vunpack.c.l.b16 %v487
        %v568 = vunpack.c.h.b16 %v487
        %v569 = vunpack.c.l.b16 %v488
        %v570 = vunpack.c.h.b16 %v488
        %v571 = vunpack.c.l.b16 %v489
        %v572 = vunpack.c.h.b16 %v489
        %v573 = vunpack.c.l.b16 %v490
        %v574 = vunpack.c.h.b16 %v490
        %v575 = vunpack.c.l.b16 %v491
        %v576 = vunpack.c.h.b16 %v491
        %v577 = vunpack.c.l.b16 %v492
        %v578 = vunpack.c.h.b16 %v492
        %v579 = vunpack.c.l.b16 %v493
        %v580 = vunpack.c.h.b16 %v493
        %v581 = vunpack.c.l.b16 %v494
        %v582 = vunpack.c.h.b16 %v494
        %v583 = vunpack.c.l.b16 %v495
        %v584 = vunpack.c.h.b16 %v495
        %v585 = vunpack.c.l.b16 %v496
        %v586 = vunpack.c.h.b16 %v496
        %v587 = vunpack.c.l.b16 %v497
        %v588 = vunpack.c.h.b16 %v497
        %v589 = vunpack.c.l.b16 %v498
        %v590 = vunpack.c.h.b16 %v498
        %v591 = vunpack.c.l.b16 %v499
        %v592 = vunpack.c.h.b16 %v499
        %v593 = vunpack.c.l.b16 %v500
        %v594 = vunpack.c.h.b16 %v500
        %v595 = vunpack.c.l.b16 %v501
        %v596 = vunpack.c.h.b16 %v501
        %v597 = vunpack.c.l.b16 %v502
        %v598 = vunpack.c.h.b16 %v502
        %v599 = vunpack.c.l.b16 %v503
        %v600 = vunpack.c.h.b16 %v503
        %v601 = vunpack.c.l.b16 %v504
        %v602 = vunpack.c.h.b16 %v504
        %v603 = vunpack.c.l.b16 %v505
        %v604 = vunpack.c.h.b16 %v505
        %v605 = vunpack.c.l.b16 %v506
        %v606 = vunpack.c.h.b16 %v506
        %v607 = vunpack.c.l.b16 %v507
        %v608 = vunpack.c.h.b16 %v507
        %v609 = vunpack.c.l.b16 %v508
        %v610 = vunpack.c.h.b16 %v508
        %v611 = vunpack.c.l.b16 %v509
        %v612 = vunpack.c.h.b16 %v509
        %v613 = vpack.c.b16 %v551, %v549
        %v614 = vpack.c.b16 %v552, %v550
        %v615 = vpack.c.b16 %v555, %v553
        %v616 = vpack.c.b16 %v556, %v554
        %v617 = vpack.c.b16 %v559, %v557
        %v618 = vpack.c.b16 %v560, %v558
        %v619 = vpack.c.b16 %v563, %v561
        %v620 = vpack.c.b16 %v564, %v562
        %v621 = vpack.c.b16 %v567, %v565
        %v622 = vpack.c.b16 %v568, %v566
        %v623 = vpack.c.b16 %v571, %v569
        %v624 = vpack.c.b16 %v572, %v570
        %v625 = vpack.c.b16 %v575, %v573
        %v626 = vpack.c.b16 %v576, %v574
        %v627 = vpack.c.b16 %v579, %v577
        %v628 = vpack.c.b16 %v580, %v578
        %v629 = vpack.c.b16 %v583, %v581
        %v630 = vpack.c.b16 %v584, %v582
        %v631 = vpack.c.b16 %v587, %v585
        %v632 = vpack.c.b16 %v588, %v586
        %v633 = vpack.c.b16 %v591, %v589
        %v634 = vpack.c.b16 %v592, %v590
        %v635 = vpack.c.b16 %v595, %v593
        %v636 = vpack.c.b16 %v596, %v594
        %v637 = vpack.c.b16 %v599, %v597
        %v638 = vpack.c.b16 %v600, %v598
        %v639 = vpack.c.b16 %v603, %v601
        %v640 = vpack.c.b16 %v604, %v602
        %v641 = vpack.c.b16 %v607, %v605
        %v642 = vpack.c.b16 %v608, %v606
        %v643 = vpack.c.b16 %v611, %v609
        %v644 = vpack.c.b16 %v612, %v610
        %677 = vmatpush.bf16.msra.mxu0 %v627
        %678 = vmatpush.bf16.msra.mxu0 %v625
        %679 = vmatpush.bf16.msra.mxu0 %v623
        %680 = vmatpush.bf16.msra.mxu0 %v621
        %681 = vmatpush.bf16.msra.mxu0 %v619
        %682 = vmatpush.bf16.msra.mxu0 %v617
        %683 = vmatpush.bf16.msra.mxu0 %v615
        %684 = vmatpush.bf16.msra.mxu0 %v613
        %685 = vmatmul.bf16.gmra.mxu0 %v513
        %v686 = vpop.f32.mrf.mxu0
        %v687 = vadd.f32 0.0, %v686
        %v688 = vpop.f32.mrf.mxu0
        %689 = vdwg.mxu0
        %690 = vmatpush.bf16.msra.mxu0 %v643
        %691 = vmatpush.bf16.msra.mxu0 %v641
        %692 = vmatpush.bf16.msra.mxu0 %v639
        %693 = vmatpush.bf16.msra.mxu0 %v637
        %694 = vmatpush.bf16.msra.mxu0 %v635
        %695 = vmatpush.bf16.msra.mxu0 %v633
        %696 = vmatpush.bf16.msra.mxu0 %v631
        %697 = vmatpush.bf16.msra.mxu0 %v629
        %698 = vmatmul.bf16.gmra.mxu0 %v514
        %v699 = vpop.f32.mrf.mxu0
        %v700 = vadd.f32 %v687, %v699
        %v701 = vpop.f32.mrf.mxu0
        %702 = vdwg.mxu0
        %703 = vmatpush.bf16.msra.mxu0 %v628
        %704 = vmatpush.bf16.msra.mxu0 %v626
        %705 = vmatpush.bf16.msra.mxu0 %v624
        %706 = vmatpush.bf16.msra.mxu0 %v622
        %707 = vmatpush.bf16.msra.mxu0 %v620
        %708 = vmatpush.bf16.msra.mxu0 %v618
        %709 = vmatpush.bf16.msra.mxu0 %v616
        %710 = vmatpush.bf16.msra.mxu0 %v614
        %711 = vmatmul.bf16.gmra.mxu0 %v513
        %v712 = vpop.f32.mrf.mxu0
        %v713 = vadd.f32 0.0, %v712
        %v714 = vpop.f32.mrf.mxu0
        %715 = vdwg.mxu0
        %716 = vmatpush.bf16.msra.mxu0 %v644
        %717 = vmatpush.bf16.msra.mxu0 %v642
        %718 = vmatpush.bf16.msra.mxu0 %v640
        %719 = vmatpush.bf16.msra.mxu0 %v638
        %720 = vmatpush.bf16.msra.mxu0 %v636
        %721 = vmatpush.bf16.msra.mxu0 %v634
        %722 = vmatpush.bf16.msra.mxu0 %v632
        %723 = vmatpush.bf16.msra.mxu0 %v630
        %724 = vmatmul.bf16.gmra.mxu0 %v514
        %v725 = vpop.f32.mrf.mxu0
        %v726 = vadd.f32 %v713, %v725
        %v727 = vpop.f32.mrf.mxu0
        %728 = vdwg.mxu0
        %v729 = vadd.f32 %v475, %v700
        %v730 = vadd.f32 %v476, %v726
        %731 = vst [vmem:[#allocation2] sm:$0xff] %v729
        %732 = vst [vmem:[#allocation2 + $0x8] sm:$0xff] %v730
        // Predicated region
        $region79: #{_lambda_.41} parent=69 // pred_check
          %p733 = pneg %p469
        $region80: #{_lambda_.41} parent=69 // pred_check_branch
          %735 = sbr.rel (%p733) target = $region82
        $region81: #{_lambda_.41} parent=69 // pred_region
          %v736 = vld [vmem:[#allocation2] sm:$0xff]
          %v737 = vld [vmem:[#allocation2 + $0x8] sm:$0xff]
          %v738 = vld [vmem:[%s452] sm:$0x3]
          %v740 = vperm.slane %v738, 0
          %v741 = vperm.slane %v738, 1
          %v744 = vmul.f32 %v736, %v740
          %v745 = vmul.f32 %v737, %v741
          %v746 = vld [vmem:[%s457] sm:$0x3]
          %v748 = vperm.slane %v746, 0
          %v749 = vperm.slane %v746, 1
          %v752 = vadd.f32 %v744, %v748
          %v753 = vadd.f32 %v745, %v749
          %v754 = vpack.c.bf16 %v753, %v752
          %755 = vst [vmem:[%s467] sm:$0xff] %v754
        $region82: #{_lambda_.41} parent=69 // pred_fallthru
          _
        %s756 = smul.u32 2, %s21
        %p757 = scmp.lt.s32.totalorder %s20, 0
        %s758 = scalar_select %p757, %s20, 0
        %p759 = scmp.lt.s32.totalorder %s756, 5
        %s760 = scalar_select %p759, %s756, 5
        %s761 = smul.addr %s758, 6
        %s762 = sadd.s32 %s760, %s761
        %s763 = smul.addr %s762, 4
        %s764 = scalar_lea.vmem %s4, %s763
        // Predicated region
        $region83: #{_lambda_.41} parent=69 // pred_check
          %p765 = pneg %p162
        $region84: #{_lambda_.41} parent=69 // pred_check_branch
          %767 = sbr.rel (%p765) target = $region86
        $region85: #{_lambda_.41} parent=69 // pred_region
          %s768 = smul.u32 2, %s21
        $region86: #{_lambda_.41} parent=69 // pred_fallthru
          _
      $region70: #{_lambda_.41} parent=5 // pred_fallthru
        _
      %p769 = scmp.le.s32.totalorder 2, %s10
      // Predicated region
      $region87: #{_lambda_.41} parent=5 // pred_check
        %p770 = pneg %p769
      $region88: #{_lambda_.41} parent=5 // pred_check_branch
        %772 = sbr.rel (%p770) target = $region90
      $region89: #{_lambda_.41} parent=5 // pred_region
        %s773 = ssub.s32 %s10, 2
        // Predicated region
        $region91: #{_lambda_.41} parent=89 // pred_check
          %p774 = pneg %p168
        $region92: #{_lambda_.41} parent=89 // pred_check_branch
          %776 = sbr.rel (%p774) target = $region94
        $region93: #{_lambda_.41} parent=89 // pred_region
          %s777 = smul.u32 2, %s24
          %p778 = scmp.lt.s32.totalorder %s23, 0
          %s779 = scalar_select %p778, %s23, 0
          %p780 = scmp.lt.s32.totalorder %s777, 5
          %s781 = scalar_select %p780, %s777, 5
          %s782 = smul.addr %s779, 6
          %s783 = sadd.s32 %s781, %s782
          %s784 = smul.addr %s783, 4
          %s785 = scalar_lea.vmem %s4, %s784
        $region94: #{_lambda_.41} parent=89 // pred_fallthru
          _
      $region90: #{_lambda_.41} parent=5 // pred_fallthru
        _
    $region6: #{_lambda_.41} parent=1 // loop_footer
      %s14 = sadd.s32 1, %s10
    $region7: #{_lambda_.41} parent=1 // loop_footer_branch
      %9 = sbr.rel target = $region3
    $region8: #{_lambda_.41} parent=1 // loop_exit
      _

// kernel: _lambda_.42
$region0: #{_lambda_.42}
  #allocation0 [shape = 'u32[]', space=smem, size = 0x4, offset = 0x4, fixed_abs, tag = 'smem constant byte address 0x4 - core index']
  #allocation1 [shape = 'u32[72,128]{1,0:T(1,128)}', space=vmem, size = 0x9000, scoped, tag = 'internal scratch']
  %s0 = inlined_call_operand.vmem [shape: bf16[2,1,256], index: 0, kind: input, shape index: {}]
  %s1 = inlined_call_operand.vmem [shape: bf16[2,2,256], index: 1, kind: input, shape index: {}]
  %s2 = inlined_call_operand.vmem [shape: bf16[2,2,256], index: 2, kind: input, shape index: {}]
  %s3 = inlined_call_operand.vmem [shape: f32[2,1,256], index: 3, kind: output, shape index: {}]
  %s4 = sld [smem:[#allocation0]]
  $region45: #{_lambda_.42} parent=0
    _
  %s6 = ssub.s32 1, %s4
  %s7 = scalar_select 0, %s6, %s4
  loop: start=0, step=1, limit=4
  $region2: #{_lambda_.42} parent=0 // loop_pre_header
    _
  $region3: #{_lambda_.42} parent=0 // loop_header
    %s9 = sphi 0, %s13
    %p10 = scmp.ge.s32.totalorder %s9, 4
    %s19 = sphi 0, %s21
    %s22 = sphi 0, %s19
    %s23 = sphi 0, %s22
    %s39 = sphi 0, %s23
    %s45 = sphi 0, %s47
    %s48 = sphi 0, %s45
    %s49 = sphi 0, %s48
    %s65 = sphi 0, %s49
    %s71 = sphi 0, %s73
    %s74 = sphi 0, %s71
    %s75 = sphi 0, %s74
    %s91 = sphi 0, %s75
    %s97 = sphi 0, %s99
    %s100 = sphi 0, %s97
    %s101 = sphi 0, %s100
    %s117 = sphi 0, %s101
  $region4: #{_lambda_.42} parent=0 // loop_header_branch
    %12 = sbr.rel (%p10) target = $region8
  $region5: #{_lambda_.42} parent=0 // loop_body
    %s14 = ssub.s32 %s9, 1
    %s15 = ssub.s32 %s9, 2
    %s16 = sadd.s32 %s9, 1
    %s17 = ssub.s32 %s9, %s16
    %p18 = scmp.eq.s32.totalorder %s17, 0
    %s20 = sadd.s32 %s19, 1
    %s21 = scalar_select %p18, %s19, %s20
    %p24 = pneg %p18
    %p25 = scmp.eq.s32.totalorder %s9, 1
    %p26 = por %p24, %p25
    %p27 = scmp.ne.s32.totalorder %s19, %s22
    %p28 = scmp.eq.s32.totalorder %s9, 0
    %p29 = por %p27, %p28
    %p30 = scmp.ne.s32.totalorder %s19, %s22
    %p31 = scmp.eq.s32.totalorder %s14, 1
    %p32 = por %p30, %p31
    %p33 = scmp.ne.s32.totalorder %s22, %s23
    %p34 = scmp.eq.s32.totalorder %s14, 0
    %p35 = por %p33, %p34
    %p36 = scmp.ne.s32.totalorder %s22, %s23
    %p37 = scmp.eq.s32.totalorder %s15, 1
    %p38 = por %p36, %p37
    %p40 = scmp.ne.s32.totalorder %s23, %s39
    %p41 = scmp.eq.s32.totalorder %s15, 0
    %p42 = por %p40, %p41
    %s43 = ssub.s32 %s9, %s16
    %p44 = scmp.eq.s32.totalorder %s43, 0
    %s46 = sadd.s32 %s45, 1
    %s47 = scalar_select %p44, %s45, %s46
    %p50 = pneg %p44
    %p51 = scmp.eq.s32.totalorder %s9, 1
    %p52 = por %p50, %p51
    %p53 = scmp.ne.s32.totalorder %s45, %s48
    %p54 = scmp.eq.s32.totalorder %s9, 0
    %p55 = por %p53, %p54
    %p56 = scmp.ne.s32.totalorder %s45, %s48
    %p57 = scmp.eq.s32.totalorder %s14, 1
    %p58 = por %p56, %p57
    %p59 = scmp.ne.s32.totalorder %s48, %s49
    %p60 = scmp.eq.s32.totalorder %s14, 0
    %p61 = por %p59, %p60
    %p62 = scmp.ne.s32.totalorder %s48, %s49
    %p63 = scmp.eq.s32.totalorder %s15, 1
    %p64 = por %p62, %p63
    %p66 = scmp.ne.s32.totalorder %s49, %s65
    %p67 = scmp.eq.s32.totalorder %s15, 0
    %p68 = por %p66, %p67
    %s69 = ssub.s32 %s9, %s16
    %p70 = scmp.eq.s32.totalorder %s69, 0
    %s72 = sadd.s32 %s71, 1
    %s73 = scalar_select %p70, %s71, %s72
    %p76 = pneg %p70
    %p77 = scmp.eq.s32.totalorder %s9, 1
    %p78 = por %p76, %p77
    %p79 = scmp.ne.s32.totalorder %s71, %s74
    %p80 = scmp.eq.s32.totalorder %s9, 0
    %p81 = por %p79, %p80
    %p82 = scmp.ne.s32.totalorder %s71, %s74
    %p83 = scmp.eq.s32.totalorder %s14, 1
    %p84 = por %p82, %p83
    %p85 = scmp.ne.s32.totalorder %s74, %s75
    %p86 = scmp.eq.s32.totalorder %s14, 0
    %p87 = por %p85, %p86
    %p88 = scmp.ne.s32.totalorder %s74, %s75
    %p89 = scmp.eq.s32.totalorder %s15, 1
    %p90 = por %p88, %p89
    %p92 = scmp.ne.s32.totalorder %s75, %s91
    %p93 = scmp.eq.s32.totalorder %s15, 0
    %p94 = por %p92, %p93
    %s95 = ssub.s32 %s9, %s16
    %p96 = scmp.eq.s32.totalorder %s95, 0
    %s98 = sadd.s32 %s97, 1
    %s99 = scalar_select %p96, %s97, %s98
    %p102 = pneg %p96
    %p103 = scmp.eq.s32.totalorder %s9, 1
    %p104 = por %p102, %p103
    %p105 = scmp.ne.s32.totalorder %s97, %s100
    %p106 = scmp.eq.s32.totalorder %s9, 0
    %p107 = por %p105, %p106
    %p108 = scmp.ne.s32.totalorder %s97, %s100
    %p109 = scmp.eq.s32.totalorder %s14, 1
    %p110 = por %p108, %p109
    %p111 = scmp.ne.s32.totalorder %s100, %s101
    %p112 = scmp.eq.s32.totalorder %s14, 0
    %p113 = por %p111, %p112
    %p114 = scmp.ne.s32.totalorder %s100, %s101
    %p115 = scmp.eq.s32.totalorder %s15, 1
    %p116 = por %p114, %p115
    %p118 = scmp.ne.s32.totalorder %s101, %s117
    %p119 = scmp.eq.s32.totalorder %s15, 0
    %p120 = por %p118, %p119
    %p121 = scmp.le.s32.totalorder 1, %s9
    %p122 = scmp.lt.s32.totalorder %s9, 3
    %p123 = pnand %p121, %p122
    %p124 = pneg %p123
    // Predicated region
    $region9: #{_lambda_.42} parent=5 // pred_check
      _
    $region10: #{_lambda_.42} parent=5 // pred_check_branch
      %126 = sbr.rel (%p123) target = $region12
    $region11: #{_lambda_.42} parent=5 // pred_region
      %s127 = ssub.s32 %s9, 1
    $region12: #{_lambda_.42} parent=5 // pred_fallthru
      _
    %p128 = scmp.lt.s32.totalorder %s9, 2
    // Predicated region
    $region13: #{_lambda_.42} parent=5 // pred_check
      %p129 = pneg %p128
    $region14: #{_lambda_.42} parent=5 // pred_check_branch
      %131 = sbr.rel (%p129) target = $region16
    $region15: #{_lambda_.42} parent=5 // pred_region
      // Predicated region
      $region17: #{_lambda_.42} parent=15 // pred_check
        %p132 = pneg %p29
      $region18: #{_lambda_.42} parent=15 // pred_check_branch
        %134 = sbr.rel (%p132) target = $region20
      $region19: #{_lambda_.42} parent=15 // pred_region
        %p135 = scmp.lt.s32.totalorder %s9, 1
        %s136 = scalar_select %p135, %s9, 1
        %s137 = smul.addr %s136, 2
        %s138 = scalar_lea.vmem %s0, %s137
      $region20: #{_lambda_.42} parent=15 // pred_fallthru
        _
      // Predicated region
      $region21: #{_lambda_.42} parent=15 // pred_check
        %p139 = pneg %p55
      $region22: #{_lambda_.42} parent=15 // pred_check_branch
        %141 = sbr.rel (%p139) target = $region24
      $region23: #{_lambda_.42} parent=15 // pred_region
        %p142 = scmp.lt.s32.totalorder %s9, 1
        %s143 = scalar_select %p142, %s9, 1
        %s144 = smul.addr %s143, 2
        %s145 = scalar_lea.vmem %s1, %s144
      $region24: #{_lambda_.42} parent=15 // pred_fallthru
        _
      // Predicated region
      $region25: #{_lambda_.42} parent=15 // pred_check
        %p146 = pneg %p81
      $region26: #{_lambda_.42} parent=15 // pred_check_branch
        %148 = sbr.rel (%p146) target = $region28
      $region27: #{_lambda_.42} parent=15 // pred_region
        %p149 = scmp.lt.s32.totalorder %s9, 1
        %s150 = scalar_select %p149, %s9, 1
        %s151 = smul.addr %s150, 2
        %s152 = scalar_lea.vmem %s2, %s151
      $region28: #{_lambda_.42} parent=15 // pred_fallthru
        _
    $region16: #{_lambda_.42} parent=5 // pred_fallthru
      _
    %p153 = scmp.le.s32.totalorder 1, %s9
    %p154 = scmp.lt.s32.totalorder %s9, 3
    %p155 = pnand %p153, %p154
    %p156 = pneg %p155
    // Predicated region
    $region29: #{_lambda_.42} parent=5 // pred_check
      _
    $region30: #{_lambda_.42} parent=5 // pred_check_branch
      %158 = sbr.rel (%p155) target = $region32
    $region31: #{_lambda_.42} parent=5 // pred_region
      %s159 = ssub.s32 %s9, 1
      %p160 = scmp.lt.s32.totalorder %s14, 1
      %s161 = scalar_select %p160, %s14, 1
      %s162 = smul.addr %s161, 2
      %s163 = scalar_lea.vmem %s0, %s162
      %p164 = pneg %p35
      %p165 = pneg %p32
      %p166 = scmp.lt.s32.totalorder %s14, 1
      %s167 = scalar_select %p166, %s14, 1
      %s168 = smul.addr %s167, 2
      %s169 = scalar_lea.vmem %s1, %s168
      %p170 = pneg %p61
      %p171 = pneg %p58
      %p172 = scmp.lt.s32.totalorder %s14, 1
      %s173 = scalar_select %p172, %s14, 1
      %s174 = smul.addr %s173, 2
      %s175 = scalar_lea.vmem %s2, %s174
      %p176 = pneg %p87
      %p177 = pneg %p84
      %p178 = pneg %p113
      %p179 = pneg %p110
      %p180 = scmp.lt.s32.totalorder %s14, 1
      %s181 = scalar_select %p180, %s14, 1
      %s182 = smul.addr %s181, 2
      %s183 = scalar_lea.vmem %s3, %s182
      %p184 = scmp.lt.s32.totalorder %s14, 1
      %s185 = scalar_select %p184, %s14, 1
      %s186 = smul.addr %s185, 2
      %s187 = scalar_lea.vmem %s0, %s186
      %p188 = scmp.lt.s32.totalorder %s14, 1
      %s189 = scalar_select %p188, %s14, 1
      %s190 = smul.addr %s189, 2
      %s191 = scalar_lea.vmem %s1, %s190
      %p192 = scmp.lt.s32.totalorder %s14, 1
      %s193 = scalar_select %p192, %s14, 1
      %s194 = smul.addr %s193, 2
      %s195 = scalar_lea.vmem %s2, %s194
      %p196 = scmp.lt.s32.totalorder %s14, 1
      %s197 = scalar_select %p196, %s14, 1
      %s198 = smul.addr %s197, 2
      %s199 = scalar_lea.vmem %s3, %s198
      %v200 = vld [vmem:[%s187] sm:$0x3]
      %v201 = vunpack.c.l.bf16 %v200
      %v202 = vld [vmem:[%s191] sm:$0x3]
      %v203 = vunpack.c.l.bf16 %v202
      %v204 = vld [vmem:[%s195] sm:$0x3]
      %v205 = vunpack.c.l.bf16 %v204
      %vm206 = vcmask 523264
      %v208 = vsel %vm206, %v201, 0
      %v211 = vsel %vm206, %v203, 0
      %213 = vmatpush.xpose.msra.mxu0 0.0
      %214 = vmatpush.xpose.msra.mxu0 0.0
      %215 = vmatpush.xpose.msra.mxu0 0.0
      %216 = vmatpush.xpose.msra.mxu0 0.0
      %217 = vmatpush.xpose.msra.mxu0 0.0
      %218 = vmatpush.xpose.msra.mxu0 0.0
      %219 = vmatpush.xpose.msra.mxu0 0.0
      %220 = vmatpush.xpose.msra.mxu0 0.0
      %221 = vmatpush.xpose.msra.mxu0 0.0
      %222 = vmatpush.xpose.msra.mxu0 0.0
      %223 = vmatpush.xpose.msra.mxu0 0.0
      %224 = vmatpush.xpose.msra.mxu0 0.0
      %225 = vmatpush.xpose.msra.mxu0 0.0
      %226 = vmatpush.xpose.msra.mxu0 0.0
      %227 = vmatpush.xpose.msra.mxu0 0.0
      %228 = vmatpush.xpose.msra.mxu0 %v211
      %229 = vmatmul.f32.gmra.mxu0 %v208
      %v230 = vpop.f32.mrf.mxu0
      %v231 = vadd.f32 0.0, %v230
      %232 = vdwg.mxu0
      %v233 = vmul.f32 %v231, 0.125
      %vm234 = vcmask 8192
      %v235 = vsel %vm234, %v233, -inf
      %236 = vmax.xlane.f32.xlu0 %v235
      %v237 = vpop.xlane.xlu0 %236
      %v238 = vsub.f32 %v233, %v237
      %v239 = vmul.f32 %v238, 1.442695
      %v240 = vpow.pop %v239
      %v241 = vsel %vm234, %v240, 0.0
      %242 = vadd.xlane.f32.xlu0 %v241
      %v243 = vpop.xlane.xlu0 %242
      %v244 = vrcp.pop %v243
      %v245 = vmul.f32 %v240, %v244
      %vm246 = vcmask 15360
      %v248 = vsel %vm246, %v245, 0
      %vm250 = vcmask 1041408
      %v252 = vsel %vm250, %v205, 0
      %254 = vmatpush.msra.mxu0 0.0
      %255 = vmatpush.msra.mxu0 0.0
      %256 = vmatpush.msra.mxu0 0.0
      %257 = vmatpush.msra.mxu0 0.0
      %258 = vmatpush.msra.mxu0 0.0
      %259 = vmatpush.msra.mxu0 0.0
      %260 = vmatpush.msra.mxu0 0.0
      %261 = vmatpush.msra.mxu0 0.0
      %262 = vmatpush.msra.mxu0 0.0
      %263 = vmatpush.msra.mxu0 0.0
      %264 = vmatpush.msra.mxu0 0.0
      %265 = vmatpush.msra.mxu0 0.0
      %266 = vmatpush.msra.mxu0 0.0
      %267 = vmatpush.msra.mxu0 0.0
      %268 = vmatpush.msra.mxu0 0.0
      %269 = vmatpush.msra.mxu0 %v252
      %270 = vmatmul.f32.gmra.mxu0 %v248
      %v271 = vpop.f32.mrf.mxu0
      %v272 = vadd.f32 0.0, %v271
      %273 = vdwg.mxu0
      %v274 = vlaneseq
      %vm275 = vcmp.ge.s32.totalorder %v274, 0
      %vm276 = vcmp.lt.s32.totalorder %v274, 64
      %vm277 = vmand %vm275, %vm276
      %278 = vst.msk [vmem:[%s199] sm:$0x1] %vm277, %v272
      %v279 = vperm.slane %v201, 0
      %280 = vrot.lane.b32.xlu0 %v279, 64
      %v281 = vpop.permute.xlu0 %280
      %282 = vst [vmem:[#allocation1] ss:$4 sm:$0xff] %v203
      %v283 = vld.sshfl [vmem:[#allocation1] sm:$0xff pattern:$0x73625140]
      %284 = vrot.lane.b32.xlu0 %v283, 64
      %v285 = vpop.permute.xlu0 %284
      %v286 = vsel %vm206, %v281, 0
      %v288 = vsel %vm206, %v285, 0
      %290 = vmatpush.xpose.msra.mxu0 0.0
      %291 = vmatpush.xpose.msra.mxu0 0.0
      %292 = vmatpush.xpose.msra.mxu0 0.0
      %293 = vmatpush.xpose.msra.mxu0 0.0
      %294 = vmatpush.xpose.msra.mxu0 0.0
      %295 = vmatpush.xpose.msra.mxu0 0.0
      %296 = vmatpush.xpose.msra.mxu0 0.0
      %297 = vmatpush.xpose.msra.mxu0 0.0
      %298 = vmatpush.xpose.msra.mxu0 0.0
      %299 = vmatpush.xpose.msra.mxu0 0.0
      %300 = vmatpush.xpose.msra.mxu0 0.0
      %301 = vmatpush.xpose.msra.mxu0 0.0
      %302 = vmatpush.xpose.msra.mxu0 0.0
      %303 = vmatpush.xpose.msra.mxu0 0.0
      %304 = vmatpush.xpose.msra.mxu0 0.0
      %305 = vmatpush.xpose.msra.mxu0 %v288
      %306 = vmatmul.f32.gmra.mxu0 %v286
      %v307 = vpop.f32.mrf.mxu0
      %v308 = vadd.f32 0.0, %v307
      %309 = vdwg.mxu0
      %v310 = vmul.f32 %v308, 0.125
      %v311 = vsel %vm234, %v310, -inf
      %312 = vmax.xlane.f32.xlu0 %v311
      %v313 = vpop.xlane.xlu0 %312
      %v314 = vsub.f32 %v310, %v313
      %v315 = vmul.f32 %v314, 1.442695
      %v316 = vpow.pop %v315
      %v317 = vsel %vm234, %v316, 0.0
      %318 = vadd.xlane.f32.xlu0 %v317
      %v319 = vpop.xlane.xlu0 %318
      %v320 = vrcp.pop %v319
      %v321 = vmul.f32 %v316, %v320
      %322 = vst [vmem:[#allocation1] ss:$4 sm:$0xff] %v205
      %v323 = vld.sshfl [vmem:[#allocation1] sm:$0xff pattern:$0x73625140]
      %324 = vrot.lane.b32.xlu0 %v323, 64
      %v325 = vpop.permute.xlu0 %324
      %v327 = vsel %vm246, %v321, 0
      %v329 = vsel %vm250, %v325, 0
      %331 = vmatpush.msra.mxu0 0.0
      %332 = vmatpush.msra.mxu0 0.0
      %333 = vmatpush.msra.mxu0 0.0
      %334 = vmatpush.msra.mxu0 0.0
      %335 = vmatpush.msra.mxu0 0.0
      %336 = vmatpush.msra.mxu0 0.0
      %337 = vmatpush.msra.mxu0 0.0
      %338 = vmatpush.msra.mxu0 0.0
      %339 = vmatpush.msra.mxu0 0.0
      %340 = vmatpush.msra.mxu0 0.0
      %341 = vmatpush.msra.mxu0 0.0
      %342 = vmatpush.msra.mxu0 0.0
      %343 = vmatpush.msra.mxu0 0.0
      %344 = vmatpush.msra.mxu0 0.0
      %345 = vmatpush.msra.mxu0 0.0
      %346 = vmatpush.msra.mxu0 %v329
      %347 = vmatmul.f32.gmra.mxu0 %v327
      %v348 = vpop.f32.mrf.mxu0
      %v349 = vadd.f32 0.0, %v348
      %350 = vdwg.mxu0
      %352 = vrot.lane.b32.xlu0 %v349, 64
      %v353 = vpop.permute.xlu0 %352
      %vm355 = vcmp.ge.s32.totalorder %v274, 64
      %vm356 = vcmp.lt.s32.totalorder %v274, 128
      %vm357 = vmand %vm355, %vm356
      %358 = vst.msk [vmem:[%s199] sm:$0x1] %vm357, %v353
      %v359 = vperm.slane %v201, 2
      %360 = vst [vmem:[#allocation1] ss:$4 sm:$0xff] %v203
      %v361 = vld.sshfl [vmem:[#allocation1 + $0x8] sm:$0xff pattern:$0x73625140]
      %v362 = vsel %vm206, %v359, 0
      %v364 = vsel %vm206, %v361, 0
      %366 = vmatpush.xpose.msra.mxu0 0.0
      %367 = vmatpush.xpose.msra.mxu0 0.0
      %368 = vmatpush.xpose.msra.mxu0 0.0
      %369 = vmatpush.xpose.msra.mxu0 0.0
      %370 = vmatpush.xpose.msra.mxu0 0.0
      %371 = vmatpush.xpose.msra.mxu0 0.0
      %372 = vmatpush.xpose.msra.mxu0 0.0
      %373 = vmatpush.xpose.msra.mxu0 0.0
      %374 = vmatpush.xpose.msra.mxu0 0.0
      %375 = vmatpush.xpose.msra.mxu0 0.0
      %376 = vmatpush.xpose.msra.mxu0 0.0
      %377 = vmatpush.xpose.msra.mxu0 0.0
      %378 = vmatpush.xpose.msra.mxu0 0.0
      %379 = vmatpush.xpose.msra.mxu0 0.0
      %380 = vmatpush.xpose.msra.mxu0 0.0
      %381 = vmatpush.xpose.msra.mxu0 %v364
      %382 = vmatmul.f32.gmra.mxu0 %v362
      %v383 = vpop.f32.mrf.mxu0
      %v384 = vadd.f32 0.0, %v383
      %385 = vdwg.mxu0
      %v386 = vmul.f32 %v384, 0.125
      %v387 = vsel %vm234, %v386, -inf
      %388 = vmax.xlane.f32.xlu0 %v387
      %v389 = vpop.xlane.xlu0 %388
      %v390 = vsub.f32 %v386, %v389
      %v391 = vmul.f32 %v390, 1.442695
      %v392 = vpow.pop %v391
      %v393 = vsel %vm234, %v392, 0.0
      %394 = vadd.xlane.f32.xlu0 %v393
      %v395 = vpop.xlane.xlu0 %394
      %v396 = vrcp.pop %v395
      %v397 = vmul.f32 %v392, %v396
      %398 = vst [vmem:[#allocation1] ss:$4 sm:$0xff] %v205
      %v399 = vld.sshfl [vmem:[#allocation1 + $0x8] sm:$0xff pattern:$0x73625140]
      %v401 = vsel %vm246, %v397, 0
      %v403 = vsel %vm250, %v399, 0
      %405 = vmatpush.msra.mxu0 0.0
      %406 = vmatpush.msra.mxu0 0.0
      %407 = vmatpush.msra.mxu0 0.0
      %408 = vmatpush.msra.mxu0 0.0
      %409 = vmatpush.msra.mxu0 0.0
      %410 = vmatpush.msra.mxu0 0.0
      %411 = vmatpush.msra.mxu0 0.0
      %412 = vmatpush.msra.mxu0 0.0
      %413 = vmatpush.msra.mxu0 0.0
      %414 = vmatpush.msra.mxu0 0.0
      %415 = vmatpush.msra.mxu0 0.0
      %416 = vmatpush.msra.mxu0 0.0
      %417 = vmatpush.msra.mxu0 0.0
      %418 = vmatpush.msra.mxu0 0.0
      %419 = vmatpush.msra.mxu0 0.0
      %420 = vmatpush.msra.mxu0 %v403
      %421 = vmatmul.f32.gmra.mxu0 %v401
      %v422 = vpop.f32.mrf.mxu0
      %v423 = vadd.f32 0.0, %v422
      %424 = vdwg.mxu0
      %425 = vst.msk [vmem:[%s199 + $0x1] sm:$0x1] %vm277, %v423
      %426 = vrot.lane.b32.xlu0 %v359, 64
      %v427 = vpop.permute.xlu0 %426
      %428 = vst [vmem:[#allocation1] ss:$4 sm:$0xff] %v203
      %v429 = vld.sshfl [vmem:[#allocation1 + $0x8] sm:$0xff pattern:$0x73625140]
      %430 = vrot.lane.b32.xlu0 %v429, 64
      %v431 = vpop.permute.xlu0 %430
      %v432 = vsel %vm206, %v427, 0
      %v434 = vsel %vm206, %v431, 0
      %436 = vmatpush.xpose.msra.mxu0 0.0
      %437 = vmatpush.xpose.msra.mxu0 0.0
      %438 = vmatpush.xpose.msra.mxu0 0.0
      %439 = vmatpush.xpose.msra.mxu0 0.0
      %440 = vmatpush.xpose.msra.mxu0 0.0
      %441 = vmatpush.xpose.msra.mxu0 0.0
      %442 = vmatpush.xpose.msra.mxu0 0.0
      %443 = vmatpush.xpose.msra.mxu0 0.0
      %444 = vmatpush.xpose.msra.mxu0 0.0
      %445 = vmatpush.xpose.msra.mxu0 0.0
      %446 = vmatpush.xpose.msra.mxu0 0.0
      %447 = vmatpush.xpose.msra.mxu0 0.0
      %448 = vmatpush.xpose.msra.mxu0 0.0
      %449 = vmatpush.xpose.msra.mxu0 0.0
      %450 = vmatpush.xpose.msra.mxu0 0.0
      %451 = vmatpush.xpose.msra.mxu0 %v434
      %452 = vmatmul.f32.gmra.mxu0 %v432
      %v453 = vpop.f32.mrf.mxu0
      %v454 = vadd.f32 0.0, %v453
      %455 = vdwg.mxu0
      %v456 = vmul.f32 %v454, 0.125
      %v457 = vsel %vm234, %v456, -inf
      %458 = vmax.xlane.f32.xlu0 %v457
      %v459 = vpop.xlane.xlu0 %458
      %v460 = vsub.f32 %v456, %v459
      %v461 = vmul.f32 %v460, 1.442695
      %v462 = vpow.pop %v461
      %v463 = vsel %vm234, %v462, 0.0
      %464 = vadd.xlane.f32.xlu0 %v463
      %v465 = vpop.xlane.xlu0 %464
      %v466 = vrcp.pop %v465
      %v467 = vmul.f32 %v462, %v466
      %468 = vst [vmem:[#allocation1] ss:$4 sm:$0xff] %v205
      %v469 = vld.sshfl [vmem:[#allocation1 + $0x8] sm:$0xff pattern:$0x73625140]
      %470 = vrot.lane.b32.xlu0 %v469, 64
      %v471 = vpop.permute.xlu0 %470
      %v473 = vsel %vm246, %v467, 0
      %v475 = vsel %vm250, %v471, 0
      %477 = vmatpush.msra.mxu0 0.0
      %478 = vmatpush.msra.mxu0 0.0
      %479 = vmatpush.msra.mxu0 0.0
      %480 = vmatpush.msra.mxu0 0.0
      %481 = vmatpush.msra.mxu0 0.0
      %482 = vmatpush.msra.mxu0 0.0
      %483 = vmatpush.msra.mxu0 0.0
      %484 = vmatpush.msra.mxu0 0.0
      %485 = vmatpush.msra.mxu0 0.0
      %486 = vmatpush.msra.mxu0 0.0
      %487 = vmatpush.msra.mxu0 0.0
      %488 = vmatpush.msra.mxu0 0.0
      %489 = vmatpush.msra.mxu0 0.0
      %490 = vmatpush.msra.mxu0 0.0
      %491 = vmatpush.msra.mxu0 0.0
      %492 = vmatpush.msra.mxu0 %v475
      %493 = vmatmul.f32.gmra.mxu0 %v473
      %v494 = vpop.f32.mrf.mxu0
      %v495 = vadd.f32 0.0, %v494
      %496 = vdwg.mxu0
      %498 = vrot.lane.b32.xlu0 %v495, 64
      %v499 = vpop.permute.xlu0 %498
      %501 = vst.msk [vmem:[%s199 + $0x1] sm:$0x1] %vm357, %v499
      %p502 = scmp.lt.s32.totalorder %s14, 1
      %s503 = scalar_select %p502, %s14, 1
      %s504 = smul.addr %s503, 2
      %s505 = scalar_lea.vmem %s3, %s504
      // Predicated region
      $region33: #{_lambda_.42} parent=31 // pred_check
        %p506 = pneg %p110
      $region34: #{_lambda_.42} parent=31 // pred_check_branch
        %508 = sbr.rel (%p506) target = $region36
      $region35: #{_lambda_.42} parent=31 // pred_region
        _
      $region36: #{_lambda_.42} parent=31 // pred_fallthru
        _
    $region32: #{_lambda_.42} parent=5 // pred_fallthru
      _
    %p509 = scmp.le.s32.totalorder 2, %s9
    // Predicated region
    $region37: #{_lambda_.42} parent=5 // pred_check
      %p510 = pneg %p509
    $region38: #{_lambda_.42} parent=5 // pred_check_branch
      %512 = sbr.rel (%p510) target = $region40
    $region39: #{_lambda_.42} parent=5 // pred_region
      %s513 = ssub.s32 %s9, 2
      // Predicated region
      $region41: #{_lambda_.42} parent=39 // pred_check
        %p514 = pneg %p116
      $region42: #{_lambda_.42} parent=39 // pred_check_branch
        %516 = sbr.rel (%p514) target = $region44
      $region43: #{_lambda_.42} parent=39 // pred_region
        %p517 = scmp.lt.s32.totalorder %s15, 1
        %s518 = scalar_select %p517, %s15, 1
        %s519 = smul.addr %s518, 2
        %s520 = scalar_lea.vmem %s3, %s519
      $region44: #{_lambda_.42} parent=39 // pred_fallthru
        _
    $region40: #{_lambda_.42} parent=5 // pred_fallthru
      _
  $region6: #{_lambda_.42} parent=0 // loop_footer
    %s13 = sadd.s32 1, %s9
  $region7: #{_lambda_.42} parent=0 // loop_footer_branch
    %8 = sbr.rel target = $region3
  $region8: #{_lambda_.42} parent=0 // loop_exit
    _

// kernel: _lambda_.43
$region0: #{_lambda_.43}
  #allocation0 [shape = 'u32[]', space=smem, size = 0x4, offset = 0x4, fixed_abs, tag = 'smem constant byte address 0x4 - core index']
  #allocation1 [shape = 'u32[72,128]{1,0:T(1,128)}', space=vmem, size = 0x9000, scoped, tag = 'internal scratch']
  #allocation2 [shape = 'f32[8,128]{1,0:T(8,128)}', space=vmem, size = 0x1000, scoped, tag = 'scratch operand']
  %s0 = inlined_call_operand.vmem [shape: bf16[8,256], index: 0, kind: input, shape index: {}]
  %s1 = inlined_call_operand.vmem [shape: bf16[256,128], index: 1, kind: input, shape index: {}]
  %s2 = inlined_call_operand.vmem [shape: f32[1,128], index: 2, kind: input, shape index: {}]
  %s3 = inlined_call_operand.vmem [shape: f32[1,128], index: 3, kind: input, shape index: {}]
  %s4 = inlined_call_operand.vmem [shape: f32[8,128], index: 4, kind: output, shape index: {}]
  %s5 = sld [smem:[#allocation0]]
  $region34: #{_lambda_.43} parent=0
    _
  %s7 = ssub.s32 1, %s5
  %s8 = scalar_select 0, %s7, %s5
  // Predicated region
  $region2: #{_lambda_.43} parent=0 // pred_check
    _
  $region3: #{_lambda_.43} parent=0 // pred_check_branch
    %10 = sbr.rel (0) target = $region5
  $region4: #{_lambda_.43} parent=0 // pred_region
    _
  $region5: #{_lambda_.43} parent=0 // pred_fallthru
    _
  // Predicated region
  $region6: #{_lambda_.43} parent=0 // pred_check
    _
  $region7: #{_lambda_.43} parent=0 // pred_check_branch
    %12 = sbr.rel (0) target = $region9
  $region8: #{_lambda_.43} parent=0 // pred_region
    _
  $region9: #{_lambda_.43} parent=0 // pred_fallthru
    _
  // Predicated region
  $region10: #{_lambda_.43} parent=0 // pred_check
    _
  $region11: #{_lambda_.43} parent=0 // pred_check_branch
    %14 = sbr.rel (0) target = $region13
  $region12: #{_lambda_.43} parent=0 // pred_region
    _
  $region13: #{_lambda_.43} parent=0 // pred_fallthru
    _
  // Predicated region
  $region14: #{_lambda_.43} parent=0 // pred_check
    _
  $region15: #{_lambda_.43} parent=0 // pred_check_branch
    %16 = sbr.rel (0) target = $region17
  $region16: #{_lambda_.43} parent=0 // pred_region
    _
  $region17: #{_lambda_.43} parent=0 // pred_fallthru
    _
  %p17 = scmp.eq.s32.totalorder 0, 0
  // Predicated region
  $region18: #{_lambda_.43} parent=0 // pred_check
    %p18 = pneg %p17
  $region19: #{_lambda_.43} parent=0 // pred_check_branch
    %20 = sbr.rel (%p18) target = $region21
  $region20: #{_lambda_.43} parent=0 // pred_region
    %21 = vst [vmem:[#allocation2] sm:$0xff] 0.0
  $region21: #{_lambda_.43} parent=0 // pred_fallthru
    _
  %v22 = vld [vmem:[#allocation2] sm:$0xff]
  %v23 = vld [vmem:[%s0] sm:$0xff]
  %v24 = vld [vmem:[%s1] sm:$0xf]
  %v25 = vld [vmem:[%s1 + $0x4] sm:$0xf]
  %v26 = vld [vmem:[%s1 + $0x8] sm:$0xf]
  %v27 = vld [vmem:[%s1 + $0xc] sm:$0xf]
  %v28 = vld [vmem:[%s1 + $0x10] sm:$0xf]
  %v29 = vld [vmem:[%s1 + $0x14] sm:$0xf]
  %v30 = vld [vmem:[%s1 + $0x18] sm:$0xf]
  %v31 = vld [vmem:[%s1 + $0x1c] sm:$0xf]
  %v32 = vld [vmem:[%s1 + $0x20] sm:$0xf]
  %v33 = vld [vmem:[%s1 + $0x24] sm:$0xf]
  %v34 = vld [vmem:[%s1 + $0x28] sm:$0xf]
  %v35 = vld [vmem:[%s1 + $0x2c] sm:$0xf]
  %v36 = vld [vmem:[%s1 + $0x30] sm:$0xf]
  %v37 = vld [vmem:[%s1 + $0x34] sm:$0xf]
  %v38 = vld [vmem:[%s1 + $0x38] sm:$0xf]
  %v39 = vld [vmem:[%s1 + $0x3c] sm:$0xf]
  %v40 = vld [vmem:[%s1 + $0x40] sm:$0xf]
  %v41 = vld [vmem:[%s1 + $0x44] sm:$0xf]
  %v42 = vld [vmem:[%s1 + $0x48] sm:$0xf]
  %v43 = vld [vmem:[%s1 + $0x4c] sm:$0xf]
  %v44 = vld [vmem:[%s1 + $0x50] sm:$0xf]
  %v45 = vld [vmem:[%s1 + $0x54] sm:$0xf]
  %v46 = vld [vmem:[%s1 + $0x58] sm:$0xf]
  %v47 = vld [vmem:[%s1 + $0x5c] sm:$0xf]
  %v48 = vld [vmem:[%s1 + $0x60] sm:$0xf]
  %v49 = vld [vmem:[%s1 + $0x64] sm:$0xf]
  %v50 = vld [vmem:[%s1 + $0x68] sm:$0xf]
  %v51 = vld [vmem:[%s1 + $0x6c] sm:$0xf]
  %v52 = vld [vmem:[%s1 + $0x70] sm:$0xf]
  %v53 = vld [vmem:[%s1 + $0x74] sm:$0xf]
  %v54 = vld [vmem:[%s1 + $0x78] sm:$0xf]
  %v55 = vld [vmem:[%s1 + $0x7c] sm:$0xf]
  %v57 = vunpack.c.l.b16 %v23
  %v58 = vunpack.c.h.b16 %v23
  %v59 = vpack.c.b16 %v57, %v57
  %v60 = vpack.c.b16 %v58, %v58
  %v95 = vunpack.c.l.b16 %v24
  %v96 = vunpack.c.l.b16 %v25
  %v97 = vunpack.c.l.b16 %v26
  %v98 = vunpack.c.l.b16 %v27
  %v99 = vunpack.c.l.b16 %v28
  %v100 = vunpack.c.l.b16 %v29
  %v101 = vunpack.c.l.b16 %v30
  %v102 = vunpack.c.l.b16 %v31
  %v103 = vunpack.c.l.b16 %v32
  %v104 = vunpack.c.l.b16 %v33
  %v105 = vunpack.c.l.b16 %v34
  %v106 = vunpack.c.l.b16 %v35
  %v107 = vunpack.c.l.b16 %v36
  %v108 = vunpack.c.l.b16 %v37
  %v109 = vunpack.c.l.b16 %v38
  %v110 = vunpack.c.l.b16 %v39
  %v111 = vunpack.c.l.b16 %v40
  %v112 = vunpack.c.l.b16 %v41
  %v113 = vunpack.c.l.b16 %v42
  %v114 = vunpack.c.l.b16 %v43
  %v115 = vunpack.c.l.b16 %v44
  %v116 = vunpack.c.l.b16 %v45
  %v117 = vunpack.c.l.b16 %v46
  %v118 = vunpack.c.l.b16 %v47
  %v119 = vunpack.c.l.b16 %v48
  %v120 = vunpack.c.l.b16 %v49
  %v121 = vunpack.c.l.b16 %v50
  %v122 = vunpack.c.l.b16 %v51
  %v123 = vunpack.c.l.b16 %v52
  %v124 = vunpack.c.l.b16 %v53
  %v125 = vunpack.c.l.b16 %v54
  %v126 = vunpack.c.l.b16 %v55
  %v127 = vpack.c.b16 %v96, %v95
  %v128 = vpack.c.b16 %v98, %v97
  %v129 = vpack.c.b16 %v100, %v99
  %v130 = vpack.c.b16 %v102, %v101
  %v131 = vpack.c.b16 %v104, %v103
  %v132 = vpack.c.b16 %v106, %v105
  %v133 = vpack.c.b16 %v108, %v107
  %v134 = vpack.c.b16 %v110, %v109
  %v135 = vpack.c.b16 %v112, %v111
  %v136 = vpack.c.b16 %v114, %v113
  %v137 = vpack.c.b16 %v116, %v115
  %v138 = vpack.c.b16 %v118, %v117
  %v139 = vpack.c.b16 %v120, %v119
  %v140 = vpack.c.b16 %v122, %v121
  %v141 = vpack.c.b16 %v124, %v123
  %v142 = vpack.c.b16 %v126, %v125
  %159 = vmatpush.bf16.msra.mxu0 %v134
  %160 = vmatpush.bf16.msra.mxu0 %v133
  %161 = vmatpush.bf16.msra.mxu0 %v132
  %162 = vmatpush.bf16.msra.mxu0 %v131
  %163 = vmatpush.bf16.msra.mxu0 %v130
  %164 = vmatpush.bf16.msra.mxu0 %v129
  %165 = vmatpush.bf16.msra.mxu0 %v128
  %166 = vmatpush.bf16.msra.mxu0 %v127
  %167 = vmatmul.bf16.gmra.mxu0 %v59
  %v168 = vpop.f32.mrf.mxu0
  %v169 = vadd.f32 0.0, %v168
  %v170 = vpop.f32.mrf.mxu0
  %171 = vdwg.mxu0
  %172 = vmatpush.bf16.msra.mxu0 %v142
  %173 = vmatpush.bf16.msra.mxu0 %v141
  %174 = vmatpush.bf16.msra.mxu0 %v140
  %175 = vmatpush.bf16.msra.mxu0 %v139
  %176 = vmatpush.bf16.msra.mxu0 %v138
  %177 = vmatpush.bf16.msra.mxu0 %v137
  %178 = vmatpush.bf16.msra.mxu0 %v136
  %179 = vmatpush.bf16.msra.mxu0 %v135
  %180 = vmatmul.bf16.gmra.mxu0 %v60
  %v181 = vpop.f32.mrf.mxu0
  %v182 = vadd.f32 %v169, %v181
  %v183 = vpop.f32.mrf.mxu0
  %184 = vdwg.mxu0
  %v185 = vadd.f32 %v22, %v182
  %186 = vst [vmem:[#allocation2] sm:$0xff] %v185
  // Predicated region
  $region22: #{_lambda_.43} parent=0 // pred_check
    %p187 = pneg %p17
  $region23: #{_lambda_.43} parent=0 // pred_check_branch
    %189 = sbr.rel (%p187) target = $region25
  $region24: #{_lambda_.43} parent=0 // pred_region
    %v190 = vld [vmem:[#allocation2] sm:$0xff]
    %v191 = vld [vmem:[%s2] sm:$0x1]
    %v193 = vperm.slane %v191, 0
    %v195 = vmul.f32 %v190, %v193
    %v196 = vld [vmem:[%s3] sm:$0x1]
    %v198 = vperm.slane %v196, 0
    %v200 = vadd.f32 %v195, %v198
    %201 = vst [vmem:[%s4] sm:$0xff] %v200
  $region25: #{_lambda_.43} parent=0 // pred_fallthru
    _
  // Predicated region
  $region26: #{_lambda_.43} parent=0 // pred_check
    _
  $region27: #{_lambda_.43} parent=0 // pred_check_branch
    %203 = sbr.rel (0) target = $region29
  $region28: #{_lambda_.43} parent=0 // pred_region
    _
  $region29: #{_lambda_.43} parent=0 // pred_fallthru
    _
  // Predicated region
  $region30: #{_lambda_.43} parent=0 // pred_check
    _
  $region31: #{_lambda_.43} parent=0 // pred_check_branch
    %205 = sbr.rel (0) target = $region33
  $region32: #{_lambda_.43} parent=0 // pred_region
    _
  $region33: #{_lambda_.43} parent=0 // pred_fallthru
    _

</llo_original>
